<compile_context>
chip_gen: v5e
topology: v5e:2x2
jax: 0.10.0
libtpu: 0.0.40
codegen_flags: <defaults>
</compile_context>

<pallas_src>
import functools
import numpy as np
import jax
import jax.numpy as jnp
from jax.experimental import pallas as pl
from jax.experimental.pallas import tpu as pltpu


# -----------------------------------------------------------------------------
# host-side prepare_trees (glue): nested-tuple trees -> (flat, indexes)
# -----------------------------------------------------------------------------
def features(x):
    return x[0]


def left_child(x):
    return x[1] if len(x) == 3 else None


def right_child(x):
    return x[2] if len(x) == 3 else None


def _is_leaf(t):
    return left_child(t) is None


def _flatten(t):
    if _is_leaf(t):
        return [np.asarray(features(t))]
    return ([np.asarray(features(t))]
            + _flatten(left_child(t))
            + _flatten(right_child(t)))


def _indexes(t, idx=1):
    # preorder (self, left, right) 1-based indices, 0 == null node
    if _is_leaf(t):
        return [(idx, 0, 0)], idx + 1
    left_tr, nxt = _indexes(left_child(t), idx + 1)
    right_tr, nxt2 = _indexes(right_child(t), nxt)
    return [(idx, idx + 1, nxt)] + left_tr + right_tr, nxt2


def prepare_trees_np(trees, in_channels):
    feats = [np.stack(_flatten(t)).astype(np.float32) for t in trees]
    idxs = [np.asarray(_indexes(t)[0], dtype=np.int32) for t in trees]
    B = len(trees)
    n_nodes = [f.shape[0] for f in feats]
    max_n = max(n_nodes)
    M = max_n + 1                       # column 0 = null node
    flat = np.zeros((B, in_channels, M), np.float32)
    indexes = np.zeros((B, max_n, 3), np.int32)
    for b in range(B):
        n = n_nodes[b]
        flat[b, :, 1:n + 1] = feats[b].T
        indexes[b, :n] = idxs[b]
    return flat, indexes, n_nodes


def lane_pad(m_real):
    # >= m_real + 3 so the circular rolls of the 7-tap spatial conv only wrap
    # through guaranteed-zero lanes; round up to a multiple of 128 (lane-dense).
    return ((m_real + 3 + 127) // 128) * 128


def make_onehots_cat(indexes, m_pad):
    # single slab [left | right] along lanes: oh[b, m, p+1]      = 1 iff left(p)  == m
    #                                         oh[b, m, m_pad+p+1] = 1 iff right(p) == m
    # (the self gather is the identity / null-column blend and is done with masks).
    B, N, _ = indexes.shape
    oh = np.zeros((B, m_pad, 2 * m_pad), np.float32)
    for b in range(B):
        for p in range(N):
            oh[b, indexes[b, p, 1], p + 1] = 1.0
            oh[b, indexes[b, p, 2], m_pad + p + 1] = 1.0
    return oh


def make_masks(n_nodes, n_max, m_pad):
    # row 0: real-node columns (1..n_real); row 1: batch-pad columns (n_real+1..n_max)
    B = len(n_nodes)
    mk = np.zeros((B, 2, m_pad), np.float32)
    for b in range(B):
        mk[b, 0, 1:n_nodes[b] + 1] = 1.0
        mk[b, 1, n_nodes[b] + 1:n_max + 1] = 1.0
    return mk


# reference-only helpers (un-padded M, 3-way one-hot, band matrix)
def make_onehots3(indexes, M):
    B, N, _ = indexes.shape
    oh = np.zeros((B, 3, M, M), np.float32)
    for b in range(B):
        for p in range(N):
            for k in range(3):
                oh[b, k, indexes[b, p, k], p + 1] = 1.0
    return oh


def make_band(sw, M):
    # PyTorch Conv1d(2,1,k=7,pad=3) (cross-correlation): out[p] = sum_j w[c,j]*in[c,p+j-3]
    band = np.zeros((2, M, M), np.float32)
    for c in range(2):
        for m in range(M):
            for p in range(M):
                j = m - p + 3
                if 0 <= j < 7:
                    band[c, m, p] = sw[0, c, j]
    return band


# -----------------------------------------------------------------------------
# fused Pallas kernel: 3x(TreeConv+CBAM+LN[+LeakyReLU]) -> DynamicPooling
# -----------------------------------------------------------------------------
def _satcnn_kernel(*refs, M_real, TB, layer_cfg):
    dot = functools.partial(jnp.dot, preferred_element_type=jnp.float32)

    data_ref, oh_ref, mask_ref, sw_ref = refs[0:4]
    out_ref = refs[-1]
    layer_refs = refs[4:-1]                       # 4 refs per tree-conv block

    Mp = data_ref.shape[-1]
    col_valid = jax.lax.broadcasted_iota(jnp.int32, (1, Mp), 1) < M_real
    two = jax.lax.broadcasted_iota(jnp.int32, (1, 2), 1)

    for t in range(TB):                           # static (trace-time) tree loop
        x = data_ref[t]                           # (C_in, Mp) f32
        oh = oh_ref[t]                            # (Mp, 2*Mp) bf16: [left | right]
        oh_l = oh[:, :Mp]                         # lane-aligned static slices
        oh_r = oh[:, Mp:]
        mk = mask_ref[t]                          # (2, Mp)
        m_real = mk[0:1, :]                       # real-node columns (1..n_real)
        m_pad = mk[1:2, :]                        # batch-pad columns (n_real+1..n_max)
        m_bias = m_real + m_pad                   # all conv output columns get bias

        for li, (apply_act, weight_first) in enumerate(layer_cfg):
            wcat, bias, ca1, ca2 = layer_refs[4 * li:4 * li + 4]

            # --- BinaryTreeConv: Conv1d(k=3, stride=3) over (self, left, right) ---
            # self-gather == identity on real columns / null column elsewhere -> mask
            # blend; left/right gathers are bf16 x bf16 MXU matmuls (f32 accumulate).
            if weight_first:                      # (W_k x) gathered; one stacked W
                co = wcat.shape[0] // 3
                y = dot(wcat[...], x)             # (3*co, Mp): single MXU launch
                y_s = y[0:co]
                y_l = y[co:2 * co].astype(jnp.bfloat16)
                y_r = y[2 * co:3 * co].astype(jnp.bfloat16)
                conv = (y_s * m_real + y_s[:, 0:1] * m_pad
                        + dot(y_l, oh_l) + dot(y_r, oh_r))
            else:                                 # gather first (expanding channels)
                g_lr = dot(x.astype(jnp.bfloat16), oh)           # (ci, 2*Mp), 1 launch
                g_s = x * m_real + x[:, 0:1] * m_pad
                g_cat = jnp.concatenate(
                    [g_s, g_lr[:, :Mp], g_lr[:, Mp:]], axis=0)   # (3*ci, Mp)
                conv = dot(wcat[...], g_cat)                     # (co, 3*ci) weight
            xx = conv + bias[...] * m_bias        # column 0 / lane-pad stay exactly 0
            c_out = xx.shape[0]

            # --- TreeCBAM: channel attention (shared MLP on [avg | max] pooled) ---
            # NOTE: relies on column-0 / lane-pad entries being exactly 0 here.
            avg_c = jnp.sum(xx, axis=1, keepdims=True) * (1.0 / M_real)   # (C, 1)
            max_c = jnp.max(xx, axis=1, keepdims=True)                    # (C, 1)
            pooled = jnp.where(two == 0, avg_c, max_c)                    # (C, 2)
            h = jnp.maximum(dot(ca1[...], pooled), 0.0)
            o2 = dot(ca2[...], h)                                         # (C, 2)
            ca = 1.0 / (1.0 + jnp.exp(-(o2[:, 0:1] + o2[:, 1:2])))
            xx = xx * ca

            # --- TreeCBAM: spatial attention (7-tap node conv via lane rolls) ---
            avg_s = jnp.mean(xx, axis=0, keepdims=True)                   # (1, Mp)
            max_s = jnp.max(xx, axis=0, keepdims=True)
            base = 14 * li
            sa_logit = jnp.zeros_like(avg_s)
            for j in range(7):
                combo = avg_s * sw_ref[base + j] + max_s * sw_ref[base + 7 + j]
                if j != 3:
                    combo = pltpu.roll(combo, shift=(3 - j) % Mp, axis=1)
                sa_logit = sa_logit + combo
            sa = 1.0 / (1.0 + jnp.exp(-sa_logit))
            xx = xx * sa

            # --- TreeLayerNorm: single-pass mean / unbiased std over (C, M_real) ---
            n = float(c_out * M_real)
            s1 = jnp.sum(xx)                       # lane-pad columns are exactly zero
            s2 = jnp.sum(xx * xx)
            mean = s1 * (1.0 / n)
            var = jnp.maximum((s2 - s1 * mean) / (n - 1.0), 0.0)
            inv = 1.0 / (jnp.sqrt(var) + 1e-5)
            z = (xx - mean) * inv
            if apply_act:                          # TreeActivation(LeakyReLU(0.01))
                z = jnp.where(z > 0, z, 0.01 * z)
            x = z

        # --- DynamicPooling: max over the real node columns -> (co_last, 1) ---
        out_ref[t] = jnp.max(jnp.where(col_valid, x, -1e30), axis=1, keepdims=True)


def satcnn_embed(flat, oh_cat, masks, sw_flat, layer_params, *, M_real, TB=1):
    """Fused tree-conv stack -> pooled (B, co_last, 1) plan embedding."""
    B, c_in, Mp = flat.shape
    assert B % TB == 0, "batch must be divisible by the tree-block size"
    dims = [(int(p["ws"].shape[1]), int(p["ws"].shape[0])) for p in layer_params]
    co_last = dims[-1][1]
    # (apply LeakyReLU?, weight-before-gather?) per tree-conv block
    layer_cfg = tuple((i < len(dims) - 1, co < ci) for i, (ci, co) in enumerate(dims))

    # host-side weight stacking: one MXU launch per conv instead of three
    weight_args = []
    for p, (_, wf) in zip(layer_params, layer_cfg):
        wcat = jnp.concatenate([p["ws"], p["wl"], p["wr"]], axis=0 if wf else 1)
        weight_args += [wcat, p["bias"], p["ca1"], p["ca2"]]

    kern = functools.partial(_satcnn_kernel, M_real=M_real, TB=TB,
                             layer_cfg=layer_cfg)

    oh_bytes = TB * Mp * 2 * Mp * 2               # bf16 one-hot slab per grid step
    # single-buffer the one-hot slab when double-buffering it would blow the v7x
    # (64 MiB physical) VMEM budget; small Mp keeps the default double buffer.
    if 2 * oh_bytes > 24 * 1024 * 1024:
        oh_spec = pl.BlockSpec((TB, Mp, 2 * Mp), lambda b: (b, 0, 0),
                               pipeline_mode=pl.Buffered(1))
    else:
        oh_spec = pl.BlockSpec((TB, Mp, 2 * Mp), lambda b: (b, 0, 0))

    in_specs = [
        pl.BlockSpec((TB, c_in, Mp), lambda b: (b, 0, 0)),
        oh_spec,
        pl.BlockSpec((TB, 2, Mp), lambda b: (b, 0, 0)),
        pl.BlockSpec(memory_space=pltpu.MemorySpace.SMEM),   # 7-tap conv weights
    ]
    args = [flat, oh_cat, masks, sw_flat]
    for w in weight_args:
        in_specs.append(pl.BlockSpec(tuple(w.shape), lambda b, nd=w.ndim: (0,) * nd))
        args.append(w)

    # VMEM budget derived from the actual blocks (double-buffered streams + resident
    # weights + intermediate headroom), clamped below v7x's 64 MiB physical VMEM.
    # v6e/v5e (128 MiB) can raise this toward ~100 MB for very large Mp instead.
    stream_bytes = TB * (c_in * Mp * 4 + 2 * Mp * 4) + oh_bytes
    wbytes = sum(int(np.prod(w.shape)) * 4 for w in weight_args)
    interm_bytes = TB * 8 * dims[0][1] * Mp * 4
    vmem_limit = int(min(max(2 * stream_bytes + 2 * wbytes + interm_bytes
                             + (4 << 20), 16 << 20), 56 << 20))

    return pl.pallas_call(
        kern,
        out_shape=jax.ShapeDtypeStruct((B, co_last, 1), jnp.float32),
        grid=(B // TB,),
        in_specs=in_specs,
        out_specs=pl.BlockSpec((TB, co_last, 1), lambda b: (b, 0, 0)),
        compiler_params=pltpu.CompilerParams(
            dimension_semantics=("parallel",),
            vmem_limit_bytes=vmem_limit),
    )(*args)


def satcnn_forward(flat, oh_cat, masks, sw_flat, layer_params, fc_params,
                   *, M_real, TB=1):
    emb = satcnn_embed(flat, oh_cat, masks, sw_flat, layer_params,
                       M_real=M_real, TB=TB)[:, :, 0]           # (B, 64)
    # MLP head as one batched XLA GEMM chain (no per-tree N=1 MXU matmuls).
    h = emb @ fc_params["w1"].T + fc_params["b1"][:, 0][None, :]
    h = jnp.where(h > 0, h, 0.01 * h)                            # LeakyReLU
    return h @ fc_params["w2"].T + fc_params["b2"][:, 0][None, :]


# -----------------------------------------------------------------------------
# deterministic parameter init (synthetic; shapes follow the module's __init__)
# -----------------------------------------------------------------------------
def init_params(key, in_channels):
    dims = [(in_channels, 256), (256, 128), (128, 64)]

    def nrm(k, shape, scale):
        return (scale * jax.random.normal(k, shape)).astype(jnp.float32)

    params = []
    k = key
    for (ci, co) in dims:
        ks = jax.random.split(k, 8)
        k = ks[-1]
        cr = max(co // 16, 1)
        params.append(dict(
            ws=nrm(ks[0], (co, ci), 1.0 / np.sqrt(3 * ci)),
            wl=nrm(ks[1], (co, ci), 1.0 / np.sqrt(3 * ci)),
            wr=nrm(ks[2], (co, ci), 1.0 / np.sqrt(3 * ci)),
            bias=nrm(ks[3], (co, 1), 0.1),
            ca1=nrm(ks[4], (cr, co), 1.0 / np.sqrt(co)),
            ca2=nrm(ks[5], (co, cr), 1.0 / np.sqrt(cr)),
            sw=nrm(ks[6], (1, 2, 7), 1.0 / np.sqrt(14)),
        ))
    ks = jax.random.split(k, 4)
    fc = dict(
        w1=nrm(ks[0], (32, 64), 1.0 / np.sqrt(64)),
        b1=nrm(ks[1], (32, 1), 0.1),
        w2=nrm(ks[2], (1, 32), 1.0 / np.sqrt(32)),
        b2=nrm(ks[3], (1, 1), 0.1),
    )
    return params, fc


# -----------------------------------------------------------------------------
# pure-JAX reference at the ORIGINAL (un-padded) M: validates lane padding,
# self-gather elimination, weight stacking and the roll-based spatial conv.
# The bf16 rounding of the gather operands mirrors the kernel (the one-hot
# selection itself is exact), so the structural comparison stays tight.
# -----------------------------------------------------------------------------
def ref_block(x, oh3, l, band, apply_act, weight_first):
    bf = lambda a: a.astype(jnp.bfloat16).astype(jnp.float32)
    gat = lambda v, k: jnp.einsum('bcm,bmp->bcp', v, oh3[:, k])
    if weight_first:
        y_s = jnp.einsum('oc,bcm->bom', l["ws"], x)
        y_l = bf(jnp.einsum('oc,bcm->bom', l["wl"], x))
        y_r = bf(jnp.einsum('oc,bcm->bom', l["wr"], x))
        conv = gat(y_s, 0) + gat(y_l, 1) + gat(y_r, 2)
    else:
        xb = bf(x)
        conv = (jnp.einsum('oc,bcp->bop', l["ws"], gat(x, 0)) +
                jnp.einsum('oc,bcp->bop', l["wl"], gat(xb, 1)) +
                jnp.einsum('oc,bcp->bop', l["wr"], gat(xb, 2)))
    M = conv.shape[2]
    mask = (jnp.arange(M) > 0).astype(jnp.float32)[None, None, :]
    xx = conv + l["bias"][None, :, :] * mask

    avg_c = jnp.mean(xx, axis=2, keepdims=True)
    max_c = jnp.max(xx, axis=2, keepdims=True)

    def mlp(v):
        h = jnp.maximum(jnp.einsum('rc,bcx->brx', l["ca1"], v), 0.0)
        return jnp.einsum('cr,brx->bcx', l["ca2"], h)

    ca = jax.nn.sigmoid(mlp(avg_c) + mlp(max_c))
    xx = xx * ca

    avg_s = jnp.mean(xx, axis=1, keepdims=True)
    max_s = jnp.max(xx, axis=1, keepdims=True)
    sa = jax.nn.sigmoid(jnp.einsum('bxm,mp->bxp', avg_s, band[0]) +
                        jnp.einsum('bxm,mp->bxp', max_s, band[1]))
    xx = xx * sa

    n = xx.shape[1] * xx.shape[2]
    mean = jnp.mean(xx, axis=(1, 2), keepdims=True)
    std = jnp.sqrt(jnp.sum((xx - mean) ** 2, axis=(1, 2), keepdims=True) / (n - 1.0))
    xx = (xx - mean) / (std + 1e-5)
    if apply_act:
        xx = jnp.where(xx > 0, xx, 0.01 * xx)
    return xx


# -----------------------------------------------------------------------------
if __name__ == "__main__":
    in_channels = 16
    key = jax.random.PRNGKey(0)
    kf, kp = jax.random.split(key)

    # deterministic node features; two small binary trees (7 and 5 nodes)
    node_feats = np.asarray(jax.random.normal(kf, (12, in_channels), dtype=jnp.float32))
    f = [node_feats[i] for i in range(12)]
    t0 = (f[0], (f[1], (f[3],), (f[4],)), (f[2], (f[5],), (f[6],)))
    t1 = (f[7], (f[8], (f[10],), (f[11],)), (f[9],))

    flat_np, idx_np, n_nodes = prepare_trees_np([t0, t1], in_channels)
    B, _, M_real = flat_np.shape
    n_max = M_real - 1
    Mp = lane_pad(M_real)

    flat_pad = np.zeros((B, in_channels, Mp), np.float32)
    flat_pad[:, :, :M_real] = flat_np
    oh_cat = jnp.asarray(make_onehots_cat(idx_np, Mp), dtype=jnp.bfloat16)  # exact 0/1
    masks = jnp.asarray(make_masks(n_nodes, n_max, Mp))

    params, fc = init_params(kp, in_channels)
    sw_flat = jnp.concatenate([l["sw"].reshape(-1) for l in params]).astype(jnp.float32)

    # --- fused Pallas forward (TB=1 keeps >=2 grid steps for v7x's 2 TensorCores) ---
    score = satcnn_forward(jnp.asarray(flat_pad), oh_cat, masks, sw_flat,
                           params, fc, M_real=M_real, TB=1)
    score = jax.block_until_ready(score)

    # --- reference forward (un-padded layout, 3-way one-hot, band conv) ---
    oh3 = jnp.asarray(make_onehots3(idx_np, M_real))
    bands = [jnp.asarray(make_band(np.asarray(l["sw"]), M_real)) for l in params]
    xr = jnp.asarray(flat_np)
    for i, l in enumerate(params):
        ci, co = int(l["ws"].shape[1]), int(l["ws"].shape[0])
        xr = ref_block(xr, oh3, l, bands[i],
                       apply_act=(i < len(params) - 1), weight_first=(co < ci))
    vr = jnp.max(xr, axis=2)                                     # DynamicPooling
    hr = vr @ fc["w1"].T + fc["b1"][:, 0][None, :]
    hr = jnp.where(hr > 0, hr, 0.01 * hr)
    sr = hr @ fc["w2"].T + fc["b2"][:, 0][None, :]               # (B, 1)

    # kernel and reference share the bf16 rounding points of the gather operands, so
    # residual error is f32 accumulation-order noise (+ rare bf16 tie-break flips).
    np.testing.assert_allclose(np.asarray(score), np.asarray(sr),
                               rtol=2e-3, atol=2e-3)
    print("KERNEL_OK")
</pallas_src>

<mosaic_0001>
module attributes {stable_mosaic.version = 11 : i64} {
  func.func @_satcnn_kernel(%arg0: i32, %arg1: memref<1x16x128xf32, #tpu.memory_space<vmem>>, %arg2: memref<1x128x256xbf16, #tpu.memory_space<vmem>>, %arg3: memref<1x2x128xf32, #tpu.memory_space<vmem>>, %arg4: memref<42xf32, #tpu.memory_space<smem>>, %arg5: memref<256x48xf32, #tpu.memory_space<vmem>>, %arg6: memref<256x1xf32, #tpu.memory_space<vmem>>, %arg7: memref<16x256xf32, #tpu.memory_space<vmem>>, %arg8: memref<256x16xf32, #tpu.memory_space<vmem>>, %arg9: memref<384x256xf32, #tpu.memory_space<vmem>>, %arg10: memref<128x1xf32, #tpu.memory_space<vmem>>, %arg11: memref<8x128xf32, #tpu.memory_space<vmem>>, %arg12: memref<128x8xf32, #tpu.memory_space<vmem>>, %arg13: memref<192x128xf32, #tpu.memory_space<vmem>>, %arg14: memref<64x1xf32, #tpu.memory_space<vmem>>, %arg15: memref<4x64xf32, #tpu.memory_space<vmem>>, %arg16: memref<64x4xf32, #tpu.memory_space<vmem>>, %arg17: memref<1x64x1xf32, #tpu.memory_space<vmem>>) attributes {dimension_semantics = [#tpu.dimension_semantics<parallel>], iteration_bounds = array<i64: 2>, scalar_prefetch = 0 : i64, scratch_operands = 0 : i64, tpu.core_type = #tpu.core_type<tc>, window_params = [{transform_indices = @transform_0, window_bounds = array<i64: 1, 16, 128>}, {transform_indices = @transform_1, window_bounds = array<i64: 1, 128, 256>}, {transform_indices = @transform_2, window_bounds = array<i64: 1, 2, 128>}, {transform_indices = @transform_3, window_bounds = array<i64: 42>}, {pipeline_mode = #tpu.pipeline_mode<synchronous>, transform_indices = @transform_4, window_bounds = array<i64: 256, 48>}, {pipeline_mode = #tpu.pipeline_mode<synchronous>, transform_indices = @transform_5, window_bounds = array<i64: 256, 1>}, {pipeline_mode = #tpu.pipeline_mode<synchronous>, transform_indices = @transform_6, window_bounds = array<i64: 16, 256>}, {pipeline_mode = #tpu.pipeline_mode<synchronous>, transform_indices = @transform_7, window_bounds = array<i64: 256, 16>}, {pipeline_mode = #tpu.pipeline_mode<synchronous>, transform_indices = @transform_8, window_bounds = array<i64: 384, 256>}, {pipeline_mode = #tpu.pipeline_mode<synchronous>, transform_indices = @transform_9, window_bounds = array<i64: 128, 1>}, {pipeline_mode = #tpu.pipeline_mode<synchronous>, transform_indices = @transform_10, window_bounds = array<i64: 8, 128>}, {pipeline_mode = #tpu.pipeline_mode<synchronous>, transform_indices = @transform_11, window_bounds = array<i64: 128, 8>}, {pipeline_mode = #tpu.pipeline_mode<synchronous>, transform_indices = @transform_12, window_bounds = array<i64: 192, 128>}, {pipeline_mode = #tpu.pipeline_mode<synchronous>, transform_indices = @transform_13, window_bounds = array<i64: 64, 1>}, {pipeline_mode = #tpu.pipeline_mode<synchronous>, transform_indices = @transform_14, window_bounds = array<i64: 4, 64>}, {pipeline_mode = #tpu.pipeline_mode<synchronous>, transform_indices = @transform_15, window_bounds = array<i64: 64, 4>}, {transform_indices = @transform_16, window_bounds = array<i64: 1, 64, 1>}]} {
    %0 = tpu.iota {dimensions = array<i32: 1>} : vector<1x128xi32>
    %c8_i32 = arith.constant 8 : i32
    %1 = vector.broadcast %c8_i32 : i32 to vector<1x128xi32>
    %2 = arith.cmpi slt, %0, %1 : vector<1x128xi32>
    %3 = tpu.iota {dimensions = array<i32: 1>} : vector<1x2xi32>
    %c0 = arith.constant 0 : index
    %c0_0 = arith.constant 0 : index
    %c0_1 = arith.constant 0 : index
    %4 = vector.load %arg1[%c0, %c0_0, %c0_1] : memref<1x16x128xf32, #tpu.memory_space<vmem>>, vector<1x16x128xf32>
    %5 = vector.shape_cast %4 : vector<1x16x128xf32> to vector<16x128xf32>
    %c0_2 = arith.constant 0 : index
    %c0_3 = arith.constant 0 : index
    %c0_4 = arith.constant 0 : index
    %6 = vector.load %arg2[%c0_2, %c0_3, %c0_4] : memref<1x128x256xbf16, #tpu.memory_space<vmem>>, vector<1x128x256xbf16>
    %7 = vector.shape_cast %6 : vector<1x128x256xbf16> to vector<128x256xbf16>
    %8 = vector.extract_strided_slice %7 {offsets = [0, 0], sizes = [128, 128], strides = [1, 1]} : vector<128x256xbf16> to vector<128x128xbf16>
    %9 = vector.extract_strided_slice %7 {offsets = [0, 128], sizes = [128, 128], strides = [1, 1]} : vector<128x256xbf16> to vector<128x128xbf16>
    %c0_5 = arith.constant 0 : index
    %c0_6 = arith.constant 0 : index
    %c0_7 = arith.constant 0 : index
    %10 = vector.load %arg3[%c0_5, %c0_6, %c0_7] : memref<1x2x128xf32, #tpu.memory_space<vmem>>, vector<1x2x128xf32>
    %11 = vector.shape_cast %10 : vector<1x2x128xf32> to vector<2x128xf32>
    %12 = vector.extract_strided_slice %11 {offsets = [0, 0], sizes = [1, 128], strides = [1, 1]} : vector<2x128xf32> to vector<1x128xf32>
    %13 = vector.extract_strided_slice %11 {offsets = [1, 0], sizes = [1, 128], strides = [1, 1]} : vector<2x128xf32> to vector<1x128xf32>
    %14 = arith.addf %12, %13 : vector<1x128xf32>
    %15 = arith.truncf %5 : vector<16x128xf32> to vector<16x128xbf16>
    %cst = arith.constant dense<0.000000e+00> : vector<16x256xf32>
    %16 = tpu.matmul %15, %7, %cst {dimension_numbers = #tpu.dot_dimension_numbers<[1], [0], [0], [1], [0, 0, 1, 1], [], []>} : vector<16x128xbf16>, vector<128x256xbf16>, vector<16x256xf32> -> vector<16x256xf32>
    %17 = vector.broadcast %12 : vector<1x128xf32> to vector<16x128xf32>
    %18 = arith.mulf %5, %17 : vector<16x128xf32>
    %19 = vector.extract_strided_slice %5 {offsets = [0, 0], sizes = [16, 1], strides = [1, 1]} : vector<16x128xf32> to vector<16x1xf32>
    %20 = vector.broadcast %19 : vector<16x1xf32> to vector<16x128xf32>
    %21 = vector.broadcast %13 : vector<1x128xf32> to vector<16x128xf32>
    %22 = arith.mulf %20, %21 : vector<16x128xf32>
    %23 = arith.addf %18, %22 : vector<16x128xf32>
    %24 = vector.extract_strided_slice %16 {offsets = [0, 0], sizes = [16, 128], strides = [1, 1]} : vector<16x256xf32> to vector<16x128xf32>
    %25 = vector.extract_strided_slice %16 {offsets = [0, 128], sizes = [16, 128], strides = [1, 1]} : vector<16x256xf32> to vector<16x128xf32>
    %26 = tpu.concatenate %23, %24, %25 in 0 : vector<16x128xf32>, vector<16x128xf32>, vector<16x128xf32> -> vector<48x128xf32>
    %c0_8 = arith.constant 0 : index
    %c0_9 = arith.constant 0 : index
    %27 = vector.load %arg5[%c0_8, %c0_9] : memref<256x48xf32, #tpu.memory_space<vmem>>, vector<256x48xf32>
    %cst_10 = arith.constant dense<0.000000e+00> : vector<256x128xf32>
    %28 = tpu.matmul %27, %26, %cst_10 {dimension_numbers = #tpu.dot_dimension_numbers<[1], [0], [0], [1], [0, 0, 1, 1], [], []>} : vector<256x48xf32>, vector<48x128xf32>, vector<256x128xf32> -> vector<256x128xf32>
    %c0_11 = arith.constant 0 : index
    %c0_12 = arith.constant 0 : index
    %29 = vector.load %arg6[%c0_11, %c0_12] : memref<256x1xf32, #tpu.memory_space<vmem>>, vector<256x1xf32>
    %30 = vector.broadcast %29 : vector<256x1xf32> to vector<256x128xf32>
    %31 = vector.broadcast %14 : vector<1x128xf32> to vector<256x128xf32>
    %32 = arith.mulf %30, %31 : vector<256x128xf32>
    %33 = arith.addf %28, %32 : vector<256x128xf32>
    %cst_13 = arith.constant dense<0.000000e+00> : vector<256xf32>
    %34 = vector.multi_reduction <add>, %33, %cst_13 [1] : vector<256x128xf32> to vector<256xf32>
    %35 = vector.shape_cast %34 : vector<256xf32> to vector<256x1xf32>
    %cst_14 = arith.constant 1.250000e-01 : f32
    %36 = vector.broadcast %cst_14 : f32 to vector<256x1xf32>
    %37 = arith.mulf %35, %36 : vector<256x1xf32>
    %cst_15 = arith.constant dense<0xFF800000> : vector<256xf32>
    %38 = vector.multi_reduction <maximumf>, %33, %cst_15 [1] : vector<256x128xf32> to vector<256xf32>
    %39 = vector.shape_cast %38 : vector<256xf32> to vector<256x1xf32>
    %c0_i32 = arith.constant 0 : i32
    %40 = vector.broadcast %c0_i32 : i32 to vector<1x2xi32>
    %41 = arith.cmpi eq, %3, %40 : vector<1x2xi32>
    %42 = vector.shape_cast %41 : vector<1x2xi1> to vector<1x2xi1>
    %43 = vector.broadcast %42 : vector<1x2xi1> to vector<256x2xi1>
    %44 = vector.shape_cast %37 : vector<256x1xf32> to vector<256x1xf32>
    %45 = vector.broadcast %44 : vector<256x1xf32> to vector<256x2xf32>
    %46 = vector.shape_cast %39 : vector<256x1xf32> to vector<256x1xf32>
    %47 = vector.broadcast %46 : vector<256x1xf32> to vector<256x2xf32>
    %48 = arith.select %43, %45, %47 : vector<256x2xi1>, vector<256x2xf32>
    %c0_16 = arith.constant 0 : index
    %c0_17 = arith.constant 0 : index
    %49 = vector.load %arg7[%c0_16, %c0_17] : memref<16x256xf32, #tpu.memory_space<vmem>>, vector<16x256xf32>
    %cst_18 = arith.constant dense<0.000000e+00> : vector<16x2xf32>
    %50 = tpu.matmul %49, %48, %cst_18 {dimension_numbers = #tpu.dot_dimension_numbers<[1], [0], [0], [1], [0, 0, 1, 1], [], []>} : vector<16x256xf32>, vector<256x2xf32>, vector<16x2xf32> -> vector<16x2xf32>
    %cst_19 = arith.constant 0.000000e+00 : f32
    %51 = vector.broadcast %cst_19 : f32 to vector<16x2xf32>
    %52 = arith.maximumf %50, %51 : vector<16x2xf32>
    %c0_20 = arith.constant 0 : index
    %c0_21 = arith.constant 0 : index
    %53 = vector.load %arg8[%c0_20, %c0_21] : memref<256x16xf32, #tpu.memory_space<vmem>>, vector<256x16xf32>
    %cst_22 = arith.constant dense<0.000000e+00> : vector<256x2xf32>
    %54 = tpu.matmul %53, %52, %cst_22 {dimension_numbers = #tpu.dot_dimension_numbers<[1], [0], [0], [1], [0, 0, 1, 1], [], []>} : vector<256x16xf32>, vector<16x2xf32>, vector<256x2xf32> -> vector<256x2xf32>
    %55 = vector.extract_strided_slice %54 {offsets = [0, 0], sizes = [256, 1], strides = [1, 1]} : vector<256x2xf32> to vector<256x1xf32>
    %56 = vector.extract_strided_slice %54 {offsets = [0, 1], sizes = [256, 1], strides = [1, 1]} : vector<256x2xf32> to vector<256x1xf32>
    %57 = arith.addf %55, %56 : vector<256x1xf32>
    %cst_23 = arith.constant 0.000000e+00 : f32
    %58 = vector.broadcast %cst_23 : f32 to vector<256x1xf32>
    %59 = arith.subf %58, %57 : vector<256x1xf32>
    %60 = math.exp %59 : vector<256x1xf32>
    %cst_24 = arith.constant 1.000000e+00 : f32
    %61 = vector.broadcast %cst_24 : f32 to vector<256x1xf32>
    %62 = arith.addf %61, %60 : vector<256x1xf32>
    %cst_25 = arith.constant 1.000000e+00 : f32
    %63 = vector.broadcast %cst_25 : f32 to vector<256x1xf32>
    %64 = arith.divf %63, %62 : vector<256x1xf32>
    %65 = vector.broadcast %64 : vector<256x1xf32> to vector<256x128xf32>
    %66 = arith.mulf %33, %65 : vector<256x128xf32>
    %cst_26 = arith.constant dense<0.000000e+00> : vector<128xf32>
    %67 = vector.multi_reduction <add>, %66, %cst_26 [0] : vector<256x128xf32> to vector<128xf32>
    %68 = vector.shape_cast %67 : vector<128xf32> to vector<1x128xf32>
    %cst_27 = arith.constant 2.560000e+02 : f32
    %69 = vector.broadcast %cst_27 : f32 to vector<1x128xf32>
    %70 = arith.divf %68, %69 : vector<1x128xf32>
    %cst_28 = arith.constant dense<0xFF800000> : vector<128xf32>
    %71 = vector.multi_reduction <maximumf>, %66, %cst_28 [0] : vector<256x128xf32> to vector<128xf32>
    %72 = vector.shape_cast %71 : vector<128xf32> to vector<1x128xf32>
    %cst_29 = arith.constant 0.000000e+00 : f32
    %73 = vector.broadcast %cst_29 : f32 to vector<1x128xf32>
    %c0_30 = arith.constant 0 : index
    %74 = memref.load %arg4[%c0_30] : memref<42xf32, #tpu.memory_space<smem>>
    %75 = vector.broadcast %74 : f32 to vector<1x128xf32>
    %76 = arith.mulf %70, %75 : vector<1x128xf32>
    %c7 = arith.constant 7 : index
    %77 = memref.load %arg4[%c7] : memref<42xf32, #tpu.memory_space<smem>>
    %78 = vector.broadcast %77 : f32 to vector<1x128xf32>
    %79 = arith.mulf %72, %78 : vector<1x128xf32>
    %80 = arith.addf %76, %79 : vector<1x128xf32>
    %c3_i32 = arith.constant 3 : i32
    %81 = tpu.dynamic_rotate %80 by %c3_i32 dim 1 : vector<1x128xf32>, i32 -> vector<1x128xf32>
    %82 = arith.addf %73, %81 : vector<1x128xf32>
    %c1 = arith.constant 1 : index
    %83 = memref.load %arg4[%c1] : memref<42xf32, #tpu.memory_space<smem>>
    %84 = vector.broadcast %83 : f32 to vector<1x128xf32>
    %85 = arith.mulf %70, %84 : vector<1x128xf32>
    %c8 = arith.constant 8 : index
    %86 = memref.load %arg4[%c8] : memref<42xf32, #tpu.memory_space<smem>>
    %87 = vector.broadcast %86 : f32 to vector<1x128xf32>
    %88 = arith.mulf %72, %87 : vector<1x128xf32>
    %89 = arith.addf %85, %88 : vector<1x128xf32>
    %c2_i32 = arith.constant 2 : i32
    %90 = tpu.dynamic_rotate %89 by %c2_i32 dim 1 : vector<1x128xf32>, i32 -> vector<1x128xf32>
    %91 = arith.addf %82, %90 : vector<1x128xf32>
    %c2 = arith.constant 2 : index
    %92 = memref.load %arg4[%c2] : memref<42xf32, #tpu.memory_space<smem>>
    %93 = vector.broadcast %92 : f32 to vector<1x128xf32>
    %94 = arith.mulf %70, %93 : vector<1x128xf32>
    %c9 = arith.constant 9 : index
    %95 = memref.load %arg4[%c9] : memref<42xf32, #tpu.memory_space<smem>>
    %96 = vector.broadcast %95 : f32 to vector<1x128xf32>
    %97 = arith.mulf %72, %96 : vector<1x128xf32>
    %98 = arith.addf %94, %97 : vector<1x128xf32>
    %c1_i32 = arith.constant 1 : i32
    %99 = tpu.dynamic_rotate %98 by %c1_i32 dim 1 : vector<1x128xf32>, i32 -> vector<1x128xf32>
    %100 = arith.addf %91, %99 : vector<1x128xf32>
    %c3 = arith.constant 3 : index
    %101 = memref.load %arg4[%c3] : memref<42xf32, #tpu.memory_space<smem>>
    %102 = vector.broadcast %101 : f32 to vector<1x128xf32>
    %103 = arith.mulf %70, %102 : vector<1x128xf32>
    %c10 = arith.constant 10 : index
    %104 = memref.load %arg4[%c10] : memref<42xf32, #tpu.memory_space<smem>>
    %105 = vector.broadcast %104 : f32 to vector<1x128xf32>
    %106 = arith.mulf %72, %105 : vector<1x128xf32>
    %107 = arith.addf %103, %106 : vector<1x128xf32>
    %108 = arith.addf %100, %107 : vector<1x128xf32>
    %c4 = arith.constant 4 : index
    %109 = memref.load %arg4[%c4] : memref<42xf32, #tpu.memory_space<smem>>
    %110 = vector.broadcast %109 : f32 to vector<1x128xf32>
    %111 = arith.mulf %70, %110 : vector<1x128xf32>
    %c11 = arith.constant 11 : index
    %112 = memref.load %arg4[%c11] : memref<42xf32, #tpu.memory_space<smem>>
    %113 = vector.broadcast %112 : f32 to vector<1x128xf32>
    %114 = arith.mulf %72, %113 : vector<1x128xf32>
    %115 = arith.addf %111, %114 : vector<1x128xf32>
    %c127_i32 = arith.constant 127 : i32
    %116 = tpu.dynamic_rotate %115 by %c127_i32 dim 1 : vector<1x128xf32>, i32 -> vector<1x128xf32>
    %117 = arith.addf %108, %116 : vector<1x128xf32>
    %c5 = arith.constant 5 : index
    %118 = memref.load %arg4[%c5] : memref<42xf32, #tpu.memory_space<smem>>
    %119 = vector.broadcast %118 : f32 to vector<1x128xf32>
    %120 = arith.mulf %70, %119 : vector<1x128xf32>
    %c12 = arith.constant 12 : index
    %121 = memref.load %arg4[%c12] : memref<42xf32, #tpu.memory_space<smem>>
    %122 = vector.broadcast %121 : f32 to vector<1x128xf32>
    %123 = arith.mulf %72, %122 : vector<1x128xf32>
    %124 = arith.addf %120, %123 : vector<1x128xf32>
    %c126_i32 = arith.constant 126 : i32
    %125 = tpu.dynamic_rotate %124 by %c126_i32 dim 1 : vector<1x128xf32>, i32 -> vector<1x128xf32>
    %126 = arith.addf %117, %125 : vector<1x128xf32>
    %c6 = arith.constant 6 : index
    %127 = memref.load %arg4[%c6] : memref<42xf32, #tpu.memory_space<smem>>
    %128 = vector.broadcast %127 : f32 to vector<1x128xf32>
    %129 = arith.mulf %70, %128 : vector<1x128xf32>
    %c13 = arith.constant 13 : index
    %130 = memref.load %arg4[%c13] : memref<42xf32, #tpu.memory_space<smem>>
    %131 = vector.broadcast %130 : f32 to vector<1x128xf32>
    %132 = arith.mulf %72, %131 : vector<1x128xf32>
    %133 = arith.addf %129, %132 : vector<1x128xf32>
    %c125_i32 = arith.constant 125 : i32
    %134 = tpu.dynamic_rotate %133 by %c125_i32 dim 1 : vector<1x128xf32>, i32 -> vector<1x128xf32>
    %135 = arith.addf %126, %134 : vector<1x128xf32>
    %cst_31 = arith.constant 0.000000e+00 : f32
    %136 = vector.broadcast %cst_31 : f32 to vector<1x128xf32>
    %137 = arith.subf %136, %135 : vector<1x128xf32>
    %138 = math.exp %137 : vector<1x128xf32>
    %cst_32 = arith.constant 1.000000e+00 : f32
    %139 = vector.broadcast %cst_32 : f32 to vector<1x128xf32>
    %140 = arith.addf %139, %138 : vector<1x128xf32>
    %cst_33 = arith.constant 1.000000e+00 : f32
    %141 = vector.broadcast %cst_33 : f32 to vector<1x128xf32>
    %142 = arith.divf %141, %140 : vector<1x128xf32>
    %143 = vector.broadcast %142 : vector<1x128xf32> to vector<256x128xf32>
    %144 = arith.mulf %66, %143 : vector<256x128xf32>
    %145 = vector.shape_cast %144 : vector<256x128xf32> to vector<1x256x128xf32>
    %cst_34 = arith.constant dense<0.000000e+00> : vector<1xf32>
    %146 = vector.multi_reduction <add>, %145, %cst_34 [1, 2] : vector<1x256x128xf32> to vector<1xf32>
    %147 = vector.shape_cast %146 : vector<1xf32> to vector<1x1x1xf32>
    %148 = vector.extract %147[0, 0, 0] : f32 from vector<1x1x1xf32>
    %149 = arith.mulf %144, %144 : vector<256x128xf32>
    %150 = vector.shape_cast %149 : vector<256x128xf32> to vector<1x256x128xf32>
    %cst_35 = arith.constant dense<0.000000e+00> : vector<1xf32>
    %151 = vector.multi_reduction <add>, %150, %cst_35 [1, 2] : vector<1x256x128xf32> to vector<1xf32>
    %152 = vector.shape_cast %151 : vector<1xf32> to vector<1x1x1xf32>
    %153 = vector.extract %152[0, 0, 0] : f32 from vector<1x1x1xf32>
    %cst_36 = arith.constant 4.8828125E-4 : f32
    %154 = arith.mulf %148, %cst_36 : f32
    %155 = arith.mulf %148, %154 : f32
    %156 = arith.subf %153, %155 : f32
    %cst_37 = arith.constant 2.047000e+03 : f32
    %157 = arith.divf %156, %cst_37 : f32
    %cst_38 = arith.constant 0.000000e+00 : f32
    %158 = arith.maximumf %157, %cst_38 : f32
    %159 = math.sqrt %158 : f32
    %cst_39 = arith.constant 9.99999974E-6 : f32
    %160 = arith.addf %159, %cst_39 : f32
    %cst_40 = arith.constant 1.000000e+00 : f32
    %161 = arith.divf %cst_40, %160 : f32
    %162 = vector.broadcast %154 : f32 to vector<256x128xf32>
    %163 = arith.subf %144, %162 : vector<256x128xf32>
    %164 = vector.broadcast %161 : f32 to vector<256x128xf32>
    %165 = arith.mulf %163, %164 : vector<256x128xf32>
    %cst_41 = arith.constant 0.000000e+00 : f32
    %166 = vector.broadcast %cst_41 : f32 to vector<256x128xf32>
    %167 = arith.cmpf ogt, %165, %166 : vector<256x128xf32>
    %cst_42 = arith.constant 0.00999999977 : f32
    %168 = vector.broadcast %cst_42 : f32 to vector<256x128xf32>
    %169 = arith.mulf %168, %165 : vector<256x128xf32>
    %170 = arith.select %167, %165, %169 : vector<256x128xi1>, vector<256x128xf32>
    %c0_43 = arith.constant 0 : index
    %c0_44 = arith.constant 0 : index
    %171 = vector.load %arg9[%c0_43, %c0_44] : memref<384x256xf32, #tpu.memory_space<vmem>>, vector<384x256xf32>
    %cst_45 = arith.constant dense<0.000000e+00> : vector<384x128xf32>
    %172 = tpu.matmul %171, %170, %cst_45 {dimension_numbers = #tpu.dot_dimension_numbers<[1], [0], [0], [1], [0, 0, 1, 1], [], []>} : vector<384x256xf32>, vector<256x128xf32>, vector<384x128xf32> -> vector<384x128xf32>
    %173 = vector.extract_strided_slice %172 {offsets = [0, 0], sizes = [128, 128], strides = [1, 1]} : vector<384x128xf32> to vector<128x128xf32>
    %174 = vector.extract_strided_slice %172 {offsets = [128, 0], sizes = [128, 128], strides = [1, 1]} : vector<384x128xf32> to vector<128x128xf32>
    %175 = arith.truncf %174 : vector<128x128xf32> to vector<128x128xbf16>
    %176 = vector.extract_strided_slice %172 {offsets = [256, 0], sizes = [128, 128], strides = [1, 1]} : vector<384x128xf32> to vector<128x128xf32>
    %177 = arith.truncf %176 : vector<128x128xf32> to vector<128x128xbf16>
    %178 = vector.broadcast %12 : vector<1x128xf32> to vector<128x128xf32>
    %179 = arith.mulf %173, %178 : vector<128x128xf32>
    %180 = vector.extract_strided_slice %173 {offsets = [0, 0], sizes = [128, 1], strides = [1, 1]} : vector<128x128xf32> to vector<128x1xf32>
    %181 = vector.broadcast %180 : vector<128x1xf32> to vector<128x128xf32>
    %182 = vector.broadcast %13 : vector<1x128xf32> to vector<128x128xf32>
    %183 = arith.mulf %181, %182 : vector<128x128xf32>
    %184 = arith.addf %179, %183 : vector<128x128xf32>
    %cst_46 = arith.constant dense<0.000000e+00> : vector<128x128xf32>
    %185 = tpu.matmul %175, %8, %cst_46 {dimension_numbers = #tpu.dot_dimension_numbers<[1], [0], [0], [1], [0, 0, 1, 1], [], []>} : vector<128x128xbf16>, vector<128x128xbf16>, vector<128x128xf32> -> vector<128x128xf32>
    %186 = arith.addf %184, %185 : vector<128x128xf32>
    %cst_47 = arith.constant dense<0.000000e+00> : vector<128x128xf32>
    %187 = tpu.matmul %177, %9, %cst_47 {dimension_numbers = #tpu.dot_dimension_numbers<[1], [0], [0], [1], [0, 0, 1, 1], [], []>} : vector<128x128xbf16>, vector<128x128xbf16>, vector<128x128xf32> -> vector<128x128xf32>
    %188 = arith.addf %186, %187 : vector<128x128xf32>
    %c0_48 = arith.constant 0 : index
    %c0_49 = arith.constant 0 : index
    %189 = vector.load %arg10[%c0_48, %c0_49] : memref<128x1xf32, #tpu.memory_space<vmem>>, vector<128x1xf32>
    %190 = vector.broadcast %189 : vector<128x1xf32> to vector<128x128xf32>
    %191 = vector.broadcast %14 : vector<1x128xf32> to vector<128x128xf32>
    %192 = arith.mulf %190, %191 : vector<128x128xf32>
    %193 = arith.addf %188, %192 : vector<128x128xf32>
    %cst_50 = arith.constant dense<0.000000e+00> : vector<128xf32>
    %194 = vector.multi_reduction <add>, %193, %cst_50 [1] : vector<128x128xf32> to vector<128xf32>
    %195 = vector.shape_cast %194 : vector<128xf32> to vector<128x1xf32>
    %cst_51 = arith.constant 1.250000e-01 : f32
    %196 = vector.broadcast %cst_51 : f32 to vector<128x1xf32>
    %197 = arith.mulf %195, %196 : vector<128x1xf32>
    %cst_52 = arith.constant dense<0xFF800000> : vector<128xf32>
    %198 = vector.multi_reduction <maximumf>, %193, %cst_52 [1] : vector<128x128xf32> to vector<128xf32>
    %199 = vector.shape_cast %198 : vector<128xf32> to vector<128x1xf32>
    %c0_i32_53 = arith.constant 0 : i32
    %200 = vector.broadcast %c0_i32_53 : i32 to vector<1x2xi32>
    %201 = arith.cmpi eq, %3, %200 : vector<1x2xi32>
    %202 = vector.shape_cast %201 : vector<1x2xi1> to vector<1x2xi1>
    %203 = vector.broadcast %202 : vector<1x2xi1> to vector<128x2xi1>
    %204 = vector.shape_cast %197 : vector<128x1xf32> to vector<128x1xf32>
    %205 = vector.broadcast %204 : vector<128x1xf32> to vector<128x2xf32>
    %206 = vector.shape_cast %199 : vector<128x1xf32> to vector<128x1xf32>
    %207 = vector.broadcast %206 : vector<128x1xf32> to vector<128x2xf32>
    %208 = arith.select %203, %205, %207 : vector<128x2xi1>, vector<128x2xf32>
    %c0_54 = arith.constant 0 : index
    %c0_55 = arith.constant 0 : index
    %209 = vector.load %arg11[%c0_54, %c0_55] : memref<8x128xf32, #tpu.memory_space<vmem>>, vector<8x128xf32>
    %cst_56 = arith.constant dense<0.000000e+00> : vector<8x2xf32>
    %210 = tpu.matmul %209, %208, %cst_56 {dimension_numbers = #tpu.dot_dimension_numbers<[1], [0], [0], [1], [0, 0, 1, 1], [], []>} : vector<8x128xf32>, vector<128x2xf32>, vector<8x2xf32> -> vector<8x2xf32>
    %cst_57 = arith.constant 0.000000e+00 : f32
    %211 = vector.broadcast %cst_57 : f32 to vector<8x2xf32>
    %212 = arith.maximumf %210, %211 : vector<8x2xf32>
    %c0_58 = arith.constant 0 : index
    %c0_59 = arith.constant 0 : index
    %213 = vector.load %arg12[%c0_58, %c0_59] : memref<128x8xf32, #tpu.memory_space<vmem>>, vector<128x8xf32>
    %cst_60 = arith.constant dense<0.000000e+00> : vector<128x2xf32>
    %214 = tpu.matmul %213, %212, %cst_60 {dimension_numbers = #tpu.dot_dimension_numbers<[1], [0], [0], [1], [0, 0, 1, 1], [], []>} : vector<128x8xf32>, vector<8x2xf32>, vector<128x2xf32> -> vector<128x2xf32>
    %215 = vector.extract_strided_slice %214 {offsets = [0, 0], sizes = [128, 1], strides = [1, 1]} : vector<128x2xf32> to vector<128x1xf32>
    %216 = vector.extract_strided_slice %214 {offsets = [0, 1], sizes = [128, 1], strides = [1, 1]} : vector<128x2xf32> to vector<128x1xf32>
    %217 = arith.addf %215, %216 : vector<128x1xf32>
    %cst_61 = arith.constant 0.000000e+00 : f32
    %218 = vector.broadcast %cst_61 : f32 to vector<128x1xf32>
    %219 = arith.subf %218, %217 : vector<128x1xf32>
    %220 = math.exp %219 : vector<128x1xf32>
    %cst_62 = arith.constant 1.000000e+00 : f32
    %221 = vector.broadcast %cst_62 : f32 to vector<128x1xf32>
    %222 = arith.addf %221, %220 : vector<128x1xf32>
    %cst_63 = arith.constant 1.000000e+00 : f32
    %223 = vector.broadcast %cst_63 : f32 to vector<128x1xf32>
    %224 = arith.divf %223, %222 : vector<128x1xf32>
    %225 = vector.broadcast %224 : vector<128x1xf32> to vector<128x128xf32>
    %226 = arith.mulf %193, %225 : vector<128x128xf32>
    %cst_64 = arith.constant dense<0.000000e+00> : vector<128xf32>
    %227 = vector.multi_reduction <add>, %226, %cst_64 [0] : vector<128x128xf32> to vector<128xf32>
    %228 = vector.shape_cast %227 : vector<128xf32> to vector<1x128xf32>
    %cst_65 = arith.constant 1.280000e+02 : f32
    %229 = vector.broadcast %cst_65 : f32 to vector<1x128xf32>
    %230 = arith.divf %228, %229 : vector<1x128xf32>
    %cst_66 = arith.constant dense<0xFF800000> : vector<128xf32>
    %231 = vector.multi_reduction <maximumf>, %226, %cst_66 [0] : vector<128x128xf32> to vector<128xf32>
    %232 = vector.shape_cast %231 : vector<128xf32> to vector<1x128xf32>
    %cst_67 = arith.constant 0.000000e+00 : f32
    %233 = vector.broadcast %cst_67 : f32 to vector<1x128xf32>
    %c14 = arith.constant 14 : index
    %234 = memref.load %arg4[%c14] : memref<42xf32, #tpu.memory_space<smem>>
    %235 = vector.broadcast %234 : f32 to vector<1x128xf32>
    %236 = arith.mulf %230, %235 : vector<1x128xf32>
    %c21 = arith.constant 21 : index
    %237 = memref.load %arg4[%c21] : memref<42xf32, #tpu.memory_space<smem>>
    %238 = vector.broadcast %237 : f32 to vector<1x128xf32>
    %239 = arith.mulf %232, %238 : vector<1x128xf32>
    %240 = arith.addf %236, %239 : vector<1x128xf32>
    %c3_i32_68 = arith.constant 3 : i32
    %241 = tpu.dynamic_rotate %240 by %c3_i32_68 dim 1 : vector<1x128xf32>, i32 -> vector<1x128xf32>
    %242 = arith.addf %233, %241 : vector<1x128xf32>
    %c15 = arith.constant 15 : index
    %243 = memref.load %arg4[%c15] : memref<42xf32, #tpu.memory_space<smem>>
    %244 = vector.broadcast %243 : f32 to vector<1x128xf32>
    %245 = arith.mulf %230, %244 : vector<1x128xf32>
    %c22 = arith.constant 22 : index
    %246 = memref.load %arg4[%c22] : memref<42xf32, #tpu.memory_space<smem>>
    %247 = vector.broadcast %246 : f32 to vector<1x128xf32>
    %248 = arith.mulf %232, %247 : vector<1x128xf32>
    %249 = arith.addf %245, %248 : vector<1x128xf32>
    %c2_i32_69 = arith.constant 2 : i32
    %250 = tpu.dynamic_rotate %249 by %c2_i32_69 dim 1 : vector<1x128xf32>, i32 -> vector<1x128xf32>
    %251 = arith.addf %242, %250 : vector<1x128xf32>
    %c16 = arith.constant 16 : index
    %252 = memref.load %arg4[%c16] : memref<42xf32, #tpu.memory_space<smem>>
    %253 = vector.broadcast %252 : f32 to vector<1x128xf32>
    %254 = arith.mulf %230, %253 : vector<1x128xf32>
    %c23 = arith.constant 23 : index
    %255 = memref.load %arg4[%c23] : memref<42xf32, #tpu.memory_space<smem>>
    %256 = vector.broadcast %255 : f32 to vector<1x128xf32>
    %257 = arith.mulf %232, %256 : vector<1x128xf32>
    %258 = arith.addf %254, %257 : vector<1x128xf32>
    %c1_i32_70 = arith.constant 1 : i32
    %259 = tpu.dynamic_rotate %258 by %c1_i32_70 dim 1 : vector<1x128xf32>, i32 -> vector<1x128xf32>
    %260 = arith.addf %251, %259 : vector<1x128xf32>
    %c17 = arith.constant 17 : index
    %261 = memref.load %arg4[%c17] : memref<42xf32, #tpu.memory_space<smem>>
    %262 = vector.broadcast %261 : f32 to vector<1x128xf32>
    %263 = arith.mulf %230, %262 : vector<1x128xf32>
    %c24 = arith.constant 24 : index
    %264 = memref.load %arg4[%c24] : memref<42xf32, #tpu.memory_space<smem>>
    %265 = vector.broadcast %264 : f32 to vector<1x128xf32>
    %266 = arith.mulf %232, %265 : vector<1x128xf32>
    %267 = arith.addf %263, %266 : vector<1x128xf32>
    %268 = arith.addf %260, %267 : vector<1x128xf32>
    %c18 = arith.constant 18 : index
    %269 = memref.load %arg4[%c18] : memref<42xf32, #tpu.memory_space<smem>>
    %270 = vector.broadcast %269 : f32 to vector<1x128xf32>
    %271 = arith.mulf %230, %270 : vector<1x128xf32>
    %c25 = arith.constant 25 : index
    %272 = memref.load %arg4[%c25] : memref<42xf32, #tpu.memory_space<smem>>
    %273 = vector.broadcast %272 : f32 to vector<1x128xf32>
    %274 = arith.mulf %232, %273 : vector<1x128xf32>
    %275 = arith.addf %271, %274 : vector<1x128xf32>
    %c127_i32_71 = arith.constant 127 : i32
    %276 = tpu.dynamic_rotate %275 by %c127_i32_71 dim 1 : vector<1x128xf32>, i32 -> vector<1x128xf32>
    %277 = arith.addf %268, %276 : vector<1x128xf32>
    %c19 = arith.constant 19 : index
    %278 = memref.load %arg4[%c19] : memref<42xf32, #tpu.memory_space<smem>>
    %279 = vector.broadcast %278 : f32 to vector<1x128xf32>
    %280 = arith.mulf %230, %279 : vector<1x128xf32>
    %c26 = arith.constant 26 : index
    %281 = memref.load %arg4[%c26] : memref<42xf32, #tpu.memory_space<smem>>
    %282 = vector.broadcast %281 : f32 to vector<1x128xf32>
    %283 = arith.mulf %232, %282 : vector<1x128xf32>
    %284 = arith.addf %280, %283 : vector<1x128xf32>
    %c126_i32_72 = arith.constant 126 : i32
    %285 = tpu.dynamic_rotate %284 by %c126_i32_72 dim 1 : vector<1x128xf32>, i32 -> vector<1x128xf32>
    %286 = arith.addf %277, %285 : vector<1x128xf32>
    %c20 = arith.constant 20 : index
    %287 = memref.load %arg4[%c20] : memref<42xf32, #tpu.memory_space<smem>>
    %288 = vector.broadcast %287 : f32 to vector<1x128xf32>
    %289 = arith.mulf %230, %288 : vector<1x128xf32>
    %c27 = arith.constant 27 : index
    %290 = memref.load %arg4[%c27] : memref<42xf32, #tpu.memory_space<smem>>
    %291 = vector.broadcast %290 : f32 to vector<1x128xf32>
    %292 = arith.mulf %232, %291 : vector<1x128xf32>
    %293 = arith.addf %289, %292 : vector<1x128xf32>
    %c125_i32_73 = arith.constant 125 : i32
    %294 = tpu.dynamic_rotate %293 by %c125_i32_73 dim 1 : vector<1x128xf32>, i32 -> vector<1x128xf32>
    %295 = arith.addf %286, %294 : vector<1x128xf32>
    %cst_74 = arith.constant 0.000000e+00 : f32
    %296 = vector.broadcast %cst_74 : f32 to vector<1x128xf32>
    %297 = arith.subf %296, %295 : vector<1x128xf32>
    %298 = math.exp %297 : vector<1x128xf32>
    %cst_75 = arith.constant 1.000000e+00 : f32
    %299 = vector.broadcast %cst_75 : f32 to vector<1x128xf32>
    %300 = arith.addf %299, %298 : vector<1x128xf32>
    %cst_76 = arith.constant 1.000000e+00 : f32
    %301 = vector.broadcast %cst_76 : f32 to vector<1x128xf32>
    %302 = arith.divf %301, %300 : vector<1x128xf32>
    %303 = vector.broadcast %302 : vector<1x128xf32> to vector<128x128xf32>
    %304 = arith.mulf %226, %303 : vector<128x128xf32>
    %305 = vector.shape_cast %304 : vector<128x128xf32> to vector<1x128x128xf32>
    %cst_77 = arith.constant dense<0.000000e+00> : vector<1xf32>
    %306 = vector.multi_reduction <add>, %305, %cst_77 [1, 2] : vector<1x128x128xf32> to vector<1xf32>
    %307 = vector.shape_cast %306 : vector<1xf32> to vector<1x1x1xf32>
    %308 = vector.extract %307[0, 0, 0] : f32 from vector<1x1x1xf32>
    %309 = arith.mulf %304, %304 : vector<128x128xf32>
    %310 = vector.shape_cast %309 : vector<128x128xf32> to vector<1x128x128xf32>
    %cst_78 = arith.constant dense<0.000000e+00> : vector<1xf32>
    %311 = vector.multi_reduction <add>, %310, %cst_78 [1, 2] : vector<1x128x128xf32> to vector<1xf32>
    %312 = vector.shape_cast %311 : vector<1xf32> to vector<1x1x1xf32>
    %313 = vector.extract %312[0, 0, 0] : f32 from vector<1x1x1xf32>
    %cst_79 = arith.constant 9.765625E-4 : f32
    %314 = arith.mulf %308, %cst_79 : f32
    %315 = arith.mulf %308, %314 : f32
    %316 = arith.subf %313, %315 : f32
    %cst_80 = arith.constant 1.023000e+03 : f32
    %317 = arith.divf %316, %cst_80 : f32
    %cst_81 = arith.constant 0.000000e+00 : f32
    %318 = arith.maximumf %317, %cst_81 : f32
    %319 = math.sqrt %318 : f32
    %cst_82 = arith.constant 9.99999974E-6 : f32
    %320 = arith.addf %319, %cst_82 : f32
    %cst_83 = arith.constant 1.000000e+00 : f32
    %321 = arith.divf %cst_83, %320 : f32
    %322 = vector.broadcast %314 : f32 to vector<128x128xf32>
    %323 = arith.subf %304, %322 : vector<128x128xf32>
    %324 = vector.broadcast %321 : f32 to vector<128x128xf32>
    %325 = arith.mulf %323, %324 : vector<128x128xf32>
    %cst_84 = arith.constant 0.000000e+00 : f32
    %326 = vector.broadcast %cst_84 : f32 to vector<128x128xf32>
    %327 = arith.cmpf ogt, %325, %326 : vector<128x128xf32>
    %cst_85 = arith.constant 0.00999999977 : f32
    %328 = vector.broadcast %cst_85 : f32 to vector<128x128xf32>
    %329 = arith.mulf %328, %325 : vector<128x128xf32>
    %330 = arith.select %327, %325, %329 : vector<128x128xi1>, vector<128x128xf32>
    %c0_86 = arith.constant 0 : index
    %c0_87 = arith.constant 0 : index
    %331 = vector.load %arg13[%c0_86, %c0_87] : memref<192x128xf32, #tpu.memory_space<vmem>>, vector<192x128xf32>
    %cst_88 = arith.constant dense<0.000000e+00> : vector<192x128xf32>
    %332 = tpu.matmul %331, %330, %cst_88 {dimension_numbers = #tpu.dot_dimension_numbers<[1], [0], [0], [1], [0, 0, 1, 1], [], []>} : vector<192x128xf32>, vector<128x128xf32>, vector<192x128xf32> -> vector<192x128xf32>
    %333 = vector.extract_strided_slice %332 {offsets = [0, 0], sizes = [64, 128], strides = [1, 1]} : vector<192x128xf32> to vector<64x128xf32>
    %334 = vector.extract_strided_slice %332 {offsets = [64, 0], sizes = [64, 128], strides = [1, 1]} : vector<192x128xf32> to vector<64x128xf32>
    %335 = arith.truncf %334 : vector<64x128xf32> to vector<64x128xbf16>
    %336 = vector.extract_strided_slice %332 {offsets = [128, 0], sizes = [64, 128], strides = [1, 1]} : vector<192x128xf32> to vector<64x128xf32>
    %337 = arith.truncf %336 : vector<64x128xf32> to vector<64x128xbf16>
    %338 = vector.broadcast %12 : vector<1x128xf32> to vector<64x128xf32>
    %339 = arith.mulf %333, %338 : vector<64x128xf32>
    %340 = vector.extract_strided_slice %333 {offsets = [0, 0], sizes = [64, 1], strides = [1, 1]} : vector<64x128xf32> to vector<64x1xf32>
    %341 = vector.broadcast %340 : vector<64x1xf32> to vector<64x128xf32>
    %342 = vector.broadcast %13 : vector<1x128xf32> to vector<64x128xf32>
    %343 = arith.mulf %341, %342 : vector<64x128xf32>
    %344 = arith.addf %339, %343 : vector<64x128xf32>
    %cst_89 = arith.constant dense<0.000000e+00> : vector<64x128xf32>
    %345 = tpu.matmul %335, %8, %cst_89 {dimension_numbers = #tpu.dot_dimension_numbers<[1], [0], [0], [1], [0, 0, 1, 1], [], []>} : vector<64x128xbf16>, vector<128x128xbf16>, vector<64x128xf32> -> vector<64x128xf32>
    %346 = arith.addf %344, %345 : vector<64x128xf32>
    %cst_90 = arith.constant dense<0.000000e+00> : vector<64x128xf32>
    %347 = tpu.matmul %337, %9, %cst_90 {dimension_numbers = #tpu.dot_dimension_numbers<[1], [0], [0], [1], [0, 0, 1, 1], [], []>} : vector<64x128xbf16>, vector<128x128xbf16>, vector<64x128xf32> -> vector<64x128xf32>
    %348 = arith.addf %346, %347 : vector<64x128xf32>
    %c0_91 = arith.constant 0 : index
    %c0_92 = arith.constant 0 : index
    %349 = vector.load %arg14[%c0_91, %c0_92] : memref<64x1xf32, #tpu.memory_space<vmem>>, vector<64x1xf32>
    %350 = vector.broadcast %349 : vector<64x1xf32> to vector<64x128xf32>
    %351 = vector.broadcast %14 : vector<1x128xf32> to vector<64x128xf32>
    %352 = arith.mulf %350, %351 : vector<64x128xf32>
    %353 = arith.addf %348, %352 : vector<64x128xf32>
    %cst_93 = arith.constant dense<0.000000e+00> : vector<64xf32>
    %354 = vector.multi_reduction <add>, %353, %cst_93 [1] : vector<64x128xf32> to vector<64xf32>
    %355 = vector.shape_cast %354 : vector<64xf32> to vector<64x1xf32>
    %cst_94 = arith.constant 1.250000e-01 : f32
    %356 = vector.broadcast %cst_94 : f32 to vector<64x1xf32>
    %357 = arith.mulf %355, %356 : vector<64x1xf32>
    %cst_95 = arith.constant dense<0xFF800000> : vector<64xf32>
    %358 = vector.multi_reduction <maximumf>, %353, %cst_95 [1] : vector<64x128xf32> to vector<64xf32>
    %359 = vector.shape_cast %358 : vector<64xf32> to vector<64x1xf32>
    %c0_i32_96 = arith.constant 0 : i32
    %360 = vector.broadcast %c0_i32_96 : i32 to vector<1x2xi32>
    %361 = arith.cmpi eq, %3, %360 : vector<1x2xi32>
    %362 = vector.shape_cast %361 : vector<1x2xi1> to vector<1x2xi1>
    %363 = vector.broadcast %362 : vector<1x2xi1> to vector<64x2xi1>
    %364 = vector.shape_cast %357 : vector<64x1xf32> to vector<64x1xf32>
    %365 = vector.broadcast %364 : vector<64x1xf32> to vector<64x2xf32>
    %366 = vector.shape_cast %359 : vector<64x1xf32> to vector<64x1xf32>
    %367 = vector.broadcast %366 : vector<64x1xf32> to vector<64x2xf32>
    %368 = arith.select %363, %365, %367 : vector<64x2xi1>, vector<64x2xf32>
    %c0_97 = arith.constant 0 : index
    %c0_98 = arith.constant 0 : index
    %369 = vector.load %arg15[%c0_97, %c0_98] : memref<4x64xf32, #tpu.memory_space<vmem>>, vector<4x64xf32>
    %cst_99 = arith.constant dense<0.000000e+00> : vector<4x2xf32>
    %370 = tpu.matmul %369, %368, %cst_99 {dimension_numbers = #tpu.dot_dimension_numbers<[1], [0], [0], [1], [0, 0, 1, 1], [], []>} : vector<4x64xf32>, vector<64x2xf32>, vector<4x2xf32> -> vector<4x2xf32>
    %cst_100 = arith.constant 0.000000e+00 : f32
    %371 = vector.broadcast %cst_100 : f32 to vector<4x2xf32>
    %372 = arith.maximumf %370, %371 : vector<4x2xf32>
    %c0_101 = arith.constant 0 : index
    %c0_102 = arith.constant 0 : index
    %373 = vector.load %arg16[%c0_101, %c0_102] : memref<64x4xf32, #tpu.memory_space<vmem>>, vector<64x4xf32>
    %cst_103 = arith.constant dense<0.000000e+00> : vector<64x2xf32>
    %374 = tpu.matmul %373, %372, %cst_103 {dimension_numbers = #tpu.dot_dimension_numbers<[1], [0], [0], [1], [0, 0, 1, 1], [], []>} : vector<64x4xf32>, vector<4x2xf32>, vector<64x2xf32> -> vector<64x2xf32>
    %375 = vector.extract_strided_slice %374 {offsets = [0, 0], sizes = [64, 1], strides = [1, 1]} : vector<64x2xf32> to vector<64x1xf32>
    %376 = vector.extract_strided_slice %374 {offsets = [0, 1], sizes = [64, 1], strides = [1, 1]} : vector<64x2xf32> to vector<64x1xf32>
    %377 = arith.addf %375, %376 : vector<64x1xf32>
    %cst_104 = arith.constant 0.000000e+00 : f32
    %378 = vector.broadcast %cst_104 : f32 to vector<64x1xf32>
    %379 = arith.subf %378, %377 : vector<64x1xf32>
    %380 = math.exp %379 : vector<64x1xf32>
    %cst_105 = arith.constant 1.000000e+00 : f32
    %381 = vector.broadcast %cst_105 : f32 to vector<64x1xf32>
    %382 = arith.addf %381, %380 : vector<64x1xf32>
    %cst_106 = arith.constant 1.000000e+00 : f32
    %383 = vector.broadcast %cst_106 : f32 to vector<64x1xf32>
    %384 = arith.divf %383, %382 : vector<64x1xf32>
    %385 = vector.broadcast %384 : vector<64x1xf32> to vector<64x128xf32>
    %386 = arith.mulf %353, %385 : vector<64x128xf32>
    %cst_107 = arith.constant dense<0.000000e+00> : vector<128xf32>
    %387 = vector.multi_reduction <add>, %386, %cst_107 [0] : vector<64x128xf32> to vector<128xf32>
    %388 = vector.shape_cast %387 : vector<128xf32> to vector<1x128xf32>
    %cst_108 = arith.constant 6.400000e+01 : f32
    %389 = vector.broadcast %cst_108 : f32 to vector<1x128xf32>
    %390 = arith.divf %388, %389 : vector<1x128xf32>
    %cst_109 = arith.constant dense<0xFF800000> : vector<128xf32>
    %391 = vector.multi_reduction <maximumf>, %386, %cst_109 [0] : vector<64x128xf32> to vector<128xf32>
    %392 = vector.shape_cast %391 : vector<128xf32> to vector<1x128xf32>
    %cst_110 = arith.constant 0.000000e+00 : f32
    %393 = vector.broadcast %cst_110 : f32 to vector<1x128xf32>
    %c28 = arith.constant 28 : index
    %394 = memref.load %arg4[%c28] : memref<42xf32, #tpu.memory_space<smem>>
    %395 = vector.broadcast %394 : f32 to vector<1x128xf32>
    %396 = arith.mulf %390, %395 : vector<1x128xf32>
    %c35 = arith.constant 35 : index
    %397 = memref.load %arg4[%c35] : memref<42xf32, #tpu.memory_space<smem>>
    %398 = vector.broadcast %397 : f32 to vector<1x128xf32>
    %399 = arith.mulf %392, %398 : vector<1x128xf32>
    %400 = arith.addf %396, %399 : vector<1x128xf32>
    %c3_i32_111 = arith.constant 3 : i32
    %401 = tpu.dynamic_rotate %400 by %c3_i32_111 dim 1 : vector<1x128xf32>, i32 -> vector<1x128xf32>
    %402 = arith.addf %393, %401 : vector<1x128xf32>
    %c29 = arith.constant 29 : index
    %403 = memref.load %arg4[%c29] : memref<42xf32, #tpu.memory_space<smem>>
    %404 = vector.broadcast %403 : f32 to vector<1x128xf32>
    %405 = arith.mulf %390, %404 : vector<1x128xf32>
    %c36 = arith.constant 36 : index
    %406 = memref.load %arg4[%c36] : memref<42xf32, #tpu.memory_space<smem>>
    %407 = vector.broadcast %406 : f32 to vector<1x128xf32>
    %408 = arith.mulf %392, %407 : vector<1x128xf32>
    %409 = arith.addf %405, %408 : vector<1x128xf32>
    %c2_i32_112 = arith.constant 2 : i32
    %410 = tpu.dynamic_rotate %409 by %c2_i32_112 dim 1 : vector<1x128xf32>, i32 -> vector<1x128xf32>
    %411 = arith.addf %402, %410 : vector<1x128xf32>
    %c30 = arith.constant 30 : index
    %412 = memref.load %arg4[%c30] : memref<42xf32, #tpu.memory_space<smem>>
    %413 = vector.broadcast %412 : f32 to vector<1x128xf32>
    %414 = arith.mulf %390, %413 : vector<1x128xf32>
    %c37 = arith.constant 37 : index
    %415 = memref.load %arg4[%c37] : memref<42xf32, #tpu.memory_space<smem>>
    %416 = vector.broadcast %415 : f32 to vector<1x128xf32>
    %417 = arith.mulf %392, %416 : vector<1x128xf32>
    %418 = arith.addf %414, %417 : vector<1x128xf32>
    %c1_i32_113 = arith.constant 1 : i32
    %419 = tpu.dynamic_rotate %418 by %c1_i32_113 dim 1 : vector<1x128xf32>, i32 -> vector<1x128xf32>
    %420 = arith.addf %411, %419 : vector<1x128xf32>
    %c31 = arith.constant 31 : index
    %421 = memref.load %arg4[%c31] : memref<42xf32, #tpu.memory_space<smem>>
    %422 = vector.broadcast %421 : f32 to vector<1x128xf32>
    %423 = arith.mulf %390, %422 : vector<1x128xf32>
    %c38 = arith.constant 38 : index
    %424 = memref.load %arg4[%c38] : memref<42xf32, #tpu.memory_space<smem>>
    %425 = vector.broadcast %424 : f32 to vector<1x128xf32>
    %426 = arith.mulf %392, %425 : vector<1x128xf32>
    %427 = arith.addf %423, %426 : vector<1x128xf32>
    %428 = arith.addf %420, %427 : vector<1x128xf32>
    %c32 = arith.constant 32 : index
    %429 = memref.load %arg4[%c32] : memref<42xf32, #tpu.memory_space<smem>>
    %430 = vector.broadcast %429 : f32 to vector<1x128xf32>
    %431 = arith.mulf %390, %430 : vector<1x128xf32>
    %c39 = arith.constant 39 : index
    %432 = memref.load %arg4[%c39] : memref<42xf32, #tpu.memory_space<smem>>
    %433 = vector.broadcast %432 : f32 to vector<1x128xf32>
    %434 = arith.mulf %392, %433 : vector<1x128xf32>
    %435 = arith.addf %431, %434 : vector<1x128xf32>
    %c127_i32_114 = arith.constant 127 : i32
    %436 = tpu.dynamic_rotate %435 by %c127_i32_114 dim 1 : vector<1x128xf32>, i32 -> vector<1x128xf32>
    %437 = arith.addf %428, %436 : vector<1x128xf32>
    %c33 = arith.constant 33 : index
    %438 = memref.load %arg4[%c33] : memref<42xf32, #tpu.memory_space<smem>>
    %439 = vector.broadcast %438 : f32 to vector<1x128xf32>
    %440 = arith.mulf %390, %439 : vector<1x128xf32>
    %c40 = arith.constant 40 : index
    %441 = memref.load %arg4[%c40] : memref<42xf32, #tpu.memory_space<smem>>
    %442 = vector.broadcast %441 : f32 to vector<1x128xf32>
    %443 = arith.mulf %392, %442 : vector<1x128xf32>
    %444 = arith.addf %440, %443 : vector<1x128xf32>
    %c126_i32_115 = arith.constant 126 : i32
    %445 = tpu.dynamic_rotate %444 by %c126_i32_115 dim 1 : vector<1x128xf32>, i32 -> vector<1x128xf32>
    %446 = arith.addf %437, %445 : vector<1x128xf32>
    %c34 = arith.constant 34 : index
    %447 = memref.load %arg4[%c34] : memref<42xf32, #tpu.memory_space<smem>>
    %448 = vector.broadcast %447 : f32 to vector<1x128xf32>
    %449 = arith.mulf %390, %448 : vector<1x128xf32>
    %c41 = arith.constant 41 : index
    %450 = memref.load %arg4[%c41] : memref<42xf32, #tpu.memory_space<smem>>
    %451 = vector.broadcast %450 : f32 to vector<1x128xf32>
    %452 = arith.mulf %392, %451 : vector<1x128xf32>
    %453 = arith.addf %449, %452 : vector<1x128xf32>
    %c125_i32_116 = arith.constant 125 : i32
    %454 = tpu.dynamic_rotate %453 by %c125_i32_116 dim 1 : vector<1x128xf32>, i32 -> vector<1x128xf32>
    %455 = arith.addf %446, %454 : vector<1x128xf32>
    %cst_117 = arith.constant 0.000000e+00 : f32
    %456 = vector.broadcast %cst_117 : f32 to vector<1x128xf32>
    %457 = arith.subf %456, %455 : vector<1x128xf32>
    %458 = math.exp %457 : vector<1x128xf32>
    %cst_118 = arith.constant 1.000000e+00 : f32
    %459 = vector.broadcast %cst_118 : f32 to vector<1x128xf32>
    %460 = arith.addf %459, %458 : vector<1x128xf32>
    %cst_119 = arith.constant 1.000000e+00 : f32
    %461 = vector.broadcast %cst_119 : f32 to vector<1x128xf32>
    %462 = arith.divf %461, %460 : vector<1x128xf32>
    %463 = vector.broadcast %462 : vector<1x128xf32> to vector<64x128xf32>
    %464 = arith.mulf %386, %463 : vector<64x128xf32>
    %465 = vector.shape_cast %464 : vector<64x128xf32> to vector<1x64x128xf32>
    %cst_120 = arith.constant dense<0.000000e+00> : vector<1xf32>
    %466 = vector.multi_reduction <add>, %465, %cst_120 [1, 2] : vector<1x64x128xf32> to vector<1xf32>
    %467 = vector.shape_cast %466 : vector<1xf32> to vector<1x1x1xf32>
    %468 = vector.extract %467[0, 0, 0] : f32 from vector<1x1x1xf32>
    %469 = arith.mulf %464, %464 : vector<64x128xf32>
    %470 = vector.shape_cast %469 : vector<64x128xf32> to vector<1x64x128xf32>
    %cst_121 = arith.constant dense<0.000000e+00> : vector<1xf32>
    %471 = vector.multi_reduction <add>, %470, %cst_121 [1, 2] : vector<1x64x128xf32> to vector<1xf32>
    %472 = vector.shape_cast %471 : vector<1xf32> to vector<1x1x1xf32>
    %473 = vector.extract %472[0, 0, 0] : f32 from vector<1x1x1xf32>
    %cst_122 = arith.constant 0.001953125 : f32
    %474 = arith.mulf %468, %cst_122 : f32
    %475 = arith.mulf %468, %474 : f32
    %476 = arith.subf %473, %475 : f32
    %cst_123 = arith.constant 5.110000e+02 : f32
    %477 = arith.divf %476, %cst_123 : f32
    %cst_124 = arith.constant 0.000000e+00 : f32
    %478 = arith.maximumf %477, %cst_124 : f32
    %479 = math.sqrt %478 : f32
    %cst_125 = arith.constant 9.99999974E-6 : f32
    %480 = arith.addf %479, %cst_125 : f32
    %cst_126 = arith.constant 1.000000e+00 : f32
    %481 = arith.divf %cst_126, %480 : f32
    %482 = vector.broadcast %474 : f32 to vector<64x128xf32>
    %483 = arith.subf %464, %482 : vector<64x128xf32>
    %484 = vector.broadcast %481 : f32 to vector<64x128xf32>
    %485 = arith.mulf %483, %484 : vector<64x128xf32>
    %cst_127 = arith.constant -1.000000e+30 : f32
    %486 = vector.shape_cast %2 : vector<1x128xi1> to vector<1x128xi1>
    %487 = vector.broadcast %486 : vector<1x128xi1> to vector<64x128xi1>
    %488 = vector.broadcast %cst_127 : f32 to vector<64x128xf32>
    %489 = arith.select %487, %485, %488 : vector<64x128xi1>, vector<64x128xf32>
    %cst_128 = arith.constant dense<0xFF800000> : vector<64xf32>
    %490 = vector.multi_reduction <maximumf>, %489, %cst_128 [1] : vector<64x128xf32> to vector<64xf32>
    %491 = vector.shape_cast %490 : vector<64xf32> to vector<64x1xf32>
    %c0_129 = arith.constant 0 : index
    %c0_130 = arith.constant 0 : index
    %c0_131 = arith.constant 0 : index
    %492 = vector.load %arg17[%c0_129, %c0_130, %c0_131] : memref<1x64x1xf32, #tpu.memory_space<vmem>>, vector<1x64x1xf32>
    %493 = vector.shape_cast %492 : vector<1x64x1xf32> to vector<64x1xf32>
    %494 = vector.shape_cast %491 : vector<64x1xf32> to vector<1x64x1xf32>
    tpu.vector_store %arg17[%c0_129, %c0_130, %c0_131], %494 {strides = array<i32>} : memref<1x64x1xf32, #tpu.memory_space<vmem>>, vector<1x64x1xf32>,
    return
  }
  func.func @transform_0(%arg0: i32) -> (i32, i32, i32) {
    %c0_i32 = arith.constant 0 : i32
    %c0_i32_0 = arith.constant 0 : i32
    %c0_i32_1 = arith.constant 0 : i32
    return %arg0, %c0_i32, %c0_i32_0 : i32, i32, i32
  }
  func.func @transform_1(%arg0: i32) -> (i32, i32, i32) {
    %c0_i32 = arith.constant 0 : i32
    %c0_i32_0 = arith.constant 0 : i32
    %c0_i32_1 = arith.constant 0 : i32
    return %arg0, %c0_i32, %c0_i32_0 : i32, i32, i32
  }
  func.func @transform_2(%arg0: i32) -> (i32, i32, i32) {
    %c0_i32 = arith.constant 0 : i32
    %c0_i32_0 = arith.constant 0 : i32
    %c0_i32_1 = arith.constant 0 : i32
    return %arg0, %c0_i32, %c0_i32_0 : i32, i32, i32
  }
  func.func @transform_3(%arg0: i32) -> i32 {
    %c0_i32 = arith.constant 0 : i32
    %c0_i32_0 = arith.constant 0 : i32
    return %c0_i32 : i32
  }
  func.func @transform_4(%arg0: i32) -> (i32, i32) {
    %c0_i32 = arith.constant 0 : i32
    %c0_i32_0 = arith.constant 0 : i32
    %c0_i32_1 = arith.constant 0 : i32
    return %c0_i32, %c0_i32_0 : i32, i32
  }
  func.func @transform_5(%arg0: i32) -> (i32, i32) {
    %c0_i32 = arith.constant 0 : i32
    %c0_i32_0 = arith.constant 0 : i32
    %c0_i32_1 = arith.constant 0 : i32
    return %c0_i32, %c0_i32_0 : i32, i32
  }
  func.func @transform_6(%arg0: i32) -> (i32, i32) {
    %c0_i32 = arith.constant 0 : i32
    %c0_i32_0 = arith.constant 0 : i32
    %c0_i32_1 = arith.constant 0 : i32
    return %c0_i32, %c0_i32_0 : i32, i32
  }
  func.func @transform_7(%arg0: i32) -> (i32, i32) {
    %c0_i32 = arith.constant 0 : i32
    %c0_i32_0 = arith.constant 0 : i32
    %c0_i32_1 = arith.constant 0 : i32
    return %c0_i32, %c0_i32_0 : i32, i32
  }
  func.func @transform_8(%arg0: i32) -> (i32, i32) {
    %c0_i32 = arith.constant 0 : i32
    %c0_i32_0 = arith.constant 0 : i32
    %c0_i32_1 = arith.constant 0 : i32
    return %c0_i32, %c0_i32_0 : i32, i32
  }
  func.func @transform_9(%arg0: i32) -> (i32, i32) {
    %c0_i32 = arith.constant 0 : i32
    %c0_i32_0 = arith.constant 0 : i32
    %c0_i32_1 = arith.constant 0 : i32
    return %c0_i32, %c0_i32_0 : i32, i32
  }
  func.func @transform_10(%arg0: i32) -> (i32, i32) {
    %c0_i32 = arith.constant 0 : i32
    %c0_i32_0 = arith.constant 0 : i32
    %c0_i32_1 = arith.constant 0 : i32
    return %c0_i32, %c0_i32_0 : i32, i32
  }
  func.func @transform_11(%arg0: i32) -> (i32, i32) {
    %c0_i32 = arith.constant 0 : i32
    %c0_i32_0 = arith.constant 0 : i32
    %c0_i32_1 = arith.constant 0 : i32
    return %c0_i32, %c0_i32_0 : i32, i32
  }
  func.func @transform_12(%arg0: i32) -> (i32, i32) {
    %c0_i32 = arith.constant 0 : i32
    %c0_i32_0 = arith.constant 0 : i32
    %c0_i32_1 = arith.constant 0 : i32
    return %c0_i32, %c0_i32_0 : i32, i32
  }
  func.func @transform_13(%arg0: i32) -> (i32, i32) {
    %c0_i32 = arith.constant 0 : i32
    %c0_i32_0 = arith.constant 0 : i32
    %c0_i32_1 = arith.constant 0 : i32
    return %c0_i32, %c0_i32_0 : i32, i32
  }
  func.func @transform_14(%arg0: i32) -> (i32, i32) {
    %c0_i32 = arith.constant 0 : i32
    %c0_i32_0 = arith.constant 0 : i32
    %c0_i32_1 = arith.constant 0 : i32
    return %c0_i32, %c0_i32_0 : i32, i32
  }
  func.func @transform_15(%arg0: i32) -> (i32, i32) {
    %c0_i32 = arith.constant 0 : i32
    %c0_i32_0 = arith.constant 0 : i32
    %c0_i32_1 = arith.constant 0 : i32
    return %c0_i32, %c0_i32_0 : i32, i32
  }
  func.func @transform_16(%arg0: i32) -> (i32, i32, i32) {
    %c0_i32 = arith.constant 0 : i32
    %c0_i32_0 = arith.constant 0 : i32
    %c0_i32_1 = arith.constant 0 : i32
    return %arg0, %c0_i32, %c0_i32_0 : i32, i32, i32
  }
}

</mosaic_0001>

<llo_original>
// kernel: tpu_custom_call.1
$region0: #{tpu_custom_call.1}
  #allocation0 [shape = 'u32[]', space=smem, size = 0x4, offset = 0x4, fixed_abs, tag = 'smem constant byte address 0x4 - core index']
  #allocation1 [shape = 'u32[72,128]{1,0:T(1,128)}', space=vmem, size = 0x9000, scoped, tag = 'internal scratch']
  %s0 = inlined_call_operand.vmem [shape: f32[2,16,128], index: 0, kind: input, shape index: {}]
  %s1 = inlined_call_operand.vmem [shape: bf16[2,128,256], index: 1, kind: input, shape index: {}]
  %s2 = inlined_call_operand.vmem [shape: f32[2,2,128], index: 2, kind: input, shape index: {}]
  %s3 = inlined_call_operand.vmem [shape: f32[42], index: 3, kind: input, shape index: {}]
  %s4 = inlined_call_operand.vmem [shape: f32[256,48], index: 4, kind: input, shape index: {}]
  %s5 = inlined_call_operand.vmem [shape: f32[256,1], index: 5, kind: input, shape index: {}]
  %s6 = inlined_call_operand.vmem [shape: f32[16,256], index: 6, kind: input, shape index: {}]
  %s7 = inlined_call_operand.vmem [shape: f32[256,16], index: 7, kind: input, shape index: {}]
  %s8 = inlined_call_operand.hbm [shape: f32[384,256], index: 8, kind: input, shape index: {}]
  %s9 = inlined_call_operand.vmem [shape: f32[128,1], index: 9, kind: input, shape index: {}]
  %s10 = inlined_call_operand.vmem [shape: f32[8,128], index: 10, kind: input, shape index: {}]
  %s11 = inlined_call_operand.vmem [shape: f32[128,8], index: 11, kind: input, shape index: {}]
  %s12 = inlined_call_operand.vmem [shape: f32[192,128], index: 12, kind: input, shape index: {}]
  %s13 = inlined_call_operand.vmem [shape: f32[64,1], index: 13, kind: input, shape index: {}]
  %s14 = inlined_call_operand.vmem [shape: f32[4,64], index: 14, kind: input, shape index: {}]
  %s15 = inlined_call_operand.vmem [shape: f32[64,4], index: 15, kind: input, shape index: {}]
  %s16 = inlined_call_operand.vmem [shape: f32[2,64,1], index: 16, kind: output, shape index: {}]
  %s17 = sld [smem:[#allocation0]]
  $region105: #{tpu_custom_call.1} parent=0
    _
  %s19 = ssub.s32 1, %s17
  %s20 = scalar_select 0, %s19, %s17
  $region1: #{tpu_custom_call.1} parent=0
    #allocation2 [shape = 'u8[512]{0}', space=smem, size = 0x200, scoped, tag = 'input window, operand 3, single buffered']
    #allocation3 [shape = 's32[2]{0}', space=sflag, size = 0x8, scoped, tag = 'scoped memory for tpu_custom_call.1']
    #allocation4 [shape = 's32[2]{0}', space=sflag, size = 0x8, scoped, tag = 'scoped memory for tpu_custom_call.1']
    #allocation5 [shape = 'u8[393216]{0}', space=vmem, size = 0x60000, scoped, tag = 'input window, operand 8, single buffered']
    %21 = vsyncpa [#allocation4], 0
    %22 = vsyncpa [#allocation3], 0
    loop: start=0, step=1, limit=4
    $region2: #{tpu_custom_call.1} parent=1 // loop_pre_header
      _
    $region3: #{tpu_custom_call.1} parent=1 // loop_header
      %s24 = sphi 0, %s28
      %p25 = scmp.ge.s32.totalorder %s24, 4
      %s34 = sphi 0, %s36
      %s37 = sphi 0, %s34
      %s38 = sphi 0, %s37
      %s54 = sphi 0, %s38
      %s60 = sphi 0, %s62
      %s63 = sphi 0, %s60
      %s64 = sphi 0, %s63
      %s80 = sphi 0, %s64
      %s86 = sphi 0, %s88
      %s89 = sphi 0, %s86
      %s90 = sphi 0, %s89
      %s106 = sphi 0, %s90
      %s110 = sphi 0, %s110
      %s112 = sphi 0, %s110
      %s113 = sphi 0, %s112
      %s127 = sphi 0, %s113
      %s131 = sphi 0, %s131
      %s133 = sphi 0, %s131
      %s134 = sphi 0, %s133
      %s148 = sphi 0, %s134
      %s152 = sphi 0, %s152
      %s154 = sphi 0, %s152
      %s155 = sphi 0, %s154
      %s169 = sphi 0, %s155
      %s173 = sphi 0, %s173
      %s175 = sphi 0, %s173
      %s176 = sphi 0, %s175
      %s190 = sphi 0, %s176
      %s194 = sphi 0, %s194
      %s196 = sphi 0, %s194
      %s197 = sphi 0, %s196
      %s211 = sphi 0, %s197
      %s215 = sphi 0, %s215
      %s217 = sphi 0, %s215
      %s218 = sphi 0, %s217
      %s232 = sphi 0, %s218
      %s236 = sphi 0, %s236
      %s238 = sphi 0, %s236
      %s239 = sphi 0, %s238
      %s253 = sphi 0, %s239
      %s257 = sphi 0, %s257
      %s259 = sphi 0, %s257
      %s260 = sphi 0, %s259
      %s274 = sphi 0, %s260
      %s278 = sphi 0, %s278
      %s280 = sphi 0, %s278
      %s281 = sphi 0, %s280
      %s295 = sphi 0, %s281
      %s299 = sphi 0, %s299
      %s301 = sphi 0, %s299
      %s302 = sphi 0, %s301
      %s316 = sphi 0, %s302
      %s320 = sphi 0, %s320
      %s322 = sphi 0, %s320
      %s323 = sphi 0, %s322
      %s337 = sphi 0, %s323
      %s341 = sphi 0, %s341
      %s343 = sphi 0, %s341
      %s344 = sphi 0, %s343
      %s358 = sphi 0, %s344
      %s362 = sphi 0, %s362
      %s364 = sphi 0, %s362
      %s365 = sphi 0, %s364
      %s379 = sphi 0, %s365
      %s385 = sphi 0, %s387
      %s388 = sphi 0, %s385
      %s389 = sphi 0, %s388
      %s405 = sphi 0, %s389
    $region4: #{tpu_custom_call.1} parent=1 // loop_header_branch
      %27 = sbr.rel (%p25) target = $region8
    $region5: #{tpu_custom_call.1} parent=1 // loop_body
      %s29 = ssub.s32 %s24, 1
      %s30 = ssub.s32 %s24, 2
      %s31 = sadd.s32 %s24, 1
      %s32 = ssub.s32 %s24, %s31
      %p33 = scmp.eq.s32.totalorder %s32, 0
      %s35 = sadd.s32 %s34, 1
      %s36 = scalar_select %p33, %s34, %s35
      %p39 = pneg %p33
      %p40 = scmp.eq.s32.totalorder %s24, 1
      %p41 = por %p39, %p40
      %p42 = scmp.ne.s32.totalorder %s34, %s37
      %p43 = scmp.eq.s32.totalorder %s24, 0
      %p44 = por %p42, %p43
      %p45 = scmp.ne.s32.totalorder %s34, %s37
      %p46 = scmp.eq.s32.totalorder %s29, 1
      %p47 = por %p45, %p46
      %p48 = scmp.ne.s32.totalorder %s37, %s38
      %p49 = scmp.eq.s32.totalorder %s29, 0
      %p50 = por %p48, %p49
      %p51 = scmp.ne.s32.totalorder %s37, %s38
      %p52 = scmp.eq.s32.totalorder %s30, 1
      %p53 = por %p51, %p52
      %p55 = scmp.ne.s32.totalorder %s38, %s54
      %p56 = scmp.eq.s32.totalorder %s30, 0
      %p57 = por %p55, %p56
      %s58 = ssub.s32 %s24, %s31
      %p59 = scmp.eq.s32.totalorder %s58, 0
      %s61 = sadd.s32 %s60, 1
      %s62 = scalar_select %p59, %s60, %s61
      %p65 = pneg %p59
      %p66 = scmp.eq.s32.totalorder %s24, 1
      %p67 = por %p65, %p66
      %p68 = scmp.ne.s32.totalorder %s60, %s63
      %p69 = scmp.eq.s32.totalorder %s24, 0
      %p70 = por %p68, %p69
      %p71 = scmp.ne.s32.totalorder %s60, %s63
      %p72 = scmp.eq.s32.totalorder %s29, 1
      %p73 = por %p71, %p72
      %p74 = scmp.ne.s32.totalorder %s63, %s64
      %p75 = scmp.eq.s32.totalorder %s29, 0
      %p76 = por %p74, %p75
      %p77 = scmp.ne.s32.totalorder %s63, %s64
      %p78 = scmp.eq.s32.totalorder %s30, 1
      %p79 = por %p77, %p78
      %p81 = scmp.ne.s32.totalorder %s64, %s80
      %p82 = scmp.eq.s32.totalorder %s30, 0
      %p83 = por %p81, %p82
      %s84 = ssub.s32 %s24, %s31
      %p85 = scmp.eq.s32.totalorder %s84, 0
      %s87 = sadd.s32 %s86, 1
      %s88 = scalar_select %p85, %s86, %s87
      %p91 = pneg %p85
      %p92 = scmp.eq.s32.totalorder %s24, 1
      %p93 = por %p91, %p92
      %p94 = scmp.ne.s32.totalorder %s86, %s89
      %p95 = scmp.eq.s32.totalorder %s24, 0
      %p96 = por %p94, %p95
      %p97 = scmp.ne.s32.totalorder %s86, %s89
      %p98 = scmp.eq.s32.totalorder %s29, 1
      %p99 = por %p97, %p98
      %p100 = scmp.ne.s32.totalorder %s89, %s90
      %p101 = scmp.eq.s32.totalorder %s29, 0
      %p102 = por %p100, %p101
      %p103 = scmp.ne.s32.totalorder %s89, %s90
      %p104 = scmp.eq.s32.totalorder %s30, 1
      %p105 = por %p103, %p104
      %p107 = scmp.ne.s32.totalorder %s90, %s106
      %p108 = scmp.eq.s32.totalorder %s30, 0
      %p109 = por %p107, %p108
      %s111 = sadd.s32 %s110, 1
      %p114 = scmp.eq.s32.totalorder %s24, 1
      %p115 = scmp.ne.s32.totalorder %s110, %s112
      %p116 = scmp.eq.s32.totalorder %s24, 0
      %p117 = por %p115, %p116
      %p118 = scmp.ne.s32.totalorder %s110, %s112
      %p119 = scmp.eq.s32.totalorder %s29, 1
      %p120 = por %p118, %p119
      %p121 = scmp.ne.s32.totalorder %s112, %s113
      %p122 = scmp.eq.s32.totalorder %s29, 0
      %p123 = por %p121, %p122
      %p124 = scmp.ne.s32.totalorder %s112, %s113
      %p125 = scmp.eq.s32.totalorder %s30, 1
      %p126 = por %p124, %p125
      %p128 = scmp.ne.s32.totalorder %s113, %s127
      %p129 = scmp.eq.s32.totalorder %s30, 0
      %p130 = por %p128, %p129
      %s132 = sadd.s32 %s131, 1
      %p135 = scmp.eq.s32.totalorder %s24, 1
      %p136 = scmp.ne.s32.totalorder %s131, %s133
      %p137 = scmp.eq.s32.totalorder %s24, 0
      %p138 = por %p136, %p137
      %p139 = scmp.ne.s32.totalorder %s131, %s133
      %p140 = scmp.eq.s32.totalorder %s29, 1
      %p141 = por %p139, %p140
      %p142 = scmp.ne.s32.totalorder %s133, %s134
      %p143 = scmp.eq.s32.totalorder %s29, 0
      %p144 = por %p142, %p143
      %p145 = scmp.ne.s32.totalorder %s133, %s134
      %p146 = scmp.eq.s32.totalorder %s30, 1
      %p147 = por %p145, %p146
      %p149 = scmp.ne.s32.totalorder %s134, %s148
      %p150 = scmp.eq.s32.totalorder %s30, 0
      %p151 = por %p149, %p150
      %s153 = sadd.s32 %s152, 1
      %p156 = scmp.eq.s32.totalorder %s24, 1
      %p157 = scmp.ne.s32.totalorder %s152, %s154
      %p158 = scmp.eq.s32.totalorder %s24, 0
      %p159 = por %p157, %p158
      %p160 = scmp.ne.s32.totalorder %s152, %s154
      %p161 = scmp.eq.s32.totalorder %s29, 1
      %p162 = por %p160, %p161
      %p163 = scmp.ne.s32.totalorder %s154, %s155
      %p164 = scmp.eq.s32.totalorder %s29, 0
      %p165 = por %p163, %p164
      %p166 = scmp.ne.s32.totalorder %s154, %s155
      %p167 = scmp.eq.s32.totalorder %s30, 1
      %p168 = por %p166, %p167
      %p170 = scmp.ne.s32.totalorder %s155, %s169
      %p171 = scmp.eq.s32.totalorder %s30, 0
      %p172 = por %p170, %p171
      %s174 = sadd.s32 %s173, 1
      %p177 = scmp.eq.s32.totalorder %s24, 1
      %p178 = scmp.ne.s32.totalorder %s173, %s175
      %p179 = scmp.eq.s32.totalorder %s24, 0
      %p180 = por %p178, %p179
      %p181 = scmp.ne.s32.totalorder %s173, %s175
      %p182 = scmp.eq.s32.totalorder %s29, 1
      %p183 = por %p181, %p182
      %p184 = scmp.ne.s32.totalorder %s175, %s176
      %p185 = scmp.eq.s32.totalorder %s29, 0
      %p186 = por %p184, %p185
      %p187 = scmp.ne.s32.totalorder %s175, %s176
      %p188 = scmp.eq.s32.totalorder %s30, 1
      %p189 = por %p187, %p188
      %p191 = scmp.ne.s32.totalorder %s176, %s190
      %p192 = scmp.eq.s32.totalorder %s30, 0
      %p193 = por %p191, %p192
      %s195 = sadd.s32 %s194, 1
      %p198 = scmp.eq.s32.totalorder %s24, 1
      %p199 = scmp.ne.s32.totalorder %s194, %s196
      %p200 = scmp.eq.s32.totalorder %s24, 0
      %p201 = por %p199, %p200
      %p202 = scmp.ne.s32.totalorder %s194, %s196
      %p203 = scmp.eq.s32.totalorder %s29, 1
      %p204 = por %p202, %p203
      %p205 = scmp.ne.s32.totalorder %s196, %s197
      %p206 = scmp.eq.s32.totalorder %s29, 0
      %p207 = por %p205, %p206
      %p208 = scmp.ne.s32.totalorder %s196, %s197
      %p209 = scmp.eq.s32.totalorder %s30, 1
      %p210 = por %p208, %p209
      %p212 = scmp.ne.s32.totalorder %s197, %s211
      %p213 = scmp.eq.s32.totalorder %s30, 0
      %p214 = por %p212, %p213
      %s216 = sadd.s32 %s215, 1
      %p219 = scmp.eq.s32.totalorder %s24, 1
      %p220 = scmp.ne.s32.totalorder %s215, %s217
      %p221 = scmp.eq.s32.totalorder %s24, 0
      %p222 = por %p220, %p221
      %p223 = scmp.ne.s32.totalorder %s215, %s217
      %p224 = scmp.eq.s32.totalorder %s29, 1
      %p225 = por %p223, %p224
      %p226 = scmp.ne.s32.totalorder %s217, %s218
      %p227 = scmp.eq.s32.totalorder %s29, 0
      %p228 = por %p226, %p227
      %p229 = scmp.ne.s32.totalorder %s217, %s218
      %p230 = scmp.eq.s32.totalorder %s30, 1
      %p231 = por %p229, %p230
      %p233 = scmp.ne.s32.totalorder %s218, %s232
      %p234 = scmp.eq.s32.totalorder %s30, 0
      %p235 = por %p233, %p234
      %s237 = sadd.s32 %s236, 1
      %p240 = scmp.eq.s32.totalorder %s24, 1
      %p241 = scmp.ne.s32.totalorder %s236, %s238
      %p242 = scmp.eq.s32.totalorder %s24, 0
      %p243 = por %p241, %p242
      %p244 = scmp.ne.s32.totalorder %s236, %s238
      %p245 = scmp.eq.s32.totalorder %s29, 1
      %p246 = por %p244, %p245
      %p247 = scmp.ne.s32.totalorder %s238, %s239
      %p248 = scmp.eq.s32.totalorder %s29, 0
      %p249 = por %p247, %p248
      %p250 = scmp.ne.s32.totalorder %s238, %s239
      %p251 = scmp.eq.s32.totalorder %s30, 1
      %p252 = por %p250, %p251
      %p254 = scmp.ne.s32.totalorder %s239, %s253
      %p255 = scmp.eq.s32.totalorder %s30, 0
      %p256 = por %p254, %p255
      %s258 = sadd.s32 %s257, 1
      %p261 = scmp.eq.s32.totalorder %s24, 1
      %p262 = scmp.ne.s32.totalorder %s257, %s259
      %p263 = scmp.eq.s32.totalorder %s24, 0
      %p264 = por %p262, %p263
      %p265 = scmp.ne.s32.totalorder %s257, %s259
      %p266 = scmp.eq.s32.totalorder %s29, 1
      %p267 = por %p265, %p266
      %p268 = scmp.ne.s32.totalorder %s259, %s260
      %p269 = scmp.eq.s32.totalorder %s29, 0
      %p270 = por %p268, %p269
      %p271 = scmp.ne.s32.totalorder %s259, %s260
      %p272 = scmp.eq.s32.totalorder %s30, 1
      %p273 = por %p271, %p272
      %p275 = scmp.ne.s32.totalorder %s260, %s274
      %p276 = scmp.eq.s32.totalorder %s30, 0
      %p277 = por %p275, %p276
      %s279 = sadd.s32 %s278, 1
      %p282 = scmp.eq.s32.totalorder %s24, 1
      %p283 = scmp.ne.s32.totalorder %s278, %s280
      %p284 = scmp.eq.s32.totalorder %s24, 0
      %p285 = por %p283, %p284
      %p286 = scmp.ne.s32.totalorder %s278, %s280
      %p287 = scmp.eq.s32.totalorder %s29, 1
      %p288 = por %p286, %p287
      %p289 = scmp.ne.s32.totalorder %s280, %s281
      %p290 = scmp.eq.s32.totalorder %s29, 0
      %p291 = por %p289, %p290
      %p292 = scmp.ne.s32.totalorder %s280, %s281
      %p293 = scmp.eq.s32.totalorder %s30, 1
      %p294 = por %p292, %p293
      %p296 = scmp.ne.s32.totalorder %s281, %s295
      %p297 = scmp.eq.s32.totalorder %s30, 0
      %p298 = por %p296, %p297
      %s300 = sadd.s32 %s299, 1
      %p303 = scmp.eq.s32.totalorder %s24, 1
      %p304 = scmp.ne.s32.totalorder %s299, %s301
      %p305 = scmp.eq.s32.totalorder %s24, 0
      %p306 = por %p304, %p305
      %p307 = scmp.ne.s32.totalorder %s299, %s301
      %p308 = scmp.eq.s32.totalorder %s29, 1
      %p309 = por %p307, %p308
      %p310 = scmp.ne.s32.totalorder %s301, %s302
      %p311 = scmp.eq.s32.totalorder %s29, 0
      %p312 = por %p310, %p311
      %p313 = scmp.ne.s32.totalorder %s301, %s302
      %p314 = scmp.eq.s32.totalorder %s30, 1
      %p315 = por %p313, %p314
      %p317 = scmp.ne.s32.totalorder %s302, %s316
      %p318 = scmp.eq.s32.totalorder %s30, 0
      %p319 = por %p317, %p318
      %s321 = sadd.s32 %s320, 1
      %p324 = scmp.eq.s32.totalorder %s24, 1
      %p325 = scmp.ne.s32.totalorder %s320, %s322
      %p326 = scmp.eq.s32.totalorder %s24, 0
      %p327 = por %p325, %p326
      %p328 = scmp.ne.s32.totalorder %s320, %s322
      %p329 = scmp.eq.s32.totalorder %s29, 1
      %p330 = por %p328, %p329
      %p331 = scmp.ne.s32.totalorder %s322, %s323
      %p332 = scmp.eq.s32.totalorder %s29, 0
      %p333 = por %p331, %p332
      %p334 = scmp.ne.s32.totalorder %s322, %s323
      %p335 = scmp.eq.s32.totalorder %s30, 1
      %p336 = por %p334, %p335
      %p338 = scmp.ne.s32.totalorder %s323, %s337
      %p339 = scmp.eq.s32.totalorder %s30, 0
      %p340 = por %p338, %p339
      %s342 = sadd.s32 %s341, 1
      %p345 = scmp.eq.s32.totalorder %s24, 1
      %p346 = scmp.ne.s32.totalorder %s341, %s343
      %p347 = scmp.eq.s32.totalorder %s24, 0
      %p348 = por %p346, %p347
      %p349 = scmp.ne.s32.totalorder %s341, %s343
      %p350 = scmp.eq.s32.totalorder %s29, 1
      %p351 = por %p349, %p350
      %p352 = scmp.ne.s32.totalorder %s343, %s344
      %p353 = scmp.eq.s32.totalorder %s29, 0
      %p354 = por %p352, %p353
      %p355 = scmp.ne.s32.totalorder %s343, %s344
      %p356 = scmp.eq.s32.totalorder %s30, 1
      %p357 = por %p355, %p356
      %p359 = scmp.ne.s32.totalorder %s344, %s358
      %p360 = scmp.eq.s32.totalorder %s30, 0
      %p361 = por %p359, %p360
      %s363 = sadd.s32 %s362, 1
      %p366 = scmp.eq.s32.totalorder %s24, 1
      %p367 = scmp.ne.s32.totalorder %s362, %s364
      %p368 = scmp.eq.s32.totalorder %s24, 0
      %p369 = por %p367, %p368
      %p370 = scmp.ne.s32.totalorder %s362, %s364
      %p371 = scmp.eq.s32.totalorder %s29, 1
      %p372 = por %p370, %p371
      %p373 = scmp.ne.s32.totalorder %s364, %s365
      %p374 = scmp.eq.s32.totalorder %s29, 0
      %p375 = por %p373, %p374
      %p376 = scmp.ne.s32.totalorder %s364, %s365
      %p377 = scmp.eq.s32.totalorder %s30, 1
      %p378 = por %p376, %p377
      %p380 = scmp.ne.s32.totalorder %s365, %s379
      %p381 = scmp.eq.s32.totalorder %s30, 0
      %p382 = por %p380, %p381
      %s383 = ssub.s32 %s24, %s31
      %p384 = scmp.eq.s32.totalorder %s383, 0
      %s386 = sadd.s32 %s385, 1
      %s387 = scalar_select %p384, %s385, %s386
      %p390 = pneg %p384
      %p391 = scmp.eq.s32.totalorder %s24, 1
      %p392 = por %p390, %p391
      %p393 = scmp.ne.s32.totalorder %s385, %s388
      %p394 = scmp.eq.s32.totalorder %s24, 0
      %p395 = por %p393, %p394
      %p396 = scmp.ne.s32.totalorder %s385, %s388
      %p397 = scmp.eq.s32.totalorder %s29, 1
      %p398 = por %p396, %p397
      %p399 = scmp.ne.s32.totalorder %s388, %s389
      %p400 = scmp.eq.s32.totalorder %s29, 0
      %p401 = por %p399, %p400
      %p402 = scmp.ne.s32.totalorder %s388, %s389
      %p403 = scmp.eq.s32.totalorder %s30, 1
      %p404 = por %p402, %p403
      %p406 = scmp.ne.s32.totalorder %s389, %s405
      %p407 = scmp.eq.s32.totalorder %s30, 0
      %p408 = por %p406, %p407
      %p409 = scmp.le.s32.totalorder 1, %s24
      %p410 = scmp.lt.s32.totalorder %s24, 3
      %p411 = pnand %p409, %p410
      %p412 = pneg %p411
      // Predicated region
      $region9: #{tpu_custom_call.1} parent=5 // pred_check
        _
      $region10: #{tpu_custom_call.1} parent=5 // pred_check_branch
        %414 = sbr.rel (%p411) target = $region12
      $region11: #{tpu_custom_call.1} parent=5 // pred_region
        %s415 = ssub.s32 %s24, 1
        // Predicated region
        $region13: #{tpu_custom_call.1} parent=11 // pred_check
          %p416 = pneg %p123
        $region14: #{tpu_custom_call.1} parent=11 // pred_check_branch
          %418 = sbr.rel (%p416) target = $region16
        $region15: #{tpu_custom_call.1} parent=11 // pred_region
          %420 = vsyncadd [#allocation4], 0
          %s422 = sshll.u32 %s3, 4
          %s423 = int_to_ptr.vmem [resolvable:$true] %s422
          %425 = dma.vmem_to_smem %s423, 16, [#allocation2], [#allocation4]
        $region16: #{tpu_custom_call.1} parent=11 // pred_fallthru
          _
        // Predicated region
        $region17: #{tpu_custom_call.1} parent=11 // pred_check
          %p426 = pneg %p144
        $region18: #{tpu_custom_call.1} parent=11 // pred_check_branch
          %428 = sbr.rel (%p426) target = $region20
        $region19: #{tpu_custom_call.1} parent=11 // pred_region
          _
        $region20: #{tpu_custom_call.1} parent=11 // pred_fallthru
          _
        // Predicated region
        $region21: #{tpu_custom_call.1} parent=11 // pred_check
          %p429 = pneg %p165
        $region22: #{tpu_custom_call.1} parent=11 // pred_check_branch
          %431 = sbr.rel (%p429) target = $region24
        $region23: #{tpu_custom_call.1} parent=11 // pred_region
          _
        $region24: #{tpu_custom_call.1} parent=11 // pred_fallthru
          _
        // Predicated region
        $region25: #{tpu_custom_call.1} parent=11 // pred_check
          %p432 = pneg %p186
        $region26: #{tpu_custom_call.1} parent=11 // pred_check_branch
          %434 = sbr.rel (%p432) target = $region28
        $region27: #{tpu_custom_call.1} parent=11 // pred_region
          _
        $region28: #{tpu_custom_call.1} parent=11 // pred_fallthru
          _
        // Predicated region
        $region29: #{tpu_custom_call.1} parent=11 // pred_check
          %p435 = pneg %p207
        $region30: #{tpu_custom_call.1} parent=11 // pred_check_branch
          %437 = sbr.rel (%p435) target = $region32
        $region31: #{tpu_custom_call.1} parent=11 // pred_region
          _
        $region32: #{tpu_custom_call.1} parent=11 // pred_fallthru
          _
        // Predicated region
        $region33: #{tpu_custom_call.1} parent=11 // pred_check
          %p438 = pneg %p228
        $region34: #{tpu_custom_call.1} parent=11 // pred_check_branch
          %440 = sbr.rel (%p438) target = $region36
        $region35: #{tpu_custom_call.1} parent=11 // pred_region
          %442 = vsyncadd [#allocation3], 0
          %s443 = sshll.u32 %s8, 4
          %s444 = int_to_ptr.hbm [resolvable:$true] %s443
          %s445 = sshll.u32 [#allocation5], 4
          %s446 = int_to_ptr.vmem [resolvable:$true] %s445
          %451 = dma.hbm_to_vmem [thread:$0]  %s444, 12288, %s446, [#allocation3], 256, 256, 16
        $region36: #{tpu_custom_call.1} parent=11 // pred_fallthru
          _
        // Predicated region
        $region37: #{tpu_custom_call.1} parent=11 // pred_check
          %p452 = pneg %p249
        $region38: #{tpu_custom_call.1} parent=11 // pred_check_branch
          %454 = sbr.rel (%p452) target = $region40
        $region39: #{tpu_custom_call.1} parent=11 // pred_region
          _
        $region40: #{tpu_custom_call.1} parent=11 // pred_fallthru
          _
        // Predicated region
        $region41: #{tpu_custom_call.1} parent=11 // pred_check
          %p455 = pneg %p270
        $region42: #{tpu_custom_call.1} parent=11 // pred_check_branch
          %457 = sbr.rel (%p455) target = $region44
        $region43: #{tpu_custom_call.1} parent=11 // pred_region
          _
        $region44: #{tpu_custom_call.1} parent=11 // pred_fallthru
          _
        // Predicated region
        $region45: #{tpu_custom_call.1} parent=11 // pred_check
          %p458 = pneg %p291
        $region46: #{tpu_custom_call.1} parent=11 // pred_check_branch
          %460 = sbr.rel (%p458) target = $region48
        $region47: #{tpu_custom_call.1} parent=11 // pred_region
          _
        $region48: #{tpu_custom_call.1} parent=11 // pred_fallthru
          _
        // Predicated region
        $region49: #{tpu_custom_call.1} parent=11 // pred_check
          %p461 = pneg %p312
        $region50: #{tpu_custom_call.1} parent=11 // pred_check_branch
          %463 = sbr.rel (%p461) target = $region52
        $region51: #{tpu_custom_call.1} parent=11 // pred_region
          _
        $region52: #{tpu_custom_call.1} parent=11 // pred_fallthru
          _
        // Predicated region
        $region53: #{tpu_custom_call.1} parent=11 // pred_check
          %p464 = pneg %p333
        $region54: #{tpu_custom_call.1} parent=11 // pred_check_branch
          %466 = sbr.rel (%p464) target = $region56
        $region55: #{tpu_custom_call.1} parent=11 // pred_region
          _
        $region56: #{tpu_custom_call.1} parent=11 // pred_fallthru
          _
        // Predicated region
        $region57: #{tpu_custom_call.1} parent=11 // pred_check
          %p467 = pneg %p354
        $region58: #{tpu_custom_call.1} parent=11 // pred_check_branch
          %469 = sbr.rel (%p467) target = $region60
        $region59: #{tpu_custom_call.1} parent=11 // pred_region
          _
        $region60: #{tpu_custom_call.1} parent=11 // pred_fallthru
          _
        // Predicated region
        $region61: #{tpu_custom_call.1} parent=11 // pred_check
          %p470 = pneg %p375
        $region62: #{tpu_custom_call.1} parent=11 // pred_check_branch
          %472 = sbr.rel (%p470) target = $region64
        $region63: #{tpu_custom_call.1} parent=11 // pred_region
          _
        $region64: #{tpu_custom_call.1} parent=11 // pred_fallthru
          _
      $region12: #{tpu_custom_call.1} parent=5 // pred_fallthru
        _
      %p473 = scmp.lt.s32.totalorder %s24, 2
      // Predicated region
      $region65: #{tpu_custom_call.1} parent=5 // pred_check
        %p474 = pneg %p473
      $region66: #{tpu_custom_call.1} parent=5 // pred_check_branch
        %476 = sbr.rel (%p474) target = $region68
      $region67: #{tpu_custom_call.1} parent=5 // pred_region
        // Predicated region
        $region69: #{tpu_custom_call.1} parent=67 // pred_check
          %p477 = pneg %p44
        $region70: #{tpu_custom_call.1} parent=67 // pred_check_branch
          %479 = sbr.rel (%p477) target = $region72
        $region71: #{tpu_custom_call.1} parent=67 // pred_region
          %p480 = scmp.lt.s32.totalorder %s24, 1
          %s481 = scalar_select %p480, %s24, 1
          %s482 = smul.addr %s481, 2
          %s483 = smul.addr %s482, 8
          %s484 = scalar_lea.vmem %s0, %s483
        $region72: #{tpu_custom_call.1} parent=67 // pred_fallthru
          _
        // Predicated region
        $region73: #{tpu_custom_call.1} parent=67 // pred_check
          %p485 = pneg %p70
        $region74: #{tpu_custom_call.1} parent=67 // pred_check_branch
          %487 = sbr.rel (%p485) target = $region76
        $region75: #{tpu_custom_call.1} parent=67 // pred_region
          %p488 = scmp.lt.s32.totalorder %s24, 1
          %s489 = scalar_select %p488, %s24, 1
          %s490 = smul.addr %s489, 32
          %s491 = smul.addr %s490, 4
          %s492 = scalar_lea.vmem %s1, %s491
        $region76: #{tpu_custom_call.1} parent=67 // pred_fallthru
          _
        // Predicated region
        $region77: #{tpu_custom_call.1} parent=67 // pred_check
          %p493 = pneg %p96
        $region78: #{tpu_custom_call.1} parent=67 // pred_check_branch
          %495 = sbr.rel (%p493) target = $region80
        $region79: #{tpu_custom_call.1} parent=67 // pred_region
          %p496 = scmp.lt.s32.totalorder %s24, 1
          %s497 = scalar_select %p496, %s24, 1
          %s498 = smul.addr %s497, 2
          %s499 = scalar_lea.vmem %s2, %s498
        $region80: #{tpu_custom_call.1} parent=67 // pred_fallthru
          _
      $region68: #{tpu_custom_call.1} parent=5 // pred_fallthru
        _
      %p500 = scmp.le.s32.totalorder 1, %s24
      %p501 = scmp.lt.s32.totalorder %s24, 3
      %p502 = pnand %p500, %p501
      %p503 = pneg %p502
      // Predicated region
      $region81: #{tpu_custom_call.1} parent=5 // pred_check
        _
      $region82: #{tpu_custom_call.1} parent=5 // pred_check_branch
        %505 = sbr.rel (%p502) target = $region84
      $region83: #{tpu_custom_call.1} parent=5 // pred_region
        %s506 = ssub.s32 %s24, 1
        // Predicated region
        $region85: #{tpu_custom_call.1} parent=83 // pred_check
          %p507 = pneg %p123
        $region86: #{tpu_custom_call.1} parent=83 // pred_check_branch
          %509 = sbr.rel (%p507) target = $region88
        $region87: #{tpu_custom_call.1} parent=83 // pred_region
          %511 = dma.done [#allocation4], 16
        $region88: #{tpu_custom_call.1} parent=83 // pred_fallthru
          _
        // Predicated region
        $region89: #{tpu_custom_call.1} parent=83 // pred_check
          %p512 = pneg %p228
        $region90: #{tpu_custom_call.1} parent=83 // pred_check_branch
          %514 = sbr.rel (%p512) target = $region92
        $region91: #{tpu_custom_call.1} parent=83 // pred_region
          %516 = dma.done [#allocation3], 12288
        $region92: #{tpu_custom_call.1} parent=83 // pred_fallthru
          _
        %517 = sfence
        %p518 = scmp.lt.s32.totalorder %s29, 1
        %s519 = scalar_select %p518, %s29, 1
        %s520 = smul.addr %s519, 2
        %s521 = smul.addr %s520, 8
        %s522 = scalar_lea.vmem %s0, %s521
        %p523 = pneg %p50
        %p524 = pneg %p47
        %p525 = scmp.lt.s32.totalorder %s29, 1
        %s526 = scalar_select %p525, %s29, 1
        %s527 = smul.addr %s526, 32
        %s528 = smul.addr %s527, 4
        %s529 = scalar_lea.vmem %s1, %s528
        %p530 = pneg %p76
        %p531 = pneg %p73
        %p532 = scmp.lt.s32.totalorder %s29, 1
        %s533 = scalar_select %p532, %s29, 1
        %s534 = smul.addr %s533, 2
        %s535 = scalar_lea.vmem %s2, %s534
        %p536 = pneg %p102
        %p537 = pneg %p99
        %p538 = pneg %p123
        %p539 = pneg %p120
        %p540 = pneg %p144
        %p541 = pneg %p141
        %p542 = pneg %p165
        %p543 = pneg %p162
        %p544 = pneg %p186
        %p545 = pneg %p183
        %p546 = pneg %p207
        %p547 = pneg %p204
        %p548 = pneg %p228
        %p549 = pneg %p225
        %p550 = pneg %p249
        %p551 = pneg %p246
        %p552 = pneg %p270
        %p553 = pneg %p267
        %p554 = pneg %p291
        %p555 = pneg %p288
        %p556 = pneg %p312
        %p557 = pneg %p309
        %p558 = pneg %p333
        %p559 = pneg %p330
        %p560 = pneg %p354
        %p561 = pneg %p351
        %p562 = pneg %p375
        %p563 = pneg %p372
        %p564 = pneg %p401
        %p565 = pneg %p398
        %p566 = scmp.lt.s32.totalorder %s29, 1
        %s567 = scalar_select %p566, %s29, 1
        %s568 = smul.addr %s567, 8
        %s569 = smul.addr %s568, 8
        %s570 = scalar_lea.vmem %s16, %s569
        %p571 = scmp.lt.s32.totalorder %s29, 1
        %s572 = scalar_select %p571, %s29, 1
        %s573 = smul.addr %s572, 2
        %s574 = smul.addr %s573, 8
        %s575 = scalar_lea.vmem %s0, %s574
        %p576 = scmp.lt.s32.totalorder %s29, 1
        %s577 = scalar_select %p576, %s29, 1
        %s578 = smul.addr %s577, 32
        %s579 = smul.addr %s578, 4
        %s580 = scalar_lea.vmem %s1, %s579
        %p581 = scmp.lt.s32.totalorder %s29, 1
        %s582 = scalar_select %p581, %s29, 1
        %s583 = smul.addr %s582, 2
        %s584 = scalar_lea.vmem %s2, %s583
        %p585 = scmp.lt.s32.totalorder %s29, 1
        %s586 = scalar_select %p585, %s29, 1
        %s587 = smul.addr %s586, 8
        %s588 = smul.addr %s587, 8
        %s589 = scalar_lea.vmem %s16, %s588
        %v590 = vlaneseq
        %v591 = vand.u32 %v590, 127
        %vm592 = vcmp.lt.s32.totalorder %v591, 8
        %v593 = vld [vmem:[%s575] sm:$0xff]
        %v594 = vld [vmem:[%s575 + $0x8] sm:$0xff]
        %v595 = vld [vmem:[%s580] sm:$0xff]
        %v596 = vld [vmem:[%s580 + $0x8] sm:$0xff]
        %v597 = vld [vmem:[%s580 + $0x10] sm:$0xff]
        %v598 = vld [vmem:[%s580 + $0x18] sm:$0xff]
        %v599 = vld [vmem:[%s580 + $0x20] sm:$0xff]
        %v600 = vld [vmem:[%s580 + $0x28] sm:$0xff]
        %v601 = vld [vmem:[%s580 + $0x30] sm:$0xff]
        %v602 = vld [vmem:[%s580 + $0x38] sm:$0xff]
        %v603 = vld [vmem:[%s580 + $0x40] sm:$0xff]
        %v604 = vld [vmem:[%s580 + $0x48] sm:$0xff]
        %v605 = vld [vmem:[%s580 + $0x50] sm:$0xff]
        %v606 = vld [vmem:[%s580 + $0x58] sm:$0xff]
        %v607 = vld [vmem:[%s580 + $0x60] sm:$0xff]
        %v608 = vld [vmem:[%s580 + $0x68] sm:$0xff]
        %v609 = vld [vmem:[%s580 + $0x70] sm:$0xff]
        %v610 = vld [vmem:[%s580 + $0x78] sm:$0xff]
        %v611 = vld [vmem:[%s584] sm:$0x3]
        %v613 = vrot.slane %v611, 1
        %v615 = vadd.f32 %v611, %v613
        %v616 = vpack.c.bf16 %v594, %v593
        %v633 = vunpack.c.l.b16 %v595
        %v634 = vunpack.c.h.b16 %v595
        %v635 = vunpack.c.l.b16 %v596
        %v636 = vunpack.c.h.b16 %v596
        %v637 = vunpack.c.l.b16 %v597
        %v638 = vunpack.c.h.b16 %v597
        %v639 = vunpack.c.l.b16 %v598
        %v640 = vunpack.c.h.b16 %v598
        %v641 = vunpack.c.l.b16 %v599
        %v642 = vunpack.c.h.b16 %v599
        %v643 = vunpack.c.l.b16 %v600
        %v644 = vunpack.c.h.b16 %v600
        %v645 = vunpack.c.l.b16 %v601
        %v646 = vunpack.c.h.b16 %v601
        %v647 = vunpack.c.l.b16 %v602
        %v648 = vunpack.c.h.b16 %v602
        %v649 = vunpack.c.l.b16 %v603
        %v650 = vunpack.c.h.b16 %v603
        %v651 = vunpack.c.l.b16 %v604
        %v652 = vunpack.c.h.b16 %v604
        %v653 = vunpack.c.l.b16 %v605
        %v654 = vunpack.c.h.b16 %v605
        %v655 = vunpack.c.l.b16 %v606
        %v656 = vunpack.c.h.b16 %v606
        %v657 = vunpack.c.l.b16 %v607
        %v658 = vunpack.c.h.b16 %v607
        %v659 = vunpack.c.l.b16 %v608
        %v660 = vunpack.c.h.b16 %v608
        %v661 = vunpack.c.l.b16 %v609
        %v662 = vunpack.c.h.b16 %v609
        %v663 = vunpack.c.l.b16 %v610
        %v664 = vunpack.c.h.b16 %v610
        %v665 = vpack.c.b16 %v635, %v633
        %v666 = vpack.c.b16 %v636, %v634
        %v667 = vpack.c.b16 %v639, %v637
        %v668 = vpack.c.b16 %v640, %v638
        %v669 = vpack.c.b16 %v643, %v641
        %v670 = vpack.c.b16 %v644, %v642
        %v671 = vpack.c.b16 %v647, %v645
        %v672 = vpack.c.b16 %v648, %v646
        %v673 = vpack.c.b16 %v651, %v649
        %v674 = vpack.c.b16 %v652, %v650
        %v675 = vpack.c.b16 %v655, %v653
        %v676 = vpack.c.b16 %v656, %v654
        %v677 = vpack.c.b16 %v659, %v657
        %v678 = vpack.c.b16 %v660, %v658
        %v679 = vpack.c.b16 %v663, %v661
        %v680 = vpack.c.b16 %v664, %v662
        %697 = vmatpush.bf16.msra.mxu0 %v679
        %698 = vmatpush.bf16.msra.mxu0 %v677
        %699 = vmatpush.bf16.msra.mxu0 %v675
        %700 = vmatpush.bf16.msra.mxu0 %v673
        %701 = vmatpush.bf16.msra.mxu0 %v671
        %702 = vmatpush.bf16.msra.mxu0 %v669
        %703 = vmatpush.bf16.msra.mxu0 %v667
        %704 = vmatpush.bf16.msra.mxu0 %v665
        %705 = vmatmul.bf16.gmra.mxu0 %v616
        %v706 = vpop.f32.mrf.mxu0
        %v707 = vadd.f32 0.0, %v706
        %v708 = vpop.f32.mrf.mxu0
        %v709 = vadd.f32 0.0, %v708
        %710 = vdwg.mxu0
        %711 = vmatpush.bf16.msra.mxu0 %v680
        %712 = vmatpush.bf16.msra.mxu0 %v678
        %713 = vmatpush.bf16.msra.mxu0 %v676
        %714 = vmatpush.bf16.msra.mxu0 %v674
        %715 = vmatpush.bf16.msra.mxu0 %v672
        %716 = vmatpush.bf16.msra.mxu0 %v670
        %717 = vmatpush.bf16.msra.mxu0 %v668
        %718 = vmatpush.bf16.msra.mxu0 %v666
        %719 = vmatmul.bf16.gmra.mxu0 %v616
        %v720 = vpop.f32.mrf.mxu0
        %v721 = vadd.f32 0.0, %v720
        %v722 = vpop.f32.mrf.mxu0
        %v723 = vadd.f32 0.0, %v722
        %724 = vdwg.mxu0
        %v725 = vperm.slane %v611, 0
        %v726 = vmul.f32 %v593, %v725
        %v727 = vmul.f32 %v594, %v725
        %729 = vset.pattern.permute.xlu0 0
        %730 = vperm.xlu0 %729, %v593
        %v731 = vpop.permute.xlu0 %730
        %734 = vset.pattern.permute.xlu0 0
        %735 = vperm.xlu0 %734, %v594
        %v736 = vpop.permute.xlu0 %735
        %v738 = vperm.slane %v611, 1
        %v739 = vmul.f32 %v731, %v738
        %v740 = vmul.f32 %v736, %v738
        %v741 = vadd.f32 %v726, %v739
        %v742 = vadd.f32 %v727, %v740
        %v743 = vld [vmem:[%s4] sm:$0xff]
        %v744 = vld [vmem:[%s4 + $0x8] sm:$0xff]
        %v745 = vld [vmem:[%s4 + $0x10] sm:$0xff]
        %v746 = vld [vmem:[%s4 + $0x18] sm:$0xff]
        %v747 = vld [vmem:[%s4 + $0x20] sm:$0xff]
        %v748 = vld [vmem:[%s4 + $0x28] sm:$0xff]
        %v749 = vld [vmem:[%s4 + $0x30] sm:$0xff]
        %v750 = vld [vmem:[%s4 + $0x38] sm:$0xff]
        %v751 = vld [vmem:[%s4 + $0x40] sm:$0xff]
        %v752 = vld [vmem:[%s4 + $0x48] sm:$0xff]
        %v753 = vld [vmem:[%s4 + $0x50] sm:$0xff]
        %v754 = vld [vmem:[%s4 + $0x58] sm:$0xff]
        %v755 = vld [vmem:[%s4 + $0x60] sm:$0xff]
        %v756 = vld [vmem:[%s4 + $0x68] sm:$0xff]
        %v757 = vld [vmem:[%s4 + $0x70] sm:$0xff]
        %v758 = vld [vmem:[%s4 + $0x78] sm:$0xff]
        %v759 = vld [vmem:[%s4 + $0x80] sm:$0xff]
        %v760 = vld [vmem:[%s4 + $0x88] sm:$0xff]
        %v761 = vld [vmem:[%s4 + $0x90] sm:$0xff]
        %v762 = vld [vmem:[%s4 + $0x98] sm:$0xff]
        %v763 = vld [vmem:[%s4 + $0xa0] sm:$0xff]
        %v764 = vld [vmem:[%s4 + $0xa8] sm:$0xff]
        %v765 = vld [vmem:[%s4 + $0xb0] sm:$0xff]
        %v766 = vld [vmem:[%s4 + $0xb8] sm:$0xff]
        %v767 = vld [vmem:[%s4 + $0xc0] sm:$0xff]
        %v768 = vld [vmem:[%s4 + $0xc8] sm:$0xff]
        %v769 = vld [vmem:[%s4 + $0xd0] sm:$0xff]
        %v770 = vld [vmem:[%s4 + $0xd8] sm:$0xff]
        %v771 = vld [vmem:[%s4 + $0xe0] sm:$0xff]
        %v772 = vld [vmem:[%s4 + $0xe8] sm:$0xff]
        %v773 = vld [vmem:[%s4 + $0xf0] sm:$0xff]
        %v774 = vld [vmem:[%s4 + $0xf8] sm:$0xff]
        %v775 = vld [vmem:[%s5] sm:$0xff]
        %v776 = vld [vmem:[%s5 + $0x8] sm:$0xff]
        %v777 = vld [vmem:[%s5 + $0x10] sm:$0xff]
        %v778 = vld [vmem:[%s5 + $0x18] sm:$0xff]
        %v779 = vld [vmem:[%s5 + $0x20] sm:$0xff]
        %v780 = vld [vmem:[%s5 + $0x28] sm:$0xff]
        %v781 = vld [vmem:[%s5 + $0x30] sm:$0xff]
        %v782 = vld [vmem:[%s5 + $0x38] sm:$0xff]
        %v783 = vld [vmem:[%s5 + $0x40] sm:$0xff]
        %v784 = vld [vmem:[%s5 + $0x48] sm:$0xff]
        %v785 = vld [vmem:[%s5 + $0x50] sm:$0xff]
        %v786 = vld [vmem:[%s5 + $0x58] sm:$0xff]
        %v787 = vld [vmem:[%s5 + $0x60] sm:$0xff]
        %v788 = vld [vmem:[%s5 + $0x68] sm:$0xff]
        %v789 = vld [vmem:[%s5 + $0x70] sm:$0xff]
        %v790 = vld [vmem:[%s5 + $0x78] sm:$0xff]
        %v791 = vld [vmem:[%s5 + $0x80] sm:$0xff]
        %v792 = vld [vmem:[%s5 + $0x88] sm:$0xff]
        %v793 = vld [vmem:[%s5 + $0x90] sm:$0xff]
        %v794 = vld [vmem:[%s5 + $0x98] sm:$0xff]
        %v795 = vld [vmem:[%s5 + $0xa0] sm:$0xff]
        %v796 = vld [vmem:[%s5 + $0xa8] sm:$0xff]
        %v797 = vld [vmem:[%s5 + $0xb0] sm:$0xff]
        %v798 = vld [vmem:[%s5 + $0xb8] sm:$0xff]
        %v799 = vld [vmem:[%s5 + $0xc0] sm:$0xff]
        %v800 = vld [vmem:[%s5 + $0xc8] sm:$0xff]
        %v801 = vld [vmem:[%s5 + $0xd0] sm:$0xff]
        %v802 = vld [vmem:[%s5 + $0xd8] sm:$0xff]
        %v803 = vld [vmem:[%s5 + $0xe0] sm:$0xff]
        %v804 = vld [vmem:[%s5 + $0xe8] sm:$0xff]
        %v805 = vld [vmem:[%s5 + $0xf0] sm:$0xff]
        %v806 = vld [vmem:[%s5 + $0xf8] sm:$0xff]
        %808 = vset.pattern.permute.xlu0 0
        %809 = vperm.xlu0 %808, %v775
        %v810 = vpop.permute.xlu0 %809
        %813 = vset.pattern.permute.xlu0 0
        %814 = vperm.xlu0 %813, %v776
        %v815 = vpop.permute.xlu0 %814
        %818 = vset.pattern.permute.xlu0 0
        %819 = vperm.xlu0 %818, %v777
        %v820 = vpop.permute.xlu0 %819
        %823 = vset.pattern.permute.xlu0 0
        %824 = vperm.xlu0 %823, %v778
        %v825 = vpop.permute.xlu0 %824
        %828 = vset.pattern.permute.xlu0 0
        %829 = vperm.xlu0 %828, %v779
        %v830 = vpop.permute.xlu0 %829
        %833 = vset.pattern.permute.xlu0 0
        %834 = vperm.xlu0 %833, %v780
        %v835 = vpop.permute.xlu0 %834
        %838 = vset.pattern.permute.xlu0 0
        %839 = vperm.xlu0 %838, %v781
        %v840 = vpop.permute.xlu0 %839
        %843 = vset.pattern.permute.xlu0 0
        %844 = vperm.xlu0 %843, %v782
        %v845 = vpop.permute.xlu0 %844
        %848 = vset.pattern.permute.xlu0 0
        %849 = vperm.xlu0 %848, %v783
        %v850 = vpop.permute.xlu0 %849
        %853 = vset.pattern.permute.xlu0 0
        %854 = vperm.xlu0 %853, %v784
        %v855 = vpop.permute.xlu0 %854
        %858 = vset.pattern.permute.xlu0 0
        %859 = vperm.xlu0 %858, %v785
        %v860 = vpop.permute.xlu0 %859
        %863 = vset.pattern.permute.xlu0 0
        %864 = vperm.xlu0 %863, %v786
        %v865 = vpop.permute.xlu0 %864
        %868 = vset.pattern.permute.xlu0 0
        %869 = vperm.xlu0 %868, %v787
        %v870 = vpop.permute.xlu0 %869
        %873 = vset.pattern.permute.xlu0 0
        %874 = vperm.xlu0 %873, %v788
        %v875 = vpop.permute.xlu0 %874
        %878 = vset.pattern.permute.xlu0 0
        %879 = vperm.xlu0 %878, %v789
        %v880 = vpop.permute.xlu0 %879
        %883 = vset.pattern.permute.xlu0 0
        %884 = vperm.xlu0 %883, %v790
        %v885 = vpop.permute.xlu0 %884
        %888 = vset.pattern.permute.xlu0 0
        %889 = vperm.xlu0 %888, %v791
        %v890 = vpop.permute.xlu0 %889
        %893 = vset.pattern.permute.xlu0 0
        %894 = vperm.xlu0 %893, %v792
        %v895 = vpop.permute.xlu0 %894
        %898 = vset.pattern.permute.xlu0 0
        %899 = vperm.xlu0 %898, %v793
        %v900 = vpop.permute.xlu0 %899
        %903 = vset.pattern.permute.xlu0 0
        %904 = vperm.xlu0 %903, %v794
        %v905 = vpop.permute.xlu0 %904
        %908 = vset.pattern.permute.xlu0 0
        %909 = vperm.xlu0 %908, %v795
        %v910 = vpop.permute.xlu0 %909
        %913 = vset.pattern.permute.xlu0 0
        %914 = vperm.xlu0 %913, %v796
        %v915 = vpop.permute.xlu0 %914
        %918 = vset.pattern.permute.xlu0 0
        %919 = vperm.xlu0 %918, %v797
        %v920 = vpop.permute.xlu0 %919
        %923 = vset.pattern.permute.xlu0 0
        %924 = vperm.xlu0 %923, %v798
        %v925 = vpop.permute.xlu0 %924
        %928 = vset.pattern.permute.xlu0 0
        %929 = vperm.xlu0 %928, %v799
        %v930 = vpop.permute.xlu0 %929
        %933 = vset.pattern.permute.xlu0 0
        %934 = vperm.xlu0 %933, %v800
        %v935 = vpop.permute.xlu0 %934
        %938 = vset.pattern.permute.xlu0 0
        %939 = vperm.xlu0 %938, %v801
        %v940 = vpop.permute.xlu0 %939
        %943 = vset.pattern.permute.xlu0 0
        %944 = vperm.xlu0 %943, %v802
        %v945 = vpop.permute.xlu0 %944
        %948 = vset.pattern.permute.xlu0 0
        %949 = vperm.xlu0 %948, %v803
        %v950 = vpop.permute.xlu0 %949
        %953 = vset.pattern.permute.xlu0 0
        %954 = vperm.xlu0 %953, %v804
        %v955 = vpop.permute.xlu0 %954
        %958 = vset.pattern.permute.xlu0 0
        %959 = vperm.xlu0 %958, %v805
        %v960 = vpop.permute.xlu0 %959
        %963 = vset.pattern.permute.xlu0 0
        %964 = vperm.xlu0 %963, %v806
        %v965 = vpop.permute.xlu0 %964
        %v967 = vperm.slane %v615, 0
        %v968 = vmul.f32 %v810, %v967
        %v969 = vmul.f32 %v815, %v967
        %v970 = vmul.f32 %v820, %v967
        %v971 = vmul.f32 %v825, %v967
        %v972 = vmul.f32 %v830, %v967
        %v973 = vmul.f32 %v835, %v967
        %v974 = vmul.f32 %v840, %v967
        %v975 = vmul.f32 %v845, %v967
        %v976 = vmul.f32 %v850, %v967
        %v977 = vmul.f32 %v855, %v967
        %v978 = vmul.f32 %v860, %v967
        %v979 = vmul.f32 %v865, %v967
        %v980 = vmul.f32 %v870, %v967
        %v981 = vmul.f32 %v875, %v967
        %v982 = vmul.f32 %v880, %v967
        %v983 = vmul.f32 %v885, %v967
        %v984 = vmul.f32 %v890, %v967
        %v985 = vmul.f32 %v895, %v967
        %v986 = vmul.f32 %v900, %v967
        %v987 = vmul.f32 %v905, %v967
        %v988 = vmul.f32 %v910, %v967
        %v989 = vmul.f32 %v915, %v967
        %v990 = vmul.f32 %v920, %v967
        %v991 = vmul.f32 %v925, %v967
        %v992 = vmul.f32 %v930, %v967
        %v993 = vmul.f32 %v935, %v967
        %v994 = vmul.f32 %v940, %v967
        %v995 = vmul.f32 %v945, %v967
        %v996 = vmul.f32 %v950, %v967
        %v997 = vmul.f32 %v955, %v967
        %v998 = vmul.f32 %v960, %v967
        %v999 = vmul.f32 %v965, %v967
        %vm1000 = vcmask 392192
        %v1002 = vsel %vm1000, %v743, 0
        %v1005 = vsel %vm1000, %v744, 0
        %v1008 = vsel %vm1000, %v745, 0
        %v1011 = vsel %vm1000, %v746, 0
        %v1014 = vsel %vm1000, %v747, 0
        %v1017 = vsel %vm1000, %v748, 0
        %v1020 = vsel %vm1000, %v749, 0
        %v1023 = vsel %vm1000, %v750, 0
        %v1026 = vsel %vm1000, %v751, 0
        %v1029 = vsel %vm1000, %v752, 0
        %v1032 = vsel %vm1000, %v753, 0
        %v1035 = vsel %vm1000, %v754, 0
        %v1038 = vsel %vm1000, %v755, 0
        %v1041 = vsel %vm1000, %v756, 0
        %v1044 = vsel %vm1000, %v757, 0
        %v1047 = vsel %vm1000, %v758, 0
        %v1050 = vsel %vm1000, %v759, 0
        %v1053 = vsel %vm1000, %v760, 0
        %v1056 = vsel %vm1000, %v761, 0
        %v1059 = vsel %vm1000, %v762, 0
        %v1062 = vsel %vm1000, %v763, 0
        %v1065 = vsel %vm1000, %v764, 0
        %v1068 = vsel %vm1000, %v765, 0
        %v1071 = vsel %vm1000, %v766, 0
        %v1074 = vsel %vm1000, %v767, 0
        %v1077 = vsel %vm1000, %v768, 0
        %v1080 = vsel %vm1000, %v769, 0
        %v1083 = vsel %vm1000, %v770, 0
        %v1086 = vsel %vm1000, %v771, 0
        %v1089 = vsel %vm1000, %v772, 0
        %v1092 = vsel %vm1000, %v773, 0
        %v1095 = vsel %vm1000, %v774, 0
        %1097 = vmatpush.msra.mxu0 0.0
        %1098 = vmatpush.msra.mxu0 0.0
        %1099 = vmatpush.msra.mxu0 0.0
        %1100 = vmatpush.msra.mxu0 0.0
        %1101 = vmatpush.msra.mxu0 0.0
        %1102 = vmatpush.msra.mxu0 0.0
        %1103 = vmatpush.msra.mxu0 0.0
        %1104 = vmatpush.msra.mxu0 0.0
        %1105 = vmatpush.msra.mxu0 0.0
        %1106 = vmatpush.msra.mxu0 0.0
        %1107 = vmatpush.msra.mxu0 %v723
        %1108 = vmatpush.msra.mxu0 %v721
        %1109 = vmatpush.msra.mxu0 %v709
        %1110 = vmatpush.msra.mxu0 %v707
        %1111 = vmatpush.msra.mxu0 %v742
        %1112 = vmatpush.msra.mxu0 %v741
        %1113 = vmatmul.f32.gmra.mxu0 %v1002
        %v1114 = vpop.f32.mrf.mxu0
        %v1115 = vadd.f32 %v968, %v1114
        %1116 = vmatmul.f32.gmra.mxu0 %v1005
        %v1117 = vpop.f32.mrf.mxu0
        %v1118 = vadd.f32 %v969, %v1117
        %1119 = vmatmul.f32.gmra.mxu0 %v1008
        %v1120 = vpop.f32.mrf.mxu0
        %v1121 = vadd.f32 %v970, %v1120
        %1122 = vmatmul.f32.gmra.mxu0 %v1011
        %v1123 = vpop.f32.mrf.mxu0
        %v1124 = vadd.f32 %v971, %v1123
        %1125 = vmatmul.f32.gmra.mxu0 %v1014
        %v1126 = vpop.f32.mrf.mxu0
        %v1127 = vadd.f32 %v972, %v1126
        %1128 = vmatmul.f32.gmra.mxu0 %v1017
        %v1129 = vpop.f32.mrf.mxu0
        %v1130 = vadd.f32 %v973, %v1129
        %1131 = vmatmul.f32.gmra.mxu0 %v1020
        %v1132 = vpop.f32.mrf.mxu0
        %v1133 = vadd.f32 %v974, %v1132
        %1134 = vmatmul.f32.gmra.mxu0 %v1023
        %v1135 = vpop.f32.mrf.mxu0
        %v1136 = vadd.f32 %v975, %v1135
        %1137 = vmatmul.f32.gmra.mxu0 %v1026
        %v1138 = vpop.f32.mrf.mxu0
        %v1139 = vadd.f32 %v976, %v1138
        %1140 = vmatmul.f32.gmra.mxu0 %v1029
        %v1141 = vpop.f32.mrf.mxu0
        %v1142 = vadd.f32 %v977, %v1141
        %1143 = vmatmul.f32.gmra.mxu0 %v1032
        %v1144 = vpop.f32.mrf.mxu0
        %v1145 = vadd.f32 %v978, %v1144
        %1146 = vmatmul.f32.gmra.mxu0 %v1035
        %v1147 = vpop.f32.mrf.mxu0
        %v1148 = vadd.f32 %v979, %v1147
        %1149 = vmatmul.f32.gmra.mxu0 %v1038
        %v1150 = vpop.f32.mrf.mxu0
        %v1151 = vadd.f32 %v980, %v1150
        %1152 = vmatmul.f32.gmra.mxu0 %v1041
        %v1153 = vpop.f32.mrf.mxu0
        %v1154 = vadd.f32 %v981, %v1153
        %1155 = vmatmul.f32.gmra.mxu0 %v1044
        %v1156 = vpop.f32.mrf.mxu0
        %v1157 = vadd.f32 %v982, %v1156
        %1158 = vmatmul.f32.gmra.mxu0 %v1047
        %v1159 = vpop.f32.mrf.mxu0
        %v1160 = vadd.f32 %v983, %v1159
        %1161 = vmatmul.f32.gmra.mxu0 %v1050
        %v1162 = vpop.f32.mrf.mxu0
        %v1163 = vadd.f32 %v984, %v1162
        %1164 = vmatmul.f32.gmra.mxu0 %v1053
        %v1165 = vpop.f32.mrf.mxu0
        %v1166 = vadd.f32 %v985, %v1165
        %1167 = vmatmul.f32.gmra.mxu0 %v1056
        %v1168 = vpop.f32.mrf.mxu0
        %v1169 = vadd.f32 %v986, %v1168
        %1170 = vmatmul.f32.gmra.mxu0 %v1059
        %v1171 = vpop.f32.mrf.mxu0
        %v1172 = vadd.f32 %v987, %v1171
        %1173 = vmatmul.f32.gmra.mxu0 %v1062
        %v1174 = vpop.f32.mrf.mxu0
        %v1175 = vadd.f32 %v988, %v1174
        %1176 = vmatmul.f32.gmra.mxu0 %v1065
        %v1177 = vpop.f32.mrf.mxu0
        %v1178 = vadd.f32 %v989, %v1177
        %1179 = vmatmul.f32.gmra.mxu0 %v1068
        %v1180 = vpop.f32.mrf.mxu0
        %v1181 = vadd.f32 %v990, %v1180
        %1182 = vmatmul.f32.gmra.mxu0 %v1071
        %v1183 = vpop.f32.mrf.mxu0
        %v1184 = vadd.f32 %v991, %v1183
        %1185 = vmatmul.f32.gmra.mxu0 %v1074
        %v1186 = vpop.f32.mrf.mxu0
        %v1187 = vadd.f32 %v992, %v1186
        %1188 = vmatmul.f32.gmra.mxu0 %v1077
        %v1189 = vpop.f32.mrf.mxu0
        %v1190 = vadd.f32 %v993, %v1189
        %1191 = vmatmul.f32.gmra.mxu0 %v1080
        %v1192 = vpop.f32.mrf.mxu0
        %v1193 = vadd.f32 %v994, %v1192
        %1194 = vmatmul.f32.gmra.mxu0 %v1083
        %v1195 = vpop.f32.mrf.mxu0
        %v1196 = vadd.f32 %v995, %v1195
        %1197 = vmatmul.f32.gmra.mxu0 %v1086
        %v1198 = vpop.f32.mrf.mxu0
        %v1199 = vadd.f32 %v996, %v1198
        %1200 = vmatmul.f32.gmra.mxu0 %v1089
        %v1201 = vpop.f32.mrf.mxu0
        %v1202 = vadd.f32 %v997, %v1201
        %1203 = vmatmul.f32.gmra.mxu0 %v1092
        %v1204 = vpop.f32.mrf.mxu0
        %v1205 = vadd.f32 %v998, %v1204
        %1206 = vmatmul.f32.gmra.mxu0 %v1095
        %v1207 = vpop.f32.mrf.mxu0
        %v1208 = vadd.f32 %v999, %v1207
        %1209 = vdwg.mxu0
        %1210 = vadd.xlane.f32.xlu0 %v1115
        %v1211 = vpop.xlane.xlu0 %1210
        %1212 = vadd.xlane.f32.xlu0 %v1118
        %v1213 = vpop.xlane.xlu0 %1212
        %1214 = vadd.xlane.f32.xlu0 %v1121
        %v1215 = vpop.xlane.xlu0 %1214
        %1216 = vadd.xlane.f32.xlu0 %v1124
        %v1217 = vpop.xlane.xlu0 %1216
        %1218 = vadd.xlane.f32.xlu0 %v1127
        %v1219 = vpop.xlane.xlu0 %1218
        %1220 = vadd.xlane.f32.xlu0 %v1130
        %v1221 = vpop.xlane.xlu0 %1220
        %1222 = vadd.xlane.f32.xlu0 %v1133
        %v1223 = vpop.xlane.xlu0 %1222
        %1224 = vadd.xlane.f32.xlu0 %v1136
        %v1225 = vpop.xlane.xlu0 %1224
        %1226 = vadd.xlane.f32.xlu0 %v1139
        %v1227 = vpop.xlane.xlu0 %1226
        %1228 = vadd.xlane.f32.xlu0 %v1142
        %v1229 = vpop.xlane.xlu0 %1228
        %1230 = vadd.xlane.f32.xlu0 %v1145
        %v1231 = vpop.xlane.xlu0 %1230
        %1232 = vadd.xlane.f32.xlu0 %v1148
        %v1233 = vpop.xlane.xlu0 %1232
        %1234 = vadd.xlane.f32.xlu0 %v1151
        %v1235 = vpop.xlane.xlu0 %1234
        %1236 = vadd.xlane.f32.xlu0 %v1154
        %v1237 = vpop.xlane.xlu0 %1236
        %1238 = vadd.xlane.f32.xlu0 %v1157
        %v1239 = vpop.xlane.xlu0 %1238
        %1240 = vadd.xlane.f32.xlu0 %v1160
        %v1241 = vpop.xlane.xlu0 %1240
        %1242 = vadd.xlane.f32.xlu0 %v1163
        %v1243 = vpop.xlane.xlu0 %1242
        %1244 = vadd.xlane.f32.xlu0 %v1166
        %v1245 = vpop.xlane.xlu0 %1244
        %1246 = vadd.xlane.f32.xlu0 %v1169
        %v1247 = vpop.xlane.xlu0 %1246
        %1248 = vadd.xlane.f32.xlu0 %v1172
        %v1249 = vpop.xlane.xlu0 %1248
        %1250 = vadd.xlane.f32.xlu0 %v1175
        %v1251 = vpop.xlane.xlu0 %1250
        %1252 = vadd.xlane.f32.xlu0 %v1178
        %v1253 = vpop.xlane.xlu0 %1252
        %1254 = vadd.xlane.f32.xlu0 %v1181
        %v1255 = vpop.xlane.xlu0 %1254
        %1256 = vadd.xlane.f32.xlu0 %v1184
        %v1257 = vpop.xlane.xlu0 %1256
        %1258 = vadd.xlane.f32.xlu0 %v1187
        %v1259 = vpop.xlane.xlu0 %1258
        %1260 = vadd.xlane.f32.xlu0 %v1190
        %v1261 = vpop.xlane.xlu0 %1260
        %1262 = vadd.xlane.f32.xlu0 %v1193
        %v1263 = vpop.xlane.xlu0 %1262
        %1264 = vadd.xlane.f32.xlu0 %v1196
        %v1265 = vpop.xlane.xlu0 %1264
        %1266 = vadd.xlane.f32.xlu0 %v1199
        %v1267 = vpop.xlane.xlu0 %1266
        %1268 = vadd.xlane.f32.xlu0 %v1202
        %v1269 = vpop.xlane.xlu0 %1268
        %1270 = vadd.xlane.f32.xlu0 %v1205
        %v1271 = vpop.xlane.xlu0 %1270
        %1272 = vadd.xlane.f32.xlu0 %v1208
        %v1273 = vpop.xlane.xlu0 %1272
        %v1274 = vmul.f32 %v1211, 0.125
        %v1275 = vmul.f32 %v1213, 0.125
        %v1276 = vmul.f32 %v1215, 0.125
        %v1277 = vmul.f32 %v1217, 0.125
        %v1278 = vmul.f32 %v1219, 0.125
        %v1279 = vmul.f32 %v1221, 0.125
        %v1280 = vmul.f32 %v1223, 0.125
        %v1281 = vmul.f32 %v1225, 0.125
        %v1282 = vmul.f32 %v1227, 0.125
        %v1283 = vmul.f32 %v1229, 0.125
        %v1284 = vmul.f32 %v1231, 0.125
        %v1285 = vmul.f32 %v1233, 0.125
        %v1286 = vmul.f32 %v1235, 0.125
        %v1287 = vmul.f32 %v1237, 0.125
        %v1288 = vmul.f32 %v1239, 0.125
        %v1289 = vmul.f32 %v1241, 0.125
        %v1290 = vmul.f32 %v1243, 0.125
        %v1291 = vmul.f32 %v1245, 0.125
        %v1292 = vmul.f32 %v1247, 0.125
        %v1293 = vmul.f32 %v1249, 0.125
        %v1294 = vmul.f32 %v1251, 0.125
        %v1295 = vmul.f32 %v1253, 0.125
        %v1296 = vmul.f32 %v1255, 0.125
        %v1297 = vmul.f32 %v1257, 0.125
        %v1298 = vmul.f32 %v1259, 0.125
        %v1299 = vmul.f32 %v1261, 0.125
        %v1300 = vmul.f32 %v1263, 0.125
        %v1301 = vmul.f32 %v1265, 0.125
        %v1302 = vmul.f32 %v1267, 0.125
        %v1303 = vmul.f32 %v1269, 0.125
        %v1304 = vmul.f32 %v1271, 0.125
        %v1305 = vmul.f32 %v1273, 0.125
        %1306 = vmax.xlane.f32.xlu0 %v1115
        %v1307 = vpop.xlane.xlu0 %1306
        %1308 = vmax.xlane.f32.xlu0 %v1118
        %v1309 = vpop.xlane.xlu0 %1308
        %1310 = vmax.xlane.f32.xlu0 %v1121
        %v1311 = vpop.xlane.xlu0 %1310
        %1312 = vmax.xlane.f32.xlu0 %v1124
        %v1313 = vpop.xlane.xlu0 %1312
        %1314 = vmax.xlane.f32.xlu0 %v1127
        %v1315 = vpop.xlane.xlu0 %1314
        %1316 = vmax.xlane.f32.xlu0 %v1130
        %v1317 = vpop.xlane.xlu0 %1316
        %1318 = vmax.xlane.f32.xlu0 %v1133
        %v1319 = vpop.xlane.xlu0 %1318
        %1320 = vmax.xlane.f32.xlu0 %v1136
        %v1321 = vpop.xlane.xlu0 %1320
        %1322 = vmax.xlane.f32.xlu0 %v1139
        %v1323 = vpop.xlane.xlu0 %1322
        %1324 = vmax.xlane.f32.xlu0 %v1142
        %v1325 = vpop.xlane.xlu0 %1324
        %1326 = vmax.xlane.f32.xlu0 %v1145
        %v1327 = vpop.xlane.xlu0 %1326
        %1328 = vmax.xlane.f32.xlu0 %v1148
        %v1329 = vpop.xlane.xlu0 %1328
        %1330 = vmax.xlane.f32.xlu0 %v1151
        %v1331 = vpop.xlane.xlu0 %1330
        %1332 = vmax.xlane.f32.xlu0 %v1154
        %v1333 = vpop.xlane.xlu0 %1332
        %1334 = vmax.xlane.f32.xlu0 %v1157
        %v1335 = vpop.xlane.xlu0 %1334
        %1336 = vmax.xlane.f32.xlu0 %v1160
        %v1337 = vpop.xlane.xlu0 %1336
        %1338 = vmax.xlane.f32.xlu0 %v1163
        %v1339 = vpop.xlane.xlu0 %1338
        %1340 = vmax.xlane.f32.xlu0 %v1166
        %v1341 = vpop.xlane.xlu0 %1340
        %1342 = vmax.xlane.f32.xlu0 %v1169
        %v1343 = vpop.xlane.xlu0 %1342
        %1344 = vmax.xlane.f32.xlu0 %v1172
        %v1345 = vpop.xlane.xlu0 %1344
        %1346 = vmax.xlane.f32.xlu0 %v1175
        %v1347 = vpop.xlane.xlu0 %1346
        %1348 = vmax.xlane.f32.xlu0 %v1178
        %v1349 = vpop.xlane.xlu0 %1348
        %1350 = vmax.xlane.f32.xlu0 %v1181
        %v1351 = vpop.xlane.xlu0 %1350
        %1352 = vmax.xlane.f32.xlu0 %v1184
        %v1353 = vpop.xlane.xlu0 %1352
        %1354 = vmax.xlane.f32.xlu0 %v1187
        %v1355 = vpop.xlane.xlu0 %1354
        %1356 = vmax.xlane.f32.xlu0 %v1190
        %v1357 = vpop.xlane.xlu0 %1356
        %1358 = vmax.xlane.f32.xlu0 %v1193
        %v1359 = vpop.xlane.xlu0 %1358
        %1360 = vmax.xlane.f32.xlu0 %v1196
        %v1361 = vpop.xlane.xlu0 %1360
        %1362 = vmax.xlane.f32.xlu0 %v1199
        %v1363 = vpop.xlane.xlu0 %1362
        %1364 = vmax.xlane.f32.xlu0 %v1202
        %v1365 = vpop.xlane.xlu0 %1364
        %1366 = vmax.xlane.f32.xlu0 %v1205
        %v1367 = vpop.xlane.xlu0 %1366
        %1368 = vmax.xlane.f32.xlu0 %v1208
        %v1369 = vpop.xlane.xlu0 %1368
        %vm1370 = vcmp.eq.s32.totalorder %v591, 0
        %v1371 = vsel %vm1370, 1, 0
        %vm1372 = vcmp.eq.s32.totalorder %v1371, 1
        %v1373 = vsel %vm1372, %v1274, %v1307
        %v1374 = vsel %vm1372, %v1275, %v1309
        %v1375 = vsel %vm1372, %v1276, %v1311
        %v1376 = vsel %vm1372, %v1277, %v1313
        %v1377 = vsel %vm1372, %v1278, %v1315
        %v1378 = vsel %vm1372, %v1279, %v1317
        %v1379 = vsel %vm1372, %v1280, %v1319
        %v1380 = vsel %vm1372, %v1281, %v1321
        %v1381 = vsel %vm1372, %v1282, %v1323
        %v1382 = vsel %vm1372, %v1283, %v1325
        %v1383 = vsel %vm1372, %v1284, %v1327
        %v1384 = vsel %vm1372, %v1285, %v1329
        %v1385 = vsel %vm1372, %v1286, %v1331
        %v1386 = vsel %vm1372, %v1287, %v1333
        %v1387 = vsel %vm1372, %v1288, %v1335
        %v1388 = vsel %vm1372, %v1289, %v1337
        %v1389 = vsel %vm1372, %v1290, %v1339
        %v1390 = vsel %vm1372, %v1291, %v1341
        %v1391 = vsel %vm1372, %v1292, %v1343
        %v1392 = vsel %vm1372, %v1293, %v1345
        %v1393 = vsel %vm1372, %v1294, %v1347
        %v1394 = vsel %vm1372, %v1295, %v1349
        %v1395 = vsel %vm1372, %v1296, %v1351
        %v1396 = vsel %vm1372, %v1297, %v1353
        %v1397 = vsel %vm1372, %v1298, %v1355
        %v1398 = vsel %vm1372, %v1299, %v1357
        %v1399 = vsel %vm1372, %v1300, %v1359
        %v1400 = vsel %vm1372, %v1301, %v1361
        %v1401 = vsel %vm1372, %v1302, %v1363
        %v1402 = vsel %vm1372, %v1303, %v1365
        %v1403 = vsel %vm1372, %v1304, %v1367
        %v1404 = vsel %vm1372, %v1305, %v1369
        %v1405 = vld [vmem:[%s6] sm:$0xff]
        %v1406 = vld [vmem:[%s6 + $0x8] sm:$0xff]
        %v1407 = vld [vmem:[%s6 + $0x10] sm:$0xff]
        %v1408 = vld [vmem:[%s6 + $0x18] sm:$0xff]
        %1409 = vmatpush.msra.mxu0 %v1388
        %1410 = vmatpush.msra.mxu0 %v1387
        %1411 = vmatpush.msra.mxu0 %v1386
        %1412 = vmatpush.msra.mxu0 %v1385
        %1413 = vmatpush.msra.mxu0 %v1384
        %1414 = vmatpush.msra.mxu0 %v1383
        %1415 = vmatpush.msra.mxu0 %v1382
        %1416 = vmatpush.msra.mxu0 %v1381
        %1417 = vmatpush.msra.mxu0 %v1380
        %1418 = vmatpush.msra.mxu0 %v1379
        %1419 = vmatpush.msra.mxu0 %v1378
        %1420 = vmatpush.msra.mxu0 %v1377
        %1421 = vmatpush.msra.mxu0 %v1376
        %1422 = vmatpush.msra.mxu0 %v1375
        %1423 = vmatpush.msra.mxu0 %v1374
        %1424 = vmatpush.msra.mxu0 %v1373
        %1425 = vmatmul.f32.gmra.mxu0 %v1405
        %v1426 = vpop.f32.mrf.mxu0
        %v1427 = vadd.f32 0.0, %v1426
        %1428 = vmatmul.f32.gmra.mxu0 %v1407
        %v1429 = vpop.f32.mrf.mxu0
        %v1430 = vadd.f32 0.0, %v1429
        %1431 = vdwg.mxu0
        %1432 = vmatpush.msra.mxu0 %v1404
        %1433 = vmatpush.msra.mxu0 %v1403
        %1434 = vmatpush.msra.mxu0 %v1402
        %1435 = vmatpush.msra.mxu0 %v1401
        %1436 = vmatpush.msra.mxu0 %v1400
        %1437 = vmatpush.msra.mxu0 %v1399
        %1438 = vmatpush.msra.mxu0 %v1398
        %1439 = vmatpush.msra.mxu0 %v1397
        %1440 = vmatpush.msra.mxu0 %v1396
        %1441 = vmatpush.msra.mxu0 %v1395
        %1442 = vmatpush.msra.mxu0 %v1394
        %1443 = vmatpush.msra.mxu0 %v1393
        %1444 = vmatpush.msra.mxu0 %v1392
        %1445 = vmatpush.msra.mxu0 %v1391
        %1446 = vmatpush.msra.mxu0 %v1390
        %1447 = vmatpush.msra.mxu0 %v1389
        %1448 = vmatmul.f32.gmra.mxu0 %v1406
        %v1449 = vpop.f32.mrf.mxu0
        %v1450 = vadd.f32 %v1427, %v1449
        %1451 = vmatmul.f32.gmra.mxu0 %v1408
        %v1452 = vpop.f32.mrf.mxu0
        %v1453 = vadd.f32 %v1430, %v1452
        %1454 = vdwg.mxu0
        %v1455 = vmax.f32 %v1450, 0.0
        %v1456 = vmax.f32 %v1453, 0.0
        %v1457 = vld [vmem:[%s7] sm:$0xff]
        %v1458 = vld [vmem:[%s7 + $0x8] sm:$0xff]
        %v1459 = vld [vmem:[%s7 + $0x10] sm:$0xff]
        %v1460 = vld [vmem:[%s7 + $0x18] sm:$0xff]
        %v1461 = vld [vmem:[%s7 + $0x20] sm:$0xff]
        %v1462 = vld [vmem:[%s7 + $0x28] sm:$0xff]
        %v1463 = vld [vmem:[%s7 + $0x30] sm:$0xff]
        %v1464 = vld [vmem:[%s7 + $0x38] sm:$0xff]
        %v1465 = vld [vmem:[%s7 + $0x40] sm:$0xff]
        %v1466 = vld [vmem:[%s7 + $0x48] sm:$0xff]
        %v1467 = vld [vmem:[%s7 + $0x50] sm:$0xff]
        %v1468 = vld [vmem:[%s7 + $0x58] sm:$0xff]
        %v1469 = vld [vmem:[%s7 + $0x60] sm:$0xff]
        %v1470 = vld [vmem:[%s7 + $0x68] sm:$0xff]
        %v1471 = vld [vmem:[%s7 + $0x70] sm:$0xff]
        %v1472 = vld [vmem:[%s7 + $0x78] sm:$0xff]
        %v1473 = vld [vmem:[%s7 + $0x80] sm:$0xff]
        %v1474 = vld [vmem:[%s7 + $0x88] sm:$0xff]
        %v1475 = vld [vmem:[%s7 + $0x90] sm:$0xff]
        %v1476 = vld [vmem:[%s7 + $0x98] sm:$0xff]
        %v1477 = vld [vmem:[%s7 + $0xa0] sm:$0xff]
        %v1478 = vld [vmem:[%s7 + $0xa8] sm:$0xff]
        %v1479 = vld [vmem:[%s7 + $0xb0] sm:$0xff]
        %v1480 = vld [vmem:[%s7 + $0xb8] sm:$0xff]
        %v1481 = vld [vmem:[%s7 + $0xc0] sm:$0xff]
        %v1482 = vld [vmem:[%s7 + $0xc8] sm:$0xff]
        %v1483 = vld [vmem:[%s7 + $0xd0] sm:$0xff]
        %v1484 = vld [vmem:[%s7 + $0xd8] sm:$0xff]
        %v1485 = vld [vmem:[%s7 + $0xe0] sm:$0xff]
        %v1486 = vld [vmem:[%s7 + $0xe8] sm:$0xff]
        %v1487 = vld [vmem:[%s7 + $0xf0] sm:$0xff]
        %v1488 = vld [vmem:[%s7 + $0xf8] sm:$0xff]
        %vm1489 = vcmask 130048
        %v1491 = vsel %vm1489, %v1457, 0
        %v1494 = vsel %vm1489, %v1458, 0
        %v1497 = vsel %vm1489, %v1459, 0
        %v1500 = vsel %vm1489, %v1460, 0
        %v1503 = vsel %vm1489, %v1461, 0
        %v1506 = vsel %vm1489, %v1462, 0
        %v1509 = vsel %vm1489, %v1463, 0
        %v1512 = vsel %vm1489, %v1464, 0
        %v1515 = vsel %vm1489, %v1465, 0
        %v1518 = vsel %vm1489, %v1466, 0
        %v1521 = vsel %vm1489, %v1467, 0
        %v1524 = vsel %vm1489, %v1468, 0
        %v1527 = vsel %vm1489, %v1469, 0
        %v1530 = vsel %vm1489, %v1470, 0
        %v1533 = vsel %vm1489, %v1471, 0
        %v1536 = vsel %vm1489, %v1472, 0
        %v1539 = vsel %vm1489, %v1473, 0
        %v1542 = vsel %vm1489, %v1474, 0
        %v1545 = vsel %vm1489, %v1475, 0
        %v1548 = vsel %vm1489, %v1476, 0
        %v1551 = vsel %vm1489, %v1477, 0
        %v1554 = vsel %vm1489, %v1478, 0
        %v1557 = vsel %vm1489, %v1479, 0
        %v1560 = vsel %vm1489, %v1480, 0
        %v1563 = vsel %vm1489, %v1481, 0
        %v1566 = vsel %vm1489, %v1482, 0
        %v1569 = vsel %vm1489, %v1483, 0
        %v1572 = vsel %vm1489, %v1484, 0
        %v1575 = vsel %vm1489, %v1485, 0
        %v1578 = vsel %vm1489, %v1486, 0
        %v1581 = vsel %vm1489, %v1487, 0
        %v1584 = vsel %vm1489, %v1488, 0
        %1586 = vmatpush.msra.mxu0 0.0
        %1587 = vmatpush.msra.mxu0 0.0
        %1588 = vmatpush.msra.mxu0 0.0
        %1589 = vmatpush.msra.mxu0 0.0
        %1590 = vmatpush.msra.mxu0 0.0
        %1591 = vmatpush.msra.mxu0 0.0
        %1592 = vmatpush.msra.mxu0 0.0
        %1593 = vmatpush.msra.mxu0 0.0
        %1594 = vmatpush.msra.mxu0 0.0
        %1595 = vmatpush.msra.mxu0 0.0
        %1596 = vmatpush.msra.mxu0 0.0
        %1597 = vmatpush.msra.mxu0 0.0
        %1598 = vmatpush.msra.mxu0 0.0
        %1599 = vmatpush.msra.mxu0 0.0
        %1600 = vmatpush.msra.mxu0 %v1456
        %1601 = vmatpush.msra.mxu0 %v1455
        %1602 = vmatmul.f32.gmra.mxu0 %v1491
        %v1603 = vpop.f32.mrf.mxu0
        %v1604 = vadd.f32 0.0, %v1603
        %1605 = vmatmul.f32.gmra.mxu0 %v1494
        %v1606 = vpop.f32.mrf.mxu0
        %v1607 = vadd.f32 0.0, %v1606
        %1608 = vmatmul.f32.gmra.mxu0 %v1497
        %v1609 = vpop.f32.mrf.mxu0
        %v1610 = vadd.f32 0.0, %v1609
        %1611 = vmatmul.f32.gmra.mxu0 %v1500
        %v1612 = vpop.f32.mrf.mxu0
        %v1613 = vadd.f32 0.0, %v1612
        %1614 = vmatmul.f32.gmra.mxu0 %v1503
        %v1615 = vpop.f32.mrf.mxu0
        %v1616 = vadd.f32 0.0, %v1615
        %1617 = vmatmul.f32.gmra.mxu0 %v1506
        %v1618 = vpop.f32.mrf.mxu0
        %v1619 = vadd.f32 0.0, %v1618
        %1620 = vmatmul.f32.gmra.mxu0 %v1509
        %v1621 = vpop.f32.mrf.mxu0
        %v1622 = vadd.f32 0.0, %v1621
        %1623 = vmatmul.f32.gmra.mxu0 %v1512
        %v1624 = vpop.f32.mrf.mxu0
        %v1625 = vadd.f32 0.0, %v1624
        %1626 = vmatmul.f32.gmra.mxu0 %v1515
        %v1627 = vpop.f32.mrf.mxu0
        %v1628 = vadd.f32 0.0, %v1627
        %1629 = vmatmul.f32.gmra.mxu0 %v1518
        %v1630 = vpop.f32.mrf.mxu0
        %v1631 = vadd.f32 0.0, %v1630
        %1632 = vmatmul.f32.gmra.mxu0 %v1521
        %v1633 = vpop.f32.mrf.mxu0
        %v1634 = vadd.f32 0.0, %v1633
        %1635 = vmatmul.f32.gmra.mxu0 %v1524
        %v1636 = vpop.f32.mrf.mxu0
        %v1637 = vadd.f32 0.0, %v1636
        %1638 = vmatmul.f32.gmra.mxu0 %v1527
        %v1639 = vpop.f32.mrf.mxu0
        %v1640 = vadd.f32 0.0, %v1639
        %1641 = vmatmul.f32.gmra.mxu0 %v1530
        %v1642 = vpop.f32.mrf.mxu0
        %v1643 = vadd.f32 0.0, %v1642
        %1644 = vmatmul.f32.gmra.mxu0 %v1533
        %v1645 = vpop.f32.mrf.mxu0
        %v1646 = vadd.f32 0.0, %v1645
        %1647 = vmatmul.f32.gmra.mxu0 %v1536
        %v1648 = vpop.f32.mrf.mxu0
        %v1649 = vadd.f32 0.0, %v1648
        %1650 = vmatmul.f32.gmra.mxu0 %v1539
        %v1651 = vpop.f32.mrf.mxu0
        %v1652 = vadd.f32 0.0, %v1651
        %1653 = vmatmul.f32.gmra.mxu0 %v1542
        %v1654 = vpop.f32.mrf.mxu0
        %v1655 = vadd.f32 0.0, %v1654
        %1656 = vmatmul.f32.gmra.mxu0 %v1545
        %v1657 = vpop.f32.mrf.mxu0
        %v1658 = vadd.f32 0.0, %v1657
        %1659 = vmatmul.f32.gmra.mxu0 %v1548
        %v1660 = vpop.f32.mrf.mxu0
        %v1661 = vadd.f32 0.0, %v1660
        %1662 = vmatmul.f32.gmra.mxu0 %v1551
        %v1663 = vpop.f32.mrf.mxu0
        %v1664 = vadd.f32 0.0, %v1663
        %1665 = vmatmul.f32.gmra.mxu0 %v1554
        %v1666 = vpop.f32.mrf.mxu0
        %v1667 = vadd.f32 0.0, %v1666
        %1668 = vmatmul.f32.gmra.mxu0 %v1557
        %v1669 = vpop.f32.mrf.mxu0
        %v1670 = vadd.f32 0.0, %v1669
        %1671 = vmatmul.f32.gmra.mxu0 %v1560
        %v1672 = vpop.f32.mrf.mxu0
        %v1673 = vadd.f32 0.0, %v1672
        %1674 = vmatmul.f32.gmra.mxu0 %v1563
        %v1675 = vpop.f32.mrf.mxu0
        %v1676 = vadd.f32 0.0, %v1675
        %1677 = vmatmul.f32.gmra.mxu0 %v1566
        %v1678 = vpop.f32.mrf.mxu0
        %v1679 = vadd.f32 0.0, %v1678
        %1680 = vmatmul.f32.gmra.mxu0 %v1569
        %v1681 = vpop.f32.mrf.mxu0
        %v1682 = vadd.f32 0.0, %v1681
        %1683 = vmatmul.f32.gmra.mxu0 %v1572
        %v1684 = vpop.f32.mrf.mxu0
        %v1685 = vadd.f32 0.0, %v1684
        %1686 = vmatmul.f32.gmra.mxu0 %v1575
        %v1687 = vpop.f32.mrf.mxu0
        %v1688 = vadd.f32 0.0, %v1687
        %1689 = vmatmul.f32.gmra.mxu0 %v1578
        %v1690 = vpop.f32.mrf.mxu0
        %v1691 = vadd.f32 0.0, %v1690
        %1692 = vmatmul.f32.gmra.mxu0 %v1581
        %v1693 = vpop.f32.mrf.mxu0
        %v1694 = vadd.f32 0.0, %v1693
        %1695 = vmatmul.f32.gmra.mxu0 %v1584
        %v1696 = vpop.f32.mrf.mxu0
        %v1697 = vadd.f32 0.0, %v1696
        %1698 = vdwg.mxu0
        %1731 = vrot.lane.b32.xlu0 %v1604, 127
        %v1732 = vpop.permute.xlu0 %1731
        %1733 = vrot.lane.b32.xlu0 %v1607, 127
        %v1734 = vpop.permute.xlu0 %1733
        %1735 = vrot.lane.b32.xlu0 %v1610, 127
        %v1736 = vpop.permute.xlu0 %1735
        %1737 = vrot.lane.b32.xlu0 %v1613, 127
        %v1738 = vpop.permute.xlu0 %1737
        %1739 = vrot.lane.b32.xlu0 %v1616, 127
        %v1740 = vpop.permute.xlu0 %1739
        %1741 = vrot.lane.b32.xlu0 %v1619, 127
        %v1742 = vpop.permute.xlu0 %1741
        %1743 = vrot.lane.b32.xlu0 %v1622, 127
        %v1744 = vpop.permute.xlu0 %1743
        %1745 = vrot.lane.b32.xlu0 %v1625, 127
        %v1746 = vpop.permute.xlu0 %1745
        %1747 = vrot.lane.b32.xlu0 %v1628, 127
        %v1748 = vpop.permute.xlu0 %1747
        %1749 = vrot.lane.b32.xlu0 %v1631, 127
        %v1750 = vpop.permute.xlu0 %1749
        %1751 = vrot.lane.b32.xlu0 %v1634, 127
        %v1752 = vpop.permute.xlu0 %1751
        %1753 = vrot.lane.b32.xlu0 %v1637, 127
        %v1754 = vpop.permute.xlu0 %1753
        %1755 = vrot.lane.b32.xlu0 %v1640, 127
        %v1756 = vpop.permute.xlu0 %1755
        %1757 = vrot.lane.b32.xlu0 %v1643, 127
        %v1758 = vpop.permute.xlu0 %1757
        %1759 = vrot.lane.b32.xlu0 %v1646, 127
        %v1760 = vpop.permute.xlu0 %1759
        %1761 = vrot.lane.b32.xlu0 %v1649, 127
        %v1762 = vpop.permute.xlu0 %1761
        %1763 = vrot.lane.b32.xlu0 %v1652, 127
        %v1764 = vpop.permute.xlu0 %1763
        %1765 = vrot.lane.b32.xlu0 %v1655, 127
        %v1766 = vpop.permute.xlu0 %1765
        %1767 = vrot.lane.b32.xlu0 %v1658, 127
        %v1768 = vpop.permute.xlu0 %1767
        %1769 = vrot.lane.b32.xlu0 %v1661, 127
        %v1770 = vpop.permute.xlu0 %1769
        %1771 = vrot.lane.b32.xlu0 %v1664, 127
        %v1772 = vpop.permute.xlu0 %1771
        %1773 = vrot.lane.b32.xlu0 %v1667, 127
        %v1774 = vpop.permute.xlu0 %1773
        %1775 = vrot.lane.b32.xlu0 %v1670, 127
        %v1776 = vpop.permute.xlu0 %1775
        %1777 = vrot.lane.b32.xlu0 %v1673, 127
        %v1778 = vpop.permute.xlu0 %1777
        %1779 = vrot.lane.b32.xlu0 %v1676, 127
        %v1780 = vpop.permute.xlu0 %1779
        %1781 = vrot.lane.b32.xlu0 %v1679, 127
        %v1782 = vpop.permute.xlu0 %1781
        %1783 = vrot.lane.b32.xlu0 %v1682, 127
        %v1784 = vpop.permute.xlu0 %1783
        %1785 = vrot.lane.b32.xlu0 %v1685, 127
        %v1786 = vpop.permute.xlu0 %1785
        %1787 = vrot.lane.b32.xlu0 %v1688, 127
        %v1788 = vpop.permute.xlu0 %1787
        %1789 = vrot.lane.b32.xlu0 %v1691, 127
        %v1790 = vpop.permute.xlu0 %1789
        %1791 = vrot.lane.b32.xlu0 %v1694, 127
        %v1792 = vpop.permute.xlu0 %1791
        %1793 = vrot.lane.b32.xlu0 %v1697, 127
        %v1794 = vpop.permute.xlu0 %1793
        %v1827 = vadd.f32 %v1604, %v1732
        %v1828 = vadd.f32 %v1607, %v1734
        %v1829 = vadd.f32 %v1610, %v1736
        %v1830 = vadd.f32 %v1613, %v1738
        %v1831 = vadd.f32 %v1616, %v1740
        %v1832 = vadd.f32 %v1619, %v1742
        %v1833 = vadd.f32 %v1622, %v1744
        %v1834 = vadd.f32 %v1625, %v1746
        %v1835 = vadd.f32 %v1628, %v1748
        %v1836 = vadd.f32 %v1631, %v1750
        %v1837 = vadd.f32 %v1634, %v1752
        %v1838 = vadd.f32 %v1637, %v1754
        %v1839 = vadd.f32 %v1640, %v1756
        %v1840 = vadd.f32 %v1643, %v1758
        %v1841 = vadd.f32 %v1646, %v1760
        %v1842 = vadd.f32 %v1649, %v1762
        %v1843 = vadd.f32 %v1652, %v1764
        %v1844 = vadd.f32 %v1655, %v1766
        %v1845 = vadd.f32 %v1658, %v1768
        %v1846 = vadd.f32 %v1661, %v1770
        %v1847 = vadd.f32 %v1664, %v1772
        %v1848 = vadd.f32 %v1667, %v1774
        %v1849 = vadd.f32 %v1670, %v1776
        %v1850 = vadd.f32 %v1673, %v1778
        %v1851 = vadd.f32 %v1676, %v1780
        %v1852 = vadd.f32 %v1679, %v1782
        %v1853 = vadd.f32 %v1682, %v1784
        %v1854 = vadd.f32 %v1685, %v1786
        %v1855 = vadd.f32 %v1688, %v1788
        %v1856 = vadd.f32 %v1691, %v1790
        %v1857 = vadd.f32 %v1694, %v1792
        %v1858 = vadd.f32 %v1697, %v1794
        %v1859 = vsub.f32 0.0, %v1827
        %v1860 = vsub.f32 0.0, %v1828
        %v1861 = vsub.f32 0.0, %v1829
        %v1862 = vsub.f32 0.0, %v1830
        %v1863 = vsub.f32 0.0, %v1831
        %v1864 = vsub.f32 0.0, %v1832
        %v1865 = vsub.f32 0.0, %v1833
        %v1866 = vsub.f32 0.0, %v1834
        %v1867 = vsub.f32 0.0, %v1835
        %v1868 = vsub.f32 0.0, %v1836
        %v1869 = vsub.f32 0.0, %v1837
        %v1870 = vsub.f32 0.0, %v1838
        %v1871 = vsub.f32 0.0, %v1839
        %v1872 = vsub.f32 0.0, %v1840
        %v1873 = vsub.f32 0.0, %v1841
        %v1874 = vsub.f32 0.0, %v1842
        %v1875 = vsub.f32 0.0, %v1843
        %v1876 = vsub.f32 0.0, %v1844
        %v1877 = vsub.f32 0.0, %v1845
        %v1878 = vsub.f32 0.0, %v1846
        %v1879 = vsub.f32 0.0, %v1847
        %v1880 = vsub.f32 0.0, %v1848
        %v1881 = vsub.f32 0.0, %v1849
        %v1882 = vsub.f32 0.0, %v1850
        %v1883 = vsub.f32 0.0, %v1851
        %v1884 = vsub.f32 0.0, %v1852
        %v1885 = vsub.f32 0.0, %v1853
        %v1886 = vsub.f32 0.0, %v1854
        %v1887 = vsub.f32 0.0, %v1855
        %v1888 = vsub.f32 0.0, %v1856
        %v1889 = vsub.f32 0.0, %v1857
        %v1890 = vsub.f32 0.0, %v1858
        %v1891 = vmul.f32 %v1859, 1.442695
        %v1892 = vpow.pop %v1891
        %v1893 = vmul.f32 %v1860, 1.442695
        %v1894 = vpow.pop %v1893
        %v1895 = vmul.f32 %v1861, 1.442695
        %v1896 = vpow.pop %v1895
        %v1897 = vmul.f32 %v1862, 1.442695
        %v1898 = vpow.pop %v1897
        %v1899 = vmul.f32 %v1863, 1.442695
        %v1900 = vpow.pop %v1899
        %v1901 = vmul.f32 %v1864, 1.442695
        %v1902 = vpow.pop %v1901
        %v1903 = vmul.f32 %v1865, 1.442695
        %v1904 = vpow.pop %v1903
        %v1905 = vmul.f32 %v1866, 1.442695
        %v1906 = vpow.pop %v1905
        %v1907 = vmul.f32 %v1867, 1.442695
        %v1908 = vpow.pop %v1907
        %v1909 = vmul.f32 %v1868, 1.442695
        %v1910 = vpow.pop %v1909
        %v1911 = vmul.f32 %v1869, 1.442695
        %v1912 = vpow.pop %v1911
        %v1913 = vmul.f32 %v1870, 1.442695
        %v1914 = vpow.pop %v1913
        %v1915 = vmul.f32 %v1871, 1.442695
        %v1916 = vpow.pop %v1915
        %v1917 = vmul.f32 %v1872, 1.442695
        %v1918 = vpow.pop %v1917
        %v1919 = vmul.f32 %v1873, 1.442695
        %v1920 = vpow.pop %v1919
        %v1921 = vmul.f32 %v1874, 1.442695
        %v1922 = vpow.pop %v1921
        %v1923 = vmul.f32 %v1875, 1.442695
        %v1924 = vpow.pop %v1923
        %v1925 = vmul.f32 %v1876, 1.442695
        %v1926 = vpow.pop %v1925
        %v1927 = vmul.f32 %v1877, 1.442695
        %v1928 = vpow.pop %v1927
        %v1929 = vmul.f32 %v1878, 1.442695
        %v1930 = vpow.pop %v1929
        %v1931 = vmul.f32 %v1879, 1.442695
        %v1932 = vpow.pop %v1931
        %v1933 = vmul.f32 %v1880, 1.442695
        %v1934 = vpow.pop %v1933
        %v1935 = vmul.f32 %v1881, 1.442695
        %v1936 = vpow.pop %v1935
        %v1937 = vmul.f32 %v1882, 1.442695
        %v1938 = vpow.pop %v1937
        %v1939 = vmul.f32 %v1883, 1.442695
        %v1940 = vpow.pop %v1939
        %v1941 = vmul.f32 %v1884, 1.442695
        %v1942 = vpow.pop %v1941
        %v1943 = vmul.f32 %v1885, 1.442695
        %v1944 = vpow.pop %v1943
        %v1945 = vmul.f32 %v1886, 1.442695
        %v1946 = vpow.pop %v1945
        %v1947 = vmul.f32 %v1887, 1.442695
        %v1948 = vpow.pop %v1947
        %v1949 = vmul.f32 %v1888, 1.442695
        %v1950 = vpow.pop %v1949
        %v1951 = vmul.f32 %v1889, 1.442695
        %v1952 = vpow.pop %v1951
        %v1953 = vmul.f32 %v1890, 1.442695
        %v1954 = vpow.pop %v1953
        %v1955 = vadd.f32 %v1892, 1.0
        %v1956 = vadd.f32 %v1894, 1.0
        %v1957 = vadd.f32 %v1896, 1.0
        %v1958 = vadd.f32 %v1898, 1.0
        %v1959 = vadd.f32 %v1900, 1.0
        %v1960 = vadd.f32 %v1902, 1.0
        %v1961 = vadd.f32 %v1904, 1.0
        %v1962 = vadd.f32 %v1906, 1.0
        %v1963 = vadd.f32 %v1908, 1.0
        %v1964 = vadd.f32 %v1910, 1.0
        %v1965 = vadd.f32 %v1912, 1.0
        %v1966 = vadd.f32 %v1914, 1.0
        %v1967 = vadd.f32 %v1916, 1.0
        %v1968 = vadd.f32 %v1918, 1.0
        %v1969 = vadd.f32 %v1920, 1.0
        %v1970 = vadd.f32 %v1922, 1.0
        %v1971 = vadd.f32 %v1924, 1.0
        %v1972 = vadd.f32 %v1926, 1.0
        %v1973 = vadd.f32 %v1928, 1.0
        %v1974 = vadd.f32 %v1930, 1.0
        %v1975 = vadd.f32 %v1932, 1.0
        %v1976 = vadd.f32 %v1934, 1.0
        %v1977 = vadd.f32 %v1936, 1.0
        %v1978 = vadd.f32 %v1938, 1.0
        %v1979 = vadd.f32 %v1940, 1.0
        %v1980 = vadd.f32 %v1942, 1.0
        %v1981 = vadd.f32 %v1944, 1.0
        %v1982 = vadd.f32 %v1946, 1.0
        %v1983 = vadd.f32 %v1948, 1.0
        %v1984 = vadd.f32 %v1950, 1.0
        %v1985 = vadd.f32 %v1952, 1.0
        %v1986 = vadd.f32 %v1954, 1.0
        %v1987 = vrcp.pop %v1955
        %v1988 = vmul.f32 %v1955, %v1987
        %v1989 = vsub.f32 1.0, %v1988
        %v1990 = vmul.f32 %v1987, %v1989
        %v1991 = vadd.f32 %v1987, %v1990
        %vm1992 = vweird.f32 %v1955
        %vm1993 = vweird.f32 %v1987
        %vm1994 = vmor %vm1992, %vm1993
        %v1995 = vsel %vm1994, %v1987, %v1991
        %v1996 = vand.u32 2147483647, %v1955
        %vm1997 = vcmp.eq.f32.partialorder %v1996, 8.507059e+37
        %v1998 = vand.u32 %v1955, 2147483648
        %v1999 = vor.u32 1.1754944e-38, %v1998
        %v2000 = vsel %vm1997, %v1999, %v1995
        %v2001 = vmul.f32 1.0, %v2000
        %v2002 = vrcp.pop %v1956
        %v2003 = vmul.f32 %v1956, %v2002
        %v2004 = vsub.f32 1.0, %v2003
        %v2005 = vmul.f32 %v2002, %v2004
        %v2006 = vadd.f32 %v2002, %v2005
        %vm2007 = vweird.f32 %v1956
        %vm2008 = vweird.f32 %v2002
        %vm2009 = vmor %vm2007, %vm2008
        %v2010 = vsel %vm2009, %v2002, %v2006
        %v2011 = vand.u32 2147483647, %v1956
        %vm2012 = vcmp.eq.f32.partialorder %v2011, 8.507059e+37
        %v2013 = vand.u32 %v1956, 2147483648
        %v2014 = vor.u32 1.1754944e-38, %v2013
        %v2015 = vsel %vm2012, %v2014, %v2010
        %v2016 = vmul.f32 1.0, %v2015
        %v2017 = vrcp.pop %v1957
        %v2018 = vmul.f32 %v1957, %v2017
        %v2019 = vsub.f32 1.0, %v2018
        %v2020 = vmul.f32 %v2017, %v2019
        %v2021 = vadd.f32 %v2017, %v2020
        %vm2022 = vweird.f32 %v1957
        %vm2023 = vweird.f32 %v2017
        %vm2024 = vmor %vm2022, %vm2023
        %v2025 = vsel %vm2024, %v2017, %v2021
        %v2026 = vand.u32 2147483647, %v1957
        %vm2027 = vcmp.eq.f32.partialorder %v2026, 8.507059e+37
        %v2028 = vand.u32 %v1957, 2147483648
        %v2029 = vor.u32 1.1754944e-38, %v2028
        %v2030 = vsel %vm2027, %v2029, %v2025
        %v2031 = vmul.f32 1.0, %v2030
        %v2032 = vrcp.pop %v1958
        %v2033 = vmul.f32 %v1958, %v2032
        %v2034 = vsub.f32 1.0, %v2033
        %v2035 = vmul.f32 %v2032, %v2034
        %v2036 = vadd.f32 %v2032, %v2035
        %vm2037 = vweird.f32 %v1958
        %vm2038 = vweird.f32 %v2032
        %vm2039 = vmor %vm2037, %vm2038
        %v2040 = vsel %vm2039, %v2032, %v2036
        %v2041 = vand.u32 2147483647, %v1958
        %vm2042 = vcmp.eq.f32.partialorder %v2041, 8.507059e+37
        %v2043 = vand.u32 %v1958, 2147483648
        %v2044 = vor.u32 1.1754944e-38, %v2043
        %v2045 = vsel %vm2042, %v2044, %v2040
        %v2046 = vmul.f32 1.0, %v2045
        %v2047 = vrcp.pop %v1959
        %v2048 = vmul.f32 %v1959, %v2047
        %v2049 = vsub.f32 1.0, %v2048
        %v2050 = vmul.f32 %v2047, %v2049
        %v2051 = vadd.f32 %v2047, %v2050
        %vm2052 = vweird.f32 %v1959
        %vm2053 = vweird.f32 %v2047
        %vm2054 = vmor %vm2052, %vm2053
        %v2055 = vsel %vm2054, %v2047, %v2051
        %v2056 = vand.u32 2147483647, %v1959
        %vm2057 = vcmp.eq.f32.partialorder %v2056, 8.507059e+37
        %v2058 = vand.u32 %v1959, 2147483648
        %v2059 = vor.u32 1.1754944e-38, %v2058
        %v2060 = vsel %vm2057, %v2059, %v2055
        %v2061 = vmul.f32 1.0, %v2060
        %v2062 = vrcp.pop %v1960
        %v2063 = vmul.f32 %v1960, %v2062
        %v2064 = vsub.f32 1.0, %v2063
        %v2065 = vmul.f32 %v2062, %v2064
        %v2066 = vadd.f32 %v2062, %v2065
        %vm2067 = vweird.f32 %v1960
        %vm2068 = vweird.f32 %v2062
        %vm2069 = vmor %vm2067, %vm2068
        %v2070 = vsel %vm2069, %v2062, %v2066
        %v2071 = vand.u32 2147483647, %v1960
        %vm2072 = vcmp.eq.f32.partialorder %v2071, 8.507059e+37
        %v2073 = vand.u32 %v1960, 2147483648
        %v2074 = vor.u32 1.1754944e-38, %v2073
        %v2075 = vsel %vm2072, %v2074, %v2070
        %v2076 = vmul.f32 1.0, %v2075
        %v2077 = vrcp.pop %v1961
        %v2078 = vmul.f32 %v1961, %v2077
        %v2079 = vsub.f32 1.0, %v2078
        %v2080 = vmul.f32 %v2077, %v2079
        %v2081 = vadd.f32 %v2077, %v2080
        %vm2082 = vweird.f32 %v1961
        %vm2083 = vweird.f32 %v2077
        %vm2084 = vmor %vm2082, %vm2083
        %v2085 = vsel %vm2084, %v2077, %v2081
        %v2086 = vand.u32 2147483647, %v1961
        %vm2087 = vcmp.eq.f32.partialorder %v2086, 8.507059e+37
        %v2088 = vand.u32 %v1961, 2147483648
        %v2089 = vor.u32 1.1754944e-38, %v2088
        %v2090 = vsel %vm2087, %v2089, %v2085
        %v2091 = vmul.f32 1.0, %v2090
        %v2092 = vrcp.pop %v1962
        %v2093 = vmul.f32 %v1962, %v2092
        %v2094 = vsub.f32 1.0, %v2093
        %v2095 = vmul.f32 %v2092, %v2094
        %v2096 = vadd.f32 %v2092, %v2095
        %vm2097 = vweird.f32 %v1962
        %vm2098 = vweird.f32 %v2092
        %vm2099 = vmor %vm2097, %vm2098
        %v2100 = vsel %vm2099, %v2092, %v2096
        %v2101 = vand.u32 2147483647, %v1962
        %vm2102 = vcmp.eq.f32.partialorder %v2101, 8.507059e+37
        %v2103 = vand.u32 %v1962, 2147483648
        %v2104 = vor.u32 1.1754944e-38, %v2103
        %v2105 = vsel %vm2102, %v2104, %v2100
        %v2106 = vmul.f32 1.0, %v2105
        %v2107 = vrcp.pop %v1963
        %v2108 = vmul.f32 %v1963, %v2107
        %v2109 = vsub.f32 1.0, %v2108
        %v2110 = vmul.f32 %v2107, %v2109
        %v2111 = vadd.f32 %v2107, %v2110
        %vm2112 = vweird.f32 %v1963
        %vm2113 = vweird.f32 %v2107
        %vm2114 = vmor %vm2112, %vm2113
        %v2115 = vsel %vm2114, %v2107, %v2111
        %v2116 = vand.u32 2147483647, %v1963
        %vm2117 = vcmp.eq.f32.partialorder %v2116, 8.507059e+37
        %v2118 = vand.u32 %v1963, 2147483648
        %v2119 = vor.u32 1.1754944e-38, %v2118
        %v2120 = vsel %vm2117, %v2119, %v2115
        %v2121 = vmul.f32 1.0, %v2120
        %v2122 = vrcp.pop %v1964
        %v2123 = vmul.f32 %v1964, %v2122
        %v2124 = vsub.f32 1.0, %v2123
        %v2125 = vmul.f32 %v2122, %v2124
        %v2126 = vadd.f32 %v2122, %v2125
        %vm2127 = vweird.f32 %v1964
        %vm2128 = vweird.f32 %v2122
        %vm2129 = vmor %vm2127, %vm2128
        %v2130 = vsel %vm2129, %v2122, %v2126
        %v2131 = vand.u32 2147483647, %v1964
        %vm2132 = vcmp.eq.f32.partialorder %v2131, 8.507059e+37
        %v2133 = vand.u32 %v1964, 2147483648
        %v2134 = vor.u32 1.1754944e-38, %v2133
        %v2135 = vsel %vm2132, %v2134, %v2130
        %v2136 = vmul.f32 1.0, %v2135
        %v2137 = vrcp.pop %v1965
        %v2138 = vmul.f32 %v1965, %v2137
        %v2139 = vsub.f32 1.0, %v2138
        %v2140 = vmul.f32 %v2137, %v2139
        %v2141 = vadd.f32 %v2137, %v2140
        %vm2142 = vweird.f32 %v1965
        %vm2143 = vweird.f32 %v2137
        %vm2144 = vmor %vm2142, %vm2143
        %v2145 = vsel %vm2144, %v2137, %v2141
        %v2146 = vand.u32 2147483647, %v1965
        %vm2147 = vcmp.eq.f32.partialorder %v2146, 8.507059e+37
        %v2148 = vand.u32 %v1965, 2147483648
        %v2149 = vor.u32 1.1754944e-38, %v2148
        %v2150 = vsel %vm2147, %v2149, %v2145
        %v2151 = vmul.f32 1.0, %v2150
        %v2152 = vrcp.pop %v1966
        %v2153 = vmul.f32 %v1966, %v2152
        %v2154 = vsub.f32 1.0, %v2153
        %v2155 = vmul.f32 %v2152, %v2154
        %v2156 = vadd.f32 %v2152, %v2155
        %vm2157 = vweird.f32 %v1966
        %vm2158 = vweird.f32 %v2152
        %vm2159 = vmor %vm2157, %vm2158
        %v2160 = vsel %vm2159, %v2152, %v2156
        %v2161 = vand.u32 2147483647, %v1966
        %vm2162 = vcmp.eq.f32.partialorder %v2161, 8.507059e+37
        %v2163 = vand.u32 %v1966, 2147483648
        %v2164 = vor.u32 1.1754944e-38, %v2163
        %v2165 = vsel %vm2162, %v2164, %v2160
        %v2166 = vmul.f32 1.0, %v2165
        %v2167 = vrcp.pop %v1967
        %v2168 = vmul.f32 %v1967, %v2167
        %v2169 = vsub.f32 1.0, %v2168
        %v2170 = vmul.f32 %v2167, %v2169
        %v2171 = vadd.f32 %v2167, %v2170
        %vm2172 = vweird.f32 %v1967
        %vm2173 = vweird.f32 %v2167
        %vm2174 = vmor %vm2172, %vm2173
        %v2175 = vsel %vm2174, %v2167, %v2171
        %v2176 = vand.u32 2147483647, %v1967
        %vm2177 = vcmp.eq.f32.partialorder %v2176, 8.507059e+37
        %v2178 = vand.u32 %v1967, 2147483648
        %v2179 = vor.u32 1.1754944e-38, %v2178
        %v2180 = vsel %vm2177, %v2179, %v2175
        %v2181 = vmul.f32 1.0, %v2180
        %v2182 = vrcp.pop %v1968
        %v2183 = vmul.f32 %v1968, %v2182
        %v2184 = vsub.f32 1.0, %v2183
        %v2185 = vmul.f32 %v2182, %v2184
        %v2186 = vadd.f32 %v2182, %v2185
        %vm2187 = vweird.f32 %v1968
        %vm2188 = vweird.f32 %v2182
        %vm2189 = vmor %vm2187, %vm2188
        %v2190 = vsel %vm2189, %v2182, %v2186
        %v2191 = vand.u32 2147483647, %v1968
        %vm2192 = vcmp.eq.f32.partialorder %v2191, 8.507059e+37
        %v2193 = vand.u32 %v1968, 2147483648
        %v2194 = vor.u32 1.1754944e-38, %v2193
        %v2195 = vsel %vm2192, %v2194, %v2190
        %v2196 = vmul.f32 1.0, %v2195
        %v2197 = vrcp.pop %v1969
        %v2198 = vmul.f32 %v1969, %v2197
        %v2199 = vsub.f32 1.0, %v2198
        %v2200 = vmul.f32 %v2197, %v2199
        %v2201 = vadd.f32 %v2197, %v2200
        %vm2202 = vweird.f32 %v1969
        %vm2203 = vweird.f32 %v2197
        %vm2204 = vmor %vm2202, %vm2203
        %v2205 = vsel %vm2204, %v2197, %v2201
        %v2206 = vand.u32 2147483647, %v1969
        %vm2207 = vcmp.eq.f32.partialorder %v2206, 8.507059e+37
        %v2208 = vand.u32 %v1969, 2147483648
        %v2209 = vor.u32 1.1754944e-38, %v2208
        %v2210 = vsel %vm2207, %v2209, %v2205
        %v2211 = vmul.f32 1.0, %v2210
        %v2212 = vrcp.pop %v1970
        %v2213 = vmul.f32 %v1970, %v2212
        %v2214 = vsub.f32 1.0, %v2213
        %v2215 = vmul.f32 %v2212, %v2214
        %v2216 = vadd.f32 %v2212, %v2215
        %vm2217 = vweird.f32 %v1970
        %vm2218 = vweird.f32 %v2212
        %vm2219 = vmor %vm2217, %vm2218
        %v2220 = vsel %vm2219, %v2212, %v2216
        %v2221 = vand.u32 2147483647, %v1970
        %vm2222 = vcmp.eq.f32.partialorder %v2221, 8.507059e+37
        %v2223 = vand.u32 %v1970, 2147483648
        %v2224 = vor.u32 1.1754944e-38, %v2223
        %v2225 = vsel %vm2222, %v2224, %v2220
        %v2226 = vmul.f32 1.0, %v2225
        %v2227 = vrcp.pop %v1971
        %v2228 = vmul.f32 %v1971, %v2227
        %v2229 = vsub.f32 1.0, %v2228
        %v2230 = vmul.f32 %v2227, %v2229
        %v2231 = vadd.f32 %v2227, %v2230
        %vm2232 = vweird.f32 %v1971
        %vm2233 = vweird.f32 %v2227
        %vm2234 = vmor %vm2232, %vm2233
        %v2235 = vsel %vm2234, %v2227, %v2231
        %v2236 = vand.u32 2147483647, %v1971
        %vm2237 = vcmp.eq.f32.partialorder %v2236, 8.507059e+37
        %v2238 = vand.u32 %v1971, 2147483648
        %v2239 = vor.u32 1.1754944e-38, %v2238
        %v2240 = vsel %vm2237, %v2239, %v2235
        %v2241 = vmul.f32 1.0, %v2240
        %v2242 = vrcp.pop %v1972
        %v2243 = vmul.f32 %v1972, %v2242
        %v2244 = vsub.f32 1.0, %v2243
        %v2245 = vmul.f32 %v2242, %v2244
        %v2246 = vadd.f32 %v2242, %v2245
        %vm2247 = vweird.f32 %v1972
        %vm2248 = vweird.f32 %v2242
        %vm2249 = vmor %vm2247, %vm2248
        %v2250 = vsel %vm2249, %v2242, %v2246
        %v2251 = vand.u32 2147483647, %v1972
        %vm2252 = vcmp.eq.f32.partialorder %v2251, 8.507059e+37
        %v2253 = vand.u32 %v1972, 2147483648
        %v2254 = vor.u32 1.1754944e-38, %v2253
        %v2255 = vsel %vm2252, %v2254, %v2250
        %v2256 = vmul.f32 1.0, %v2255
        %v2257 = vrcp.pop %v1973
        %v2258 = vmul.f32 %v1973, %v2257
        %v2259 = vsub.f32 1.0, %v2258
        %v2260 = vmul.f32 %v2257, %v2259
        %v2261 = vadd.f32 %v2257, %v2260
        %vm2262 = vweird.f32 %v1973
        %vm2263 = vweird.f32 %v2257
        %vm2264 = vmor %vm2262, %vm2263
        %v2265 = vsel %vm2264, %v2257, %v2261
        %v2266 = vand.u32 2147483647, %v1973
        %vm2267 = vcmp.eq.f32.partialorder %v2266, 8.507059e+37
        %v2268 = vand.u32 %v1973, 2147483648
        %v2269 = vor.u32 1.1754944e-38, %v2268
        %v2270 = vsel %vm2267, %v2269, %v2265
        %v2271 = vmul.f32 1.0, %v2270
        %v2272 = vrcp.pop %v1974
        %v2273 = vmul.f32 %v1974, %v2272
        %v2274 = vsub.f32 1.0, %v2273
        %v2275 = vmul.f32 %v2272, %v2274
        %v2276 = vadd.f32 %v2272, %v2275
        %vm2277 = vweird.f32 %v1974
        %vm2278 = vweird.f32 %v2272
        %vm2279 = vmor %vm2277, %vm2278
        %v2280 = vsel %vm2279, %v2272, %v2276
        %v2281 = vand.u32 2147483647, %v1974
        %vm2282 = vcmp.eq.f32.partialorder %v2281, 8.507059e+37
        %v2283 = vand.u32 %v1974, 2147483648
        %v2284 = vor.u32 1.1754944e-38, %v2283
        %v2285 = vsel %vm2282, %v2284, %v2280
        %v2286 = vmul.f32 1.0, %v2285
        %v2287 = vrcp.pop %v1975
        %v2288 = vmul.f32 %v1975, %v2287
        %v2289 = vsub.f32 1.0, %v2288
        %v2290 = vmul.f32 %v2287, %v2289
        %v2291 = vadd.f32 %v2287, %v2290
        %vm2292 = vweird.f32 %v1975
        %vm2293 = vweird.f32 %v2287
        %vm2294 = vmor %vm2292, %vm2293
        %v2295 = vsel %vm2294, %v2287, %v2291
        %v2296 = vand.u32 2147483647, %v1975
        %vm2297 = vcmp.eq.f32.partialorder %v2296, 8.507059e+37
        %v2298 = vand.u32 %v1975, 2147483648
        %v2299 = vor.u32 1.1754944e-38, %v2298
        %v2300 = vsel %vm2297, %v2299, %v2295
        %v2301 = vmul.f32 1.0, %v2300
        %v2302 = vrcp.pop %v1976
        %v2303 = vmul.f32 %v1976, %v2302
        %v2304 = vsub.f32 1.0, %v2303
        %v2305 = vmul.f32 %v2302, %v2304
        %v2306 = vadd.f32 %v2302, %v2305
        %vm2307 = vweird.f32 %v1976
        %vm2308 = vweird.f32 %v2302
        %vm2309 = vmor %vm2307, %vm2308
        %v2310 = vsel %vm2309, %v2302, %v2306
        %v2311 = vand.u32 2147483647, %v1976
        %vm2312 = vcmp.eq.f32.partialorder %v2311, 8.507059e+37
        %v2313 = vand.u32 %v1976, 2147483648
        %v2314 = vor.u32 1.1754944e-38, %v2313
        %v2315 = vsel %vm2312, %v2314, %v2310
        %v2316 = vmul.f32 1.0, %v2315
        %v2317 = vrcp.pop %v1977
        %v2318 = vmul.f32 %v1977, %v2317
        %v2319 = vsub.f32 1.0, %v2318
        %v2320 = vmul.f32 %v2317, %v2319
        %v2321 = vadd.f32 %v2317, %v2320
        %vm2322 = vweird.f32 %v1977
        %vm2323 = vweird.f32 %v2317
        %vm2324 = vmor %vm2322, %vm2323
        %v2325 = vsel %vm2324, %v2317, %v2321
        %v2326 = vand.u32 2147483647, %v1977
        %vm2327 = vcmp.eq.f32.partialorder %v2326, 8.507059e+37
        %v2328 = vand.u32 %v1977, 2147483648
        %v2329 = vor.u32 1.1754944e-38, %v2328
        %v2330 = vsel %vm2327, %v2329, %v2325
        %v2331 = vmul.f32 1.0, %v2330
        %v2332 = vrcp.pop %v1978
        %v2333 = vmul.f32 %v1978, %v2332
        %v2334 = vsub.f32 1.0, %v2333
        %v2335 = vmul.f32 %v2332, %v2334
        %v2336 = vadd.f32 %v2332, %v2335
        %vm2337 = vweird.f32 %v1978
        %vm2338 = vweird.f32 %v2332
        %vm2339 = vmor %vm2337, %vm2338
        %v2340 = vsel %vm2339, %v2332, %v2336
        %v2341 = vand.u32 2147483647, %v1978
        %vm2342 = vcmp.eq.f32.partialorder %v2341, 8.507059e+37
        %v2343 = vand.u32 %v1978, 2147483648
        %v2344 = vor.u32 1.1754944e-38, %v2343
        %v2345 = vsel %vm2342, %v2344, %v2340
        %v2346 = vmul.f32 1.0, %v2345
        %v2347 = vrcp.pop %v1979
        %v2348 = vmul.f32 %v1979, %v2347
        %v2349 = vsub.f32 1.0, %v2348
        %v2350 = vmul.f32 %v2347, %v2349
        %v2351 = vadd.f32 %v2347, %v2350
        %vm2352 = vweird.f32 %v1979
        %vm2353 = vweird.f32 %v2347
        %vm2354 = vmor %vm2352, %vm2353
        %v2355 = vsel %vm2354, %v2347, %v2351
        %v2356 = vand.u32 2147483647, %v1979
        %vm2357 = vcmp.eq.f32.partialorder %v2356, 8.507059e+37
        %v2358 = vand.u32 %v1979, 2147483648
        %v2359 = vor.u32 1.1754944e-38, %v2358
        %v2360 = vsel %vm2357, %v2359, %v2355
        %v2361 = vmul.f32 1.0, %v2360
        %v2362 = vrcp.pop %v1980
        %v2363 = vmul.f32 %v1980, %v2362
        %v2364 = vsub.f32 1.0, %v2363
        %v2365 = vmul.f32 %v2362, %v2364
        %v2366 = vadd.f32 %v2362, %v2365
        %vm2367 = vweird.f32 %v1980
        %vm2368 = vweird.f32 %v2362
        %vm2369 = vmor %vm2367, %vm2368
        %v2370 = vsel %vm2369, %v2362, %v2366
        %v2371 = vand.u32 2147483647, %v1980
        %vm2372 = vcmp.eq.f32.partialorder %v2371, 8.507059e+37
        %v2373 = vand.u32 %v1980, 2147483648
        %v2374 = vor.u32 1.1754944e-38, %v2373
        %v2375 = vsel %vm2372, %v2374, %v2370
        %v2376 = vmul.f32 1.0, %v2375
        %v2377 = vrcp.pop %v1981
        %v2378 = vmul.f32 %v1981, %v2377
        %v2379 = vsub.f32 1.0, %v2378
        %v2380 = vmul.f32 %v2377, %v2379
        %v2381 = vadd.f32 %v2377, %v2380
        %vm2382 = vweird.f32 %v1981
        %vm2383 = vweird.f32 %v2377
        %vm2384 = vmor %vm2382, %vm2383
        %v2385 = vsel %vm2384, %v2377, %v2381
        %v2386 = vand.u32 2147483647, %v1981
        %vm2387 = vcmp.eq.f32.partialorder %v2386, 8.507059e+37
        %v2388 = vand.u32 %v1981, 2147483648
        %v2389 = vor.u32 1.1754944e-38, %v2388
        %v2390 = vsel %vm2387, %v2389, %v2385
        %v2391 = vmul.f32 1.0, %v2390
        %v2392 = vrcp.pop %v1982
        %v2393 = vmul.f32 %v1982, %v2392
        %v2394 = vsub.f32 1.0, %v2393
        %v2395 = vmul.f32 %v2392, %v2394
        %v2396 = vadd.f32 %v2392, %v2395
        %vm2397 = vweird.f32 %v1982
        %vm2398 = vweird.f32 %v2392
        %vm2399 = vmor %vm2397, %vm2398
        %v2400 = vsel %vm2399, %v2392, %v2396
        %v2401 = vand.u32 2147483647, %v1982
        %vm2402 = vcmp.eq.f32.partialorder %v2401, 8.507059e+37
        %v2403 = vand.u32 %v1982, 2147483648
        %v2404 = vor.u32 1.1754944e-38, %v2403
        %v2405 = vsel %vm2402, %v2404, %v2400
        %v2406 = vmul.f32 1.0, %v2405
        %v2407 = vrcp.pop %v1983
        %v2408 = vmul.f32 %v1983, %v2407
        %v2409 = vsub.f32 1.0, %v2408
        %v2410 = vmul.f32 %v2407, %v2409
        %v2411 = vadd.f32 %v2407, %v2410
        %vm2412 = vweird.f32 %v1983
        %vm2413 = vweird.f32 %v2407
        %vm2414 = vmor %vm2412, %vm2413
        %v2415 = vsel %vm2414, %v2407, %v2411
        %v2416 = vand.u32 2147483647, %v1983
        %vm2417 = vcmp.eq.f32.partialorder %v2416, 8.507059e+37
        %v2418 = vand.u32 %v1983, 2147483648
        %v2419 = vor.u32 1.1754944e-38, %v2418
        %v2420 = vsel %vm2417, %v2419, %v2415
        %v2421 = vmul.f32 1.0, %v2420
        %v2422 = vrcp.pop %v1984
        %v2423 = vmul.f32 %v1984, %v2422
        %v2424 = vsub.f32 1.0, %v2423
        %v2425 = vmul.f32 %v2422, %v2424
        %v2426 = vadd.f32 %v2422, %v2425
        %vm2427 = vweird.f32 %v1984
        %vm2428 = vweird.f32 %v2422
        %vm2429 = vmor %vm2427, %vm2428
        %v2430 = vsel %vm2429, %v2422, %v2426
        %v2431 = vand.u32 2147483647, %v1984
        %vm2432 = vcmp.eq.f32.partialorder %v2431, 8.507059e+37
        %v2433 = vand.u32 %v1984, 2147483648
        %v2434 = vor.u32 1.1754944e-38, %v2433
        %v2435 = vsel %vm2432, %v2434, %v2430
        %v2436 = vmul.f32 1.0, %v2435
        %v2437 = vrcp.pop %v1985
        %v2438 = vmul.f32 %v1985, %v2437
        %v2439 = vsub.f32 1.0, %v2438
        %v2440 = vmul.f32 %v2437, %v2439
        %v2441 = vadd.f32 %v2437, %v2440
        %vm2442 = vweird.f32 %v1985
        %vm2443 = vweird.f32 %v2437
        %vm2444 = vmor %vm2442, %vm2443
        %v2445 = vsel %vm2444, %v2437, %v2441
        %v2446 = vand.u32 2147483647, %v1985
        %vm2447 = vcmp.eq.f32.partialorder %v2446, 8.507059e+37
        %v2448 = vand.u32 %v1985, 2147483648
        %v2449 = vor.u32 1.1754944e-38, %v2448
        %v2450 = vsel %vm2447, %v2449, %v2445
        %v2451 = vmul.f32 1.0, %v2450
        %v2452 = vrcp.pop %v1986
        %v2453 = vmul.f32 %v1986, %v2452
        %v2454 = vsub.f32 1.0, %v2453
        %v2455 = vmul.f32 %v2452, %v2454
        %v2456 = vadd.f32 %v2452, %v2455
        %vm2457 = vweird.f32 %v1986
        %vm2458 = vweird.f32 %v2452
        %vm2459 = vmor %vm2457, %vm2458
        %v2460 = vsel %vm2459, %v2452, %v2456
        %v2461 = vand.u32 2147483647, %v1986
        %vm2462 = vcmp.eq.f32.partialorder %v2461, 8.507059e+37
        %v2463 = vand.u32 %v1986, 2147483648
        %v2464 = vor.u32 1.1754944e-38, %v2463
        %v2465 = vsel %vm2462, %v2464, %v2460
        %v2466 = vmul.f32 1.0, %v2465
        %2468 = vset.pattern.permute.xlu0 0
        %2469 = vperm.xlu0 %2468, %v2001
        %v2470 = vpop.permute.xlu0 %2469
        %2473 = vset.pattern.permute.xlu0 0
        %2474 = vperm.xlu0 %2473, %v2016
        %v2475 = vpop.permute.xlu0 %2474
        %2478 = vset.pattern.permute.xlu0 0
        %2479 = vperm.xlu0 %2478, %v2031
        %v2480 = vpop.permute.xlu0 %2479
        %2483 = vset.pattern.permute.xlu0 0
        %2484 = vperm.xlu0 %2483, %v2046
        %v2485 = vpop.permute.xlu0 %2484
        %2488 = vset.pattern.permute.xlu0 0
        %2489 = vperm.xlu0 %2488, %v2061
        %v2490 = vpop.permute.xlu0 %2489
        %2493 = vset.pattern.permute.xlu0 0
        %2494 = vperm.xlu0 %2493, %v2076
        %v2495 = vpop.permute.xlu0 %2494
        %2498 = vset.pattern.permute.xlu0 0
        %2499 = vperm.xlu0 %2498, %v2091
        %v2500 = vpop.permute.xlu0 %2499
        %2503 = vset.pattern.permute.xlu0 0
        %2504 = vperm.xlu0 %2503, %v2106
        %v2505 = vpop.permute.xlu0 %2504
        %2508 = vset.pattern.permute.xlu0 0
        %2509 = vperm.xlu0 %2508, %v2121
        %v2510 = vpop.permute.xlu0 %2509
        %2513 = vset.pattern.permute.xlu0 0
        %2514 = vperm.xlu0 %2513, %v2136
        %v2515 = vpop.permute.xlu0 %2514
        %2518 = vset.pattern.permute.xlu0 0
        %2519 = vperm.xlu0 %2518, %v2151
        %v2520 = vpop.permute.xlu0 %2519
        %2523 = vset.pattern.permute.xlu0 0
        %2524 = vperm.xlu0 %2523, %v2166
        %v2525 = vpop.permute.xlu0 %2524
        %2528 = vset.pattern.permute.xlu0 0
        %2529 = vperm.xlu0 %2528, %v2181
        %v2530 = vpop.permute.xlu0 %2529
        %2533 = vset.pattern.permute.xlu0 0
        %2534 = vperm.xlu0 %2533, %v2196
        %v2535 = vpop.permute.xlu0 %2534
        %2538 = vset.pattern.permute.xlu0 0
        %2539 = vperm.xlu0 %2538, %v2211
        %v2540 = vpop.permute.xlu0 %2539
        %2543 = vset.pattern.permute.xlu0 0
        %2544 = vperm.xlu0 %2543, %v2226
        %v2545 = vpop.permute.xlu0 %2544
        %2548 = vset.pattern.permute.xlu0 0
        %2549 = vperm.xlu0 %2548, %v2241
        %v2550 = vpop.permute.xlu0 %2549
        %2553 = vset.pattern.permute.xlu0 0
        %2554 = vperm.xlu0 %2553, %v2256
        %v2555 = vpop.permute.xlu0 %2554
        %2558 = vset.pattern.permute.xlu0 0
        %2559 = vperm.xlu0 %2558, %v2271
        %v2560 = vpop.permute.xlu0 %2559
        %2563 = vset.pattern.permute.xlu0 0
        %2564 = vperm.xlu0 %2563, %v2286
        %v2565 = vpop.permute.xlu0 %2564
        %2568 = vset.pattern.permute.xlu0 0
        %2569 = vperm.xlu0 %2568, %v2301
        %v2570 = vpop.permute.xlu0 %2569
        %2573 = vset.pattern.permute.xlu0 0
        %2574 = vperm.xlu0 %2573, %v2316
        %v2575 = vpop.permute.xlu0 %2574
        %2578 = vset.pattern.permute.xlu0 0
        %2579 = vperm.xlu0 %2578, %v2331
        %v2580 = vpop.permute.xlu0 %2579
        %2583 = vset.pattern.permute.xlu0 0
        %2584 = vperm.xlu0 %2583, %v2346
        %v2585 = vpop.permute.xlu0 %2584
        %2588 = vset.pattern.permute.xlu0 0
        %2589 = vperm.xlu0 %2588, %v2361
        %v2590 = vpop.permute.xlu0 %2589
        %2593 = vset.pattern.permute.xlu0 0
        %2594 = vperm.xlu0 %2593, %v2376
        %v2595 = vpop.permute.xlu0 %2594
        %2598 = vset.pattern.permute.xlu0 0
        %2599 = vperm.xlu0 %2598, %v2391
        %v2600 = vpop.permute.xlu0 %2599
        %2603 = vset.pattern.permute.xlu0 0
        %2604 = vperm.xlu0 %2603, %v2406
        %v2605 = vpop.permute.xlu0 %2604
        %2608 = vset.pattern.permute.xlu0 0
        %2609 = vperm.xlu0 %2608, %v2421
        %v2610 = vpop.permute.xlu0 %2609
        %2613 = vset.pattern.permute.xlu0 0
        %2614 = vperm.xlu0 %2613, %v2436
        %v2615 = vpop.permute.xlu0 %2614
        %2618 = vset.pattern.permute.xlu0 0
        %2619 = vperm.xlu0 %2618, %v2451
        %v2620 = vpop.permute.xlu0 %2619
        %2623 = vset.pattern.permute.xlu0 0
        %2624 = vperm.xlu0 %2623, %v2466
        %v2625 = vpop.permute.xlu0 %2624
        %v2627 = vmul.f32 %v1115, %v2470
        %v2628 = vmul.f32 %v1118, %v2475
        %v2629 = vmul.f32 %v1121, %v2480
        %v2630 = vmul.f32 %v1124, %v2485
        %v2631 = vmul.f32 %v1127, %v2490
        %v2632 = vmul.f32 %v1130, %v2495
        %v2633 = vmul.f32 %v1133, %v2500
        %v2634 = vmul.f32 %v1136, %v2505
        %v2635 = vmul.f32 %v1139, %v2510
        %v2636 = vmul.f32 %v1142, %v2515
        %v2637 = vmul.f32 %v1145, %v2520
        %v2638 = vmul.f32 %v1148, %v2525
        %v2639 = vmul.f32 %v1151, %v2530
        %v2640 = vmul.f32 %v1154, %v2535
        %v2641 = vmul.f32 %v1157, %v2540
        %v2642 = vmul.f32 %v1160, %v2545
        %v2643 = vmul.f32 %v1163, %v2550
        %v2644 = vmul.f32 %v1166, %v2555
        %v2645 = vmul.f32 %v1169, %v2560
        %v2646 = vmul.f32 %v1172, %v2565
        %v2647 = vmul.f32 %v1175, %v2570
        %v2648 = vmul.f32 %v1178, %v2575
        %v2649 = vmul.f32 %v1181, %v2580
        %v2650 = vmul.f32 %v1184, %v2585
        %v2651 = vmul.f32 %v1187, %v2590
        %v2652 = vmul.f32 %v1190, %v2595
        %v2653 = vmul.f32 %v1193, %v2600
        %v2654 = vmul.f32 %v1196, %v2605
        %v2655 = vmul.f32 %v1199, %v2610
        %v2656 = vmul.f32 %v1202, %v2615
        %v2657 = vmul.f32 %v1205, %v2620
        %v2658 = vmul.f32 %v1208, %v2625
        %v2659 = vadd.f32 %v2627, %v2628
        %v2660 = vadd.f32 %v2659, %v2629
        %v2661 = vadd.f32 %v2660, %v2630
        %v2662 = vadd.f32 %v2661, %v2631
        %v2663 = vadd.f32 %v2662, %v2632
        %v2664 = vadd.f32 %v2663, %v2633
        %v2665 = vadd.f32 %v2664, %v2634
        %v2666 = vadd.f32 %v2665, %v2635
        %v2667 = vadd.f32 %v2666, %v2636
        %v2668 = vadd.f32 %v2667, %v2637
        %v2669 = vadd.f32 %v2668, %v2638
        %v2670 = vadd.f32 %v2669, %v2639
        %v2671 = vadd.f32 %v2670, %v2640
        %v2672 = vadd.f32 %v2671, %v2641
        %v2673 = vadd.f32 %v2672, %v2642
        %v2674 = vadd.f32 %v2673, %v2643
        %v2675 = vadd.f32 %v2674, %v2644
        %v2676 = vadd.f32 %v2675, %v2645
        %v2677 = vadd.f32 %v2676, %v2646
        %v2678 = vadd.f32 %v2677, %v2647
        %v2679 = vadd.f32 %v2678, %v2648
        %v2680 = vadd.f32 %v2679, %v2649
        %v2681 = vadd.f32 %v2680, %v2650
        %v2682 = vadd.f32 %v2681, %v2651
        %v2683 = vadd.f32 %v2682, %v2652
        %v2684 = vadd.f32 %v2683, %v2653
        %v2685 = vadd.f32 %v2684, %v2654
        %v2686 = vadd.f32 %v2685, %v2655
        %v2687 = vadd.f32 %v2686, %v2656
        %v2688 = vadd.f32 %v2687, %v2657
        %v2689 = vadd.f32 %v2688, %v2658
        %v2690 = vrot.slane %v2689, 4
        %v2691 = vadd.f32 %v2689, %v2690
        %v2692 = vrot.slane %v2691, 2
        %v2693 = vadd.f32 %v2691, %v2692
        %v2694 = vrot.slane %v2693, 1
        %v2695 = vadd.f32 %v2693, %v2694
        %v2696 = vrcp.pop 256.0
        %v2697 = vmul.f32 256.0, %v2696
        %v2698 = vsub.f32 1.0, %v2697
        %v2699 = vmul.f32 %v2696, %v2698
        %v2700 = vadd.f32 %v2696, %v2699
        %vm2701 = vweird.f32 %v2696
        %v2702 = vsel %vm2701, %v2696, %v2700
        %v2703 = vmul.f32 %v2695, %v2702
        %v2704 = vmax.f32 %v2627, %v2631
        %v2705 = vmax.f32 %v2628, %v2632
        %v2706 = vmax.f32 %v2629, %v2633
        %v2707 = vmax.f32 %v2630, %v2634
        %v2708 = vmax.f32 %v2704, %v2635
        %v2709 = vmax.f32 %v2705, %v2636
        %v2710 = vmax.f32 %v2706, %v2637
        %v2711 = vmax.f32 %v2707, %v2638
        %v2712 = vmax.f32 %v2708, %v2639
        %v2713 = vmax.f32 %v2709, %v2640
        %v2714 = vmax.f32 %v2710, %v2641
        %v2715 = vmax.f32 %v2711, %v2642
        %v2716 = vmax.f32 %v2712, %v2643
        %v2717 = vmax.f32 %v2713, %v2644
        %v2718 = vmax.f32 %v2714, %v2645
        %v2719 = vmax.f32 %v2715, %v2646
        %v2720 = vmax.f32 %v2716, %v2647
        %v2721 = vmax.f32 %v2717, %v2648
        %v2722 = vmax.f32 %v2718, %v2649
        %v2723 = vmax.f32 %v2719, %v2650
        %v2724 = vmax.f32 %v2720, %v2651
        %v2725 = vmax.f32 %v2721, %v2652
        %v2726 = vmax.f32 %v2722, %v2653
        %v2727 = vmax.f32 %v2723, %v2654
        %v2728 = vmax.f32 %v2724, %v2655
        %v2729 = vmax.f32 %v2725, %v2656
        %v2730 = vmax.f32 %v2726, %v2657
        %v2731 = vmax.f32 %v2727, %v2658
        %v2732 = vmax.f32 %v2728, %v2729
        %v2733 = vmax.f32 %v2730, %v2731
        %v2734 = vmax.f32 %v2732, %v2733
        %v2735 = vrot.slane %v2734, 4
        %v2736 = vmax.f32 %v2734, %v2735
        %v2737 = vrot.slane %v2736, 2
        %v2738 = vmax.f32 %v2736, %v2737
        %v2739 = vrot.slane %v2738, 1
        %v2740 = vmax.f32 %v2738, %v2739
        %s2741 = sld [smem:[#allocation2]]
        %v2742 = vstv %s2741
        %v2743 = vmul.f32 %v2703, %v2742
        %s2744 = sld [smem:[#allocation2 + $0x7]]
        %v2745 = vstv %s2744
        %v2746 = vmul.f32 %v2740, %v2745
        %v2747 = vadd.f32 %v2743, %v2746
        %2748 = vrot.lane.b32.xlu0 %v2747, 3
        %v2749 = vpop.permute.xlu0 %2748
        %v2750 = vadd.f32 %v2749, 0.0
        %s2751 = sld [smem:[#allocation2 + $0x1]]
        %v2752 = vstv %s2751
        %v2753 = vmul.f32 %v2703, %v2752
        %s2754 = sld [smem:[#allocation2 + $0x8]]
        %v2755 = vstv %s2754
        %v2756 = vmul.f32 %v2740, %v2755
        %v2757 = vadd.f32 %v2753, %v2756
        %2758 = vrot.lane.b32.xlu0 %v2757, 2
        %v2759 = vpop.permute.xlu0 %2758
        %v2760 = vadd.f32 %v2750, %v2759
        %s2761 = sld [smem:[#allocation2 + $0x2]]
        %v2762 = vstv %s2761
        %v2763 = vmul.f32 %v2703, %v2762
        %s2764 = sld [smem:[#allocation2 + $0x9]]
        %v2765 = vstv %s2764
        %v2766 = vmul.f32 %v2740, %v2765
        %v2767 = vadd.f32 %v2763, %v2766
        %2768 = vrot.lane.b32.xlu0 %v2767, 1
        %v2769 = vpop.permute.xlu0 %2768
        %v2770 = vadd.f32 %v2760, %v2769
        %s2771 = sld [smem:[#allocation2 + $0x3]]
        %v2772 = vstv %s2771
        %v2773 = vmul.f32 %v2703, %v2772
        %s2774 = sld [smem:[#allocation2 + $0xa]]
        %v2775 = vstv %s2774
        %v2776 = vmul.f32 %v2740, %v2775
        %v2777 = vadd.f32 %v2773, %v2776
        %v2778 = vadd.f32 %v2770, %v2777
        %s2779 = sld [smem:[#allocation2 + $0x4]]
        %v2780 = vstv %s2779
        %v2781 = vmul.f32 %v2703, %v2780
        %s2782 = sld [smem:[#allocation2 + $0xb]]
        %v2783 = vstv %s2782
        %v2784 = vmul.f32 %v2740, %v2783
        %v2785 = vadd.f32 %v2781, %v2784
        %2786 = vrot.lane.b32.xlu0 %v2785, 127
        %v2787 = vpop.permute.xlu0 %2786
        %v2788 = vadd.f32 %v2778, %v2787
        %s2789 = sld [smem:[#allocation2 + $0x5]]
        %v2790 = vstv %s2789
        %v2791 = vmul.f32 %v2703, %v2790
        %s2792 = sld [smem:[#allocation2 + $0xc]]
        %v2793 = vstv %s2792
        %v2794 = vmul.f32 %v2740, %v2793
        %v2795 = vadd.f32 %v2791, %v2794
        %2796 = vrot.lane.b32.xlu0 %v2795, 126
        %v2797 = vpop.permute.xlu0 %2796
        %v2798 = vadd.f32 %v2788, %v2797
        %s2799 = sld [smem:[#allocation2 + $0x6]]
        %v2800 = vstv %s2799
        %v2801 = vmul.f32 %v2703, %v2800
        %s2802 = sld [smem:[#allocation2 + $0xd]]
        %v2803 = vstv %s2802
        %v2804 = vmul.f32 %v2740, %v2803
        %v2805 = vadd.f32 %v2801, %v2804
        %2806 = vrot.lane.b32.xlu0 %v2805, 125
        %v2807 = vpop.permute.xlu0 %2806
        %v2808 = vadd.f32 %v2798, %v2807
        %v2809 = vsub.f32 0.0, %v2808
        %v2810 = vmul.f32 %v2809, 1.442695
        %v2811 = vpow.pop %v2810
        %v2812 = vadd.f32 %v2811, 1.0
        %v2813 = vrcp.pop %v2812
        %v2814 = vmul.f32 %v2812, %v2813
        %v2815 = vsub.f32 1.0, %v2814
        %v2816 = vmul.f32 %v2813, %v2815
        %v2817 = vadd.f32 %v2813, %v2816
        %vm2818 = vweird.f32 %v2812
        %vm2819 = vweird.f32 %v2813
        %vm2820 = vmor %vm2818, %vm2819
        %v2821 = vsel %vm2820, %v2813, %v2817
        %v2822 = vand.u32 2147483647, %v2812
        %vm2823 = vcmp.eq.f32.partialorder %v2822, 8.507059e+37
        %v2824 = vand.u32 %v2812, 2147483648
        %v2825 = vor.u32 1.1754944e-38, %v2824
        %v2826 = vsel %vm2823, %v2825, %v2821
        %v2827 = vmul.f32 1.0, %v2826
        %v2828 = vperm.slane %v2827, 0
        %v2829 = vmul.f32 %v2627, %v2828
        %v2830 = vmul.f32 %v2628, %v2828
        %v2831 = vmul.f32 %v2629, %v2828
        %v2832 = vmul.f32 %v2630, %v2828
        %v2833 = vmul.f32 %v2631, %v2828
        %v2834 = vmul.f32 %v2632, %v2828
        %v2835 = vmul.f32 %v2633, %v2828
        %v2836 = vmul.f32 %v2634, %v2828
        %v2837 = vmul.f32 %v2635, %v2828
        %v2838 = vmul.f32 %v2636, %v2828
        %v2839 = vmul.f32 %v2637, %v2828
        %v2840 = vmul.f32 %v2638, %v2828
        %v2841 = vmul.f32 %v2639, %v2828
        %v2842 = vmul.f32 %v2640, %v2828
        %v2843 = vmul.f32 %v2641, %v2828
        %v2844 = vmul.f32 %v2642, %v2828
        %v2845 = vmul.f32 %v2643, %v2828
        %v2846 = vmul.f32 %v2644, %v2828
        %v2847 = vmul.f32 %v2645, %v2828
        %v2848 = vmul.f32 %v2646, %v2828
        %v2849 = vmul.f32 %v2647, %v2828
        %v2850 = vmul.f32 %v2648, %v2828
        %v2851 = vmul.f32 %v2649, %v2828
        %v2852 = vmul.f32 %v2650, %v2828
        %v2853 = vmul.f32 %v2651, %v2828
        %v2854 = vmul.f32 %v2652, %v2828
        %v2855 = vmul.f32 %v2653, %v2828
        %v2856 = vmul.f32 %v2654, %v2828
        %v2857 = vmul.f32 %v2655, %v2828
        %v2858 = vmul.f32 %v2656, %v2828
        %v2859 = vmul.f32 %v2657, %v2828
        %v2860 = vmul.f32 %v2658, %v2828
        %v2861 = vadd.f32 %v2829, %v2830
        %v2862 = vadd.f32 %v2861, %v2831
        %v2863 = vadd.f32 %v2862, %v2832
        %v2864 = vadd.f32 %v2863, %v2833
        %v2865 = vadd.f32 %v2864, %v2834
        %v2866 = vadd.f32 %v2865, %v2835
        %v2867 = vadd.f32 %v2866, %v2836
        %v2868 = vadd.f32 %v2867, %v2837
        %v2869 = vadd.f32 %v2868, %v2838
        %v2870 = vadd.f32 %v2869, %v2839
        %v2871 = vadd.f32 %v2870, %v2840
        %v2872 = vadd.f32 %v2871, %v2841
        %v2873 = vadd.f32 %v2872, %v2842
        %v2874 = vadd.f32 %v2873, %v2843
        %v2875 = vadd.f32 %v2874, %v2844
        %v2876 = vadd.f32 %v2875, %v2845
        %v2877 = vadd.f32 %v2876, %v2846
        %v2878 = vadd.f32 %v2877, %v2847
        %v2879 = vadd.f32 %v2878, %v2848
        %v2880 = vadd.f32 %v2879, %v2849
        %v2881 = vadd.f32 %v2880, %v2850
        %v2882 = vadd.f32 %v2881, %v2851
        %v2883 = vadd.f32 %v2882, %v2852
        %v2884 = vadd.f32 %v2883, %v2853
        %v2885 = vadd.f32 %v2884, %v2854
        %v2886 = vadd.f32 %v2885, %v2855
        %v2887 = vadd.f32 %v2886, %v2856
        %v2888 = vadd.f32 %v2887, %v2857
        %v2889 = vadd.f32 %v2888, %v2858
        %v2890 = vadd.f32 %v2889, %v2859
        %v2891 = vadd.f32 %v2890, %v2860
        %2892 = vadd.xlane.f32.xlu0 %v2891
        %v2893 = vpop.xlane.xlu0 %2892
        %v2894 = vrot.slane %v2893, 4
        %v2895 = vadd.f32 %v2893, %v2894
        %v2896 = vrot.slane %v2895, 2
        %v2897 = vadd.f32 %v2895, %v2896
        %v2898 = vrot.slane %v2897, 1
        %v2899 = vadd.f32 %v2897, %v2898
        %s2900 = vtos %v2899
        %v2901 = vmul.f32 %v2829, %v2829
        %v2902 = vmul.f32 %v2830, %v2830
        %v2903 = vmul.f32 %v2831, %v2831
        %v2904 = vmul.f32 %v2832, %v2832
        %v2905 = vmul.f32 %v2833, %v2833
        %v2906 = vmul.f32 %v2834, %v2834
        %v2907 = vmul.f32 %v2835, %v2835
        %v2908 = vmul.f32 %v2836, %v2836
        %v2909 = vmul.f32 %v2837, %v2837
        %v2910 = vmul.f32 %v2838, %v2838
        %v2911 = vmul.f32 %v2839, %v2839
        %v2912 = vmul.f32 %v2840, %v2840
        %v2913 = vmul.f32 %v2841, %v2841
        %v2914 = vmul.f32 %v2842, %v2842
        %v2915 = vmul.f32 %v2843, %v2843
        %v2916 = vmul.f32 %v2844, %v2844
        %v2917 = vmul.f32 %v2845, %v2845
        %v2918 = vmul.f32 %v2846, %v2846
        %v2919 = vmul.f32 %v2847, %v2847
        %v2920 = vmul.f32 %v2848, %v2848
        %v2921 = vmul.f32 %v2849, %v2849
        %v2922 = vmul.f32 %v2850, %v2850
        %v2923 = vmul.f32 %v2851, %v2851
        %v2924 = vmul.f32 %v2852, %v2852
        %v2925 = vmul.f32 %v2853, %v2853
        %v2926 = vmul.f32 %v2854, %v2854
        %v2927 = vmul.f32 %v2855, %v2855
        %v2928 = vmul.f32 %v2856, %v2856
        %v2929 = vmul.f32 %v2857, %v2857
        %v2930 = vmul.f32 %v2858, %v2858
        %v2931 = vmul.f32 %v2859, %v2859
        %v2932 = vmul.f32 %v2860, %v2860
        %v2933 = vadd.f32 %v2901, %v2902
        %v2934 = vadd.f32 %v2933, %v2903
        %v2935 = vadd.f32 %v2934, %v2904
        %v2936 = vadd.f32 %v2935, %v2905
        %v2937 = vadd.f32 %v2936, %v2906
        %v2938 = vadd.f32 %v2937, %v2907
        %v2939 = vadd.f32 %v2938, %v2908
        %v2940 = vadd.f32 %v2939, %v2909
        %v2941 = vadd.f32 %v2940, %v2910
        %v2942 = vadd.f32 %v2941, %v2911
        %v2943 = vadd.f32 %v2942, %v2912
        %v2944 = vadd.f32 %v2943, %v2913
        %v2945 = vadd.f32 %v2944, %v2914
        %v2946 = vadd.f32 %v2945, %v2915
        %v2947 = vadd.f32 %v2946, %v2916
        %v2948 = vadd.f32 %v2947, %v2917
        %v2949 = vadd.f32 %v2948, %v2918
        %v2950 = vadd.f32 %v2949, %v2919
        %v2951 = vadd.f32 %v2950, %v2920
        %v2952 = vadd.f32 %v2951, %v2921
        %v2953 = vadd.f32 %v2952, %v2922
        %v2954 = vadd.f32 %v2953, %v2923
        %v2955 = vadd.f32 %v2954, %v2924
        %v2956 = vadd.f32 %v2955, %v2925
        %v2957 = vadd.f32 %v2956, %v2926
        %v2958 = vadd.f32 %v2957, %v2927
        %v2959 = vadd.f32 %v2958, %v2928
        %v2960 = vadd.f32 %v2959, %v2929
        %v2961 = vadd.f32 %v2960, %v2930
        %v2962 = vadd.f32 %v2961, %v2931
        %v2963 = vadd.f32 %v2962, %v2932
        %2964 = vadd.xlane.f32.xlu0 %v2963
        %v2965 = vpop.xlane.xlu0 %2964
        %v2966 = vrot.slane %v2965, 4
        %v2967 = vadd.f32 %v2965, %v2966
        %v2968 = vrot.slane %v2967, 2
        %v2969 = vadd.f32 %v2967, %v2968
        %v2970 = vrot.slane %v2969, 1
        %v2971 = vadd.f32 %v2969, %v2970
        %s2972 = vtos %v2971
        %s2973 = smul.f32 %s2900, 0.00048828125
        %s2974 = smul.f32 %s2900, %s2973
        %s2975 = ssub.f32 %s2972, %s2974
        %v2976 = vrcp.pop 2047.0
        %v2977 = vmul.f32 2047.0, %v2976
        %v2978 = vsub.f32 1.0, %v2977
        %v2979 = vmul.f32 %v2976, %v2978
        %v2980 = vadd.f32 %v2976, %v2979
        %vm2981 = vweird.f32 %v2976
        %v2982 = vsel %vm2981, %v2976, %v2980
        %s2983 = vtos %v2982
        %s2984 = smul.f32 %s2975, %s2983
        %s2985 = smax.f32 %s2984, 0.0
        %v2986 = vstv %s2985
        %v2987 = vrsqrt.pop %v2986
        %v2988 = vmul.f32 %v2987, %v2986
        %v2989 = vmul.f32 %v2988, %v2987
        %v2990 = vmul.f32 0.5, %v2989
        %v2991 = vsub.f32 1.5, %v2990
        %v2992 = vmul.f32 %v2987, %v2991
        %v2993 = vmul.f32 %v2986, %v2992
        %vm2994 = vcmp.eq.f32.partialorder %v2986, inf
        %v2995 = vsel %vm2994, %v2986, %v2993
        %vm2996 = vcmp.eq.f32.partialorder %v2986, 0.0
        %v2997 = vand.u32 %v2986, 2147483648
        %v2998 = vsel %vm2996, %v2997, %v2995
        %s2999 = vtos %v2998
        %s3000 = sadd.f32 %s2999, 1e-05
        %v3001 = vstv %s3000
        %v3002 = vrcp.pop %v3001
        %v3003 = vmul.f32 %v3001, %v3002
        %v3004 = vsub.f32 1.0, %v3003
        %v3005 = vmul.f32 %v3002, %v3004
        %v3006 = vadd.f32 %v3002, %v3005
        %vm3007 = vweird.f32 %v3001
        %vm3008 = vweird.f32 %v3002
        %vm3009 = vmor %vm3007, %vm3008
        %v3010 = vsel %vm3009, %v3002, %v3006
        %v3011 = vand.u32 2147483647, %v3001
        %vm3012 = vcmp.eq.f32.partialorder %v3011, 8.507059e+37
        %v3013 = vand.u32 %v3001, 2147483648
        %v3014 = vor.u32 1.1754944e-38, %v3013
        %v3015 = vsel %vm3012, %v3014, %v3010
        %s3016 = vtos %v3015
        %v3017 = vstv %s2973
        %v3018 = vsub.f32 %v2829, %v3017
        %v3019 = vsub.f32 %v2830, %v3017
        %v3020 = vsub.f32 %v2831, %v3017
        %v3021 = vsub.f32 %v2832, %v3017
        %v3022 = vsub.f32 %v2833, %v3017
        %v3023 = vsub.f32 %v2834, %v3017
        %v3024 = vsub.f32 %v2835, %v3017
        %v3025 = vsub.f32 %v2836, %v3017
        %v3026 = vsub.f32 %v2837, %v3017
        %v3027 = vsub.f32 %v2838, %v3017
        %v3028 = vsub.f32 %v2839, %v3017
        %v3029 = vsub.f32 %v2840, %v3017
        %v3030 = vsub.f32 %v2841, %v3017
        %v3031 = vsub.f32 %v2842, %v3017
        %v3032 = vsub.f32 %v2843, %v3017
        %v3033 = vsub.f32 %v2844, %v3017
        %v3034 = vsub.f32 %v2845, %v3017
        %v3035 = vsub.f32 %v2846, %v3017
        %v3036 = vsub.f32 %v2847, %v3017
        %v3037 = vsub.f32 %v2848, %v3017
        %v3038 = vsub.f32 %v2849, %v3017
        %v3039 = vsub.f32 %v2850, %v3017
        %v3040 = vsub.f32 %v2851, %v3017
        %v3041 = vsub.f32 %v2852, %v3017
        %v3042 = vsub.f32 %v2853, %v3017
        %v3043 = vsub.f32 %v2854, %v3017
        %v3044 = vsub.f32 %v2855, %v3017
        %v3045 = vsub.f32 %v2856, %v3017
        %v3046 = vsub.f32 %v2857, %v3017
        %v3047 = vsub.f32 %v2858, %v3017
        %v3048 = vsub.f32 %v2859, %v3017
        %v3049 = vsub.f32 %v2860, %v3017
        %v3050 = vstv %s3016
        %v3051 = vmul.f32 %v3018, %v3050
        %v3052 = vmul.f32 %v3019, %v3050
        %v3053 = vmul.f32 %v3020, %v3050
        %v3054 = vmul.f32 %v3021, %v3050
        %v3055 = vmul.f32 %v3022, %v3050
        %v3056 = vmul.f32 %v3023, %v3050
        %v3057 = vmul.f32 %v3024, %v3050
        %v3058 = vmul.f32 %v3025, %v3050
        %v3059 = vmul.f32 %v3026, %v3050
        %v3060 = vmul.f32 %v3027, %v3050
        %v3061 = vmul.f32 %v3028, %v3050
        %v3062 = vmul.f32 %v3029, %v3050
        %v3063 = vmul.f32 %v3030, %v3050
        %v3064 = vmul.f32 %v3031, %v3050
        %v3065 = vmul.f32 %v3032, %v3050
        %v3066 = vmul.f32 %v3033, %v3050
        %v3067 = vmul.f32 %v3034, %v3050
        %v3068 = vmul.f32 %v3035, %v3050
        %v3069 = vmul.f32 %v3036, %v3050
        %v3070 = vmul.f32 %v3037, %v3050
        %v3071 = vmul.f32 %v3038, %v3050
        %v3072 = vmul.f32 %v3039, %v3050
        %v3073 = vmul.f32 %v3040, %v3050
        %v3074 = vmul.f32 %v3041, %v3050
        %v3075 = vmul.f32 %v3042, %v3050
        %v3076 = vmul.f32 %v3043, %v3050
        %v3077 = vmul.f32 %v3044, %v3050
        %v3078 = vmul.f32 %v3045, %v3050
        %v3079 = vmul.f32 %v3046, %v3050
        %v3080 = vmul.f32 %v3047, %v3050
        %v3081 = vmul.f32 %v3048, %v3050
        %v3082 = vmul.f32 %v3049, %v3050
        %vm3083 = vcmp.gt.f32.partialorder %v3051, 0.0
        %vm3084 = vcmp.gt.f32.partialorder %v3052, 0.0
        %vm3085 = vcmp.gt.f32.partialorder %v3053, 0.0
        %vm3086 = vcmp.gt.f32.partialorder %v3054, 0.0
        %vm3087 = vcmp.gt.f32.partialorder %v3055, 0.0
        %vm3088 = vcmp.gt.f32.partialorder %v3056, 0.0
        %vm3089 = vcmp.gt.f32.partialorder %v3057, 0.0
        %vm3090 = vcmp.gt.f32.partialorder %v3058, 0.0
        %vm3091 = vcmp.gt.f32.partialorder %v3059, 0.0
        %vm3092 = vcmp.gt.f32.partialorder %v3060, 0.0
        %vm3093 = vcmp.gt.f32.partialorder %v3061, 0.0
        %vm3094 = vcmp.gt.f32.partialorder %v3062, 0.0
        %vm3095 = vcmp.gt.f32.partialorder %v3063, 0.0
        %vm3096 = vcmp.gt.f32.partialorder %v3064, 0.0
        %vm3097 = vcmp.gt.f32.partialorder %v3065, 0.0
        %vm3098 = vcmp.gt.f32.partialorder %v3066, 0.0
        %vm3099 = vcmp.gt.f32.partialorder %v3067, 0.0
        %vm3100 = vcmp.gt.f32.partialorder %v3068, 0.0
        %vm3101 = vcmp.gt.f32.partialorder %v3069, 0.0
        %vm3102 = vcmp.gt.f32.partialorder %v3070, 0.0
        %vm3103 = vcmp.gt.f32.partialorder %v3071, 0.0
        %vm3104 = vcmp.gt.f32.partialorder %v3072, 0.0
        %vm3105 = vcmp.gt.f32.partialorder %v3073, 0.0
        %vm3106 = vcmp.gt.f32.partialorder %v3074, 0.0
        %vm3107 = vcmp.gt.f32.partialorder %v3075, 0.0
        %vm3108 = vcmp.gt.f32.partialorder %v3076, 0.0
        %vm3109 = vcmp.gt.f32.partialorder %v3077, 0.0
        %vm3110 = vcmp.gt.f32.partialorder %v3078, 0.0
        %vm3111 = vcmp.gt.f32.partialorder %v3079, 0.0
        %vm3112 = vcmp.gt.f32.partialorder %v3080, 0.0
        %vm3113 = vcmp.gt.f32.partialorder %v3081, 0.0
        %vm3114 = vcmp.gt.f32.partialorder %v3082, 0.0
        %v3115 = vmul.f32 %v3051, 0.01
        %v3116 = vmul.f32 %v3052, 0.01
        %v3117 = vmul.f32 %v3053, 0.01
        %v3118 = vmul.f32 %v3054, 0.01
        %v3119 = vmul.f32 %v3055, 0.01
        %v3120 = vmul.f32 %v3056, 0.01
        %v3121 = vmul.f32 %v3057, 0.01
        %v3122 = vmul.f32 %v3058, 0.01
        %v3123 = vmul.f32 %v3059, 0.01
        %v3124 = vmul.f32 %v3060, 0.01
        %v3125 = vmul.f32 %v3061, 0.01
        %v3126 = vmul.f32 %v3062, 0.01
        %v3127 = vmul.f32 %v3063, 0.01
        %v3128 = vmul.f32 %v3064, 0.01
        %v3129 = vmul.f32 %v3065, 0.01
        %v3130 = vmul.f32 %v3066, 0.01
        %v3131 = vmul.f32 %v3067, 0.01
        %v3132 = vmul.f32 %v3068, 0.01
        %v3133 = vmul.f32 %v3069, 0.01
        %v3134 = vmul.f32 %v3070, 0.01
        %v3135 = vmul.f32 %v3071, 0.01
        %v3136 = vmul.f32 %v3072, 0.01
        %v3137 = vmul.f32 %v3073, 0.01
        %v3138 = vmul.f32 %v3074, 0.01
        %v3139 = vmul.f32 %v3075, 0.01
        %v3140 = vmul.f32 %v3076, 0.01
        %v3141 = vmul.f32 %v3077, 0.01
        %v3142 = vmul.f32 %v3078, 0.01
        %v3143 = vmul.f32 %v3079, 0.01
        %v3144 = vmul.f32 %v3080, 0.01
        %v3145 = vmul.f32 %v3081, 0.01
        %v3146 = vmul.f32 %v3082, 0.01
        %v3147 = vsel %vm3083, %v3051, %v3115
        %v3148 = vsel %vm3084, %v3052, %v3116
        %v3149 = vsel %vm3085, %v3053, %v3117
        %v3150 = vsel %vm3086, %v3054, %v3118
        %v3151 = vsel %vm3087, %v3055, %v3119
        %v3152 = vsel %vm3088, %v3056, %v3120
        %v3153 = vsel %vm3089, %v3057, %v3121
        %v3154 = vsel %vm3090, %v3058, %v3122
        %v3155 = vsel %vm3091, %v3059, %v3123
        %v3156 = vsel %vm3092, %v3060, %v3124
        %v3157 = vsel %vm3093, %v3061, %v3125
        %v3158 = vsel %vm3094, %v3062, %v3126
        %v3159 = vsel %vm3095, %v3063, %v3127
        %v3160 = vsel %vm3096, %v3064, %v3128
        %v3161 = vsel %vm3097, %v3065, %v3129
        %v3162 = vsel %vm3098, %v3066, %v3130
        %v3163 = vsel %vm3099, %v3067, %v3131
        %v3164 = vsel %vm3100, %v3068, %v3132
        %v3165 = vsel %vm3101, %v3069, %v3133
        %v3166 = vsel %vm3102, %v3070, %v3134
        %v3167 = vsel %vm3103, %v3071, %v3135
        %v3168 = vsel %vm3104, %v3072, %v3136
        %v3169 = vsel %vm3105, %v3073, %v3137
        %v3170 = vsel %vm3106, %v3074, %v3138
        %v3171 = vsel %vm3107, %v3075, %v3139
        %v3172 = vsel %vm3108, %v3076, %v3140
        %v3173 = vsel %vm3109, %v3077, %v3141
        %v3174 = vsel %vm3110, %v3078, %v3142
        %v3175 = vsel %vm3111, %v3079, %v3143
        %v3176 = vsel %vm3112, %v3080, %v3144
        %v3177 = vsel %vm3113, %v3081, %v3145
        %v3178 = vsel %vm3114, %v3082, %v3146
        %v3179 = vld [vmem:[#allocation5] sm:$0xff]
        %v3180 = vld [vmem:[#allocation5 + $0x8] sm:$0xff]
        %v3181 = vld [vmem:[#allocation5 + $0x10] sm:$0xff]
        %v3182 = vld [vmem:[#allocation5 + $0x18] sm:$0xff]
        %v3183 = vld [vmem:[#allocation5 + $0x20] sm:$0xff]
        %v3184 = vld [vmem:[#allocation5 + $0x28] sm:$0xff]
        %v3185 = vld [vmem:[#allocation5 + $0x30] sm:$0xff]
        %v3186 = vld [vmem:[#allocation5 + $0x38] sm:$0xff]
        %v3187 = vld [vmem:[#allocation5 + $0x40] sm:$0xff]
        %v3188 = vld [vmem:[#allocation5 + $0x48] sm:$0xff]
        %v3189 = vld [vmem:[#allocation5 + $0x50] sm:$0xff]
        %v3190 = vld [vmem:[#allocation5 + $0x58] sm:$0xff]
        %v3191 = vld [vmem:[#allocation5 + $0x60] sm:$0xff]
        %v3192 = vld [vmem:[#allocation5 + $0x68] sm:$0xff]
        %v3193 = vld [vmem:[#allocation5 + $0x70] sm:$0xff]
        %v3194 = vld [vmem:[#allocation5 + $0x78] sm:$0xff]
        %v3195 = vld [vmem:[#allocation5 + $0x80] sm:$0xff]
        %v3196 = vld [vmem:[#allocation5 + $0x88] sm:$0xff]
        %v3197 = vld [vmem:[#allocation5 + $0x90] sm:$0xff]
        %v3198 = vld [vmem:[#allocation5 + $0x98] sm:$0xff]
        %v3199 = vld [vmem:[#allocation5 + $0xa0] sm:$0xff]
        %v3200 = vld [vmem:[#allocation5 + $0xa8] sm:$0xff]
        %v3201 = vld [vmem:[#allocation5 + $0xb0] sm:$0xff]
        %v3202 = vld [vmem:[#allocation5 + $0xb8] sm:$0xff]
        %v3203 = vld [vmem:[#allocation5 + $0xc0] sm:$0xff]
        %v3204 = vld [vmem:[#allocation5 + $0xc8] sm:$0xff]
        %v3205 = vld [vmem:[#allocation5 + $0xd0] sm:$0xff]
        %v3206 = vld [vmem:[#allocation5 + $0xd8] sm:$0xff]
        %v3207 = vld [vmem:[#allocation5 + $0xe0] sm:$0xff]
        %v3208 = vld [vmem:[#allocation5 + $0xe8] sm:$0xff]
        %v3209 = vld [vmem:[#allocation5 + $0xf0] sm:$0xff]
        %v3210 = vld [vmem:[#allocation5 + $0xf8] sm:$0xff]
        %v3211 = vld [vmem:[#allocation5 + $0x100] sm:$0xff]
        %v3212 = vld [vmem:[#allocation5 + $0x108] sm:$0xff]
        %v3213 = vld [vmem:[#allocation5 + $0x110] sm:$0xff]
        %v3214 = vld [vmem:[#allocation5 + $0x118] sm:$0xff]
        %v3215 = vld [vmem:[#allocation5 + $0x120] sm:$0xff]
        %v3216 = vld [vmem:[#allocation5 + $0x128] sm:$0xff]
        %v3217 = vld [vmem:[#allocation5 + $0x130] sm:$0xff]
        %v3218 = vld [vmem:[#allocation5 + $0x138] sm:$0xff]
        %v3219 = vld [vmem:[#allocation5 + $0x140] sm:$0xff]
        %v3220 = vld [vmem:[#allocation5 + $0x148] sm:$0xff]
        %v3221 = vld [vmem:[#allocation5 + $0x150] sm:$0xff]
        %v3222 = vld [vmem:[#allocation5 + $0x158] sm:$0xff]
        %v3223 = vld [vmem:[#allocation5 + $0x160] sm:$0xff]
        %v3224 = vld [vmem:[#allocation5 + $0x168] sm:$0xff]
        %v3225 = vld [vmem:[#allocation5 + $0x170] sm:$0xff]
        %v3226 = vld [vmem:[#allocation5 + $0x178] sm:$0xff]
        %v3227 = vld [vmem:[#allocation5 + $0x180] sm:$0xff]
        %v3228 = vld [vmem:[#allocation5 + $0x188] sm:$0xff]
        %v3229 = vld [vmem:[#allocation5 + $0x190] sm:$0xff]
        %v3230 = vld [vmem:[#allocation5 + $0x198] sm:$0xff]
        %v3231 = vld [vmem:[#allocation5 + $0x1a0] sm:$0xff]
        %v3232 = vld [vmem:[#allocation5 + $0x1a8] sm:$0xff]
        %v3233 = vld [vmem:[#allocation5 + $0x1b0] sm:$0xff]
        %v3234 = vld [vmem:[#allocation5 + $0x1b8] sm:$0xff]
        %v3235 = vld [vmem:[#allocation5 + $0x1c0] sm:$0xff]
        %v3236 = vld [vmem:[#allocation5 + $0x1c8] sm:$0xff]
        %v3237 = vld [vmem:[#allocation5 + $0x1d0] sm:$0xff]
        %v3238 = vld [vmem:[#allocation5 + $0x1d8] sm:$0xff]
        %v3239 = vld [vmem:[#allocation5 + $0x1e0] sm:$0xff]
        %v3240 = vld [vmem:[#allocation5 + $0x1e8] sm:$0xff]
        %v3241 = vld [vmem:[#allocation5 + $0x1f0] sm:$0xff]
        %v3242 = vld [vmem:[#allocation5 + $0x1f8] sm:$0xff]
        %v3243 = vld [vmem:[#allocation5 + $0x200] sm:$0xff]
        %v3244 = vld [vmem:[#allocation5 + $0x208] sm:$0xff]
        %v3245 = vld [vmem:[#allocation5 + $0x210] sm:$0xff]
        %v3246 = vld [vmem:[#allocation5 + $0x218] sm:$0xff]
        %v3247 = vld [vmem:[#allocation5 + $0x220] sm:$0xff]
        %v3248 = vld [vmem:[#allocation5 + $0x228] sm:$0xff]
        %v3249 = vld [vmem:[#allocation5 + $0x230] sm:$0xff]
        %v3250 = vld [vmem:[#allocation5 + $0x238] sm:$0xff]
        %v3251 = vld [vmem:[#allocation5 + $0x240] sm:$0xff]
        %v3252 = vld [vmem:[#allocation5 + $0x248] sm:$0xff]
        %v3253 = vld [vmem:[#allocation5 + $0x250] sm:$0xff]
        %v3254 = vld [vmem:[#allocation5 + $0x258] sm:$0xff]
        %v3255 = vld [vmem:[#allocation5 + $0x260] sm:$0xff]
        %v3256 = vld [vmem:[#allocation5 + $0x268] sm:$0xff]
        %v3257 = vld [vmem:[#allocation5 + $0x270] sm:$0xff]
        %v3258 = vld [vmem:[#allocation5 + $0x278] sm:$0xff]
        %v3259 = vld [vmem:[#allocation5 + $0x280] sm:$0xff]
        %v3260 = vld [vmem:[#allocation5 + $0x288] sm:$0xff]
        %v3261 = vld [vmem:[#allocation5 + $0x290] sm:$0xff]
        %v3262 = vld [vmem:[#allocation5 + $0x298] sm:$0xff]
        %v3263 = vld [vmem:[#allocation5 + $0x2a0] sm:$0xff]
        %v3264 = vld [vmem:[#allocation5 + $0x2a8] sm:$0xff]
        %v3265 = vld [vmem:[#allocation5 + $0x2b0] sm:$0xff]
        %v3266 = vld [vmem:[#allocation5 + $0x2b8] sm:$0xff]
        %v3267 = vld [vmem:[#allocation5 + $0x2c0] sm:$0xff]
        %v3268 = vld [vmem:[#allocation5 + $0x2c8] sm:$0xff]
        %v3269 = vld [vmem:[#allocation5 + $0x2d0] sm:$0xff]
        %v3270 = vld [vmem:[#allocation5 + $0x2d8] sm:$0xff]
        %v3271 = vld [vmem:[#allocation5 + $0x2e0] sm:$0xff]
        %v3272 = vld [vmem:[#allocation5 + $0x2e8] sm:$0xff]
        %v3273 = vld [vmem:[#allocation5 + $0x2f0] sm:$0xff]
        %v3274 = vld [vmem:[#allocation5 + $0x2f8] sm:$0xff]
        %3275 = vmatpush.msra.mxu0 %v3162
        %3276 = vmatpush.msra.mxu0 %v3161
        %3277 = vmatpush.msra.mxu0 %v3160
        %3278 = vmatpush.msra.mxu0 %v3159
        %3279 = vmatpush.msra.mxu0 %v3158
        %3280 = vmatpush.msra.mxu0 %v3157
        %3281 = vmatpush.msra.mxu0 %v3156
        %3282 = vmatpush.msra.mxu0 %v3155
        %3283 = vmatpush.msra.mxu0 %v3154
        %3284 = vmatpush.msra.mxu0 %v3153
        %3285 = vmatpush.msra.mxu0 %v3152
        %3286 = vmatpush.msra.mxu0 %v3151
        %3287 = vmatpush.msra.mxu0 %v3150
        %3288 = vmatpush.msra.mxu0 %v3149
        %3289 = vmatpush.msra.mxu0 %v3148
        %3290 = vmatpush.msra.mxu0 %v3147
        %3291 = vmatmul.f32.gmra.mxu0 %v3179
        %v3292 = vpop.f32.mrf.mxu0
        %v3293 = vadd.f32 0.0, %v3292
        %3294 = vmatmul.f32.gmra.mxu0 %v3181
        %v3295 = vpop.f32.mrf.mxu0
        %v3296 = vadd.f32 0.0, %v3295
        %3297 = vmatmul.f32.gmra.mxu0 %v3183
        %v3298 = vpop.f32.mrf.mxu0
        %v3299 = vadd.f32 0.0, %v3298
        %3300 = vmatmul.f32.gmra.mxu0 %v3185
        %v3301 = vpop.f32.mrf.mxu0
        %v3302 = vadd.f32 0.0, %v3301
        %3303 = vmatmul.f32.gmra.mxu0 %v3187
        %v3304 = vpop.f32.mrf.mxu0
        %v3305 = vadd.f32 0.0, %v3304
        %3306 = vmatmul.f32.gmra.mxu0 %v3189
        %v3307 = vpop.f32.mrf.mxu0
        %v3308 = vadd.f32 0.0, %v3307
        %3309 = vmatmul.f32.gmra.mxu0 %v3191
        %v3310 = vpop.f32.mrf.mxu0
        %v3311 = vadd.f32 0.0, %v3310
        %3312 = vmatmul.f32.gmra.mxu0 %v3193
        %v3313 = vpop.f32.mrf.mxu0
        %v3314 = vadd.f32 0.0, %v3313
        %3315 = vmatmul.f32.gmra.mxu0 %v3195
        %v3316 = vpop.f32.mrf.mxu0
        %v3317 = vadd.f32 0.0, %v3316
        %3318 = vmatmul.f32.gmra.mxu0 %v3197
        %v3319 = vpop.f32.mrf.mxu0
        %v3320 = vadd.f32 0.0, %v3319
        %3321 = vmatmul.f32.gmra.mxu0 %v3199
        %v3322 = vpop.f32.mrf.mxu0
        %v3323 = vadd.f32 0.0, %v3322
        %3324 = vmatmul.f32.gmra.mxu0 %v3201
        %v3325 = vpop.f32.mrf.mxu0
        %v3326 = vadd.f32 0.0, %v3325
        %3327 = vmatmul.f32.gmra.mxu0 %v3203
        %v3328 = vpop.f32.mrf.mxu0
        %v3329 = vadd.f32 0.0, %v3328
        %3330 = vmatmul.f32.gmra.mxu0 %v3205
        %v3331 = vpop.f32.mrf.mxu0
        %v3332 = vadd.f32 0.0, %v3331
        %3333 = vmatmul.f32.gmra.mxu0 %v3207
        %v3334 = vpop.f32.mrf.mxu0
        %v3335 = vadd.f32 0.0, %v3334
        %3336 = vmatmul.f32.gmra.mxu0 %v3209
        %v3337 = vpop.f32.mrf.mxu0
        %v3338 = vadd.f32 0.0, %v3337
        %3339 = vmatmul.f32.gmra.mxu0 %v3211
        %v3340 = vpop.f32.mrf.mxu0
        %v3341 = vadd.f32 0.0, %v3340
        %3342 = vmatmul.f32.gmra.mxu0 %v3213
        %v3343 = vpop.f32.mrf.mxu0
        %v3344 = vadd.f32 0.0, %v3343
        %3345 = vmatmul.f32.gmra.mxu0 %v3215
        %v3346 = vpop.f32.mrf.mxu0
        %v3347 = vadd.f32 0.0, %v3346
        %3348 = vmatmul.f32.gmra.mxu0 %v3217
        %v3349 = vpop.f32.mrf.mxu0
        %v3350 = vadd.f32 0.0, %v3349
        %3351 = vmatmul.f32.gmra.mxu0 %v3219
        %v3352 = vpop.f32.mrf.mxu0
        %v3353 = vadd.f32 0.0, %v3352
        %3354 = vmatmul.f32.gmra.mxu0 %v3221
        %v3355 = vpop.f32.mrf.mxu0
        %v3356 = vadd.f32 0.0, %v3355
        %3357 = vmatmul.f32.gmra.mxu0 %v3223
        %v3358 = vpop.f32.mrf.mxu0
        %v3359 = vadd.f32 0.0, %v3358
        %3360 = vmatmul.f32.gmra.mxu0 %v3225
        %v3361 = vpop.f32.mrf.mxu0
        %v3362 = vadd.f32 0.0, %v3361
        %3363 = vmatmul.f32.gmra.mxu0 %v3227
        %v3364 = vpop.f32.mrf.mxu0
        %v3365 = vadd.f32 0.0, %v3364
        %3366 = vmatmul.f32.gmra.mxu0 %v3229
        %v3367 = vpop.f32.mrf.mxu0
        %v3368 = vadd.f32 0.0, %v3367
        %3369 = vmatmul.f32.gmra.mxu0 %v3231
        %v3370 = vpop.f32.mrf.mxu0
        %v3371 = vadd.f32 0.0, %v3370
        %3372 = vmatmul.f32.gmra.mxu0 %v3233
        %v3373 = vpop.f32.mrf.mxu0
        %v3374 = vadd.f32 0.0, %v3373
        %3375 = vmatmul.f32.gmra.mxu0 %v3235
        %v3376 = vpop.f32.mrf.mxu0
        %v3377 = vadd.f32 0.0, %v3376
        %3378 = vmatmul.f32.gmra.mxu0 %v3237
        %v3379 = vpop.f32.mrf.mxu0
        %v3380 = vadd.f32 0.0, %v3379
        %3381 = vmatmul.f32.gmra.mxu0 %v3239
        %v3382 = vpop.f32.mrf.mxu0
        %v3383 = vadd.f32 0.0, %v3382
        %3384 = vmatmul.f32.gmra.mxu0 %v3241
        %v3385 = vpop.f32.mrf.mxu0
        %v3386 = vadd.f32 0.0, %v3385
        %3387 = vmatmul.f32.gmra.mxu0 %v3243
        %v3388 = vpop.f32.mrf.mxu0
        %v3389 = vadd.f32 0.0, %v3388
        %3390 = vmatmul.f32.gmra.mxu0 %v3245
        %v3391 = vpop.f32.mrf.mxu0
        %v3392 = vadd.f32 0.0, %v3391
        %3393 = vmatmul.f32.gmra.mxu0 %v3247
        %v3394 = vpop.f32.mrf.mxu0
        %v3395 = vadd.f32 0.0, %v3394
        %3396 = vmatmul.f32.gmra.mxu0 %v3249
        %v3397 = vpop.f32.mrf.mxu0
        %v3398 = vadd.f32 0.0, %v3397
        %3399 = vmatmul.f32.gmra.mxu0 %v3251
        %v3400 = vpop.f32.mrf.mxu0
        %v3401 = vadd.f32 0.0, %v3400
        %3402 = vmatmul.f32.gmra.mxu0 %v3253
        %v3403 = vpop.f32.mrf.mxu0
        %v3404 = vadd.f32 0.0, %v3403
        %3405 = vmatmul.f32.gmra.mxu0 %v3255
        %v3406 = vpop.f32.mrf.mxu0
        %v3407 = vadd.f32 0.0, %v3406
        %3408 = vmatmul.f32.gmra.mxu0 %v3257
        %v3409 = vpop.f32.mrf.mxu0
        %v3410 = vadd.f32 0.0, %v3409
        %3411 = vmatmul.f32.gmra.mxu0 %v3259
        %v3412 = vpop.f32.mrf.mxu0
        %v3413 = vadd.f32 0.0, %v3412
        %3414 = vmatmul.f32.gmra.mxu0 %v3261
        %v3415 = vpop.f32.mrf.mxu0
        %v3416 = vadd.f32 0.0, %v3415
        %3417 = vmatmul.f32.gmra.mxu0 %v3263
        %v3418 = vpop.f32.mrf.mxu0
        %v3419 = vadd.f32 0.0, %v3418
        %3420 = vmatmul.f32.gmra.mxu0 %v3265
        %v3421 = vpop.f32.mrf.mxu0
        %v3422 = vadd.f32 0.0, %v3421
        %3423 = vmatmul.f32.gmra.mxu0 %v3267
        %v3424 = vpop.f32.mrf.mxu0
        %v3425 = vadd.f32 0.0, %v3424
        %3426 = vmatmul.f32.gmra.mxu0 %v3269
        %v3427 = vpop.f32.mrf.mxu0
        %v3428 = vadd.f32 0.0, %v3427
        %3429 = vmatmul.f32.gmra.mxu0 %v3271
        %v3430 = vpop.f32.mrf.mxu0
        %v3431 = vadd.f32 0.0, %v3430
        %3432 = vmatmul.f32.gmra.mxu0 %v3273
        %v3433 = vpop.f32.mrf.mxu0
        %v3434 = vadd.f32 0.0, %v3433
        %3435 = vdwg.mxu0
        %3436 = vmatpush.msra.mxu0 %v3178
        %3437 = vmatpush.msra.mxu0 %v3177
        %3438 = vmatpush.msra.mxu0 %v3176
        %3439 = vmatpush.msra.mxu0 %v3175
        %3440 = vmatpush.msra.mxu0 %v3174
        %3441 = vmatpush.msra.mxu0 %v3173
        %3442 = vmatpush.msra.mxu0 %v3172
        %3443 = vmatpush.msra.mxu0 %v3171
        %3444 = vmatpush.msra.mxu0 %v3170
        %3445 = vmatpush.msra.mxu0 %v3169
        %3446 = vmatpush.msra.mxu0 %v3168
        %3447 = vmatpush.msra.mxu0 %v3167
        %3448 = vmatpush.msra.mxu0 %v3166
        %3449 = vmatpush.msra.mxu0 %v3165
        %3450 = vmatpush.msra.mxu0 %v3164
        %3451 = vmatpush.msra.mxu0 %v3163
        %3452 = vmatmul.f32.gmra.mxu0 %v3180
        %v3453 = vpop.f32.mrf.mxu0
        %v3454 = vadd.f32 %v3293, %v3453
        %3455 = vmatmul.f32.gmra.mxu0 %v3182
        %v3456 = vpop.f32.mrf.mxu0
        %v3457 = vadd.f32 %v3296, %v3456
        %3458 = vmatmul.f32.gmra.mxu0 %v3184
        %v3459 = vpop.f32.mrf.mxu0
        %v3460 = vadd.f32 %v3299, %v3459
        %3461 = vmatmul.f32.gmra.mxu0 %v3186
        %v3462 = vpop.f32.mrf.mxu0
        %v3463 = vadd.f32 %v3302, %v3462
        %3464 = vmatmul.f32.gmra.mxu0 %v3188
        %v3465 = vpop.f32.mrf.mxu0
        %v3466 = vadd.f32 %v3305, %v3465
        %3467 = vmatmul.f32.gmra.mxu0 %v3190
        %v3468 = vpop.f32.mrf.mxu0
        %v3469 = vadd.f32 %v3308, %v3468
        %3470 = vmatmul.f32.gmra.mxu0 %v3192
        %v3471 = vpop.f32.mrf.mxu0
        %v3472 = vadd.f32 %v3311, %v3471
        %3473 = vmatmul.f32.gmra.mxu0 %v3194
        %v3474 = vpop.f32.mrf.mxu0
        %v3475 = vadd.f32 %v3314, %v3474
        %3476 = vmatmul.f32.gmra.mxu0 %v3196
        %v3477 = vpop.f32.mrf.mxu0
        %v3478 = vadd.f32 %v3317, %v3477
        %3479 = vmatmul.f32.gmra.mxu0 %v3198
        %v3480 = vpop.f32.mrf.mxu0
        %v3481 = vadd.f32 %v3320, %v3480
        %3482 = vmatmul.f32.gmra.mxu0 %v3200
        %v3483 = vpop.f32.mrf.mxu0
        %v3484 = vadd.f32 %v3323, %v3483
        %3485 = vmatmul.f32.gmra.mxu0 %v3202
        %v3486 = vpop.f32.mrf.mxu0
        %v3487 = vadd.f32 %v3326, %v3486
        %3488 = vmatmul.f32.gmra.mxu0 %v3204
        %v3489 = vpop.f32.mrf.mxu0
        %v3490 = vadd.f32 %v3329, %v3489
        %3491 = vmatmul.f32.gmra.mxu0 %v3206
        %v3492 = vpop.f32.mrf.mxu0
        %v3493 = vadd.f32 %v3332, %v3492
        %3494 = vmatmul.f32.gmra.mxu0 %v3208
        %v3495 = vpop.f32.mrf.mxu0
        %v3496 = vadd.f32 %v3335, %v3495
        %3497 = vmatmul.f32.gmra.mxu0 %v3210
        %v3498 = vpop.f32.mrf.mxu0
        %v3499 = vadd.f32 %v3338, %v3498
        %3500 = vmatmul.f32.gmra.mxu0 %v3212
        %v3501 = vpop.f32.mrf.mxu0
        %v3502 = vadd.f32 %v3341, %v3501
        %3503 = vmatmul.f32.gmra.mxu0 %v3214
        %v3504 = vpop.f32.mrf.mxu0
        %v3505 = vadd.f32 %v3344, %v3504
        %3506 = vmatmul.f32.gmra.mxu0 %v3216
        %v3507 = vpop.f32.mrf.mxu0
        %v3508 = vadd.f32 %v3347, %v3507
        %3509 = vmatmul.f32.gmra.mxu0 %v3218
        %v3510 = vpop.f32.mrf.mxu0
        %v3511 = vadd.f32 %v3350, %v3510
        %3512 = vmatmul.f32.gmra.mxu0 %v3220
        %v3513 = vpop.f32.mrf.mxu0
        %v3514 = vadd.f32 %v3353, %v3513
        %3515 = vmatmul.f32.gmra.mxu0 %v3222
        %v3516 = vpop.f32.mrf.mxu0
        %v3517 = vadd.f32 %v3356, %v3516
        %3518 = vmatmul.f32.gmra.mxu0 %v3224
        %v3519 = vpop.f32.mrf.mxu0
        %v3520 = vadd.f32 %v3359, %v3519
        %3521 = vmatmul.f32.gmra.mxu0 %v3226
        %v3522 = vpop.f32.mrf.mxu0
        %v3523 = vadd.f32 %v3362, %v3522
        %3524 = vmatmul.f32.gmra.mxu0 %v3228
        %v3525 = vpop.f32.mrf.mxu0
        %v3526 = vadd.f32 %v3365, %v3525
        %3527 = vmatmul.f32.gmra.mxu0 %v3230
        %v3528 = vpop.f32.mrf.mxu0
        %v3529 = vadd.f32 %v3368, %v3528
        %3530 = vmatmul.f32.gmra.mxu0 %v3232
        %v3531 = vpop.f32.mrf.mxu0
        %v3532 = vadd.f32 %v3371, %v3531
        %3533 = vmatmul.f32.gmra.mxu0 %v3234
        %v3534 = vpop.f32.mrf.mxu0
        %v3535 = vadd.f32 %v3374, %v3534
        %3536 = vmatmul.f32.gmra.mxu0 %v3236
        %v3537 = vpop.f32.mrf.mxu0
        %v3538 = vadd.f32 %v3377, %v3537
        %3539 = vmatmul.f32.gmra.mxu0 %v3238
        %v3540 = vpop.f32.mrf.mxu0
        %v3541 = vadd.f32 %v3380, %v3540
        %3542 = vmatmul.f32.gmra.mxu0 %v3240
        %v3543 = vpop.f32.mrf.mxu0
        %v3544 = vadd.f32 %v3383, %v3543
        %3545 = vmatmul.f32.gmra.mxu0 %v3242
        %v3546 = vpop.f32.mrf.mxu0
        %v3547 = vadd.f32 %v3386, %v3546
        %3548 = vmatmul.f32.gmra.mxu0 %v3244
        %v3549 = vpop.f32.mrf.mxu0
        %v3550 = vadd.f32 %v3389, %v3549
        %3551 = vmatmul.f32.gmra.mxu0 %v3246
        %v3552 = vpop.f32.mrf.mxu0
        %v3553 = vadd.f32 %v3392, %v3552
        %3554 = vmatmul.f32.gmra.mxu0 %v3248
        %v3555 = vpop.f32.mrf.mxu0
        %v3556 = vadd.f32 %v3395, %v3555
        %3557 = vmatmul.f32.gmra.mxu0 %v3250
        %v3558 = vpop.f32.mrf.mxu0
        %v3559 = vadd.f32 %v3398, %v3558
        %3560 = vmatmul.f32.gmra.mxu0 %v3252
        %v3561 = vpop.f32.mrf.mxu0
        %v3562 = vadd.f32 %v3401, %v3561
        %3563 = vmatmul.f32.gmra.mxu0 %v3254
        %v3564 = vpop.f32.mrf.mxu0
        %v3565 = vadd.f32 %v3404, %v3564
        %3566 = vmatmul.f32.gmra.mxu0 %v3256
        %v3567 = vpop.f32.mrf.mxu0
        %v3568 = vadd.f32 %v3407, %v3567
        %3569 = vmatmul.f32.gmra.mxu0 %v3258
        %v3570 = vpop.f32.mrf.mxu0
        %v3571 = vadd.f32 %v3410, %v3570
        %3572 = vmatmul.f32.gmra.mxu0 %v3260
        %v3573 = vpop.f32.mrf.mxu0
        %v3574 = vadd.f32 %v3413, %v3573
        %3575 = vmatmul.f32.gmra.mxu0 %v3262
        %v3576 = vpop.f32.mrf.mxu0
        %v3577 = vadd.f32 %v3416, %v3576
        %3578 = vmatmul.f32.gmra.mxu0 %v3264
        %v3579 = vpop.f32.mrf.mxu0
        %v3580 = vadd.f32 %v3419, %v3579
        %3581 = vmatmul.f32.gmra.mxu0 %v3266
        %v3582 = vpop.f32.mrf.mxu0
        %v3583 = vadd.f32 %v3422, %v3582
        %3584 = vmatmul.f32.gmra.mxu0 %v3268
        %v3585 = vpop.f32.mrf.mxu0
        %v3586 = vadd.f32 %v3425, %v3585
        %3587 = vmatmul.f32.gmra.mxu0 %v3270
        %v3588 = vpop.f32.mrf.mxu0
        %v3589 = vadd.f32 %v3428, %v3588
        %3590 = vmatmul.f32.gmra.mxu0 %v3272
        %v3591 = vpop.f32.mrf.mxu0
        %v3592 = vadd.f32 %v3431, %v3591
        %3593 = vmatmul.f32.gmra.mxu0 %v3274
        %v3594 = vpop.f32.mrf.mxu0
        %v3595 = vadd.f32 %v3434, %v3594
        %3596 = vdwg.mxu0
        %v3597 = vpack.c.bf16 %v3505, %v3502
        %v3598 = vpack.c.bf16 %v3511, %v3508
        %v3599 = vpack.c.bf16 %v3517, %v3514
        %v3600 = vpack.c.bf16 %v3523, %v3520
        %v3601 = vpack.c.bf16 %v3529, %v3526
        %v3602 = vpack.c.bf16 %v3535, %v3532
        %v3603 = vpack.c.bf16 %v3541, %v3538
        %v3604 = vpack.c.bf16 %v3547, %v3544
        %v3605 = vpack.c.bf16 %v3553, %v3550
        %v3606 = vpack.c.bf16 %v3559, %v3556
        %v3607 = vpack.c.bf16 %v3565, %v3562
        %v3608 = vpack.c.bf16 %v3571, %v3568
        %v3609 = vpack.c.bf16 %v3577, %v3574
        %v3610 = vpack.c.bf16 %v3583, %v3580
        %v3611 = vpack.c.bf16 %v3589, %v3586
        %v3612 = vpack.c.bf16 %v3595, %v3592
        %v3613 = vmul.f32 %v3454, %v725
        %v3614 = vmul.f32 %v3457, %v725
        %v3615 = vmul.f32 %v3460, %v725
        %v3616 = vmul.f32 %v3463, %v725
        %v3617 = vmul.f32 %v3466, %v725
        %v3618 = vmul.f32 %v3469, %v725
        %v3619 = vmul.f32 %v3472, %v725
        %v3620 = vmul.f32 %v3475, %v725
        %v3621 = vmul.f32 %v3478, %v725
        %v3622 = vmul.f32 %v3481, %v725
        %v3623 = vmul.f32 %v3484, %v725
        %v3624 = vmul.f32 %v3487, %v725
        %v3625 = vmul.f32 %v3490, %v725
        %v3626 = vmul.f32 %v3493, %v725
        %v3627 = vmul.f32 %v3496, %v725
        %v3628 = vmul.f32 %v3499, %v725
        %3630 = vset.pattern.permute.xlu0 0
        %3631 = vperm.xlu0 %3630, %v3454
        %v3632 = vpop.permute.xlu0 %3631
        %3635 = vset.pattern.permute.xlu0 0
        %3636 = vperm.xlu0 %3635, %v3457
        %v3637 = vpop.permute.xlu0 %3636
        %3640 = vset.pattern.permute.xlu0 0
        %3641 = vperm.xlu0 %3640, %v3460
        %v3642 = vpop.permute.xlu0 %3641
        %3645 = vset.pattern.permute.xlu0 0
        %3646 = vperm.xlu0 %3645, %v3463
        %v3647 = vpop.permute.xlu0 %3646
        %3650 = vset.pattern.permute.xlu0 0
        %3651 = vperm.xlu0 %3650, %v3466
        %v3652 = vpop.permute.xlu0 %3651
        %3655 = vset.pattern.permute.xlu0 0
        %3656 = vperm.xlu0 %3655, %v3469
        %v3657 = vpop.permute.xlu0 %3656
        %3660 = vset.pattern.permute.xlu0 0
        %3661 = vperm.xlu0 %3660, %v3472
        %v3662 = vpop.permute.xlu0 %3661
        %3665 = vset.pattern.permute.xlu0 0
        %3666 = vperm.xlu0 %3665, %v3475
        %v3667 = vpop.permute.xlu0 %3666
        %3670 = vset.pattern.permute.xlu0 0
        %3671 = vperm.xlu0 %3670, %v3478
        %v3672 = vpop.permute.xlu0 %3671
        %3675 = vset.pattern.permute.xlu0 0
        %3676 = vperm.xlu0 %3675, %v3481
        %v3677 = vpop.permute.xlu0 %3676
        %3680 = vset.pattern.permute.xlu0 0
        %3681 = vperm.xlu0 %3680, %v3484
        %v3682 = vpop.permute.xlu0 %3681
        %3685 = vset.pattern.permute.xlu0 0
        %3686 = vperm.xlu0 %3685, %v3487
        %v3687 = vpop.permute.xlu0 %3686
        %3690 = vset.pattern.permute.xlu0 0
        %3691 = vperm.xlu0 %3690, %v3490
        %v3692 = vpop.permute.xlu0 %3691
        %3695 = vset.pattern.permute.xlu0 0
        %3696 = vperm.xlu0 %3695, %v3493
        %v3697 = vpop.permute.xlu0 %3696
        %3700 = vset.pattern.permute.xlu0 0
        %3701 = vperm.xlu0 %3700, %v3496
        %v3702 = vpop.permute.xlu0 %3701
        %3705 = vset.pattern.permute.xlu0 0
        %3706 = vperm.xlu0 %3705, %v3499
        %v3707 = vpop.permute.xlu0 %3706
        %v3709 = vmul.f32 %v3632, %v738
        %v3710 = vmul.f32 %v3637, %v738
        %v3711 = vmul.f32 %v3642, %v738
        %v3712 = vmul.f32 %v3647, %v738
        %v3713 = vmul.f32 %v3652, %v738
        %v3714 = vmul.f32 %v3657, %v738
        %v3715 = vmul.f32 %v3662, %v738
        %v3716 = vmul.f32 %v3667, %v738
        %v3717 = vmul.f32 %v3672, %v738
        %v3718 = vmul.f32 %v3677, %v738
        %v3719 = vmul.f32 %v3682, %v738
        %v3720 = vmul.f32 %v3687, %v738
        %v3721 = vmul.f32 %v3692, %v738
        %v3722 = vmul.f32 %v3697, %v738
        %v3723 = vmul.f32 %v3702, %v738
        %v3724 = vmul.f32 %v3707, %v738
        %v3725 = vadd.f32 %v3613, %v3709
        %v3726 = vadd.f32 %v3614, %v3710
        %v3727 = vadd.f32 %v3615, %v3711
        %v3728 = vadd.f32 %v3616, %v3712
        %v3729 = vadd.f32 %v3617, %v3713
        %v3730 = vadd.f32 %v3618, %v3714
        %v3731 = vadd.f32 %v3619, %v3715
        %v3732 = vadd.f32 %v3620, %v3716
        %v3733 = vadd.f32 %v3621, %v3717
        %v3734 = vadd.f32 %v3622, %v3718
        %v3735 = vadd.f32 %v3623, %v3719
        %v3736 = vadd.f32 %v3624, %v3720
        %v3737 = vadd.f32 %v3625, %v3721
        %v3738 = vadd.f32 %v3626, %v3722
        %v3739 = vadd.f32 %v3627, %v3723
        %v3740 = vadd.f32 %v3628, %v3724
        %3741 = vmatpush.bf16.msra.mxu0 %v679
        %3742 = vmatpush.bf16.msra.mxu0 %v677
        %3743 = vmatpush.bf16.msra.mxu0 %v675
        %3744 = vmatpush.bf16.msra.mxu0 %v673
        %3745 = vmatpush.bf16.msra.mxu0 %v671
        %3746 = vmatpush.bf16.msra.mxu0 %v669
        %3747 = vmatpush.bf16.msra.mxu0 %v667
        %3748 = vmatpush.bf16.msra.mxu0 %v665
        %3749 = vmatmul.bf16.gmra.mxu0 %v3597
        %v3750 = vpop.f32.mrf.mxu0
        %v3751 = vadd.f32 0.0, %v3750
        %v3752 = vpop.f32.mrf.mxu0
        %v3753 = vadd.f32 0.0, %v3752
        %3754 = vmatmul.bf16.gmra.mxu0 %v3598
        %v3755 = vpop.f32.mrf.mxu0
        %v3756 = vadd.f32 0.0, %v3755
        %v3757 = vpop.f32.mrf.mxu0
        %v3758 = vadd.f32 0.0, %v3757
        %3759 = vmatmul.bf16.gmra.mxu0 %v3599
        %v3760 = vpop.f32.mrf.mxu0
        %v3761 = vadd.f32 0.0, %v3760
        %v3762 = vpop.f32.mrf.mxu0
        %v3763 = vadd.f32 0.0, %v3762
        %3764 = vmatmul.bf16.gmra.mxu0 %v3600
        %v3765 = vpop.f32.mrf.mxu0
        %v3766 = vadd.f32 0.0, %v3765
        %v3767 = vpop.f32.mrf.mxu0
        %v3768 = vadd.f32 0.0, %v3767
        %3769 = vmatmul.bf16.gmra.mxu0 %v3601
        %v3770 = vpop.f32.mrf.mxu0
        %v3771 = vadd.f32 0.0, %v3770
        %v3772 = vpop.f32.mrf.mxu0
        %v3773 = vadd.f32 0.0, %v3772
        %3774 = vmatmul.bf16.gmra.mxu0 %v3602
        %v3775 = vpop.f32.mrf.mxu0
        %v3776 = vadd.f32 0.0, %v3775
        %v3777 = vpop.f32.mrf.mxu0
        %v3778 = vadd.f32 0.0, %v3777
        %3779 = vmatmul.bf16.gmra.mxu0 %v3603
        %v3780 = vpop.f32.mrf.mxu0
        %v3781 = vadd.f32 0.0, %v3780
        %v3782 = vpop.f32.mrf.mxu0
        %v3783 = vadd.f32 0.0, %v3782
        %3784 = vmatmul.bf16.gmra.mxu0 %v3604
        %v3785 = vpop.f32.mrf.mxu0
        %v3786 = vadd.f32 0.0, %v3785
        %v3787 = vpop.f32.mrf.mxu0
        %v3788 = vadd.f32 0.0, %v3787
        %3789 = vdwg.mxu0
        %v3790 = vadd.f32 %v3725, %v3751
        %v3791 = vadd.f32 %v3726, %v3753
        %v3792 = vadd.f32 %v3727, %v3756
        %v3793 = vadd.f32 %v3728, %v3758
        %v3794 = vadd.f32 %v3729, %v3761
        %v3795 = vadd.f32 %v3730, %v3763
        %v3796 = vadd.f32 %v3731, %v3766
        %v3797 = vadd.f32 %v3732, %v3768
        %v3798 = vadd.f32 %v3733, %v3771
        %v3799 = vadd.f32 %v3734, %v3773
        %v3800 = vadd.f32 %v3735, %v3776
        %v3801 = vadd.f32 %v3736, %v3778
        %v3802 = vadd.f32 %v3737, %v3781
        %v3803 = vadd.f32 %v3738, %v3783
        %v3804 = vadd.f32 %v3739, %v3786
        %v3805 = vadd.f32 %v3740, %v3788
        %3806 = vmatpush.bf16.msra.mxu0 %v680
        %3807 = vmatpush.bf16.msra.mxu0 %v678
        %3808 = vmatpush.bf16.msra.mxu0 %v676
        %3809 = vmatpush.bf16.msra.mxu0 %v674
        %3810 = vmatpush.bf16.msra.mxu0 %v672
        %3811 = vmatpush.bf16.msra.mxu0 %v670
        %3812 = vmatpush.bf16.msra.mxu0 %v668
        %3813 = vmatpush.bf16.msra.mxu0 %v666
        %3814 = vmatmul.bf16.gmra.mxu0 %v3605
        %v3815 = vpop.f32.mrf.mxu0
        %v3816 = vadd.f32 0.0, %v3815
        %v3817 = vpop.f32.mrf.mxu0
        %v3818 = vadd.f32 0.0, %v3817
        %3819 = vmatmul.bf16.gmra.mxu0 %v3606
        %v3820 = vpop.f32.mrf.mxu0
        %v3821 = vadd.f32 0.0, %v3820
        %v3822 = vpop.f32.mrf.mxu0
        %v3823 = vadd.f32 0.0, %v3822
        %3824 = vmatmul.bf16.gmra.mxu0 %v3607
        %v3825 = vpop.f32.mrf.mxu0
        %v3826 = vadd.f32 0.0, %v3825
        %v3827 = vpop.f32.mrf.mxu0
        %v3828 = vadd.f32 0.0, %v3827
        %3829 = vmatmul.bf16.gmra.mxu0 %v3608
        %v3830 = vpop.f32.mrf.mxu0
        %v3831 = vadd.f32 0.0, %v3830
        %v3832 = vpop.f32.mrf.mxu0
        %v3833 = vadd.f32 0.0, %v3832
        %3834 = vmatmul.bf16.gmra.mxu0 %v3609
        %v3835 = vpop.f32.mrf.mxu0
        %v3836 = vadd.f32 0.0, %v3835
        %v3837 = vpop.f32.mrf.mxu0
        %v3838 = vadd.f32 0.0, %v3837
        %3839 = vmatmul.bf16.gmra.mxu0 %v3610
        %v3840 = vpop.f32.mrf.mxu0
        %v3841 = vadd.f32 0.0, %v3840
        %v3842 = vpop.f32.mrf.mxu0
        %v3843 = vadd.f32 0.0, %v3842
        %3844 = vmatmul.bf16.gmra.mxu0 %v3611
        %v3845 = vpop.f32.mrf.mxu0
        %v3846 = vadd.f32 0.0, %v3845
        %v3847 = vpop.f32.mrf.mxu0
        %v3848 = vadd.f32 0.0, %v3847
        %3849 = vmatmul.bf16.gmra.mxu0 %v3612
        %v3850 = vpop.f32.mrf.mxu0
        %v3851 = vadd.f32 0.0, %v3850
        %v3852 = vpop.f32.mrf.mxu0
        %v3853 = vadd.f32 0.0, %v3852
        %3854 = vdwg.mxu0
        %v3855 = vadd.f32 %v3790, %v3816
        %v3856 = vadd.f32 %v3791, %v3818
        %v3857 = vadd.f32 %v3792, %v3821
        %v3858 = vadd.f32 %v3793, %v3823
        %v3859 = vadd.f32 %v3794, %v3826
        %v3860 = vadd.f32 %v3795, %v3828
        %v3861 = vadd.f32 %v3796, %v3831
        %v3862 = vadd.f32 %v3797, %v3833
        %v3863 = vadd.f32 %v3798, %v3836
        %v3864 = vadd.f32 %v3799, %v3838
        %v3865 = vadd.f32 %v3800, %v3841
        %v3866 = vadd.f32 %v3801, %v3843
        %v3867 = vadd.f32 %v3802, %v3846
        %v3868 = vadd.f32 %v3803, %v3848
        %v3869 = vadd.f32 %v3804, %v3851
        %v3870 = vadd.f32 %v3805, %v3853
        %v3871 = vld [vmem:[%s9] sm:$0xff]
        %v3872 = vld [vmem:[%s9 + $0x8] sm:$0xff]
        %v3873 = vld [vmem:[%s9 + $0x10] sm:$0xff]
        %v3874 = vld [vmem:[%s9 + $0x18] sm:$0xff]
        %v3875 = vld [vmem:[%s9 + $0x20] sm:$0xff]
        %v3876 = vld [vmem:[%s9 + $0x28] sm:$0xff]
        %v3877 = vld [vmem:[%s9 + $0x30] sm:$0xff]
        %v3878 = vld [vmem:[%s9 + $0x38] sm:$0xff]
        %v3879 = vld [vmem:[%s9 + $0x40] sm:$0xff]
        %v3880 = vld [vmem:[%s9 + $0x48] sm:$0xff]
        %v3881 = vld [vmem:[%s9 + $0x50] sm:$0xff]
        %v3882 = vld [vmem:[%s9 + $0x58] sm:$0xff]
        %v3883 = vld [vmem:[%s9 + $0x60] sm:$0xff]
        %v3884 = vld [vmem:[%s9 + $0x68] sm:$0xff]
        %v3885 = vld [vmem:[%s9 + $0x70] sm:$0xff]
        %v3886 = vld [vmem:[%s9 + $0x78] sm:$0xff]
        %3888 = vset.pattern.permute.xlu0 0
        %3889 = vperm.xlu0 %3888, %v3871
        %v3890 = vpop.permute.xlu0 %3889
        %3893 = vset.pattern.permute.xlu0 0
        %3894 = vperm.xlu0 %3893, %v3872
        %v3895 = vpop.permute.xlu0 %3894
        %3898 = vset.pattern.permute.xlu0 0
        %3899 = vperm.xlu0 %3898, %v3873
        %v3900 = vpop.permute.xlu0 %3899
        %3903 = vset.pattern.permute.xlu0 0
        %3904 = vperm.xlu0 %3903, %v3874
        %v3905 = vpop.permute.xlu0 %3904
        %3908 = vset.pattern.permute.xlu0 0
        %3909 = vperm.xlu0 %3908, %v3875
        %v3910 = vpop.permute.xlu0 %3909
        %3913 = vset.pattern.permute.xlu0 0
        %3914 = vperm.xlu0 %3913, %v3876
        %v3915 = vpop.permute.xlu0 %3914
        %3918 = vset.pattern.permute.xlu0 0
        %3919 = vperm.xlu0 %3918, %v3877
        %v3920 = vpop.permute.xlu0 %3919
        %3923 = vset.pattern.permute.xlu0 0
        %3924 = vperm.xlu0 %3923, %v3878
        %v3925 = vpop.permute.xlu0 %3924
        %3928 = vset.pattern.permute.xlu0 0
        %3929 = vperm.xlu0 %3928, %v3879
        %v3930 = vpop.permute.xlu0 %3929
        %3933 = vset.pattern.permute.xlu0 0
        %3934 = vperm.xlu0 %3933, %v3880
        %v3935 = vpop.permute.xlu0 %3934
        %3938 = vset.pattern.permute.xlu0 0
        %3939 = vperm.xlu0 %3938, %v3881
        %v3940 = vpop.permute.xlu0 %3939
        %3943 = vset.pattern.permute.xlu0 0
        %3944 = vperm.xlu0 %3943, %v3882
        %v3945 = vpop.permute.xlu0 %3944
        %3948 = vset.pattern.permute.xlu0 0
        %3949 = vperm.xlu0 %3948, %v3883
        %v3950 = vpop.permute.xlu0 %3949
        %3953 = vset.pattern.permute.xlu0 0
        %3954 = vperm.xlu0 %3953, %v3884
        %v3955 = vpop.permute.xlu0 %3954
        %3958 = vset.pattern.permute.xlu0 0
        %3959 = vperm.xlu0 %3958, %v3885
        %v3960 = vpop.permute.xlu0 %3959
        %3963 = vset.pattern.permute.xlu0 0
        %3964 = vperm.xlu0 %3963, %v3886
        %v3965 = vpop.permute.xlu0 %3964
        %v3967 = vmul.f32 %v3890, %v967
        %v3968 = vmul.f32 %v3895, %v967
        %v3969 = vmul.f32 %v3900, %v967
        %v3970 = vmul.f32 %v3905, %v967
        %v3971 = vmul.f32 %v3910, %v967
        %v3972 = vmul.f32 %v3915, %v967
        %v3973 = vmul.f32 %v3920, %v967
        %v3974 = vmul.f32 %v3925, %v967
        %v3975 = vmul.f32 %v3930, %v967
        %v3976 = vmul.f32 %v3935, %v967
        %v3977 = vmul.f32 %v3940, %v967
        %v3978 = vmul.f32 %v3945, %v967
        %v3979 = vmul.f32 %v3950, %v967
        %v3980 = vmul.f32 %v3955, %v967
        %v3981 = vmul.f32 %v3960, %v967
        %v3982 = vmul.f32 %v3965, %v967
        %v3983 = vadd.f32 %v3855, %v3967
        %v3984 = vadd.f32 %v3856, %v3968
        %v3985 = vadd.f32 %v3857, %v3969
        %v3986 = vadd.f32 %v3858, %v3970
        %v3987 = vadd.f32 %v3859, %v3971
        %v3988 = vadd.f32 %v3860, %v3972
        %v3989 = vadd.f32 %v3861, %v3973
        %v3990 = vadd.f32 %v3862, %v3974
        %v3991 = vadd.f32 %v3863, %v3975
        %v3992 = vadd.f32 %v3864, %v3976
        %v3993 = vadd.f32 %v3865, %v3977
        %v3994 = vadd.f32 %v3866, %v3978
        %v3995 = vadd.f32 %v3867, %v3979
        %v3996 = vadd.f32 %v3868, %v3980
        %v3997 = vadd.f32 %v3869, %v3981
        %v3998 = vadd.f32 %v3870, %v3982
        %3999 = vadd.xlane.f32.xlu0 %v3983
        %v4000 = vpop.xlane.xlu0 %3999
        %4001 = vadd.xlane.f32.xlu0 %v3984
        %v4002 = vpop.xlane.xlu0 %4001
        %4003 = vadd.xlane.f32.xlu0 %v3985
        %v4004 = vpop.xlane.xlu0 %4003
        %4005 = vadd.xlane.f32.xlu0 %v3986
        %v4006 = vpop.xlane.xlu0 %4005
        %4007 = vadd.xlane.f32.xlu0 %v3987
        %v4008 = vpop.xlane.xlu0 %4007
        %4009 = vadd.xlane.f32.xlu0 %v3988
        %v4010 = vpop.xlane.xlu0 %4009
        %4011 = vadd.xlane.f32.xlu0 %v3989
        %v4012 = vpop.xlane.xlu0 %4011
        %4013 = vadd.xlane.f32.xlu0 %v3990
        %v4014 = vpop.xlane.xlu0 %4013
        %4015 = vadd.xlane.f32.xlu0 %v3991
        %v4016 = vpop.xlane.xlu0 %4015
        %4017 = vadd.xlane.f32.xlu0 %v3992
        %v4018 = vpop.xlane.xlu0 %4017
        %4019 = vadd.xlane.f32.xlu0 %v3993
        %v4020 = vpop.xlane.xlu0 %4019
        %4021 = vadd.xlane.f32.xlu0 %v3994
        %v4022 = vpop.xlane.xlu0 %4021
        %4023 = vadd.xlane.f32.xlu0 %v3995
        %v4024 = vpop.xlane.xlu0 %4023
        %4025 = vadd.xlane.f32.xlu0 %v3996
        %v4026 = vpop.xlane.xlu0 %4025
        %4027 = vadd.xlane.f32.xlu0 %v3997
        %v4028 = vpop.xlane.xlu0 %4027
        %4029 = vadd.xlane.f32.xlu0 %v3998
        %v4030 = vpop.xlane.xlu0 %4029
        %v4031 = vmul.f32 %v4000, 0.125
        %v4032 = vmul.f32 %v4002, 0.125
        %v4033 = vmul.f32 %v4004, 0.125
        %v4034 = vmul.f32 %v4006, 0.125
        %v4035 = vmul.f32 %v4008, 0.125
        %v4036 = vmul.f32 %v4010, 0.125
        %v4037 = vmul.f32 %v4012, 0.125
        %v4038 = vmul.f32 %v4014, 0.125
        %v4039 = vmul.f32 %v4016, 0.125
        %v4040 = vmul.f32 %v4018, 0.125
        %v4041 = vmul.f32 %v4020, 0.125
        %v4042 = vmul.f32 %v4022, 0.125
        %v4043 = vmul.f32 %v4024, 0.125
        %v4044 = vmul.f32 %v4026, 0.125
        %v4045 = vmul.f32 %v4028, 0.125
        %v4046 = vmul.f32 %v4030, 0.125
        %4047 = vmax.xlane.f32.xlu0 %v3983
        %v4048 = vpop.xlane.xlu0 %4047
        %4049 = vmax.xlane.f32.xlu0 %v3984
        %v4050 = vpop.xlane.xlu0 %4049
        %4051 = vmax.xlane.f32.xlu0 %v3985
        %v4052 = vpop.xlane.xlu0 %4051
        %4053 = vmax.xlane.f32.xlu0 %v3986
        %v4054 = vpop.xlane.xlu0 %4053
        %4055 = vmax.xlane.f32.xlu0 %v3987
        %v4056 = vpop.xlane.xlu0 %4055
        %4057 = vmax.xlane.f32.xlu0 %v3988
        %v4058 = vpop.xlane.xlu0 %4057
        %4059 = vmax.xlane.f32.xlu0 %v3989
        %v4060 = vpop.xlane.xlu0 %4059
        %4061 = vmax.xlane.f32.xlu0 %v3990
        %v4062 = vpop.xlane.xlu0 %4061
        %4063 = vmax.xlane.f32.xlu0 %v3991
        %v4064 = vpop.xlane.xlu0 %4063
        %4065 = vmax.xlane.f32.xlu0 %v3992
        %v4066 = vpop.xlane.xlu0 %4065
        %4067 = vmax.xlane.f32.xlu0 %v3993
        %v4068 = vpop.xlane.xlu0 %4067
        %4069 = vmax.xlane.f32.xlu0 %v3994
        %v4070 = vpop.xlane.xlu0 %4069
        %4071 = vmax.xlane.f32.xlu0 %v3995
        %v4072 = vpop.xlane.xlu0 %4071
        %4073 = vmax.xlane.f32.xlu0 %v3996
        %v4074 = vpop.xlane.xlu0 %4073
        %4075 = vmax.xlane.f32.xlu0 %v3997
        %v4076 = vpop.xlane.xlu0 %4075
        %4077 = vmax.xlane.f32.xlu0 %v3998
        %v4078 = vpop.xlane.xlu0 %4077
        %v4079 = vsel %vm1372, %v4031, %v4048
        %v4080 = vsel %vm1372, %v4032, %v4050
        %v4081 = vsel %vm1372, %v4033, %v4052
        %v4082 = vsel %vm1372, %v4034, %v4054
        %v4083 = vsel %vm1372, %v4035, %v4056
        %v4084 = vsel %vm1372, %v4036, %v4058
        %v4085 = vsel %vm1372, %v4037, %v4060
        %v4086 = vsel %vm1372, %v4038, %v4062
        %v4087 = vsel %vm1372, %v4039, %v4064
        %v4088 = vsel %vm1372, %v4040, %v4066
        %v4089 = vsel %vm1372, %v4041, %v4068
        %v4090 = vsel %vm1372, %v4042, %v4070
        %v4091 = vsel %vm1372, %v4043, %v4072
        %v4092 = vsel %vm1372, %v4044, %v4074
        %v4093 = vsel %vm1372, %v4045, %v4076
        %v4094 = vsel %vm1372, %v4046, %v4078
        %v4095 = vld [vmem:[%s10] sm:$0xff]
        %4096 = vmatpush.msra.mxu0 %v4094
        %4097 = vmatpush.msra.mxu0 %v4093
        %4098 = vmatpush.msra.mxu0 %v4092
        %4099 = vmatpush.msra.mxu0 %v4091
        %4100 = vmatpush.msra.mxu0 %v4090
        %4101 = vmatpush.msra.mxu0 %v4089
        %4102 = vmatpush.msra.mxu0 %v4088
        %4103 = vmatpush.msra.mxu0 %v4087
        %4104 = vmatpush.msra.mxu0 %v4086
        %4105 = vmatpush.msra.mxu0 %v4085
        %4106 = vmatpush.msra.mxu0 %v4084
        %4107 = vmatpush.msra.mxu0 %v4083
        %4108 = vmatpush.msra.mxu0 %v4082
        %4109 = vmatpush.msra.mxu0 %v4081
        %4110 = vmatpush.msra.mxu0 %v4080
        %4111 = vmatpush.msra.mxu0 %v4079
        %4112 = vmatmul.f32.gmra.mxu0 %v4095
        %v4113 = vpop.f32.mrf.mxu0
        %v4114 = vadd.f32 0.0, %v4113
        %4115 = vdwg.mxu0
        %v4116 = vmax.f32 %v4114, 0.0
        %v4117 = vld [vmem:[%s11] sm:$0xff]
        %v4118 = vld [vmem:[%s11 + $0x8] sm:$0xff]
        %v4119 = vld [vmem:[%s11 + $0x10] sm:$0xff]
        %v4120 = vld [vmem:[%s11 + $0x18] sm:$0xff]
        %v4121 = vld [vmem:[%s11 + $0x20] sm:$0xff]
        %v4122 = vld [vmem:[%s11 + $0x28] sm:$0xff]
        %v4123 = vld [vmem:[%s11 + $0x30] sm:$0xff]
        %v4124 = vld [vmem:[%s11 + $0x38] sm:$0xff]
        %v4125 = vld [vmem:[%s11 + $0x40] sm:$0xff]
        %v4126 = vld [vmem:[%s11 + $0x48] sm:$0xff]
        %v4127 = vld [vmem:[%s11 + $0x50] sm:$0xff]
        %v4128 = vld [vmem:[%s11 + $0x58] sm:$0xff]
        %v4129 = vld [vmem:[%s11 + $0x60] sm:$0xff]
        %v4130 = vld [vmem:[%s11 + $0x68] sm:$0xff]
        %v4131 = vld [vmem:[%s11 + $0x70] sm:$0xff]
        %v4132 = vld [vmem:[%s11 + $0x78] sm:$0xff]
        %vm4133 = vcmask 64512
        %v4135 = vsel %vm4133, %v4117, 0
        %v4138 = vsel %vm4133, %v4118, 0
        %v4141 = vsel %vm4133, %v4119, 0
        %v4144 = vsel %vm4133, %v4120, 0
        %v4147 = vsel %vm4133, %v4121, 0
        %v4150 = vsel %vm4133, %v4122, 0
        %v4153 = vsel %vm4133, %v4123, 0
        %v4156 = vsel %vm4133, %v4124, 0
        %v4159 = vsel %vm4133, %v4125, 0
        %v4162 = vsel %vm4133, %v4126, 0
        %v4165 = vsel %vm4133, %v4127, 0
        %v4168 = vsel %vm4133, %v4128, 0
        %v4171 = vsel %vm4133, %v4129, 0
        %v4174 = vsel %vm4133, %v4130, 0
        %v4177 = vsel %vm4133, %v4131, 0
        %v4180 = vsel %vm4133, %v4132, 0
        %4182 = vmatpush.msra.mxu0 0.0
        %4183 = vmatpush.msra.mxu0 0.0
        %4184 = vmatpush.msra.mxu0 0.0
        %4185 = vmatpush.msra.mxu0 0.0
        %4186 = vmatpush.msra.mxu0 0.0
        %4187 = vmatpush.msra.mxu0 0.0
        %4188 = vmatpush.msra.mxu0 0.0
        %4189 = vmatpush.msra.mxu0 0.0
        %4190 = vmatpush.msra.mxu0 0.0
        %4191 = vmatpush.msra.mxu0 0.0
        %4192 = vmatpush.msra.mxu0 0.0
        %4193 = vmatpush.msra.mxu0 0.0
        %4194 = vmatpush.msra.mxu0 0.0
        %4195 = vmatpush.msra.mxu0 0.0
        %4196 = vmatpush.msra.mxu0 0.0
        %4197 = vmatpush.msra.mxu0 %v4116
        %4198 = vmatmul.f32.gmra.mxu0 %v4135
        %v4199 = vpop.f32.mrf.mxu0
        %v4200 = vadd.f32 0.0, %v4199
        %4201 = vmatmul.f32.gmra.mxu0 %v4138
        %v4202 = vpop.f32.mrf.mxu0
        %v4203 = vadd.f32 0.0, %v4202
        %4204 = vmatmul.f32.gmra.mxu0 %v4141
        %v4205 = vpop.f32.mrf.mxu0
        %v4206 = vadd.f32 0.0, %v4205
        %4207 = vmatmul.f32.gmra.mxu0 %v4144
        %v4208 = vpop.f32.mrf.mxu0
        %v4209 = vadd.f32 0.0, %v4208
        %4210 = vmatmul.f32.gmra.mxu0 %v4147
        %v4211 = vpop.f32.mrf.mxu0
        %v4212 = vadd.f32 0.0, %v4211
        %4213 = vmatmul.f32.gmra.mxu0 %v4150
        %v4214 = vpop.f32.mrf.mxu0
        %v4215 = vadd.f32 0.0, %v4214
        %4216 = vmatmul.f32.gmra.mxu0 %v4153
        %v4217 = vpop.f32.mrf.mxu0
        %v4218 = vadd.f32 0.0, %v4217
        %4219 = vmatmul.f32.gmra.mxu0 %v4156
        %v4220 = vpop.f32.mrf.mxu0
        %v4221 = vadd.f32 0.0, %v4220
        %4222 = vmatmul.f32.gmra.mxu0 %v4159
        %v4223 = vpop.f32.mrf.mxu0
        %v4224 = vadd.f32 0.0, %v4223
        %4225 = vmatmul.f32.gmra.mxu0 %v4162
        %v4226 = vpop.f32.mrf.mxu0
        %v4227 = vadd.f32 0.0, %v4226
        %4228 = vmatmul.f32.gmra.mxu0 %v4165
        %v4229 = vpop.f32.mrf.mxu0
        %v4230 = vadd.f32 0.0, %v4229
        %4231 = vmatmul.f32.gmra.mxu0 %v4168
        %v4232 = vpop.f32.mrf.mxu0
        %v4233 = vadd.f32 0.0, %v4232
        %4234 = vmatmul.f32.gmra.mxu0 %v4171
        %v4235 = vpop.f32.mrf.mxu0
        %v4236 = vadd.f32 0.0, %v4235
        %4237 = vmatmul.f32.gmra.mxu0 %v4174
        %v4238 = vpop.f32.mrf.mxu0
        %v4239 = vadd.f32 0.0, %v4238
        %4240 = vmatmul.f32.gmra.mxu0 %v4177
        %v4241 = vpop.f32.mrf.mxu0
        %v4242 = vadd.f32 0.0, %v4241
        %4243 = vmatmul.f32.gmra.mxu0 %v4180
        %v4244 = vpop.f32.mrf.mxu0
        %v4245 = vadd.f32 0.0, %v4244
        %4246 = vdwg.mxu0
        %4263 = vrot.lane.b32.xlu0 %v4200, 127
        %v4264 = vpop.permute.xlu0 %4263
        %4265 = vrot.lane.b32.xlu0 %v4203, 127
        %v4266 = vpop.permute.xlu0 %4265
        %4267 = vrot.lane.b32.xlu0 %v4206, 127
        %v4268 = vpop.permute.xlu0 %4267
        %4269 = vrot.lane.b32.xlu0 %v4209, 127
        %v4270 = vpop.permute.xlu0 %4269
        %4271 = vrot.lane.b32.xlu0 %v4212, 127
        %v4272 = vpop.permute.xlu0 %4271
        %4273 = vrot.lane.b32.xlu0 %v4215, 127
        %v4274 = vpop.permute.xlu0 %4273
        %4275 = vrot.lane.b32.xlu0 %v4218, 127
        %v4276 = vpop.permute.xlu0 %4275
        %4277 = vrot.lane.b32.xlu0 %v4221, 127
        %v4278 = vpop.permute.xlu0 %4277
        %4279 = vrot.lane.b32.xlu0 %v4224, 127
        %v4280 = vpop.permute.xlu0 %4279
        %4281 = vrot.lane.b32.xlu0 %v4227, 127
        %v4282 = vpop.permute.xlu0 %4281
        %4283 = vrot.lane.b32.xlu0 %v4230, 127
        %v4284 = vpop.permute.xlu0 %4283
        %4285 = vrot.lane.b32.xlu0 %v4233, 127
        %v4286 = vpop.permute.xlu0 %4285
        %4287 = vrot.lane.b32.xlu0 %v4236, 127
        %v4288 = vpop.permute.xlu0 %4287
        %4289 = vrot.lane.b32.xlu0 %v4239, 127
        %v4290 = vpop.permute.xlu0 %4289
        %4291 = vrot.lane.b32.xlu0 %v4242, 127
        %v4292 = vpop.permute.xlu0 %4291
        %4293 = vrot.lane.b32.xlu0 %v4245, 127
        %v4294 = vpop.permute.xlu0 %4293
        %v4311 = vadd.f32 %v4200, %v4264
        %v4312 = vadd.f32 %v4203, %v4266
        %v4313 = vadd.f32 %v4206, %v4268
        %v4314 = vadd.f32 %v4209, %v4270
        %v4315 = vadd.f32 %v4212, %v4272
        %v4316 = vadd.f32 %v4215, %v4274
        %v4317 = vadd.f32 %v4218, %v4276
        %v4318 = vadd.f32 %v4221, %v4278
        %v4319 = vadd.f32 %v4224, %v4280
        %v4320 = vadd.f32 %v4227, %v4282
        %v4321 = vadd.f32 %v4230, %v4284
        %v4322 = vadd.f32 %v4233, %v4286
        %v4323 = vadd.f32 %v4236, %v4288
        %v4324 = vadd.f32 %v4239, %v4290
        %v4325 = vadd.f32 %v4242, %v4292
        %v4326 = vadd.f32 %v4245, %v4294
        %v4327 = vsub.f32 0.0, %v4311
        %v4328 = vsub.f32 0.0, %v4312
        %v4329 = vsub.f32 0.0, %v4313
        %v4330 = vsub.f32 0.0, %v4314
        %v4331 = vsub.f32 0.0, %v4315
        %v4332 = vsub.f32 0.0, %v4316
        %v4333 = vsub.f32 0.0, %v4317
        %v4334 = vsub.f32 0.0, %v4318
        %v4335 = vsub.f32 0.0, %v4319
        %v4336 = vsub.f32 0.0, %v4320
        %v4337 = vsub.f32 0.0, %v4321
        %v4338 = vsub.f32 0.0, %v4322
        %v4339 = vsub.f32 0.0, %v4323
        %v4340 = vsub.f32 0.0, %v4324
        %v4341 = vsub.f32 0.0, %v4325
        %v4342 = vsub.f32 0.0, %v4326
        %v4343 = vmul.f32 %v4327, 1.442695
        %v4344 = vpow.pop %v4343
        %v4345 = vmul.f32 %v4328, 1.442695
        %v4346 = vpow.pop %v4345
        %v4347 = vmul.f32 %v4329, 1.442695
        %v4348 = vpow.pop %v4347
        %v4349 = vmul.f32 %v4330, 1.442695
        %v4350 = vpow.pop %v4349
        %v4351 = vmul.f32 %v4331, 1.442695
        %v4352 = vpow.pop %v4351
        %v4353 = vmul.f32 %v4332, 1.442695
        %v4354 = vpow.pop %v4353
        %v4355 = vmul.f32 %v4333, 1.442695
        %v4356 = vpow.pop %v4355
        %v4357 = vmul.f32 %v4334, 1.442695
        %v4358 = vpow.pop %v4357
        %v4359 = vmul.f32 %v4335, 1.442695
        %v4360 = vpow.pop %v4359
        %v4361 = vmul.f32 %v4336, 1.442695
        %v4362 = vpow.pop %v4361
        %v4363 = vmul.f32 %v4337, 1.442695
        %v4364 = vpow.pop %v4363
        %v4365 = vmul.f32 %v4338, 1.442695
        %v4366 = vpow.pop %v4365
        %v4367 = vmul.f32 %v4339, 1.442695
        %v4368 = vpow.pop %v4367
        %v4369 = vmul.f32 %v4340, 1.442695
        %v4370 = vpow.pop %v4369
        %v4371 = vmul.f32 %v4341, 1.442695
        %v4372 = vpow.pop %v4371
        %v4373 = vmul.f32 %v4342, 1.442695
        %v4374 = vpow.pop %v4373
        %v4375 = vadd.f32 %v4344, 1.0
        %v4376 = vadd.f32 %v4346, 1.0
        %v4377 = vadd.f32 %v4348, 1.0
        %v4378 = vadd.f32 %v4350, 1.0
        %v4379 = vadd.f32 %v4352, 1.0
        %v4380 = vadd.f32 %v4354, 1.0
        %v4381 = vadd.f32 %v4356, 1.0
        %v4382 = vadd.f32 %v4358, 1.0
        %v4383 = vadd.f32 %v4360, 1.0
        %v4384 = vadd.f32 %v4362, 1.0
        %v4385 = vadd.f32 %v4364, 1.0
        %v4386 = vadd.f32 %v4366, 1.0
        %v4387 = vadd.f32 %v4368, 1.0
        %v4388 = vadd.f32 %v4370, 1.0
        %v4389 = vadd.f32 %v4372, 1.0
        %v4390 = vadd.f32 %v4374, 1.0
        %v4391 = vrcp.pop %v4375
        %v4392 = vmul.f32 %v4375, %v4391
        %v4393 = vsub.f32 1.0, %v4392
        %v4394 = vmul.f32 %v4391, %v4393
        %v4395 = vadd.f32 %v4391, %v4394
        %vm4396 = vweird.f32 %v4375
        %vm4397 = vweird.f32 %v4391
        %vm4398 = vmor %vm4396, %vm4397
        %v4399 = vsel %vm4398, %v4391, %v4395
        %v4400 = vand.u32 2147483647, %v4375
        %vm4401 = vcmp.eq.f32.partialorder %v4400, 8.507059e+37
        %v4402 = vand.u32 %v4375, 2147483648
        %v4403 = vor.u32 1.1754944e-38, %v4402
        %v4404 = vsel %vm4401, %v4403, %v4399
        %v4405 = vmul.f32 1.0, %v4404
        %v4406 = vrcp.pop %v4376
        %v4407 = vmul.f32 %v4376, %v4406
        %v4408 = vsub.f32 1.0, %v4407
        %v4409 = vmul.f32 %v4406, %v4408
        %v4410 = vadd.f32 %v4406, %v4409
        %vm4411 = vweird.f32 %v4376
        %vm4412 = vweird.f32 %v4406
        %vm4413 = vmor %vm4411, %vm4412
        %v4414 = vsel %vm4413, %v4406, %v4410
        %v4415 = vand.u32 2147483647, %v4376
        %vm4416 = vcmp.eq.f32.partialorder %v4415, 8.507059e+37
        %v4417 = vand.u32 %v4376, 2147483648
        %v4418 = vor.u32 1.1754944e-38, %v4417
        %v4419 = vsel %vm4416, %v4418, %v4414
        %v4420 = vmul.f32 1.0, %v4419
        %v4421 = vrcp.pop %v4377
        %v4422 = vmul.f32 %v4377, %v4421
        %v4423 = vsub.f32 1.0, %v4422
        %v4424 = vmul.f32 %v4421, %v4423
        %v4425 = vadd.f32 %v4421, %v4424
        %vm4426 = vweird.f32 %v4377
        %vm4427 = vweird.f32 %v4421
        %vm4428 = vmor %vm4426, %vm4427
        %v4429 = vsel %vm4428, %v4421, %v4425
        %v4430 = vand.u32 2147483647, %v4377
        %vm4431 = vcmp.eq.f32.partialorder %v4430, 8.507059e+37
        %v4432 = vand.u32 %v4377, 2147483648
        %v4433 = vor.u32 1.1754944e-38, %v4432
        %v4434 = vsel %vm4431, %v4433, %v4429
        %v4435 = vmul.f32 1.0, %v4434
        %v4436 = vrcp.pop %v4378
        %v4437 = vmul.f32 %v4378, %v4436
        %v4438 = vsub.f32 1.0, %v4437
        %v4439 = vmul.f32 %v4436, %v4438
        %v4440 = vadd.f32 %v4436, %v4439
        %vm4441 = vweird.f32 %v4378
        %vm4442 = vweird.f32 %v4436
        %vm4443 = vmor %vm4441, %vm4442
        %v4444 = vsel %vm4443, %v4436, %v4440
        %v4445 = vand.u32 2147483647, %v4378
        %vm4446 = vcmp.eq.f32.partialorder %v4445, 8.507059e+37
        %v4447 = vand.u32 %v4378, 2147483648
        %v4448 = vor.u32 1.1754944e-38, %v4447
        %v4449 = vsel %vm4446, %v4448, %v4444
        %v4450 = vmul.f32 1.0, %v4449
        %v4451 = vrcp.pop %v4379
        %v4452 = vmul.f32 %v4379, %v4451
        %v4453 = vsub.f32 1.0, %v4452
        %v4454 = vmul.f32 %v4451, %v4453
        %v4455 = vadd.f32 %v4451, %v4454
        %vm4456 = vweird.f32 %v4379
        %vm4457 = vweird.f32 %v4451
        %vm4458 = vmor %vm4456, %vm4457
        %v4459 = vsel %vm4458, %v4451, %v4455
        %v4460 = vand.u32 2147483647, %v4379
        %vm4461 = vcmp.eq.f32.partialorder %v4460, 8.507059e+37
        %v4462 = vand.u32 %v4379, 2147483648
        %v4463 = vor.u32 1.1754944e-38, %v4462
        %v4464 = vsel %vm4461, %v4463, %v4459
        %v4465 = vmul.f32 1.0, %v4464
        %v4466 = vrcp.pop %v4380
        %v4467 = vmul.f32 %v4380, %v4466
        %v4468 = vsub.f32 1.0, %v4467
        %v4469 = vmul.f32 %v4466, %v4468
        %v4470 = vadd.f32 %v4466, %v4469
        %vm4471 = vweird.f32 %v4380
        %vm4472 = vweird.f32 %v4466
        %vm4473 = vmor %vm4471, %vm4472
        %v4474 = vsel %vm4473, %v4466, %v4470
        %v4475 = vand.u32 2147483647, %v4380
        %vm4476 = vcmp.eq.f32.partialorder %v4475, 8.507059e+37
        %v4477 = vand.u32 %v4380, 2147483648
        %v4478 = vor.u32 1.1754944e-38, %v4477
        %v4479 = vsel %vm4476, %v4478, %v4474
        %v4480 = vmul.f32 1.0, %v4479
        %v4481 = vrcp.pop %v4381
        %v4482 = vmul.f32 %v4381, %v4481
        %v4483 = vsub.f32 1.0, %v4482
        %v4484 = vmul.f32 %v4481, %v4483
        %v4485 = vadd.f32 %v4481, %v4484
        %vm4486 = vweird.f32 %v4381
        %vm4487 = vweird.f32 %v4481
        %vm4488 = vmor %vm4486, %vm4487
        %v4489 = vsel %vm4488, %v4481, %v4485
        %v4490 = vand.u32 2147483647, %v4381
        %vm4491 = vcmp.eq.f32.partialorder %v4490, 8.507059e+37
        %v4492 = vand.u32 %v4381, 2147483648
        %v4493 = vor.u32 1.1754944e-38, %v4492
        %v4494 = vsel %vm4491, %v4493, %v4489
        %v4495 = vmul.f32 1.0, %v4494
        %v4496 = vrcp.pop %v4382
        %v4497 = vmul.f32 %v4382, %v4496
        %v4498 = vsub.f32 1.0, %v4497
        %v4499 = vmul.f32 %v4496, %v4498
        %v4500 = vadd.f32 %v4496, %v4499
        %vm4501 = vweird.f32 %v4382
        %vm4502 = vweird.f32 %v4496
        %vm4503 = vmor %vm4501, %vm4502
        %v4504 = vsel %vm4503, %v4496, %v4500
        %v4505 = vand.u32 2147483647, %v4382
        %vm4506 = vcmp.eq.f32.partialorder %v4505, 8.507059e+37
        %v4507 = vand.u32 %v4382, 2147483648
        %v4508 = vor.u32 1.1754944e-38, %v4507
        %v4509 = vsel %vm4506, %v4508, %v4504
        %v4510 = vmul.f32 1.0, %v4509
        %v4511 = vrcp.pop %v4383
        %v4512 = vmul.f32 %v4383, %v4511
        %v4513 = vsub.f32 1.0, %v4512
        %v4514 = vmul.f32 %v4511, %v4513
        %v4515 = vadd.f32 %v4511, %v4514
        %vm4516 = vweird.f32 %v4383
        %vm4517 = vweird.f32 %v4511
        %vm4518 = vmor %vm4516, %vm4517
        %v4519 = vsel %vm4518, %v4511, %v4515
        %v4520 = vand.u32 2147483647, %v4383
        %vm4521 = vcmp.eq.f32.partialorder %v4520, 8.507059e+37
        %v4522 = vand.u32 %v4383, 2147483648
        %v4523 = vor.u32 1.1754944e-38, %v4522
        %v4524 = vsel %vm4521, %v4523, %v4519
        %v4525 = vmul.f32 1.0, %v4524
        %v4526 = vrcp.pop %v4384
        %v4527 = vmul.f32 %v4384, %v4526
        %v4528 = vsub.f32 1.0, %v4527
        %v4529 = vmul.f32 %v4526, %v4528
        %v4530 = vadd.f32 %v4526, %v4529
        %vm4531 = vweird.f32 %v4384
        %vm4532 = vweird.f32 %v4526
        %vm4533 = vmor %vm4531, %vm4532
        %v4534 = vsel %vm4533, %v4526, %v4530
        %v4535 = vand.u32 2147483647, %v4384
        %vm4536 = vcmp.eq.f32.partialorder %v4535, 8.507059e+37
        %v4537 = vand.u32 %v4384, 2147483648
        %v4538 = vor.u32 1.1754944e-38, %v4537
        %v4539 = vsel %vm4536, %v4538, %v4534
        %v4540 = vmul.f32 1.0, %v4539
        %v4541 = vrcp.pop %v4385
        %v4542 = vmul.f32 %v4385, %v4541
        %v4543 = vsub.f32 1.0, %v4542
        %v4544 = vmul.f32 %v4541, %v4543
        %v4545 = vadd.f32 %v4541, %v4544
        %vm4546 = vweird.f32 %v4385
        %vm4547 = vweird.f32 %v4541
        %vm4548 = vmor %vm4546, %vm4547
        %v4549 = vsel %vm4548, %v4541, %v4545
        %v4550 = vand.u32 2147483647, %v4385
        %vm4551 = vcmp.eq.f32.partialorder %v4550, 8.507059e+37
        %v4552 = vand.u32 %v4385, 2147483648
        %v4553 = vor.u32 1.1754944e-38, %v4552
        %v4554 = vsel %vm4551, %v4553, %v4549
        %v4555 = vmul.f32 1.0, %v4554
        %v4556 = vrcp.pop %v4386
        %v4557 = vmul.f32 %v4386, %v4556
        %v4558 = vsub.f32 1.0, %v4557
        %v4559 = vmul.f32 %v4556, %v4558
        %v4560 = vadd.f32 %v4556, %v4559
        %vm4561 = vweird.f32 %v4386
        %vm4562 = vweird.f32 %v4556
        %vm4563 = vmor %vm4561, %vm4562
        %v4564 = vsel %vm4563, %v4556, %v4560
        %v4565 = vand.u32 2147483647, %v4386
        %vm4566 = vcmp.eq.f32.partialorder %v4565, 8.507059e+37
        %v4567 = vand.u32 %v4386, 2147483648
        %v4568 = vor.u32 1.1754944e-38, %v4567
        %v4569 = vsel %vm4566, %v4568, %v4564
        %v4570 = vmul.f32 1.0, %v4569
        %v4571 = vrcp.pop %v4387
        %v4572 = vmul.f32 %v4387, %v4571
        %v4573 = vsub.f32 1.0, %v4572
        %v4574 = vmul.f32 %v4571, %v4573
        %v4575 = vadd.f32 %v4571, %v4574
        %vm4576 = vweird.f32 %v4387
        %vm4577 = vweird.f32 %v4571
        %vm4578 = vmor %vm4576, %vm4577
        %v4579 = vsel %vm4578, %v4571, %v4575
        %v4580 = vand.u32 2147483647, %v4387
        %vm4581 = vcmp.eq.f32.partialorder %v4580, 8.507059e+37
        %v4582 = vand.u32 %v4387, 2147483648
        %v4583 = vor.u32 1.1754944e-38, %v4582
        %v4584 = vsel %vm4581, %v4583, %v4579
        %v4585 = vmul.f32 1.0, %v4584
        %v4586 = vrcp.pop %v4388
        %v4587 = vmul.f32 %v4388, %v4586
        %v4588 = vsub.f32 1.0, %v4587
        %v4589 = vmul.f32 %v4586, %v4588
        %v4590 = vadd.f32 %v4586, %v4589
        %vm4591 = vweird.f32 %v4388
        %vm4592 = vweird.f32 %v4586
        %vm4593 = vmor %vm4591, %vm4592
        %v4594 = vsel %vm4593, %v4586, %v4590
        %v4595 = vand.u32 2147483647, %v4388
        %vm4596 = vcmp.eq.f32.partialorder %v4595, 8.507059e+37
        %v4597 = vand.u32 %v4388, 2147483648
        %v4598 = vor.u32 1.1754944e-38, %v4597
        %v4599 = vsel %vm4596, %v4598, %v4594
        %v4600 = vmul.f32 1.0, %v4599
        %v4601 = vrcp.pop %v4389
        %v4602 = vmul.f32 %v4389, %v4601
        %v4603 = vsub.f32 1.0, %v4602
        %v4604 = vmul.f32 %v4601, %v4603
        %v4605 = vadd.f32 %v4601, %v4604
        %vm4606 = vweird.f32 %v4389
        %vm4607 = vweird.f32 %v4601
        %vm4608 = vmor %vm4606, %vm4607
        %v4609 = vsel %vm4608, %v4601, %v4605
        %v4610 = vand.u32 2147483647, %v4389
        %vm4611 = vcmp.eq.f32.partialorder %v4610, 8.507059e+37
        %v4612 = vand.u32 %v4389, 2147483648
        %v4613 = vor.u32 1.1754944e-38, %v4612
        %v4614 = vsel %vm4611, %v4613, %v4609
        %v4615 = vmul.f32 1.0, %v4614
        %v4616 = vrcp.pop %v4390
        %v4617 = vmul.f32 %v4390, %v4616
        %v4618 = vsub.f32 1.0, %v4617
        %v4619 = vmul.f32 %v4616, %v4618
        %v4620 = vadd.f32 %v4616, %v4619
        %vm4621 = vweird.f32 %v4390
        %vm4622 = vweird.f32 %v4616
        %vm4623 = vmor %vm4621, %vm4622
        %v4624 = vsel %vm4623, %v4616, %v4620
        %v4625 = vand.u32 2147483647, %v4390
        %vm4626 = vcmp.eq.f32.partialorder %v4625, 8.507059e+37
        %v4627 = vand.u32 %v4390, 2147483648
        %v4628 = vor.u32 1.1754944e-38, %v4627
        %v4629 = vsel %vm4626, %v4628, %v4624
        %v4630 = vmul.f32 1.0, %v4629
        %4632 = vset.pattern.permute.xlu0 0
        %4633 = vperm.xlu0 %4632, %v4405
        %v4634 = vpop.permute.xlu0 %4633
        %4637 = vset.pattern.permute.xlu0 0
        %4638 = vperm.xlu0 %4637, %v4420
        %v4639 = vpop.permute.xlu0 %4638
        %4642 = vset.pattern.permute.xlu0 0
        %4643 = vperm.xlu0 %4642, %v4435
        %v4644 = vpop.permute.xlu0 %4643
        %4647 = vset.pattern.permute.xlu0 0
        %4648 = vperm.xlu0 %4647, %v4450
        %v4649 = vpop.permute.xlu0 %4648
        %4652 = vset.pattern.permute.xlu0 0
        %4653 = vperm.xlu0 %4652, %v4465
        %v4654 = vpop.permute.xlu0 %4653
        %4657 = vset.pattern.permute.xlu0 0
        %4658 = vperm.xlu0 %4657, %v4480
        %v4659 = vpop.permute.xlu0 %4658
        %4662 = vset.pattern.permute.xlu0 0
        %4663 = vperm.xlu0 %4662, %v4495
        %v4664 = vpop.permute.xlu0 %4663
        %4667 = vset.pattern.permute.xlu0 0
        %4668 = vperm.xlu0 %4667, %v4510
        %v4669 = vpop.permute.xlu0 %4668
        %4672 = vset.pattern.permute.xlu0 0
        %4673 = vperm.xlu0 %4672, %v4525
        %v4674 = vpop.permute.xlu0 %4673
        %4677 = vset.pattern.permute.xlu0 0
        %4678 = vperm.xlu0 %4677, %v4540
        %v4679 = vpop.permute.xlu0 %4678
        %4682 = vset.pattern.permute.xlu0 0
        %4683 = vperm.xlu0 %4682, %v4555
        %v4684 = vpop.permute.xlu0 %4683
        %4687 = vset.pattern.permute.xlu0 0
        %4688 = vperm.xlu0 %4687, %v4570
        %v4689 = vpop.permute.xlu0 %4688
        %4692 = vset.pattern.permute.xlu0 0
        %4693 = vperm.xlu0 %4692, %v4585
        %v4694 = vpop.permute.xlu0 %4693
        %4697 = vset.pattern.permute.xlu0 0
        %4698 = vperm.xlu0 %4697, %v4600
        %v4699 = vpop.permute.xlu0 %4698
        %4702 = vset.pattern.permute.xlu0 0
        %4703 = vperm.xlu0 %4702, %v4615
        %v4704 = vpop.permute.xlu0 %4703
        %4707 = vset.pattern.permute.xlu0 0
        %4708 = vperm.xlu0 %4707, %v4630
        %v4709 = vpop.permute.xlu0 %4708
        %v4711 = vmul.f32 %v3983, %v4634
        %v4712 = vmul.f32 %v3984, %v4639
        %v4713 = vmul.f32 %v3985, %v4644
        %v4714 = vmul.f32 %v3986, %v4649
        %v4715 = vmul.f32 %v3987, %v4654
        %v4716 = vmul.f32 %v3988, %v4659
        %v4717 = vmul.f32 %v3989, %v4664
        %v4718 = vmul.f32 %v3990, %v4669
        %v4719 = vmul.f32 %v3991, %v4674
        %v4720 = vmul.f32 %v3992, %v4679
        %v4721 = vmul.f32 %v3993, %v4684
        %v4722 = vmul.f32 %v3994, %v4689
        %v4723 = vmul.f32 %v3995, %v4694
        %v4724 = vmul.f32 %v3996, %v4699
        %v4725 = vmul.f32 %v3997, %v4704
        %v4726 = vmul.f32 %v3998, %v4709
        %v4727 = vadd.f32 %v4711, %v4712
        %v4728 = vadd.f32 %v4727, %v4713
        %v4729 = vadd.f32 %v4728, %v4714
        %v4730 = vadd.f32 %v4729, %v4715
        %v4731 = vadd.f32 %v4730, %v4716
        %v4732 = vadd.f32 %v4731, %v4717
        %v4733 = vadd.f32 %v4732, %v4718
        %v4734 = vadd.f32 %v4733, %v4719
        %v4735 = vadd.f32 %v4734, %v4720
        %v4736 = vadd.f32 %v4735, %v4721
        %v4737 = vadd.f32 %v4736, %v4722
        %v4738 = vadd.f32 %v4737, %v4723
        %v4739 = vadd.f32 %v4738, %v4724
        %v4740 = vadd.f32 %v4739, %v4725
        %v4741 = vadd.f32 %v4740, %v4726
        %v4742 = vrot.slane %v4741, 4
        %v4743 = vadd.f32 %v4741, %v4742
        %v4744 = vrot.slane %v4743, 2
        %v4745 = vadd.f32 %v4743, %v4744
        %v4746 = vrot.slane %v4745, 1
        %v4747 = vadd.f32 %v4745, %v4746
        %v4748 = vrcp.pop 128.0
        %v4749 = vmul.f32 128.0, %v4748
        %v4750 = vsub.f32 1.0, %v4749
        %v4751 = vmul.f32 %v4748, %v4750
        %v4752 = vadd.f32 %v4748, %v4751
        %vm4753 = vweird.f32 %v4748
        %v4754 = vsel %vm4753, %v4748, %v4752
        %v4755 = vmul.f32 %v4747, %v4754
        %v4756 = vmax.f32 %v4711, %v4715
        %v4757 = vmax.f32 %v4712, %v4716
        %v4758 = vmax.f32 %v4713, %v4717
        %v4759 = vmax.f32 %v4714, %v4718
        %v4760 = vmax.f32 %v4756, %v4719
        %v4761 = vmax.f32 %v4757, %v4720
        %v4762 = vmax.f32 %v4758, %v4721
        %v4763 = vmax.f32 %v4759, %v4722
        %v4764 = vmax.f32 %v4760, %v4723
        %v4765 = vmax.f32 %v4761, %v4724
        %v4766 = vmax.f32 %v4762, %v4725
        %v4767 = vmax.f32 %v4763, %v4726
        %v4768 = vmax.f32 %v4764, %v4765
        %v4769 = vmax.f32 %v4766, %v4767
        %v4770 = vmax.f32 %v4768, %v4769
        %v4771 = vrot.slane %v4770, 4
        %v4772 = vmax.f32 %v4770, %v4771
        %v4773 = vrot.slane %v4772, 2
        %v4774 = vmax.f32 %v4772, %v4773
        %v4775 = vrot.slane %v4774, 1
        %v4776 = vmax.f32 %v4774, %v4775
        %s4777 = sld [smem:[#allocation2 + $0xe]]
        %v4778 = vstv %s4777
        %v4779 = vmul.f32 %v4755, %v4778
        %s4780 = sld [smem:[#allocation2 + $0x15]]
        %v4781 = vstv %s4780
        %v4782 = vmul.f32 %v4776, %v4781
        %v4783 = vadd.f32 %v4779, %v4782
        %4784 = vrot.lane.b32.xlu0 %v4783, 3
        %v4785 = vpop.permute.xlu0 %4784
        %v4786 = vadd.f32 %v4785, 0.0
        %s4787 = sld [smem:[#allocation2 + $0xf]]
        %v4788 = vstv %s4787
        %v4789 = vmul.f32 %v4755, %v4788
        %s4790 = sld [smem:[#allocation2 + $0x16]]
        %v4791 = vstv %s4790
        %v4792 = vmul.f32 %v4776, %v4791
        %v4793 = vadd.f32 %v4789, %v4792
        %4794 = vrot.lane.b32.xlu0 %v4793, 2
        %v4795 = vpop.permute.xlu0 %4794
        %v4796 = vadd.f32 %v4786, %v4795
        %s4797 = sld [smem:[#allocation2 + $0x10]]
        %v4798 = vstv %s4797
        %v4799 = vmul.f32 %v4755, %v4798
        %s4800 = sld [smem:[#allocation2 + $0x17]]
        %v4801 = vstv %s4800
        %v4802 = vmul.f32 %v4776, %v4801
        %v4803 = vadd.f32 %v4799, %v4802
        %4804 = vrot.lane.b32.xlu0 %v4803, 1
        %v4805 = vpop.permute.xlu0 %4804
        %v4806 = vadd.f32 %v4796, %v4805
        %s4807 = sld [smem:[#allocation2 + $0x11]]
        %v4808 = vstv %s4807
        %v4809 = vmul.f32 %v4755, %v4808
        %s4810 = sld [smem:[#allocation2 + $0x18]]
        %v4811 = vstv %s4810
        %v4812 = vmul.f32 %v4776, %v4811
        %v4813 = vadd.f32 %v4809, %v4812
        %v4814 = vadd.f32 %v4806, %v4813
        %s4815 = sld [smem:[#allocation2 + $0x12]]
        %v4816 = vstv %s4815
        %v4817 = vmul.f32 %v4755, %v4816
        %s4818 = sld [smem:[#allocation2 + $0x19]]
        %v4819 = vstv %s4818
        %v4820 = vmul.f32 %v4776, %v4819
        %v4821 = vadd.f32 %v4817, %v4820
        %4822 = vrot.lane.b32.xlu0 %v4821, 127
        %v4823 = vpop.permute.xlu0 %4822
        %v4824 = vadd.f32 %v4814, %v4823
        %s4825 = sld [smem:[#allocation2 + $0x13]]
        %v4826 = vstv %s4825
        %v4827 = vmul.f32 %v4755, %v4826
        %s4828 = sld [smem:[#allocation2 + $0x1a]]
        %v4829 = vstv %s4828
        %v4830 = vmul.f32 %v4776, %v4829
        %v4831 = vadd.f32 %v4827, %v4830
        %4832 = vrot.lane.b32.xlu0 %v4831, 126
        %v4833 = vpop.permute.xlu0 %4832
        %v4834 = vadd.f32 %v4824, %v4833
        %s4835 = sld [smem:[#allocation2 + $0x14]]
        %v4836 = vstv %s4835
        %v4837 = vmul.f32 %v4755, %v4836
        %s4838 = sld [smem:[#allocation2 + $0x1b]]
        %v4839 = vstv %s4838
        %v4840 = vmul.f32 %v4776, %v4839
        %v4841 = vadd.f32 %v4837, %v4840
        %4842 = vrot.lane.b32.xlu0 %v4841, 125
        %v4843 = vpop.permute.xlu0 %4842
        %v4844 = vadd.f32 %v4834, %v4843
        %v4845 = vsub.f32 0.0, %v4844
        %v4846 = vmul.f32 %v4845, 1.442695
        %v4847 = vpow.pop %v4846
        %v4848 = vadd.f32 %v4847, 1.0
        %v4849 = vrcp.pop %v4848
        %v4850 = vmul.f32 %v4848, %v4849
        %v4851 = vsub.f32 1.0, %v4850
        %v4852 = vmul.f32 %v4849, %v4851
        %v4853 = vadd.f32 %v4849, %v4852
        %vm4854 = vweird.f32 %v4848
        %vm4855 = vweird.f32 %v4849
        %vm4856 = vmor %vm4854, %vm4855
        %v4857 = vsel %vm4856, %v4849, %v4853
        %v4858 = vand.u32 2147483647, %v4848
        %vm4859 = vcmp.eq.f32.partialorder %v4858, 8.507059e+37
        %v4860 = vand.u32 %v4848, 2147483648
        %v4861 = vor.u32 1.1754944e-38, %v4860
        %v4862 = vsel %vm4859, %v4861, %v4857
        %v4863 = vmul.f32 1.0, %v4862
        %v4864 = vperm.slane %v4863, 0
        %v4865 = vmul.f32 %v4711, %v4864
        %v4866 = vmul.f32 %v4712, %v4864
        %v4867 = vmul.f32 %v4713, %v4864
        %v4868 = vmul.f32 %v4714, %v4864
        %v4869 = vmul.f32 %v4715, %v4864
        %v4870 = vmul.f32 %v4716, %v4864
        %v4871 = vmul.f32 %v4717, %v4864
        %v4872 = vmul.f32 %v4718, %v4864
        %v4873 = vmul.f32 %v4719, %v4864
        %v4874 = vmul.f32 %v4720, %v4864
        %v4875 = vmul.f32 %v4721, %v4864
        %v4876 = vmul.f32 %v4722, %v4864
        %v4877 = vmul.f32 %v4723, %v4864
        %v4878 = vmul.f32 %v4724, %v4864
        %v4879 = vmul.f32 %v4725, %v4864
        %v4880 = vmul.f32 %v4726, %v4864
        %v4881 = vadd.f32 %v4865, %v4866
        %v4882 = vadd.f32 %v4881, %v4867
        %v4883 = vadd.f32 %v4882, %v4868
        %v4884 = vadd.f32 %v4883, %v4869
        %v4885 = vadd.f32 %v4884, %v4870
        %v4886 = vadd.f32 %v4885, %v4871
        %v4887 = vadd.f32 %v4886, %v4872
        %v4888 = vadd.f32 %v4887, %v4873
        %v4889 = vadd.f32 %v4888, %v4874
        %v4890 = vadd.f32 %v4889, %v4875
        %v4891 = vadd.f32 %v4890, %v4876
        %v4892 = vadd.f32 %v4891, %v4877
        %v4893 = vadd.f32 %v4892, %v4878
        %v4894 = vadd.f32 %v4893, %v4879
        %v4895 = vadd.f32 %v4894, %v4880
        %4896 = vadd.xlane.f32.xlu0 %v4895
        %v4897 = vpop.xlane.xlu0 %4896
        %v4898 = vrot.slane %v4897, 4
        %v4899 = vadd.f32 %v4897, %v4898
        %v4900 = vrot.slane %v4899, 2
        %v4901 = vadd.f32 %v4899, %v4900
        %v4902 = vrot.slane %v4901, 1
        %v4903 = vadd.f32 %v4901, %v4902
        %s4904 = vtos %v4903
        %v4905 = vmul.f32 %v4865, %v4865
        %v4906 = vmul.f32 %v4866, %v4866
        %v4907 = vmul.f32 %v4867, %v4867
        %v4908 = vmul.f32 %v4868, %v4868
        %v4909 = vmul.f32 %v4869, %v4869
        %v4910 = vmul.f32 %v4870, %v4870
        %v4911 = vmul.f32 %v4871, %v4871
        %v4912 = vmul.f32 %v4872, %v4872
        %v4913 = vmul.f32 %v4873, %v4873
        %v4914 = vmul.f32 %v4874, %v4874
        %v4915 = vmul.f32 %v4875, %v4875
        %v4916 = vmul.f32 %v4876, %v4876
        %v4917 = vmul.f32 %v4877, %v4877
        %v4918 = vmul.f32 %v4878, %v4878
        %v4919 = vmul.f32 %v4879, %v4879
        %v4920 = vmul.f32 %v4880, %v4880
        %v4921 = vadd.f32 %v4905, %v4906
        %v4922 = vadd.f32 %v4921, %v4907
        %v4923 = vadd.f32 %v4922, %v4908
        %v4924 = vadd.f32 %v4923, %v4909
        %v4925 = vadd.f32 %v4924, %v4910
        %v4926 = vadd.f32 %v4925, %v4911
        %v4927 = vadd.f32 %v4926, %v4912
        %v4928 = vadd.f32 %v4927, %v4913
        %v4929 = vadd.f32 %v4928, %v4914
        %v4930 = vadd.f32 %v4929, %v4915
        %v4931 = vadd.f32 %v4930, %v4916
        %v4932 = vadd.f32 %v4931, %v4917
        %v4933 = vadd.f32 %v4932, %v4918
        %v4934 = vadd.f32 %v4933, %v4919
        %v4935 = vadd.f32 %v4934, %v4920
        %4936 = vadd.xlane.f32.xlu0 %v4935
        %v4937 = vpop.xlane.xlu0 %4936
        %v4938 = vrot.slane %v4937, 4
        %v4939 = vadd.f32 %v4937, %v4938
        %v4940 = vrot.slane %v4939, 2
        %v4941 = vadd.f32 %v4939, %v4940
        %v4942 = vrot.slane %v4941, 1
        %v4943 = vadd.f32 %v4941, %v4942
        %s4944 = vtos %v4943
        %s4945 = smul.f32 %s4904, 0.0009765625
        %s4946 = smul.f32 %s4904, %s4945
        %s4947 = ssub.f32 %s4944, %s4946
        %v4948 = vrcp.pop 1023.0
        %v4949 = vmul.f32 1023.0, %v4948
        %v4950 = vsub.f32 1.0, %v4949
        %v4951 = vmul.f32 %v4948, %v4950
        %v4952 = vadd.f32 %v4948, %v4951
        %vm4953 = vweird.f32 %v4948
        %v4954 = vsel %vm4953, %v4948, %v4952
        %s4955 = vtos %v4954
        %s4956 = smul.f32 %s4947, %s4955
        %s4957 = smax.f32 %s4956, 0.0
        %v4958 = vstv %s4957
        %v4959 = vrsqrt.pop %v4958
        %v4960 = vmul.f32 %v4959, %v4958
        %v4961 = vmul.f32 %v4960, %v4959
        %v4962 = vmul.f32 0.5, %v4961
        %v4963 = vsub.f32 1.5, %v4962
        %v4964 = vmul.f32 %v4959, %v4963
        %v4965 = vmul.f32 %v4958, %v4964
        %vm4966 = vcmp.eq.f32.partialorder %v4958, inf
        %v4967 = vsel %vm4966, %v4958, %v4965
        %vm4968 = vcmp.eq.f32.partialorder %v4958, 0.0
        %v4969 = vand.u32 %v4958, 2147483648
        %v4970 = vsel %vm4968, %v4969, %v4967
        %s4971 = vtos %v4970
        %s4972 = sadd.f32 %s4971, 1e-05
        %v4973 = vstv %s4972
        %v4974 = vrcp.pop %v4973
        %v4975 = vmul.f32 %v4973, %v4974
        %v4976 = vsub.f32 1.0, %v4975
        %v4977 = vmul.f32 %v4974, %v4976
        %v4978 = vadd.f32 %v4974, %v4977
        %vm4979 = vweird.f32 %v4973
        %vm4980 = vweird.f32 %v4974
        %vm4981 = vmor %vm4979, %vm4980
        %v4982 = vsel %vm4981, %v4974, %v4978
        %v4983 = vand.u32 2147483647, %v4973
        %vm4984 = vcmp.eq.f32.partialorder %v4983, 8.507059e+37
        %v4985 = vand.u32 %v4973, 2147483648
        %v4986 = vor.u32 1.1754944e-38, %v4985
        %v4987 = vsel %vm4984, %v4986, %v4982
        %s4988 = vtos %v4987
        %v4989 = vstv %s4945
        %v4990 = vsub.f32 %v4865, %v4989
        %v4991 = vsub.f32 %v4866, %v4989
        %v4992 = vsub.f32 %v4867, %v4989
        %v4993 = vsub.f32 %v4868, %v4989
        %v4994 = vsub.f32 %v4869, %v4989
        %v4995 = vsub.f32 %v4870, %v4989
        %v4996 = vsub.f32 %v4871, %v4989
        %v4997 = vsub.f32 %v4872, %v4989
        %v4998 = vsub.f32 %v4873, %v4989
        %v4999 = vsub.f32 %v4874, %v4989
        %v5000 = vsub.f32 %v4875, %v4989
        %v5001 = vsub.f32 %v4876, %v4989
        %v5002 = vsub.f32 %v4877, %v4989
        %v5003 = vsub.f32 %v4878, %v4989
        %v5004 = vsub.f32 %v4879, %v4989
        %v5005 = vsub.f32 %v4880, %v4989
        %v5006 = vstv %s4988
        %v5007 = vmul.f32 %v4990, %v5006
        %v5008 = vmul.f32 %v4991, %v5006
        %v5009 = vmul.f32 %v4992, %v5006
        %v5010 = vmul.f32 %v4993, %v5006
        %v5011 = vmul.f32 %v4994, %v5006
        %v5012 = vmul.f32 %v4995, %v5006
        %v5013 = vmul.f32 %v4996, %v5006
        %v5014 = vmul.f32 %v4997, %v5006
        %v5015 = vmul.f32 %v4998, %v5006
        %v5016 = vmul.f32 %v4999, %v5006
        %v5017 = vmul.f32 %v5000, %v5006
        %v5018 = vmul.f32 %v5001, %v5006
        %v5019 = vmul.f32 %v5002, %v5006
        %v5020 = vmul.f32 %v5003, %v5006
        %v5021 = vmul.f32 %v5004, %v5006
        %v5022 = vmul.f32 %v5005, %v5006
        %vm5023 = vcmp.gt.f32.partialorder %v5007, 0.0
        %vm5024 = vcmp.gt.f32.partialorder %v5008, 0.0
        %vm5025 = vcmp.gt.f32.partialorder %v5009, 0.0
        %vm5026 = vcmp.gt.f32.partialorder %v5010, 0.0
        %vm5027 = vcmp.gt.f32.partialorder %v5011, 0.0
        %vm5028 = vcmp.gt.f32.partialorder %v5012, 0.0
        %vm5029 = vcmp.gt.f32.partialorder %v5013, 0.0
        %vm5030 = vcmp.gt.f32.partialorder %v5014, 0.0
        %vm5031 = vcmp.gt.f32.partialorder %v5015, 0.0
        %vm5032 = vcmp.gt.f32.partialorder %v5016, 0.0
        %vm5033 = vcmp.gt.f32.partialorder %v5017, 0.0
        %vm5034 = vcmp.gt.f32.partialorder %v5018, 0.0
        %vm5035 = vcmp.gt.f32.partialorder %v5019, 0.0
        %vm5036 = vcmp.gt.f32.partialorder %v5020, 0.0
        %vm5037 = vcmp.gt.f32.partialorder %v5021, 0.0
        %vm5038 = vcmp.gt.f32.partialorder %v5022, 0.0
        %v5039 = vmul.f32 %v5007, 0.01
        %v5040 = vmul.f32 %v5008, 0.01
        %v5041 = vmul.f32 %v5009, 0.01
        %v5042 = vmul.f32 %v5010, 0.01
        %v5043 = vmul.f32 %v5011, 0.01
        %v5044 = vmul.f32 %v5012, 0.01
        %v5045 = vmul.f32 %v5013, 0.01
        %v5046 = vmul.f32 %v5014, 0.01
        %v5047 = vmul.f32 %v5015, 0.01
        %v5048 = vmul.f32 %v5016, 0.01
        %v5049 = vmul.f32 %v5017, 0.01
        %v5050 = vmul.f32 %v5018, 0.01
        %v5051 = vmul.f32 %v5019, 0.01
        %v5052 = vmul.f32 %v5020, 0.01
        %v5053 = vmul.f32 %v5021, 0.01
        %v5054 = vmul.f32 %v5022, 0.01
        %v5055 = vsel %vm5023, %v5007, %v5039
        %v5056 = vsel %vm5024, %v5008, %v5040
        %v5057 = vsel %vm5025, %v5009, %v5041
        %v5058 = vsel %vm5026, %v5010, %v5042
        %v5059 = vsel %vm5027, %v5011, %v5043
        %v5060 = vsel %vm5028, %v5012, %v5044
        %v5061 = vsel %vm5029, %v5013, %v5045
        %v5062 = vsel %vm5030, %v5014, %v5046
        %v5063 = vsel %vm5031, %v5015, %v5047
        %v5064 = vsel %vm5032, %v5016, %v5048
        %v5065 = vsel %vm5033, %v5017, %v5049
        %v5066 = vsel %vm5034, %v5018, %v5050
        %v5067 = vsel %vm5035, %v5019, %v5051
        %v5068 = vsel %vm5036, %v5020, %v5052
        %v5069 = vsel %vm5037, %v5021, %v5053
        %v5070 = vsel %vm5038, %v5022, %v5054
        %v5071 = vld [vmem:[%s12] sm:$0xff]
        %v5072 = vld [vmem:[%s12 + $0x8] sm:$0xff]
        %v5073 = vld [vmem:[%s12 + $0x10] sm:$0xff]
        %v5074 = vld [vmem:[%s12 + $0x18] sm:$0xff]
        %v5075 = vld [vmem:[%s12 + $0x20] sm:$0xff]
        %v5076 = vld [vmem:[%s12 + $0x28] sm:$0xff]
        %v5077 = vld [vmem:[%s12 + $0x30] sm:$0xff]
        %v5078 = vld [vmem:[%s12 + $0x38] sm:$0xff]
        %v5079 = vld [vmem:[%s12 + $0x40] sm:$0xff]
        %v5080 = vld [vmem:[%s12 + $0x48] sm:$0xff]
        %v5081 = vld [vmem:[%s12 + $0x50] sm:$0xff]
        %v5082 = vld [vmem:[%s12 + $0x58] sm:$0xff]
        %v5083 = vld [vmem:[%s12 + $0x60] sm:$0xff]
        %v5084 = vld [vmem:[%s12 + $0x68] sm:$0xff]
        %v5085 = vld [vmem:[%s12 + $0x70] sm:$0xff]
        %v5086 = vld [vmem:[%s12 + $0x78] sm:$0xff]
        %v5087 = vld [vmem:[%s12 + $0x80] sm:$0xff]
        %v5088 = vld [vmem:[%s12 + $0x88] sm:$0xff]
        %v5089 = vld [vmem:[%s12 + $0x90] sm:$0xff]
        %v5090 = vld [vmem:[%s12 + $0x98] sm:$0xff]
        %v5091 = vld [vmem:[%s12 + $0xa0] sm:$0xff]
        %v5092 = vld [vmem:[%s12 + $0xa8] sm:$0xff]
        %v5093 = vld [vmem:[%s12 + $0xb0] sm:$0xff]
        %v5094 = vld [vmem:[%s12 + $0xb8] sm:$0xff]
        %5095 = vmatpush.msra.mxu0 %v5070
        %5096 = vmatpush.msra.mxu0 %v5069
        %5097 = vmatpush.msra.mxu0 %v5068
        %5098 = vmatpush.msra.mxu0 %v5067
        %5099 = vmatpush.msra.mxu0 %v5066
        %5100 = vmatpush.msra.mxu0 %v5065
        %5101 = vmatpush.msra.mxu0 %v5064
        %5102 = vmatpush.msra.mxu0 %v5063
        %5103 = vmatpush.msra.mxu0 %v5062
        %5104 = vmatpush.msra.mxu0 %v5061
        %5105 = vmatpush.msra.mxu0 %v5060
        %5106 = vmatpush.msra.mxu0 %v5059
        %5107 = vmatpush.msra.mxu0 %v5058
        %5108 = vmatpush.msra.mxu0 %v5057
        %5109 = vmatpush.msra.mxu0 %v5056
        %5110 = vmatpush.msra.mxu0 %v5055
        %5111 = vmatmul.f32.gmra.mxu0 %v5071
        %v5112 = vpop.f32.mrf.mxu0
        %v5113 = vadd.f32 0.0, %v5112
        %5114 = vmatmul.f32.gmra.mxu0 %v5072
        %v5115 = vpop.f32.mrf.mxu0
        %v5116 = vadd.f32 0.0, %v5115
        %5117 = vmatmul.f32.gmra.mxu0 %v5073
        %v5118 = vpop.f32.mrf.mxu0
        %v5119 = vadd.f32 0.0, %v5118
        %5120 = vmatmul.f32.gmra.mxu0 %v5074
        %v5121 = vpop.f32.mrf.mxu0
        %v5122 = vadd.f32 0.0, %v5121
        %5123 = vmatmul.f32.gmra.mxu0 %v5075
        %v5124 = vpop.f32.mrf.mxu0
        %v5125 = vadd.f32 0.0, %v5124
        %5126 = vmatmul.f32.gmra.mxu0 %v5076
        %v5127 = vpop.f32.mrf.mxu0
        %v5128 = vadd.f32 0.0, %v5127
        %5129 = vmatmul.f32.gmra.mxu0 %v5077
        %v5130 = vpop.f32.mrf.mxu0
        %v5131 = vadd.f32 0.0, %v5130
        %5132 = vmatmul.f32.gmra.mxu0 %v5078
        %v5133 = vpop.f32.mrf.mxu0
        %v5134 = vadd.f32 0.0, %v5133
        %5135 = vmatmul.f32.gmra.mxu0 %v5079
        %v5136 = vpop.f32.mrf.mxu0
        %v5137 = vadd.f32 0.0, %v5136
        %5138 = vmatmul.f32.gmra.mxu0 %v5080
        %v5139 = vpop.f32.mrf.mxu0
        %v5140 = vadd.f32 0.0, %v5139
        %5141 = vmatmul.f32.gmra.mxu0 %v5081
        %v5142 = vpop.f32.mrf.mxu0
        %v5143 = vadd.f32 0.0, %v5142
        %5144 = vmatmul.f32.gmra.mxu0 %v5082
        %v5145 = vpop.f32.mrf.mxu0
        %v5146 = vadd.f32 0.0, %v5145
        %5147 = vmatmul.f32.gmra.mxu0 %v5083
        %v5148 = vpop.f32.mrf.mxu0
        %v5149 = vadd.f32 0.0, %v5148
        %5150 = vmatmul.f32.gmra.mxu0 %v5084
        %v5151 = vpop.f32.mrf.mxu0
        %v5152 = vadd.f32 0.0, %v5151
        %5153 = vmatmul.f32.gmra.mxu0 %v5085
        %v5154 = vpop.f32.mrf.mxu0
        %v5155 = vadd.f32 0.0, %v5154
        %5156 = vmatmul.f32.gmra.mxu0 %v5086
        %v5157 = vpop.f32.mrf.mxu0
        %v5158 = vadd.f32 0.0, %v5157
        %5159 = vmatmul.f32.gmra.mxu0 %v5087
        %v5160 = vpop.f32.mrf.mxu0
        %v5161 = vadd.f32 0.0, %v5160
        %5162 = vmatmul.f32.gmra.mxu0 %v5088
        %v5163 = vpop.f32.mrf.mxu0
        %v5164 = vadd.f32 0.0, %v5163
        %5165 = vmatmul.f32.gmra.mxu0 %v5089
        %v5166 = vpop.f32.mrf.mxu0
        %v5167 = vadd.f32 0.0, %v5166
        %5168 = vmatmul.f32.gmra.mxu0 %v5090
        %v5169 = vpop.f32.mrf.mxu0
        %v5170 = vadd.f32 0.0, %v5169
        %5171 = vmatmul.f32.gmra.mxu0 %v5091
        %v5172 = vpop.f32.mrf.mxu0
        %v5173 = vadd.f32 0.0, %v5172
        %5174 = vmatmul.f32.gmra.mxu0 %v5092
        %v5175 = vpop.f32.mrf.mxu0
        %v5176 = vadd.f32 0.0, %v5175
        %5177 = vmatmul.f32.gmra.mxu0 %v5093
        %v5178 = vpop.f32.mrf.mxu0
        %v5179 = vadd.f32 0.0, %v5178
        %5180 = vmatmul.f32.gmra.mxu0 %v5094
        %v5181 = vpop.f32.mrf.mxu0
        %v5182 = vadd.f32 0.0, %v5181
        %5183 = vdwg.mxu0
        %v5184 = vpack.c.bf16 %v5140, %v5137
        %v5185 = vpack.c.bf16 %v5146, %v5143
        %v5186 = vpack.c.bf16 %v5152, %v5149
        %v5187 = vpack.c.bf16 %v5158, %v5155
        %v5188 = vpack.c.bf16 %v5164, %v5161
        %v5189 = vpack.c.bf16 %v5170, %v5167
        %v5190 = vpack.c.bf16 %v5176, %v5173
        %v5191 = vpack.c.bf16 %v5182, %v5179
        %v5192 = vmul.f32 %v5113, %v725
        %v5193 = vmul.f32 %v5116, %v725
        %v5194 = vmul.f32 %v5119, %v725
        %v5195 = vmul.f32 %v5122, %v725
        %v5196 = vmul.f32 %v5125, %v725
        %v5197 = vmul.f32 %v5128, %v725
        %v5198 = vmul.f32 %v5131, %v725
        %v5199 = vmul.f32 %v5134, %v725
        %5201 = vset.pattern.permute.xlu0 0
        %5202 = vperm.xlu0 %5201, %v5113
        %v5203 = vpop.permute.xlu0 %5202
        %5206 = vset.pattern.permute.xlu0 0
        %5207 = vperm.xlu0 %5206, %v5116
        %v5208 = vpop.permute.xlu0 %5207
        %5211 = vset.pattern.permute.xlu0 0
        %5212 = vperm.xlu0 %5211, %v5119
        %v5213 = vpop.permute.xlu0 %5212
        %5216 = vset.pattern.permute.xlu0 0
        %5217 = vperm.xlu0 %5216, %v5122
        %v5218 = vpop.permute.xlu0 %5217
        %5221 = vset.pattern.permute.xlu0 0
        %5222 = vperm.xlu0 %5221, %v5125
        %v5223 = vpop.permute.xlu0 %5222
        %5226 = vset.pattern.permute.xlu0 0
        %5227 = vperm.xlu0 %5226, %v5128
        %v5228 = vpop.permute.xlu0 %5227
        %5231 = vset.pattern.permute.xlu0 0
        %5232 = vperm.xlu0 %5231, %v5131
        %v5233 = vpop.permute.xlu0 %5232
        %5236 = vset.pattern.permute.xlu0 0
        %5237 = vperm.xlu0 %5236, %v5134
        %v5238 = vpop.permute.xlu0 %5237
        %v5240 = vmul.f32 %v5203, %v738
        %v5241 = vmul.f32 %v5208, %v738
        %v5242 = vmul.f32 %v5213, %v738
        %v5243 = vmul.f32 %v5218, %v738
        %v5244 = vmul.f32 %v5223, %v738
        %v5245 = vmul.f32 %v5228, %v738
        %v5246 = vmul.f32 %v5233, %v738
        %v5247 = vmul.f32 %v5238, %v738
        %v5248 = vadd.f32 %v5192, %v5240
        %v5249 = vadd.f32 %v5193, %v5241
        %v5250 = vadd.f32 %v5194, %v5242
        %v5251 = vadd.f32 %v5195, %v5243
        %v5252 = vadd.f32 %v5196, %v5244
        %v5253 = vadd.f32 %v5197, %v5245
        %v5254 = vadd.f32 %v5198, %v5246
        %v5255 = vadd.f32 %v5199, %v5247
        %5256 = vmatpush.bf16.msra.mxu0 %v679
        %5257 = vmatpush.bf16.msra.mxu0 %v677
        %5258 = vmatpush.bf16.msra.mxu0 %v675
        %5259 = vmatpush.bf16.msra.mxu0 %v673
        %5260 = vmatpush.bf16.msra.mxu0 %v671
        %5261 = vmatpush.bf16.msra.mxu0 %v669
        %5262 = vmatpush.bf16.msra.mxu0 %v667
        %5263 = vmatpush.bf16.msra.mxu0 %v665
        %5264 = vmatmul.bf16.gmra.mxu0 %v5184
        %v5265 = vpop.f32.mrf.mxu0
        %v5266 = vadd.f32 0.0, %v5265
        %v5267 = vpop.f32.mrf.mxu0
        %v5268 = vadd.f32 0.0, %v5267
        %5269 = vmatmul.bf16.gmra.mxu0 %v5185
        %v5270 = vpop.f32.mrf.mxu0
        %v5271 = vadd.f32 0.0, %v5270
        %v5272 = vpop.f32.mrf.mxu0
        %v5273 = vadd.f32 0.0, %v5272
        %5274 = vmatmul.bf16.gmra.mxu0 %v5186
        %v5275 = vpop.f32.mrf.mxu0
        %v5276 = vadd.f32 0.0, %v5275
        %v5277 = vpop.f32.mrf.mxu0
        %v5278 = vadd.f32 0.0, %v5277
        %5279 = vmatmul.bf16.gmra.mxu0 %v5187
        %v5280 = vpop.f32.mrf.mxu0
        %v5281 = vadd.f32 0.0, %v5280
        %v5282 = vpop.f32.mrf.mxu0
        %v5283 = vadd.f32 0.0, %v5282
        %5284 = vdwg.mxu0
        %v5285 = vadd.f32 %v5248, %v5266
        %v5286 = vadd.f32 %v5249, %v5268
        %v5287 = vadd.f32 %v5250, %v5271
        %v5288 = vadd.f32 %v5251, %v5273
        %v5289 = vadd.f32 %v5252, %v5276
        %v5290 = vadd.f32 %v5253, %v5278
        %v5291 = vadd.f32 %v5254, %v5281
        %v5292 = vadd.f32 %v5255, %v5283
        %5293 = vmatpush.bf16.msra.mxu0 %v680
        %5294 = vmatpush.bf16.msra.mxu0 %v678
        %5295 = vmatpush.bf16.msra.mxu0 %v676
        %5296 = vmatpush.bf16.msra.mxu0 %v674
        %5297 = vmatpush.bf16.msra.mxu0 %v672
        %5298 = vmatpush.bf16.msra.mxu0 %v670
        %5299 = vmatpush.bf16.msra.mxu0 %v668
        %5300 = vmatpush.bf16.msra.mxu0 %v666
        %5301 = vmatmul.bf16.gmra.mxu0 %v5188
        %v5302 = vpop.f32.mrf.mxu0
        %v5303 = vadd.f32 0.0, %v5302
        %v5304 = vpop.f32.mrf.mxu0
        %v5305 = vadd.f32 0.0, %v5304
        %5306 = vmatmul.bf16.gmra.mxu0 %v5189
        %v5307 = vpop.f32.mrf.mxu0
        %v5308 = vadd.f32 0.0, %v5307
        %v5309 = vpop.f32.mrf.mxu0
        %v5310 = vadd.f32 0.0, %v5309
        %5311 = vmatmul.bf16.gmra.mxu0 %v5190
        %v5312 = vpop.f32.mrf.mxu0
        %v5313 = vadd.f32 0.0, %v5312
        %v5314 = vpop.f32.mrf.mxu0
        %v5315 = vadd.f32 0.0, %v5314
        %5316 = vmatmul.bf16.gmra.mxu0 %v5191
        %v5317 = vpop.f32.mrf.mxu0
        %v5318 = vadd.f32 0.0, %v5317
        %v5319 = vpop.f32.mrf.mxu0
        %v5320 = vadd.f32 0.0, %v5319
        %5321 = vdwg.mxu0
        %v5322 = vadd.f32 %v5285, %v5303
        %v5323 = vadd.f32 %v5286, %v5305
        %v5324 = vadd.f32 %v5287, %v5308
        %v5325 = vadd.f32 %v5288, %v5310
        %v5326 = vadd.f32 %v5289, %v5313
        %v5327 = vadd.f32 %v5290, %v5315
        %v5328 = vadd.f32 %v5291, %v5318
        %v5329 = vadd.f32 %v5292, %v5320
        %v5330 = vld [vmem:[%s13] sm:$0xff]
        %v5331 = vld [vmem:[%s13 + $0x8] sm:$0xff]
        %v5332 = vld [vmem:[%s13 + $0x10] sm:$0xff]
        %v5333 = vld [vmem:[%s13 + $0x18] sm:$0xff]
        %v5334 = vld [vmem:[%s13 + $0x20] sm:$0xff]
        %v5335 = vld [vmem:[%s13 + $0x28] sm:$0xff]
        %v5336 = vld [vmem:[%s13 + $0x30] sm:$0xff]
        %v5337 = vld [vmem:[%s13 + $0x38] sm:$0xff]
        %5339 = vset.pattern.permute.xlu0 0
        %5340 = vperm.xlu0 %5339, %v5330
        %v5341 = vpop.permute.xlu0 %5340
        %5344 = vset.pattern.permute.xlu0 0
        %5345 = vperm.xlu0 %5344, %v5331
        %v5346 = vpop.permute.xlu0 %5345
        %5349 = vset.pattern.permute.xlu0 0
        %5350 = vperm.xlu0 %5349, %v5332
        %v5351 = vpop.permute.xlu0 %5350
        %5354 = vset.pattern.permute.xlu0 0
        %5355 = vperm.xlu0 %5354, %v5333
        %v5356 = vpop.permute.xlu0 %5355
        %5359 = vset.pattern.permute.xlu0 0
        %5360 = vperm.xlu0 %5359, %v5334
        %v5361 = vpop.permute.xlu0 %5360
        %5364 = vset.pattern.permute.xlu0 0
        %5365 = vperm.xlu0 %5364, %v5335
        %v5366 = vpop.permute.xlu0 %5365
        %5369 = vset.pattern.permute.xlu0 0
        %5370 = vperm.xlu0 %5369, %v5336
        %v5371 = vpop.permute.xlu0 %5370
        %5374 = vset.pattern.permute.xlu0 0
        %5375 = vperm.xlu0 %5374, %v5337
        %v5376 = vpop.permute.xlu0 %5375
        %v5378 = vmul.f32 %v5341, %v967
        %v5379 = vmul.f32 %v5346, %v967
        %v5380 = vmul.f32 %v5351, %v967
        %v5381 = vmul.f32 %v5356, %v967
        %v5382 = vmul.f32 %v5361, %v967
        %v5383 = vmul.f32 %v5366, %v967
        %v5384 = vmul.f32 %v5371, %v967
        %v5385 = vmul.f32 %v5376, %v967
        %v5386 = vadd.f32 %v5322, %v5378
        %v5387 = vadd.f32 %v5323, %v5379
        %v5388 = vadd.f32 %v5324, %v5380
        %v5389 = vadd.f32 %v5325, %v5381
        %v5390 = vadd.f32 %v5326, %v5382
        %v5391 = vadd.f32 %v5327, %v5383
        %v5392 = vadd.f32 %v5328, %v5384
        %v5393 = vadd.f32 %v5329, %v5385
        %5394 = vadd.xlane.f32.xlu0 %v5386
        %v5395 = vpop.xlane.xlu0 %5394
        %5396 = vadd.xlane.f32.xlu0 %v5387
        %v5397 = vpop.xlane.xlu0 %5396
        %5398 = vadd.xlane.f32.xlu0 %v5388
        %v5399 = vpop.xlane.xlu0 %5398
        %5400 = vadd.xlane.f32.xlu0 %v5389
        %v5401 = vpop.xlane.xlu0 %5400
        %5402 = vadd.xlane.f32.xlu0 %v5390
        %v5403 = vpop.xlane.xlu0 %5402
        %5404 = vadd.xlane.f32.xlu0 %v5391
        %v5405 = vpop.xlane.xlu0 %5404
        %5406 = vadd.xlane.f32.xlu0 %v5392
        %v5407 = vpop.xlane.xlu0 %5406
        %5408 = vadd.xlane.f32.xlu0 %v5393
        %v5409 = vpop.xlane.xlu0 %5408
        %v5410 = vmul.f32 %v5395, 0.125
        %v5411 = vmul.f32 %v5397, 0.125
        %v5412 = vmul.f32 %v5399, 0.125
        %v5413 = vmul.f32 %v5401, 0.125
        %v5414 = vmul.f32 %v5403, 0.125
        %v5415 = vmul.f32 %v5405, 0.125
        %v5416 = vmul.f32 %v5407, 0.125
        %v5417 = vmul.f32 %v5409, 0.125
        %5418 = vmax.xlane.f32.xlu0 %v5386
        %v5419 = vpop.xlane.xlu0 %5418
        %5420 = vmax.xlane.f32.xlu0 %v5387
        %v5421 = vpop.xlane.xlu0 %5420
        %5422 = vmax.xlane.f32.xlu0 %v5388
        %v5423 = vpop.xlane.xlu0 %5422
        %5424 = vmax.xlane.f32.xlu0 %v5389
        %v5425 = vpop.xlane.xlu0 %5424
        %5426 = vmax.xlane.f32.xlu0 %v5390
        %v5427 = vpop.xlane.xlu0 %5426
        %5428 = vmax.xlane.f32.xlu0 %v5391
        %v5429 = vpop.xlane.xlu0 %5428
        %5430 = vmax.xlane.f32.xlu0 %v5392
        %v5431 = vpop.xlane.xlu0 %5430
        %5432 = vmax.xlane.f32.xlu0 %v5393
        %v5433 = vpop.xlane.xlu0 %5432
        %v5434 = vsel %vm1372, %v5410, %v5419
        %v5435 = vsel %vm1372, %v5411, %v5421
        %v5436 = vsel %vm1372, %v5412, %v5423
        %v5437 = vsel %vm1372, %v5413, %v5425
        %v5438 = vsel %vm1372, %v5414, %v5427
        %v5439 = vsel %vm1372, %v5415, %v5429
        %v5440 = vsel %vm1372, %v5416, %v5431
        %v5441 = vsel %vm1372, %v5417, %v5433
        %v5442 = vld [vmem:[%s14] sm:$0xf]
        %vm5443 = vcmask 523264
        %v5445 = vsel %vm5443, %v5442, 0
        %5447 = vmatpush.msra.mxu0 0.0
        %5448 = vmatpush.msra.mxu0 0.0
        %5449 = vmatpush.msra.mxu0 0.0
        %5450 = vmatpush.msra.mxu0 0.0
        %5451 = vmatpush.msra.mxu0 0.0
        %5452 = vmatpush.msra.mxu0 0.0
        %5453 = vmatpush.msra.mxu0 0.0
        %5454 = vmatpush.msra.mxu0 0.0
        %5455 = vmatpush.msra.mxu0 %v5441
        %5456 = vmatpush.msra.mxu0 %v5440
        %5457 = vmatpush.msra.mxu0 %v5439
        %5458 = vmatpush.msra.mxu0 %v5438
        %5459 = vmatpush.msra.mxu0 %v5437
        %5460 = vmatpush.msra.mxu0 %v5436
        %5461 = vmatpush.msra.mxu0 %v5435
        %5462 = vmatpush.msra.mxu0 %v5434
        %5463 = vmatmul.f32.gmra.mxu0 %v5445
        %v5464 = vpop.f32.mrf.mxu0
        %v5465 = vadd.f32 0.0, %v5464
        %5466 = vdwg.mxu0
        %v5467 = vmax.f32 %v5465, 0.0
        %v5468 = vld [vmem:[%s15] sm:$0xff]
        %v5469 = vld [vmem:[%s15 + $0x8] sm:$0xff]
        %v5470 = vld [vmem:[%s15 + $0x10] sm:$0xff]
        %v5471 = vld [vmem:[%s15 + $0x18] sm:$0xff]
        %v5472 = vld [vmem:[%s15 + $0x20] sm:$0xff]
        %v5473 = vld [vmem:[%s15 + $0x28] sm:$0xff]
        %v5474 = vld [vmem:[%s15 + $0x30] sm:$0xff]
        %v5475 = vld [vmem:[%s15 + $0x38] sm:$0xff]
        %vm5476 = vcmask 31744
        %v5478 = vsel %vm5476, %v5468, 0
        %v5481 = vsel %vm5476, %v5469, 0
        %v5484 = vsel %vm5476, %v5470, 0
        %v5487 = vsel %vm5476, %v5471, 0
        %v5490 = vsel %vm5476, %v5472, 0
        %v5493 = vsel %vm5476, %v5473, 0
        %v5496 = vsel %vm5476, %v5474, 0
        %v5499 = vsel %vm5476, %v5475, 0
        %vm5501 = vcmask 1043456
        %v5503 = vsel %vm5501, %v5467, 0
        %5505 = vmatpush.msra.mxu0 0.0
        %5506 = vmatpush.msra.mxu0 0.0
        %5507 = vmatpush.msra.mxu0 0.0
        %5508 = vmatpush.msra.mxu0 0.0
        %5509 = vmatpush.msra.mxu0 0.0
        %5510 = vmatpush.msra.mxu0 0.0
        %5511 = vmatpush.msra.mxu0 0.0
        %5512 = vmatpush.msra.mxu0 0.0
        %5513 = vmatpush.msra.mxu0 0.0
        %5514 = vmatpush.msra.mxu0 0.0
        %5515 = vmatpush.msra.mxu0 0.0
        %5516 = vmatpush.msra.mxu0 0.0
        %5517 = vmatpush.msra.mxu0 0.0
        %5518 = vmatpush.msra.mxu0 0.0
        %5519 = vmatpush.msra.mxu0 0.0
        %5520 = vmatpush.msra.mxu0 %v5503
        %5521 = vmatmul.f32.gmra.mxu0 %v5478
        %v5522 = vpop.f32.mrf.mxu0
        %v5523 = vadd.f32 0.0, %v5522
        %5524 = vmatmul.f32.gmra.mxu0 %v5481
        %v5525 = vpop.f32.mrf.mxu0
        %v5526 = vadd.f32 0.0, %v5525
        %5527 = vmatmul.f32.gmra.mxu0 %v5484
        %v5528 = vpop.f32.mrf.mxu0
        %v5529 = vadd.f32 0.0, %v5528
        %5530 = vmatmul.f32.gmra.mxu0 %v5487
        %v5531 = vpop.f32.mrf.mxu0
        %v5532 = vadd.f32 0.0, %v5531
        %5533 = vmatmul.f32.gmra.mxu0 %v5490
        %v5534 = vpop.f32.mrf.mxu0
        %v5535 = vadd.f32 0.0, %v5534
        %5536 = vmatmul.f32.gmra.mxu0 %v5493
        %v5537 = vpop.f32.mrf.mxu0
        %v5538 = vadd.f32 0.0, %v5537
        %5539 = vmatmul.f32.gmra.mxu0 %v5496
        %v5540 = vpop.f32.mrf.mxu0
        %v5541 = vadd.f32 0.0, %v5540
        %5542 = vmatmul.f32.gmra.mxu0 %v5499
        %v5543 = vpop.f32.mrf.mxu0
        %v5544 = vadd.f32 0.0, %v5543
        %5545 = vdwg.mxu0
        %5554 = vrot.lane.b32.xlu0 %v5523, 127
        %v5555 = vpop.permute.xlu0 %5554
        %5556 = vrot.lane.b32.xlu0 %v5526, 127
        %v5557 = vpop.permute.xlu0 %5556
        %5558 = vrot.lane.b32.xlu0 %v5529, 127
        %v5559 = vpop.permute.xlu0 %5558
        %5560 = vrot.lane.b32.xlu0 %v5532, 127
        %v5561 = vpop.permute.xlu0 %5560
        %5562 = vrot.lane.b32.xlu0 %v5535, 127
        %v5563 = vpop.permute.xlu0 %5562
        %5564 = vrot.lane.b32.xlu0 %v5538, 127
        %v5565 = vpop.permute.xlu0 %5564
        %5566 = vrot.lane.b32.xlu0 %v5541, 127
        %v5567 = vpop.permute.xlu0 %5566
        %5568 = vrot.lane.b32.xlu0 %v5544, 127
        %v5569 = vpop.permute.xlu0 %5568
        %v5578 = vadd.f32 %v5523, %v5555
        %v5579 = vadd.f32 %v5526, %v5557
        %v5580 = vadd.f32 %v5529, %v5559
        %v5581 = vadd.f32 %v5532, %v5561
        %v5582 = vadd.f32 %v5535, %v5563
        %v5583 = vadd.f32 %v5538, %v5565
        %v5584 = vadd.f32 %v5541, %v5567
        %v5585 = vadd.f32 %v5544, %v5569
        %v5586 = vsub.f32 0.0, %v5578
        %v5587 = vsub.f32 0.0, %v5579
        %v5588 = vsub.f32 0.0, %v5580
        %v5589 = vsub.f32 0.0, %v5581
        %v5590 = vsub.f32 0.0, %v5582
        %v5591 = vsub.f32 0.0, %v5583
        %v5592 = vsub.f32 0.0, %v5584
        %v5593 = vsub.f32 0.0, %v5585
        %v5594 = vmul.f32 %v5586, 1.442695
        %v5595 = vpow.pop %v5594
        %v5596 = vmul.f32 %v5587, 1.442695
        %v5597 = vpow.pop %v5596
        %v5598 = vmul.f32 %v5588, 1.442695
        %v5599 = vpow.pop %v5598
        %v5600 = vmul.f32 %v5589, 1.442695
        %v5601 = vpow.pop %v5600
        %v5602 = vmul.f32 %v5590, 1.442695
        %v5603 = vpow.pop %v5602
        %v5604 = vmul.f32 %v5591, 1.442695
        %v5605 = vpow.pop %v5604
        %v5606 = vmul.f32 %v5592, 1.442695
        %v5607 = vpow.pop %v5606
        %v5608 = vmul.f32 %v5593, 1.442695
        %v5609 = vpow.pop %v5608
        %v5610 = vadd.f32 %v5595, 1.0
        %v5611 = vadd.f32 %v5597, 1.0
        %v5612 = vadd.f32 %v5599, 1.0
        %v5613 = vadd.f32 %v5601, 1.0
        %v5614 = vadd.f32 %v5603, 1.0
        %v5615 = vadd.f32 %v5605, 1.0
        %v5616 = vadd.f32 %v5607, 1.0
        %v5617 = vadd.f32 %v5609, 1.0
        %v5618 = vrcp.pop %v5610
        %v5619 = vmul.f32 %v5610, %v5618
        %v5620 = vsub.f32 1.0, %v5619
        %v5621 = vmul.f32 %v5618, %v5620
        %v5622 = vadd.f32 %v5618, %v5621
        %vm5623 = vweird.f32 %v5610
        %vm5624 = vweird.f32 %v5618
        %vm5625 = vmor %vm5623, %vm5624
        %v5626 = vsel %vm5625, %v5618, %v5622
        %v5627 = vand.u32 2147483647, %v5610
        %vm5628 = vcmp.eq.f32.partialorder %v5627, 8.507059e+37
        %v5629 = vand.u32 %v5610, 2147483648
        %v5630 = vor.u32 1.1754944e-38, %v5629
        %v5631 = vsel %vm5628, %v5630, %v5626
        %v5632 = vmul.f32 1.0, %v5631
        %v5633 = vrcp.pop %v5611
        %v5634 = vmul.f32 %v5611, %v5633
        %v5635 = vsub.f32 1.0, %v5634
        %v5636 = vmul.f32 %v5633, %v5635
        %v5637 = vadd.f32 %v5633, %v5636
        %vm5638 = vweird.f32 %v5611
        %vm5639 = vweird.f32 %v5633
        %vm5640 = vmor %vm5638, %vm5639
        %v5641 = vsel %vm5640, %v5633, %v5637
        %v5642 = vand.u32 2147483647, %v5611
        %vm5643 = vcmp.eq.f32.partialorder %v5642, 8.507059e+37
        %v5644 = vand.u32 %v5611, 2147483648
        %v5645 = vor.u32 1.1754944e-38, %v5644
        %v5646 = vsel %vm5643, %v5645, %v5641
        %v5647 = vmul.f32 1.0, %v5646
        %v5648 = vrcp.pop %v5612
        %v5649 = vmul.f32 %v5612, %v5648
        %v5650 = vsub.f32 1.0, %v5649
        %v5651 = vmul.f32 %v5648, %v5650
        %v5652 = vadd.f32 %v5648, %v5651
        %vm5653 = vweird.f32 %v5612
        %vm5654 = vweird.f32 %v5648
        %vm5655 = vmor %vm5653, %vm5654
        %v5656 = vsel %vm5655, %v5648, %v5652
        %v5657 = vand.u32 2147483647, %v5612
        %vm5658 = vcmp.eq.f32.partialorder %v5657, 8.507059e+37
        %v5659 = vand.u32 %v5612, 2147483648
        %v5660 = vor.u32 1.1754944e-38, %v5659
        %v5661 = vsel %vm5658, %v5660, %v5656
        %v5662 = vmul.f32 1.0, %v5661
        %v5663 = vrcp.pop %v5613
        %v5664 = vmul.f32 %v5613, %v5663
        %v5665 = vsub.f32 1.0, %v5664
        %v5666 = vmul.f32 %v5663, %v5665
        %v5667 = vadd.f32 %v5663, %v5666
        %vm5668 = vweird.f32 %v5613
        %vm5669 = vweird.f32 %v5663
        %vm5670 = vmor %vm5668, %vm5669
        %v5671 = vsel %vm5670, %v5663, %v5667
        %v5672 = vand.u32 2147483647, %v5613
        %vm5673 = vcmp.eq.f32.partialorder %v5672, 8.507059e+37
        %v5674 = vand.u32 %v5613, 2147483648
        %v5675 = vor.u32 1.1754944e-38, %v5674
        %v5676 = vsel %vm5673, %v5675, %v5671
        %v5677 = vmul.f32 1.0, %v5676
        %v5678 = vrcp.pop %v5614
        %v5679 = vmul.f32 %v5614, %v5678
        %v5680 = vsub.f32 1.0, %v5679
        %v5681 = vmul.f32 %v5678, %v5680
        %v5682 = vadd.f32 %v5678, %v5681
        %vm5683 = vweird.f32 %v5614
        %vm5684 = vweird.f32 %v5678
        %vm5685 = vmor %vm5683, %vm5684
        %v5686 = vsel %vm5685, %v5678, %v5682
        %v5687 = vand.u32 2147483647, %v5614
        %vm5688 = vcmp.eq.f32.partialorder %v5687, 8.507059e+37
        %v5689 = vand.u32 %v5614, 2147483648
        %v5690 = vor.u32 1.1754944e-38, %v5689
        %v5691 = vsel %vm5688, %v5690, %v5686
        %v5692 = vmul.f32 1.0, %v5691
        %v5693 = vrcp.pop %v5615
        %v5694 = vmul.f32 %v5615, %v5693
        %v5695 = vsub.f32 1.0, %v5694
        %v5696 = vmul.f32 %v5693, %v5695
        %v5697 = vadd.f32 %v5693, %v5696
        %vm5698 = vweird.f32 %v5615
        %vm5699 = vweird.f32 %v5693
        %vm5700 = vmor %vm5698, %vm5699
        %v5701 = vsel %vm5700, %v5693, %v5697
        %v5702 = vand.u32 2147483647, %v5615
        %vm5703 = vcmp.eq.f32.partialorder %v5702, 8.507059e+37
        %v5704 = vand.u32 %v5615, 2147483648
        %v5705 = vor.u32 1.1754944e-38, %v5704
        %v5706 = vsel %vm5703, %v5705, %v5701
        %v5707 = vmul.f32 1.0, %v5706
        %v5708 = vrcp.pop %v5616
        %v5709 = vmul.f32 %v5616, %v5708
        %v5710 = vsub.f32 1.0, %v5709
        %v5711 = vmul.f32 %v5708, %v5710
        %v5712 = vadd.f32 %v5708, %v5711
        %vm5713 = vweird.f32 %v5616
        %vm5714 = vweird.f32 %v5708
        %vm5715 = vmor %vm5713, %vm5714
        %v5716 = vsel %vm5715, %v5708, %v5712
        %v5717 = vand.u32 2147483647, %v5616
        %vm5718 = vcmp.eq.f32.partialorder %v5717, 8.507059e+37
        %v5719 = vand.u32 %v5616, 2147483648
        %v5720 = vor.u32 1.1754944e-38, %v5719
        %v5721 = vsel %vm5718, %v5720, %v5716
        %v5722 = vmul.f32 1.0, %v5721
        %v5723 = vrcp.pop %v5617
        %v5724 = vmul.f32 %v5617, %v5723
        %v5725 = vsub.f32 1.0, %v5724
        %v5726 = vmul.f32 %v5723, %v5725
        %v5727 = vadd.f32 %v5723, %v5726
        %vm5728 = vweird.f32 %v5617
        %vm5729 = vweird.f32 %v5723
        %vm5730 = vmor %vm5728, %vm5729
        %v5731 = vsel %vm5730, %v5723, %v5727
        %v5732 = vand.u32 2147483647, %v5617
        %vm5733 = vcmp.eq.f32.partialorder %v5732, 8.507059e+37
        %v5734 = vand.u32 %v5617, 2147483648
        %v5735 = vor.u32 1.1754944e-38, %v5734
        %v5736 = vsel %vm5733, %v5735, %v5731
        %v5737 = vmul.f32 1.0, %v5736
        %5739 = vset.pattern.permute.xlu0 0
        %5740 = vperm.xlu0 %5739, %v5632
        %v5741 = vpop.permute.xlu0 %5740
        %5744 = vset.pattern.permute.xlu0 0
        %5745 = vperm.xlu0 %5744, %v5647
        %v5746 = vpop.permute.xlu0 %5745
        %5749 = vset.pattern.permute.xlu0 0
        %5750 = vperm.xlu0 %5749, %v5662
        %v5751 = vpop.permute.xlu0 %5750
        %5754 = vset.pattern.permute.xlu0 0
        %5755 = vperm.xlu0 %5754, %v5677
        %v5756 = vpop.permute.xlu0 %5755
        %5759 = vset.pattern.permute.xlu0 0
        %5760 = vperm.xlu0 %5759, %v5692
        %v5761 = vpop.permute.xlu0 %5760
        %5764 = vset.pattern.permute.xlu0 0
        %5765 = vperm.xlu0 %5764, %v5707
        %v5766 = vpop.permute.xlu0 %5765
        %5769 = vset.pattern.permute.xlu0 0
        %5770 = vperm.xlu0 %5769, %v5722
        %v5771 = vpop.permute.xlu0 %5770
        %5774 = vset.pattern.permute.xlu0 0
        %5775 = vperm.xlu0 %5774, %v5737
        %v5776 = vpop.permute.xlu0 %5775
        %v5778 = vmul.f32 %v5386, %v5741
        %v5779 = vmul.f32 %v5387, %v5746
        %v5780 = vmul.f32 %v5388, %v5751
        %v5781 = vmul.f32 %v5389, %v5756
        %v5782 = vmul.f32 %v5390, %v5761
        %v5783 = vmul.f32 %v5391, %v5766
        %v5784 = vmul.f32 %v5392, %v5771
        %v5785 = vmul.f32 %v5393, %v5776
        %v5786 = vadd.f32 %v5778, %v5779
        %v5787 = vadd.f32 %v5786, %v5780
        %v5788 = vadd.f32 %v5787, %v5781
        %v5789 = vadd.f32 %v5788, %v5782
        %v5790 = vadd.f32 %v5789, %v5783
        %v5791 = vadd.f32 %v5790, %v5784
        %v5792 = vadd.f32 %v5791, %v5785
        %v5793 = vrot.slane %v5792, 4
        %v5794 = vadd.f32 %v5792, %v5793
        %v5795 = vrot.slane %v5794, 2
        %v5796 = vadd.f32 %v5794, %v5795
        %v5797 = vrot.slane %v5796, 1
        %v5798 = vadd.f32 %v5796, %v5797
        %v5799 = vrcp.pop 64.0
        %v5800 = vmul.f32 64.0, %v5799
        %v5801 = vsub.f32 1.0, %v5800
        %v5802 = vmul.f32 %v5799, %v5801
        %v5803 = vadd.f32 %v5799, %v5802
        %vm5804 = vweird.f32 %v5799
        %v5805 = vsel %vm5804, %v5799, %v5803
        %v5806 = vmul.f32 %v5798, %v5805
        %v5807 = vmax.f32 %v5778, %v5782
        %v5808 = vmax.f32 %v5779, %v5783
        %v5809 = vmax.f32 %v5780, %v5784
        %v5810 = vmax.f32 %v5781, %v5785
        %v5811 = vmax.f32 %v5807, %v5808
        %v5812 = vmax.f32 %v5809, %v5810
        %v5813 = vmax.f32 %v5811, %v5812
        %v5814 = vrot.slane %v5813, 4
        %v5815 = vmax.f32 %v5813, %v5814
        %v5816 = vrot.slane %v5815, 2
        %v5817 = vmax.f32 %v5815, %v5816
        %v5818 = vrot.slane %v5817, 1
        %v5819 = vmax.f32 %v5817, %v5818
        %s5820 = sld [smem:[#allocation2 + $0x1c]]
        %v5821 = vstv %s5820
        %v5822 = vmul.f32 %v5806, %v5821
        %s5823 = sld [smem:[#allocation2 + $0x23]]
        %v5824 = vstv %s5823
        %v5825 = vmul.f32 %v5819, %v5824
        %v5826 = vadd.f32 %v5822, %v5825
        %5827 = vrot.lane.b32.xlu0 %v5826, 3
        %v5828 = vpop.permute.xlu0 %5827
        %v5829 = vadd.f32 %v5828, 0.0
        %s5830 = sld [smem:[#allocation2 + $0x1d]]
        %v5831 = vstv %s5830
        %v5832 = vmul.f32 %v5806, %v5831
        %s5833 = sld [smem:[#allocation2 + $0x24]]
        %v5834 = vstv %s5833
        %v5835 = vmul.f32 %v5819, %v5834
        %v5836 = vadd.f32 %v5832, %v5835
        %5837 = vrot.lane.b32.xlu0 %v5836, 2
        %v5838 = vpop.permute.xlu0 %5837
        %v5839 = vadd.f32 %v5829, %v5838
        %s5840 = sld [smem:[#allocation2 + $0x1e]]
        %v5841 = vstv %s5840
        %v5842 = vmul.f32 %v5806, %v5841
        %s5843 = sld [smem:[#allocation2 + $0x25]]
        %v5844 = vstv %s5843
        %v5845 = vmul.f32 %v5819, %v5844
        %v5846 = vadd.f32 %v5842, %v5845
        %5847 = vrot.lane.b32.xlu0 %v5846, 1
        %v5848 = vpop.permute.xlu0 %5847
        %v5849 = vadd.f32 %v5839, %v5848
        %s5850 = sld [smem:[#allocation2 + $0x1f]]
        %v5851 = vstv %s5850
        %v5852 = vmul.f32 %v5806, %v5851
        %s5853 = sld [smem:[#allocation2 + $0x26]]
        %v5854 = vstv %s5853
        %v5855 = vmul.f32 %v5819, %v5854
        %v5856 = vadd.f32 %v5852, %v5855
        %v5857 = vadd.f32 %v5849, %v5856
        %s5858 = sld [smem:[#allocation2 + $0x20]]
        %v5859 = vstv %s5858
        %v5860 = vmul.f32 %v5806, %v5859
        %s5861 = sld [smem:[#allocation2 + $0x27]]
        %v5862 = vstv %s5861
        %v5863 = vmul.f32 %v5819, %v5862
        %v5864 = vadd.f32 %v5860, %v5863
        %5865 = vrot.lane.b32.xlu0 %v5864, 127
        %v5866 = vpop.permute.xlu0 %5865
        %v5867 = vadd.f32 %v5857, %v5866
        %s5868 = sld [smem:[#allocation2 + $0x21]]
        %v5869 = vstv %s5868
        %v5870 = vmul.f32 %v5806, %v5869
        %s5871 = sld [smem:[#allocation2 + $0x28]]
        %v5872 = vstv %s5871
        %v5873 = vmul.f32 %v5819, %v5872
        %v5874 = vadd.f32 %v5870, %v5873
        %5875 = vrot.lane.b32.xlu0 %v5874, 126
        %v5876 = vpop.permute.xlu0 %5875
        %v5877 = vadd.f32 %v5867, %v5876
        %s5878 = sld [smem:[#allocation2 + $0x22]]
        %v5879 = vstv %s5878
        %v5880 = vmul.f32 %v5806, %v5879
        %s5881 = sld [smem:[#allocation2 + $0x29]]
        %v5882 = vstv %s5881
        %v5883 = vmul.f32 %v5819, %v5882
        %v5884 = vadd.f32 %v5880, %v5883
        %5885 = vrot.lane.b32.xlu0 %v5884, 125
        %v5886 = vpop.permute.xlu0 %5885
        %v5887 = vadd.f32 %v5877, %v5886
        %v5888 = vsub.f32 0.0, %v5887
        %v5889 = vmul.f32 %v5888, 1.442695
        %v5890 = vpow.pop %v5889
        %v5891 = vadd.f32 %v5890, 1.0
        %v5892 = vrcp.pop %v5891
        %v5893 = vmul.f32 %v5891, %v5892
        %v5894 = vsub.f32 1.0, %v5893
        %v5895 = vmul.f32 %v5892, %v5894
        %v5896 = vadd.f32 %v5892, %v5895
        %vm5897 = vweird.f32 %v5891
        %vm5898 = vweird.f32 %v5892
        %vm5899 = vmor %vm5897, %vm5898
        %v5900 = vsel %vm5899, %v5892, %v5896
        %v5901 = vand.u32 2147483647, %v5891
        %vm5902 = vcmp.eq.f32.partialorder %v5901, 8.507059e+37
        %v5903 = vand.u32 %v5891, 2147483648
        %v5904 = vor.u32 1.1754944e-38, %v5903
        %v5905 = vsel %vm5902, %v5904, %v5900
        %v5906 = vmul.f32 1.0, %v5905
        %v5907 = vperm.slane %v5906, 0
        %v5908 = vmul.f32 %v5778, %v5907
        %v5909 = vmul.f32 %v5779, %v5907
        %v5910 = vmul.f32 %v5780, %v5907
        %v5911 = vmul.f32 %v5781, %v5907
        %v5912 = vmul.f32 %v5782, %v5907
        %v5913 = vmul.f32 %v5783, %v5907
        %v5914 = vmul.f32 %v5784, %v5907
        %v5915 = vmul.f32 %v5785, %v5907
        %v5916 = vadd.f32 %v5908, %v5909
        %v5917 = vadd.f32 %v5916, %v5910
        %v5918 = vadd.f32 %v5917, %v5911
        %v5919 = vadd.f32 %v5918, %v5912
        %v5920 = vadd.f32 %v5919, %v5913
        %v5921 = vadd.f32 %v5920, %v5914
        %v5922 = vadd.f32 %v5921, %v5915
        %5923 = vadd.xlane.f32.xlu0 %v5922
        %v5924 = vpop.xlane.xlu0 %5923
        %v5925 = vrot.slane %v5924, 4
        %v5926 = vadd.f32 %v5924, %v5925
        %v5927 = vrot.slane %v5926, 2
        %v5928 = vadd.f32 %v5926, %v5927
        %v5929 = vrot.slane %v5928, 1
        %v5930 = vadd.f32 %v5928, %v5929
        %s5931 = vtos %v5930
        %v5932 = vmul.f32 %v5908, %v5908
        %v5933 = vmul.f32 %v5909, %v5909
        %v5934 = vmul.f32 %v5910, %v5910
        %v5935 = vmul.f32 %v5911, %v5911
        %v5936 = vmul.f32 %v5912, %v5912
        %v5937 = vmul.f32 %v5913, %v5913
        %v5938 = vmul.f32 %v5914, %v5914
        %v5939 = vmul.f32 %v5915, %v5915
        %v5940 = vadd.f32 %v5932, %v5933
        %v5941 = vadd.f32 %v5940, %v5934
        %v5942 = vadd.f32 %v5941, %v5935
        %v5943 = vadd.f32 %v5942, %v5936
        %v5944 = vadd.f32 %v5943, %v5937
        %v5945 = vadd.f32 %v5944, %v5938
        %v5946 = vadd.f32 %v5945, %v5939
        %5947 = vadd.xlane.f32.xlu0 %v5946
        %v5948 = vpop.xlane.xlu0 %5947
        %v5949 = vrot.slane %v5948, 4
        %v5950 = vadd.f32 %v5948, %v5949
        %v5951 = vrot.slane %v5950, 2
        %v5952 = vadd.f32 %v5950, %v5951
        %v5953 = vrot.slane %v5952, 1
        %v5954 = vadd.f32 %v5952, %v5953
        %s5955 = vtos %v5954
        %s5956 = smul.f32 %s5931, 0.001953125
        %s5957 = smul.f32 %s5931, %s5956
        %s5958 = ssub.f32 %s5955, %s5957
        %v5959 = vrcp.pop 511.0
        %v5960 = vmul.f32 511.0, %v5959
        %v5961 = vsub.f32 1.0, %v5960
        %v5962 = vmul.f32 %v5959, %v5961
        %v5963 = vadd.f32 %v5959, %v5962
        %vm5964 = vweird.f32 %v5959
        %v5965 = vsel %vm5964, %v5959, %v5963
        %s5966 = vtos %v5965
        %s5967 = smul.f32 %s5958, %s5966
        %s5968 = smax.f32 %s5967, 0.0
        %v5969 = vstv %s5968
        %v5970 = vrsqrt.pop %v5969
        %v5971 = vmul.f32 %v5970, %v5969
        %v5972 = vmul.f32 %v5971, %v5970
        %v5973 = vmul.f32 0.5, %v5972
        %v5974 = vsub.f32 1.5, %v5973
        %v5975 = vmul.f32 %v5970, %v5974
        %v5976 = vmul.f32 %v5969, %v5975
        %vm5977 = vcmp.eq.f32.partialorder %v5969, inf
        %v5978 = vsel %vm5977, %v5969, %v5976
        %vm5979 = vcmp.eq.f32.partialorder %v5969, 0.0
        %v5980 = vand.u32 %v5969, 2147483648
        %v5981 = vsel %vm5979, %v5980, %v5978
        %s5982 = vtos %v5981
        %s5983 = sadd.f32 %s5982, 1e-05
        %v5984 = vstv %s5983
        %v5985 = vrcp.pop %v5984
        %v5986 = vmul.f32 %v5984, %v5985
        %v5987 = vsub.f32 1.0, %v5986
        %v5988 = vmul.f32 %v5985, %v5987
        %v5989 = vadd.f32 %v5985, %v5988
        %vm5990 = vweird.f32 %v5984
        %vm5991 = vweird.f32 %v5985
        %vm5992 = vmor %vm5990, %vm5991
        %v5993 = vsel %vm5992, %v5985, %v5989
        %v5994 = vand.u32 2147483647, %v5984
        %vm5995 = vcmp.eq.f32.partialorder %v5994, 8.507059e+37
        %v5996 = vand.u32 %v5984, 2147483648
        %v5997 = vor.u32 1.1754944e-38, %v5996
        %v5998 = vsel %vm5995, %v5997, %v5993
        %s5999 = vtos %v5998
        %v6000 = vstv %s5956
        %v6001 = vsub.f32 %v5908, %v6000
        %v6002 = vsub.f32 %v5909, %v6000
        %v6003 = vsub.f32 %v5910, %v6000
        %v6004 = vsub.f32 %v5911, %v6000
        %v6005 = vsub.f32 %v5912, %v6000
        %v6006 = vsub.f32 %v5913, %v6000
        %v6007 = vsub.f32 %v5914, %v6000
        %v6008 = vsub.f32 %v5915, %v6000
        %v6009 = vstv %s5999
        %v6010 = vmul.f32 %v6001, %v6009
        %v6011 = vmul.f32 %v6002, %v6009
        %v6012 = vmul.f32 %v6003, %v6009
        %v6013 = vmul.f32 %v6004, %v6009
        %v6014 = vmul.f32 %v6005, %v6009
        %v6015 = vmul.f32 %v6006, %v6009
        %v6016 = vmul.f32 %v6007, %v6009
        %v6017 = vmul.f32 %v6008, %v6009
        %v6018 = vsel %vm592, 1, 0
        %vm6019 = vcmp.eq.s32.totalorder %v6018, 1
        %v6020 = vsel %vm6019, %v6010, -1e+30
        %v6021 = vsel %vm6019, %v6011, -1e+30
        %v6022 = vsel %vm6019, %v6012, -1e+30
        %v6023 = vsel %vm6019, %v6013, -1e+30
        %v6024 = vsel %vm6019, %v6014, -1e+30
        %v6025 = vsel %vm6019, %v6015, -1e+30
        %v6026 = vsel %vm6019, %v6016, -1e+30
        %v6027 = vsel %vm6019, %v6017, -1e+30
        %6028 = vmax.xlane.f32.xlu0 %v6020
        %v6029 = vpop.xlane.xlu0 %6028
        %6030 = vmax.xlane.f32.xlu0 %v6021
        %v6031 = vpop.xlane.xlu0 %6030
        %6032 = vmax.xlane.f32.xlu0 %v6022
        %v6033 = vpop.xlane.xlu0 %6032
        %6034 = vmax.xlane.f32.xlu0 %v6023
        %v6035 = vpop.xlane.xlu0 %6034
        %6036 = vmax.xlane.f32.xlu0 %v6024
        %v6037 = vpop.xlane.xlu0 %6036
        %6038 = vmax.xlane.f32.xlu0 %v6025
        %v6039 = vpop.xlane.xlu0 %6038
        %6040 = vmax.xlane.f32.xlu0 %v6026
        %v6041 = vpop.xlane.xlu0 %6040
        %6042 = vmax.xlane.f32.xlu0 %v6027
        %v6043 = vpop.xlane.xlu0 %6042
        %vm6044 = vcmask 7168
        %6045 = vst.msk [vmem:[%s589] sm:$0xff] %vm6044, %v6029
        %6046 = vst.msk [vmem:[%s589 + $0x8] sm:$0xff] %vm6044, %v6031
        %6047 = vst.msk [vmem:[%s589 + $0x10] sm:$0xff] %vm6044, %v6033
        %6048 = vst.msk [vmem:[%s589 + $0x18] sm:$0xff] %vm6044, %v6035
        %6049 = vst.msk [vmem:[%s589 + $0x20] sm:$0xff] %vm6044, %v6037
        %6050 = vst.msk [vmem:[%s589 + $0x28] sm:$0xff] %vm6044, %v6039
        %6051 = vst.msk [vmem:[%s589 + $0x30] sm:$0xff] %vm6044, %v6041
        %6052 = vst.msk [vmem:[%s589 + $0x38] sm:$0xff] %vm6044, %v6043
        %p6053 = scmp.lt.s32.totalorder %s29, 1
        %s6054 = scalar_select %p6053, %s29, 1
        %s6055 = smul.addr %s6054, 8
        %s6056 = smul.addr %s6055, 8
        %s6057 = scalar_lea.vmem %s16, %s6056
        // Predicated region
        $region93: #{tpu_custom_call.1} parent=83 // pred_check
          %p6058 = pneg %p398
        $region94: #{tpu_custom_call.1} parent=83 // pred_check_branch
          %6060 = sbr.rel (%p6058) target = $region96
        $region95: #{tpu_custom_call.1} parent=83 // pred_region
          _
        $region96: #{tpu_custom_call.1} parent=83 // pred_fallthru
          _
      $region84: #{tpu_custom_call.1} parent=5 // pred_fallthru
        _
      %p6061 = scmp.le.s32.totalorder 2, %s24
      // Predicated region
      $region97: #{tpu_custom_call.1} parent=5 // pred_check
        %p6062 = pneg %p6061
      $region98: #{tpu_custom_call.1} parent=5 // pred_check_branch
        %6064 = sbr.rel (%p6062) target = $region100
      $region99: #{tpu_custom_call.1} parent=5 // pred_region
        %s6065 = ssub.s32 %s24, 2
        // Predicated region
        $region101: #{tpu_custom_call.1} parent=99 // pred_check
          %p6066 = pneg %p404
        $region102: #{tpu_custom_call.1} parent=99 // pred_check_branch
          %6068 = sbr.rel (%p6066) target = $region104
        $region103: #{tpu_custom_call.1} parent=99 // pred_region
          %p6069 = scmp.lt.s32.totalorder %s30, 1
          %s6070 = scalar_select %p6069, %s30, 1
          %s6071 = smul.addr %s6070, 8
          %s6072 = smul.addr %s6071, 8
          %s6073 = scalar_lea.vmem %s16, %s6072
        $region104: #{tpu_custom_call.1} parent=99 // pred_fallthru
          _
      $region100: #{tpu_custom_call.1} parent=5 // pred_fallthru
        _
    $region6: #{tpu_custom_call.1} parent=1 // loop_footer
      %s28 = sadd.s32 1, %s24
    $region7: #{tpu_custom_call.1} parent=1 // loop_footer_branch
      %23 = sbr.rel target = $region3
    $region8: #{tpu_custom_call.1} parent=1 // loop_exit
      _
    %6074 = vsyncpa [#allocation3], 1
    %s6075 = scalar_lea.sflag [#allocation3], 1
    %6076 = vsyncpa %s6075, 1
    %6077 = vsyncpa [#allocation4], 1
    %s6078 = scalar_lea.sflag [#allocation4], 1
    %6079 = vsyncpa %s6078, 1

</llo_original>
